<compile_context>
chip_gen: v7x
topology: tpu7x:2x2x1
jax: 0.10.0
libtpu: 0.0.40
codegen_flags: <defaults>
</compile_context>

<pallas_src>
import functools
import math

import jax
import jax.numpy as jnp
from jax.experimental import pallas as pl
from jax.experimental.pallas import tpu as pltpu

BN_EPS = 1e-5
BN_SCALE = 1.0 / math.sqrt(1.0 + BN_EPS)   # eval-mode BN with fresh running stats
MXU_DTYPE = jnp.bfloat16                   # MXU operand dtype (f32 accumulation)
LANE = 128                                 # pad Cout to one full vreg lane width


# --------------------------------------------------------------------------
# Pallas kernels
# --------------------------------------------------------------------------
def _accum_taps(tap, w, oh, ow):
    """Sum of 9 shifted (oh*ow, cin) @ (cin, npad) MXU dots, f32 accumulation."""
    npad = w.shape[-1]
    acc = jnp.zeros((oh * ow, npad), jnp.float32)
    for kh in range(3):
        for kw in range(3):
            t = tap(kh, kw).reshape(oh * ow, -1).astype(MXU_DTYPE)
            acc = acc + jnp.dot(t, w[kh * 3 + kw],
                                preferred_element_type=jnp.float32)
    return acc


def conv_s1_sum_kernel(x_ref, wk_ref, bk_ref, s_ref, *, oh, ow):
    """stride-1 ConvBN; emits only per-batch spatial column sums (avg-pool fusion)."""
    x = x_ref[0]                                   # (H+2, W+2, Cin) f32
    w = wk_ref[...]                                # (9, Cin, Npad)  bf16 (BN folded)
    acc = _accum_taps(lambda kh, kw: x[kh:kh + oh, kw:kw + ow, :], w, oh, ow)
    acc = acc + bk_ref[...]
    s_ref[...] = jnp.sum(acc, axis=0, keepdims=True).reshape(s_ref.shape)


def conv_s2_sum_kernel(xph_ref, wk_ref, bk_ref, s_ref, *, oh, ow):
    """stride-2 ConvBN on a pixel-unshuffled input; emits only spatial sums."""
    xph = xph_ref[0]                               # (2, 2, H/2+1, W/2+1, Cin) f32
    w = wk_ref[...]

    def tap(kh, kw):                               # every tap is a static slice
        return xph[kh % 2, kw % 2,
                   kh // 2:kh // 2 + oh,
                   kw // 2:kw // 2 + ow, :]

    acc = _accum_taps(tap, w, oh, ow) + bk_ref[...]
    s_ref[...] = jnp.sum(acc, axis=0, keepdims=True).reshape(s_ref.shape)


def conv_s1_gated_kernel(x_ref, g_ref, wk_ref, bk_ref, o_ref, *, oh, ow):
    """stride-1 ConvBN of (x * gate); gate broadcast over H, W; lane-dense output."""
    x = x_ref[0] * g_ref[0, 0]                     # fused channel gate (f32)
    w = wk_ref[...]
    acc = _accum_taps(lambda kh, kw: x[kh:kh + oh, kw:kw + ow, :], w, oh, ow)
    acc = acc + bk_ref[...]
    o_ref[...] = acc.reshape(1, oh, ow, acc.shape[-1])


def gate_kernel(s1_ref, s2_ref, wm_ref, bm_ref, wca_ref, wcb_ref, bc_ref, g_ref):
    """relu(x1*x2)->linear_multiple, relu(linear_concat), sigmoid gate.

    linear_concat is computed as x1 @ Wa + x2 @ Wb (no in-kernel concatenate).
    """
    x1 = s1_ref[...]                               # (B, 2C) pooled conv1
    x2 = s2_ref[...]                               # (B, 2C) pooled conv2

    def dot(a, wt):
        return jnp.dot(a.astype(MXU_DTYPE), wt.astype(MXU_DTYPE),
                       preferred_element_type=jnp.float32)

    z = jnp.maximum(x1 * x2, 0.0)
    z = dot(z, wm_ref[...]) + bm_ref[...]
    y = dot(x1, wca_ref[...]) + dot(x2, wcb_ref[...]) + bc_ref[...]
    y = jnp.maximum(y, 0.0)
    g_ref[...] = jax.nn.sigmoid(z * y)


# --------------------------------------------------------------------------
# Host-side wrappers
# --------------------------------------------------------------------------
def _fold_conv_bn(w_hwio, conv_bias, npad):
    """Fold eval-mode BN into conv weight/bias; zero-pad Cout to `npad` lanes."""
    kh, kw, cin, cout = w_hwio.shape
    w = (w_hwio * BN_SCALE).reshape(kh * kw, cin, cout)
    w = jnp.pad(w, ((0, 0), (0, 0), (0, npad - cout))).astype(MXU_DTYPE)
    b = jnp.pad(conv_bias * BN_SCALE, (0, npad - cout))
    return w, b.reshape(1, npad).astype(jnp.float32)


def _conv_compiler_params():
    return pltpu.CompilerParams(
        dimension_semantics=("parallel",),      # batch axis -> both TCs on v7x
        vmem_limit_bytes=32 * 1024 * 1024,      # tiles sized well under 32 MiB
    )


def conv_s2_pooled_sums(x, wk, bk):
    """stride-2 ConvBN; returns spatial sums of the padded-Cout output, (B,1,NPAD)."""
    B, H, W, C = x.shape
    assert H % 2 == 0 and W % 2 == 0
    npad = wk.shape[-1]
    oh, ow = H // 2, W // 2
    xp = jnp.pad(x, ((0, 0), (1, 1), (1, 1), (0, 0)))
    # pixel-unshuffle: xph[b, i, j] = xp[b, i::2, j::2]  (phase decomposition)
    xph = jnp.stack(
        [jnp.stack([xp[:, i::2, j::2, :] for j in range(2)], axis=1)
         for i in range(2)], axis=1)            # (B, 2, 2, H/2+1, W/2+1, C)
    hp2, wp2 = xph.shape[3], xph.shape[4]
    kern = functools.partial(conv_s2_sum_kernel, oh=oh, ow=ow)
    return pl.pallas_call(
        kern,
        grid=(B,),
        in_specs=[
            pl.BlockSpec((1, 2, 2, hp2, wp2, C), lambda b: (b, 0, 0, 0, 0, 0)),
            pl.BlockSpec((9, C, npad), lambda b: (0, 0, 0)),
            pl.BlockSpec((1, npad), lambda b: (0, 0)),
        ],
        out_specs=pl.BlockSpec((1, 1, npad), lambda b: (b, 0, 0)),
        out_shape=jax.ShapeDtypeStruct((B, 1, npad), jnp.float32),
        compiler_params=_conv_compiler_params(),
        cost_estimate=pl.CostEstimate(
            flops=2 * B * oh * ow * 9 * C * npad, transcendentals=0,
            bytes_accessed=xph.size * 4 + wk.size * 2 + B * npad * 4),
    )(xph, wk, bk)


def conv_s1_pooled_sums(x, wk, bk):
    """stride-1 ConvBN; returns spatial sums of the padded-Cout output, (B,1,NPAD)."""
    B, H, W, C = x.shape
    npad = wk.shape[-1]
    xp = jnp.pad(x, ((0, 0), (1, 1), (1, 1), (0, 0)))
    kern = functools.partial(conv_s1_sum_kernel, oh=H, ow=W)
    return pl.pallas_call(
        kern,
        grid=(B,),
        in_specs=[
            pl.BlockSpec((1, H + 2, W + 2, C), lambda b: (b, 0, 0, 0)),
            pl.BlockSpec((9, C, npad), lambda b: (0, 0, 0)),
            pl.BlockSpec((1, npad), lambda b: (0, 0)),
        ],
        out_specs=pl.BlockSpec((1, 1, npad), lambda b: (b, 0, 0)),
        out_shape=jax.ShapeDtypeStruct((B, 1, npad), jnp.float32),
        compiler_params=_conv_compiler_params(),
        cost_estimate=pl.CostEstimate(
            flops=2 * B * H * W * 9 * C * npad, transcendentals=0,
            bytes_accessed=xp.size * 4 + wk.size * 2 + B * npad * 4),
    )(xp, wk, bk)


def conv_s1_gated(x, gate, wk, bk):
    """stride-1 ConvBN of (x * gate); returns full (B, H, W, NPAD) map."""
    B, H, W, C = x.shape
    npad = wk.shape[-1]
    xp = jnp.pad(x, ((0, 0), (1, 1), (1, 1), (0, 0)))
    g3 = gate.reshape(B, 1, C)
    kern = functools.partial(conv_s1_gated_kernel, oh=H, ow=W)
    return pl.pallas_call(
        kern,
        grid=(B,),
        in_specs=[
            pl.BlockSpec((1, H + 2, W + 2, C), lambda b: (b, 0, 0, 0)),
            pl.BlockSpec((1, 1, C), lambda b: (b, 0, 0)),
            pl.BlockSpec((9, C, npad), lambda b: (0, 0, 0)),
            pl.BlockSpec((1, npad), lambda b: (0, 0)),
        ],
        out_specs=pl.BlockSpec((1, H, W, npad), lambda b: (b, 0, 0, 0)),
        out_shape=jax.ShapeDtypeStruct((B, H, W, npad), jnp.float32),
        compiler_params=_conv_compiler_params(),
        cost_estimate=pl.CostEstimate(
            flops=2 * B * H * W * 9 * C * npad, transcendentals=0,
            bytes_accessed=xp.size * 4 + wk.size * 2 + B * H * W * npad * 4),
    )(xp, g3, wk, bk)


def t_layer_forward(x, p):
    B, H, W, C = x.shape
    C2 = p["w1"].shape[-1]
    out_c = p["w3"].shape[-1]
    npad = LANE

    w1, b1 = _fold_conv_bn(p["w1"], p["b1"], npad)
    w2, b2 = _fold_conv_bn(p["w2"], p["b2"], npad)
    w3, b3 = _fold_conv_bn(p["w3"], p["b3"], npad)

    # conv1 (stride 2) / conv2 (stride 1): only their global-average pools are
    # used downstream, so the kernels emit fused spatial sums only.
    sums1 = conv_s2_pooled_sums(x, w1, b1)          # (B, 1, npad)
    sums2 = conv_s1_pooled_sums(x, w2, b2)          # (B, 1, npad)
    s1 = sums1[:, 0, :C2] * (1.0 / ((H // 2) * (W // 2)))   # avg_pool(conv1)
    s2 = sums2[:, 0, :C2] * (1.0 / (H * W))                 # avg_pool(conv2)

    gate = pl.pallas_call(
        gate_kernel,
        out_shape=jax.ShapeDtypeStruct((B, C), jnp.float32),
    )(s1, s2,
      p["w_mul"], p["b_mul"].reshape(1, C),
      p["w_cat"][:C2], p["w_cat"][C2:], p["b_cat"].reshape(1, C))

    # conv3 with the channel gate fused into its prologue.
    y3 = conv_s1_gated(x, gate, w3, b3)             # (B, H, W, npad)
    return y3[..., :out_c]


# --------------------------------------------------------------------------
# Pure-JAX references (correctness checks only)
# --------------------------------------------------------------------------
def _ref_forward(x, p, mxu_dtype=None):
    """mxu_dtype=None: exact f32 module semantics.
    mxu_dtype=bf16:   mirrors the kernel's MXU operand quantization exactly."""
    hp = jax.lax.Precision.HIGHEST

    def q(a):
        return a if mxu_dtype is None else a.astype(mxu_dtype).astype(jnp.float32)

    def conv_bn(inp, w, b, stride):
        y = jax.lax.conv_general_dilated(
            q(inp), q(w * BN_SCALE), (stride, stride), ((1, 1), (1, 1)),
            dimension_numbers=("NHWC", "HWIO", "NHWC"),
            precision=hp, preferred_element_type=jnp.float32)
        return y + b * BN_SCALE

    def dot(a, wt):
        return jnp.dot(q(a), q(wt), precision=hp,
                       preferred_element_type=jnp.float32)

    C2 = p["w1"].shape[-1]
    x1 = conv_bn(x, p["w1"], p["b1"], 2)
    x2 = conv_bn(x, p["w2"], p["b2"], 1)
    p1 = x1.mean(axis=(1, 2))
    p2 = x2.mean(axis=(1, 2))
    z = dot(jnp.maximum(p1 * p2, 0.0), p["w_mul"]) + p["b_mul"]
    y = jnp.maximum(dot(p1, p["w_cat"][:C2]) + dot(p2, p["w_cat"][C2:])
                    + p["b_cat"], 0.0)
    g = jax.nn.sigmoid(z * y)
    return conv_bn(x * g[:, None, None, :], p["w3"], p["b3"], 1)


# --------------------------------------------------------------------------
# Main
# --------------------------------------------------------------------------
if __name__ == "__main__":
    B, C, H, W = 2, 4, 16, 16
    RATIO, OUT_C = 2, 8
    C2 = C * RATIO

    key = jax.random.PRNGKey(0)
    ks = jax.random.split(key, 11)
    x = jax.random.normal(ks[0], (B, H, W, C), jnp.float32)

    params = {
        "w1": jax.random.normal(ks[1], (3, 3, C, C2), jnp.float32) * 0.1,
        "b1": jax.random.normal(ks[2], (C2,), jnp.float32) * 0.1,
        "w2": jax.random.normal(ks[3], (3, 3, C, C2), jnp.float32) * 0.1,
        "b2": jax.random.normal(ks[4], (C2,), jnp.float32) * 0.1,
        "w_cat": jax.random.normal(ks[5], (2 * C2, C), jnp.float32) * 0.1,
        "b_cat": jax.random.normal(ks[6], (C,), jnp.float32) * 0.1,
        "w_mul": jax.random.normal(ks[7], (C2, C), jnp.float32) * 0.1,
        "b_mul": jax.random.normal(ks[8], (C,), jnp.float32) * 0.1,
        "w3": jax.random.normal(ks[9], (3, 3, C, OUT_C), jnp.float32) * 0.1,
        "b3": jax.random.normal(ks[10], (OUT_C,), jnp.float32) * 0.1,
    }

    out = jax.block_until_ready(jax.jit(t_layer_forward)(x, params))
    assert out.shape == (B, H, W, OUT_C), out.shape

    # Tight structural check vs a reference that mirrors the bf16 MXU operands.
    ref_mirror = jax.block_until_ready(_ref_forward(x, params, mxu_dtype=MXU_DTYPE))
    assert jnp.allclose(out, ref_mirror, rtol=1e-3, atol=1e-3), \
        "mismatch vs bf16-mirrored reference"

    # Loose semantic check vs the exact f32 module math (bf16 only on MXU operands).
    ref_f32 = jax.block_until_ready(_ref_forward(x, params))
    assert jnp.allclose(out, ref_f32, rtol=2e-2, atol=1e-2), \
        "mismatch vs f32 reference"

    print("KERNEL_OK")
</pallas_src>

<mosaic_0001>
module attributes {stable_mosaic.version = 11 : i64} {
  func.func @conv_s2_sum_kernel(%arg0: i32, %arg1: memref<1x2x2x9x9x4xf32, #tpu.memory_space<vmem>>, %arg2: memref<9x4x128xbf16, #tpu.memory_space<vmem>>, %arg3: memref<1x128xf32, #tpu.memory_space<vmem>>, %arg4: memref<1x1x128xf32, #tpu.memory_space<vmem>>) attributes {dimension_semantics = [#tpu.dimension_semantics<parallel>], iteration_bounds = array<i64: 2>, scalar_prefetch = 0 : i64, scratch_operands = 0 : i64, tpu.core_type = #tpu.core_type<tc>, window_params = [{transform_indices = @transform_0, window_bounds = array<i64: 1, 2, 2, 9, 9, 4>}, {pipeline_mode = #tpu.pipeline_mode<synchronous>, transform_indices = @transform_1, window_bounds = array<i64: 9, 4, 128>}, {pipeline_mode = #tpu.pipeline_mode<synchronous>, transform_indices = @transform_2, window_bounds = array<i64: 1, 128>}, {transform_indices = @transform_3, window_bounds = array<i64: 1, 1, 128>}]} {
    %c0 = arith.constant 0 : index
    %c0_0 = arith.constant 0 : index
    %c0_1 = arith.constant 0 : index
    %c0_2 = arith.constant 0 : index
    %c0_3 = arith.constant 0 : index
    %c0_4 = arith.constant 0 : index
    %0 = vector.load %arg1[%c0, %c0_0, %c0_1, %c0_2, %c0_3, %c0_4] : memref<1x2x2x9x9x4xf32, #tpu.memory_space<vmem>>, vector<1x2x2x9x9x4xf32>
    %1 = vector.shape_cast %0 : vector<1x2x2x9x9x4xf32> to vector<2x2x9x9x4xf32>
    %c0_5 = arith.constant 0 : index
    %c0_6 = arith.constant 0 : index
    %c0_7 = arith.constant 0 : index
    %2 = vector.load %arg2[%c0_5, %c0_6, %c0_7] : memref<9x4x128xbf16, #tpu.memory_space<vmem>>, vector<9x4x128xbf16>
    %cst = arith.constant 0.000000e+00 : f32
    %3 = vector.broadcast %cst : f32 to vector<64x128xf32>
    %4 = vector.extract_strided_slice %1 {offsets = [0, 0, 0, 0, 0], sizes = [1, 1, 8, 8, 4], strides = [1, 1, 1, 1, 1]} : vector<2x2x9x9x4xf32> to vector<1x1x8x8x4xf32>
    %5 = vector.shape_cast %4 : vector<1x1x8x8x4xf32> to vector<8x8x4xf32>
    %6 = vector.shape_cast %5 : vector<8x8x4xf32> to vector<64x4xf32>
    %7 = arith.truncf %6 : vector<64x4xf32> to vector<64x4xbf16>
    %8 = vector.extract_strided_slice %2 {offsets = [0, 0, 0], sizes = [1, 4, 128], strides = [1, 1, 1]} : vector<9x4x128xbf16> to vector<1x4x128xbf16>
    %9 = vector.shape_cast %8 : vector<1x4x128xbf16> to vector<4x128xbf16>
    %cst_8 = arith.constant dense<0.000000e+00> : vector<64x128xf32>
    %10 = tpu.matmul %7, %9, %cst_8 {dimension_numbers = #tpu.dot_dimension_numbers<[1], [0], [0], [1], [0, 0, 1, 1], [], []>} : vector<64x4xbf16>, vector<4x128xbf16>, vector<64x128xf32> -> vector<64x128xf32>
    %11 = arith.addf %3, %10 : vector<64x128xf32>
    %12 = vector.extract_strided_slice %1 {offsets = [0, 1, 0, 0, 0], sizes = [1, 1, 8, 8, 4], strides = [1, 1, 1, 1, 1]} : vector<2x2x9x9x4xf32> to vector<1x1x8x8x4xf32>
    %13 = vector.shape_cast %12 : vector<1x1x8x8x4xf32> to vector<8x8x4xf32>
    %14 = vector.shape_cast %13 : vector<8x8x4xf32> to vector<64x4xf32>
    %15 = arith.truncf %14 : vector<64x4xf32> to vector<64x4xbf16>
    %16 = vector.extract_strided_slice %2 {offsets = [1, 0, 0], sizes = [1, 4, 128], strides = [1, 1, 1]} : vector<9x4x128xbf16> to vector<1x4x128xbf16>
    %17 = vector.shape_cast %16 : vector<1x4x128xbf16> to vector<4x128xbf16>
    %cst_9 = arith.constant dense<0.000000e+00> : vector<64x128xf32>
    %18 = tpu.matmul %15, %17, %cst_9 {dimension_numbers = #tpu.dot_dimension_numbers<[1], [0], [0], [1], [0, 0, 1, 1], [], []>} : vector<64x4xbf16>, vector<4x128xbf16>, vector<64x128xf32> -> vector<64x128xf32>
    %19 = arith.addf %11, %18 : vector<64x128xf32>
    %20 = vector.extract_strided_slice %1 {offsets = [0, 0, 0, 1, 0], sizes = [1, 1, 8, 8, 4], strides = [1, 1, 1, 1, 1]} : vector<2x2x9x9x4xf32> to vector<1x1x8x8x4xf32>
    %21 = vector.shape_cast %20 : vector<1x1x8x8x4xf32> to vector<8x8x4xf32>
    %22 = vector.shape_cast %21 : vector<8x8x4xf32> to vector<64x4xf32>
    %23 = arith.truncf %22 : vector<64x4xf32> to vector<64x4xbf16>
    %24 = vector.extract_strided_slice %2 {offsets = [2, 0, 0], sizes = [1, 4, 128], strides = [1, 1, 1]} : vector<9x4x128xbf16> to vector<1x4x128xbf16>
    %25 = vector.shape_cast %24 : vector<1x4x128xbf16> to vector<4x128xbf16>
    %cst_10 = arith.constant dense<0.000000e+00> : vector<64x128xf32>
    %26 = tpu.matmul %23, %25, %cst_10 {dimension_numbers = #tpu.dot_dimension_numbers<[1], [0], [0], [1], [0, 0, 1, 1], [], []>} : vector<64x4xbf16>, vector<4x128xbf16>, vector<64x128xf32> -> vector<64x128xf32>
    %27 = arith.addf %19, %26 : vector<64x128xf32>
    %28 = vector.extract_strided_slice %1 {offsets = [1, 0, 0, 0, 0], sizes = [1, 1, 8, 8, 4], strides = [1, 1, 1, 1, 1]} : vector<2x2x9x9x4xf32> to vector<1x1x8x8x4xf32>
    %29 = vector.shape_cast %28 : vector<1x1x8x8x4xf32> to vector<8x8x4xf32>
    %30 = vector.shape_cast %29 : vector<8x8x4xf32> to vector<64x4xf32>
    %31 = arith.truncf %30 : vector<64x4xf32> to vector<64x4xbf16>
    %32 = vector.extract_strided_slice %2 {offsets = [3, 0, 0], sizes = [1, 4, 128], strides = [1, 1, 1]} : vector<9x4x128xbf16> to vector<1x4x128xbf16>
    %33 = vector.shape_cast %32 : vector<1x4x128xbf16> to vector<4x128xbf16>
    %cst_11 = arith.constant dense<0.000000e+00> : vector<64x128xf32>
    %34 = tpu.matmul %31, %33, %cst_11 {dimension_numbers = #tpu.dot_dimension_numbers<[1], [0], [0], [1], [0, 0, 1, 1], [], []>} : vector<64x4xbf16>, vector<4x128xbf16>, vector<64x128xf32> -> vector<64x128xf32>
    %35 = arith.addf %27, %34 : vector<64x128xf32>
    %36 = vector.extract_strided_slice %1 {offsets = [1, 1, 0, 0, 0], sizes = [1, 1, 8, 8, 4], strides = [1, 1, 1, 1, 1]} : vector<2x2x9x9x4xf32> to vector<1x1x8x8x4xf32>
    %37 = vector.shape_cast %36 : vector<1x1x8x8x4xf32> to vector<8x8x4xf32>
    %38 = vector.shape_cast %37 : vector<8x8x4xf32> to vector<64x4xf32>
    %39 = arith.truncf %38 : vector<64x4xf32> to vector<64x4xbf16>
    %40 = vector.extract_strided_slice %2 {offsets = [4, 0, 0], sizes = [1, 4, 128], strides = [1, 1, 1]} : vector<9x4x128xbf16> to vector<1x4x128xbf16>
    %41 = vector.shape_cast %40 : vector<1x4x128xbf16> to vector<4x128xbf16>
    %cst_12 = arith.constant dense<0.000000e+00> : vector<64x128xf32>
    %42 = tpu.matmul %39, %41, %cst_12 {dimension_numbers = #tpu.dot_dimension_numbers<[1], [0], [0], [1], [0, 0, 1, 1], [], []>} : vector<64x4xbf16>, vector<4x128xbf16>, vector<64x128xf32> -> vector<64x128xf32>
    %43 = arith.addf %35, %42 : vector<64x128xf32>
    %44 = vector.extract_strided_slice %1 {offsets = [1, 0, 0, 1, 0], sizes = [1, 1, 8, 8, 4], strides = [1, 1, 1, 1, 1]} : vector<2x2x9x9x4xf32> to vector<1x1x8x8x4xf32>
    %45 = vector.shape_cast %44 : vector<1x1x8x8x4xf32> to vector<8x8x4xf32>
    %46 = vector.shape_cast %45 : vector<8x8x4xf32> to vector<64x4xf32>
    %47 = arith.truncf %46 : vector<64x4xf32> to vector<64x4xbf16>
    %48 = vector.extract_strided_slice %2 {offsets = [5, 0, 0], sizes = [1, 4, 128], strides = [1, 1, 1]} : vector<9x4x128xbf16> to vector<1x4x128xbf16>
    %49 = vector.shape_cast %48 : vector<1x4x128xbf16> to vector<4x128xbf16>
    %cst_13 = arith.constant dense<0.000000e+00> : vector<64x128xf32>
    %50 = tpu.matmul %47, %49, %cst_13 {dimension_numbers = #tpu.dot_dimension_numbers<[1], [0], [0], [1], [0, 0, 1, 1], [], []>} : vector<64x4xbf16>, vector<4x128xbf16>, vector<64x128xf32> -> vector<64x128xf32>
    %51 = arith.addf %43, %50 : vector<64x128xf32>
    %52 = vector.extract_strided_slice %1 {offsets = [0, 0, 1, 0, 0], sizes = [1, 1, 8, 8, 4], strides = [1, 1, 1, 1, 1]} : vector<2x2x9x9x4xf32> to vector<1x1x8x8x4xf32>
    %53 = vector.shape_cast %52 : vector<1x1x8x8x4xf32> to vector<8x8x4xf32>
    %54 = vector.shape_cast %53 : vector<8x8x4xf32> to vector<64x4xf32>
    %55 = arith.truncf %54 : vector<64x4xf32> to vector<64x4xbf16>
    %56 = vector.extract_strided_slice %2 {offsets = [6, 0, 0], sizes = [1, 4, 128], strides = [1, 1, 1]} : vector<9x4x128xbf16> to vector<1x4x128xbf16>
    %57 = vector.shape_cast %56 : vector<1x4x128xbf16> to vector<4x128xbf16>
    %cst_14 = arith.constant dense<0.000000e+00> : vector<64x128xf32>
    %58 = tpu.matmul %55, %57, %cst_14 {dimension_numbers = #tpu.dot_dimension_numbers<[1], [0], [0], [1], [0, 0, 1, 1], [], []>} : vector<64x4xbf16>, vector<4x128xbf16>, vector<64x128xf32> -> vector<64x128xf32>
    %59 = arith.addf %51, %58 : vector<64x128xf32>
    %60 = vector.extract_strided_slice %1 {offsets = [0, 1, 1, 0, 0], sizes = [1, 1, 8, 8, 4], strides = [1, 1, 1, 1, 1]} : vector<2x2x9x9x4xf32> to vector<1x1x8x8x4xf32>
    %61 = vector.shape_cast %60 : vector<1x1x8x8x4xf32> to vector<8x8x4xf32>
    %62 = vector.shape_cast %61 : vector<8x8x4xf32> to vector<64x4xf32>
    %63 = arith.truncf %62 : vector<64x4xf32> to vector<64x4xbf16>
    %64 = vector.extract_strided_slice %2 {offsets = [7, 0, 0], sizes = [1, 4, 128], strides = [1, 1, 1]} : vector<9x4x128xbf16> to vector<1x4x128xbf16>
    %65 = vector.shape_cast %64 : vector<1x4x128xbf16> to vector<4x128xbf16>
    %cst_15 = arith.constant dense<0.000000e+00> : vector<64x128xf32>
    %66 = tpu.matmul %63, %65, %cst_15 {dimension_numbers = #tpu.dot_dimension_numbers<[1], [0], [0], [1], [0, 0, 1, 1], [], []>} : vector<64x4xbf16>, vector<4x128xbf16>, vector<64x128xf32> -> vector<64x128xf32>
    %67 = arith.addf %59, %66 : vector<64x128xf32>
    %68 = vector.extract_strided_slice %1 {offsets = [0, 0, 1, 1, 0], sizes = [1, 1, 8, 8, 4], strides = [1, 1, 1, 1, 1]} : vector<2x2x9x9x4xf32> to vector<1x1x8x8x4xf32>
    %69 = vector.shape_cast %68 : vector<1x1x8x8x4xf32> to vector<8x8x4xf32>
    %70 = vector.shape_cast %69 : vector<8x8x4xf32> to vector<64x4xf32>
    %71 = arith.truncf %70 : vector<64x4xf32> to vector<64x4xbf16>
    %72 = vector.extract_strided_slice %2 {offsets = [8, 0, 0], sizes = [1, 4, 128], strides = [1, 1, 1]} : vector<9x4x128xbf16> to vector<1x4x128xbf16>
    %73 = vector.shape_cast %72 : vector<1x4x128xbf16> to vector<4x128xbf16>
    %cst_16 = arith.constant dense<0.000000e+00> : vector<64x128xf32>
    %74 = tpu.matmul %71, %73, %cst_16 {dimension_numbers = #tpu.dot_dimension_numbers<[1], [0], [0], [1], [0, 0, 1, 1], [], []>} : vector<64x4xbf16>, vector<4x128xbf16>, vector<64x128xf32> -> vector<64x128xf32>
    %75 = arith.addf %67, %74 : vector<64x128xf32>
    %c0_17 = arith.constant 0 : index
    %c0_18 = arith.constant 0 : index
    %76 = vector.load %arg3[%c0_17, %c0_18] : memref<1x128xf32, #tpu.memory_space<vmem>>, vector<1x128xf32>
    %77 = vector.broadcast %76 : vector<1x128xf32> to vector<64x128xf32>
    %78 = arith.addf %75, %77 : vector<64x128xf32>
    %cst_19 = arith.constant dense<0.000000e+00> : vector<128xf32>
    %79 = vector.multi_reduction <add>, %78, %cst_19 [0] : vector<64x128xf32> to vector<128xf32>
    %80 = vector.shape_cast %79 : vector<128xf32> to vector<1x128xf32>
    %81 = vector.shape_cast %80 : vector<1x128xf32> to vector<1x1x128xf32>
    %c0_20 = arith.constant 0 : index
    %c0_21 = arith.constant 0 : index
    %c0_22 = arith.constant 0 : index
    %82 = vector.load %arg4[%c0_20, %c0_21, %c0_22] : memref<1x1x128xf32, #tpu.memory_space<vmem>>, vector<1x1x128xf32>
    tpu.vector_store %arg4[%c0_20, %c0_21, %c0_22], %81 {strides = array<i32>} : memref<1x1x128xf32, #tpu.memory_space<vmem>>, vector<1x1x128xf32>,
    return
  }
  func.func @transform_0(%arg0: i32) -> (i32, i32, i32, i32, i32, i32) {
    %c0_i32 = arith.constant 0 : i32
    %c0_i32_0 = arith.constant 0 : i32
    %c0_i32_1 = arith.constant 0 : i32
    %c0_i32_2 = arith.constant 0 : i32
    %c0_i32_3 = arith.constant 0 : i32
    %c0_i32_4 = arith.constant 0 : i32
    return %arg0, %c0_i32, %c0_i32_0, %c0_i32_1, %c0_i32_2, %c0_i32_3 : i32, i32, i32, i32, i32, i32
  }
  func.func @transform_1(%arg0: i32) -> (i32, i32, i32) {
    %c0_i32 = arith.constant 0 : i32
    %c0_i32_0 = arith.constant 0 : i32
    %c0_i32_1 = arith.constant 0 : i32
    %c0_i32_2 = arith.constant 0 : i32
    return %c0_i32, %c0_i32_0, %c0_i32_1 : i32, i32, i32
  }
  func.func @transform_2(%arg0: i32) -> (i32, i32) {
    %c0_i32 = arith.constant 0 : i32
    %c0_i32_0 = arith.constant 0 : i32
    %c0_i32_1 = arith.constant 0 : i32
    return %c0_i32, %c0_i32_0 : i32, i32
  }
  func.func @transform_3(%arg0: i32) -> (i32, i32, i32) {
    %c0_i32 = arith.constant 0 : i32
    %c0_i32_0 = arith.constant 0 : i32
    %c0_i32_1 = arith.constant 0 : i32
    return %arg0, %c0_i32, %c0_i32_0 : i32, i32, i32
  }
}

module attributes {stable_mosaic.version = 11 : i64} {
  func.func @conv_s1_sum_kernel(%arg0: i32, %arg1: memref<1x18x18x4xf32, #tpu.memory_space<vmem>>, %arg2: memref<9x4x128xbf16, #tpu.memory_space<vmem>>, %arg3: memref<1x128xf32, #tpu.memory_space<vmem>>, %arg4: memref<1x1x128xf32, #tpu.memory_space<vmem>>) attributes {dimension_semantics = [#tpu.dimension_semantics<parallel>], iteration_bounds = array<i64: 2>, scalar_prefetch = 0 : i64, scratch_operands = 0 : i64, tpu.core_type = #tpu.core_type<tc>, window_params = [{transform_indices = @transform_0, window_bounds = array<i64: 1, 18, 18, 4>}, {pipeline_mode = #tpu.pipeline_mode<synchronous>, transform_indices = @transform_1, window_bounds = array<i64: 9, 4, 128>}, {pipeline_mode = #tpu.pipeline_mode<synchronous>, transform_indices = @transform_2, window_bounds = array<i64: 1, 128>}, {transform_indices = @transform_3, window_bounds = array<i64: 1, 1, 128>}]} {
    %c0 = arith.constant 0 : index
    %c0_0 = arith.constant 0 : index
    %c0_1 = arith.constant 0 : index
    %c0_2 = arith.constant 0 : index
    %0 = vector.load %arg1[%c0, %c0_0, %c0_1, %c0_2] : memref<1x18x18x4xf32, #tpu.memory_space<vmem>>, vector<1x18x18x4xf32>
    %1 = vector.shape_cast %0 : vector<1x18x18x4xf32> to vector<18x18x4xf32>
    %c0_3 = arith.constant 0 : index
    %c0_4 = arith.constant 0 : index
    %c0_5 = arith.constant 0 : index
    %2 = vector.load %arg2[%c0_3, %c0_4, %c0_5] : memref<9x4x128xbf16, #tpu.memory_space<vmem>>, vector<9x4x128xbf16>
    %cst = arith.constant 0.000000e+00 : f32
    %3 = vector.broadcast %cst : f32 to vector<256x128xf32>
    %4 = vector.extract_strided_slice %1 {offsets = [0, 0, 0], sizes = [16, 16, 4], strides = [1, 1, 1]} : vector<18x18x4xf32> to vector<16x16x4xf32>
    %5 = vector.shape_cast %4 : vector<16x16x4xf32> to vector<256x4xf32>
    %6 = arith.truncf %5 : vector<256x4xf32> to vector<256x4xbf16>
    %7 = vector.extract_strided_slice %2 {offsets = [0, 0, 0], sizes = [1, 4, 128], strides = [1, 1, 1]} : vector<9x4x128xbf16> to vector<1x4x128xbf16>
    %8 = vector.shape_cast %7 : vector<1x4x128xbf16> to vector<4x128xbf16>
    %cst_6 = arith.constant dense<0.000000e+00> : vector<256x128xf32>
    %9 = tpu.matmul %6, %8, %cst_6 {dimension_numbers = #tpu.dot_dimension_numbers<[1], [0], [0], [1], [0, 0, 1, 1], [], []>} : vector<256x4xbf16>, vector<4x128xbf16>, vector<256x128xf32> -> vector<256x128xf32>
    %10 = arith.addf %3, %9 : vector<256x128xf32>
    %11 = vector.extract_strided_slice %1 {offsets = [0, 1, 0], sizes = [16, 16, 4], strides = [1, 1, 1]} : vector<18x18x4xf32> to vector<16x16x4xf32>
    %12 = vector.shape_cast %11 : vector<16x16x4xf32> to vector<256x4xf32>
    %13 = arith.truncf %12 : vector<256x4xf32> to vector<256x4xbf16>
    %14 = vector.extract_strided_slice %2 {offsets = [1, 0, 0], sizes = [1, 4, 128], strides = [1, 1, 1]} : vector<9x4x128xbf16> to vector<1x4x128xbf16>
    %15 = vector.shape_cast %14 : vector<1x4x128xbf16> to vector<4x128xbf16>
    %cst_7 = arith.constant dense<0.000000e+00> : vector<256x128xf32>
    %16 = tpu.matmul %13, %15, %cst_7 {dimension_numbers = #tpu.dot_dimension_numbers<[1], [0], [0], [1], [0, 0, 1, 1], [], []>} : vector<256x4xbf16>, vector<4x128xbf16>, vector<256x128xf32> -> vector<256x128xf32>
    %17 = arith.addf %10, %16 : vector<256x128xf32>
    %18 = vector.extract_strided_slice %1 {offsets = [0, 2, 0], sizes = [16, 16, 4], strides = [1, 1, 1]} : vector<18x18x4xf32> to vector<16x16x4xf32>
    %19 = vector.shape_cast %18 : vector<16x16x4xf32> to vector<256x4xf32>
    %20 = arith.truncf %19 : vector<256x4xf32> to vector<256x4xbf16>
    %21 = vector.extract_strided_slice %2 {offsets = [2, 0, 0], sizes = [1, 4, 128], strides = [1, 1, 1]} : vector<9x4x128xbf16> to vector<1x4x128xbf16>
    %22 = vector.shape_cast %21 : vector<1x4x128xbf16> to vector<4x128xbf16>
    %cst_8 = arith.constant dense<0.000000e+00> : vector<256x128xf32>
    %23 = tpu.matmul %20, %22, %cst_8 {dimension_numbers = #tpu.dot_dimension_numbers<[1], [0], [0], [1], [0, 0, 1, 1], [], []>} : vector<256x4xbf16>, vector<4x128xbf16>, vector<256x128xf32> -> vector<256x128xf32>
    %24 = arith.addf %17, %23 : vector<256x128xf32>
    %25 = vector.extract_strided_slice %1 {offsets = [1, 0, 0], sizes = [16, 16, 4], strides = [1, 1, 1]} : vector<18x18x4xf32> to vector<16x16x4xf32>
    %26 = vector.shape_cast %25 : vector<16x16x4xf32> to vector<256x4xf32>
    %27 = arith.truncf %26 : vector<256x4xf32> to vector<256x4xbf16>
    %28 = vector.extract_strided_slice %2 {offsets = [3, 0, 0], sizes = [1, 4, 128], strides = [1, 1, 1]} : vector<9x4x128xbf16> to vector<1x4x128xbf16>
    %29 = vector.shape_cast %28 : vector<1x4x128xbf16> to vector<4x128xbf16>
    %cst_9 = arith.constant dense<0.000000e+00> : vector<256x128xf32>
    %30 = tpu.matmul %27, %29, %cst_9 {dimension_numbers = #tpu.dot_dimension_numbers<[1], [0], [0], [1], [0, 0, 1, 1], [], []>} : vector<256x4xbf16>, vector<4x128xbf16>, vector<256x128xf32> -> vector<256x128xf32>
    %31 = arith.addf %24, %30 : vector<256x128xf32>
    %32 = vector.extract_strided_slice %1 {offsets = [1, 1, 0], sizes = [16, 16, 4], strides = [1, 1, 1]} : vector<18x18x4xf32> to vector<16x16x4xf32>
    %33 = vector.shape_cast %32 : vector<16x16x4xf32> to vector<256x4xf32>
    %34 = arith.truncf %33 : vector<256x4xf32> to vector<256x4xbf16>
    %35 = vector.extract_strided_slice %2 {offsets = [4, 0, 0], sizes = [1, 4, 128], strides = [1, 1, 1]} : vector<9x4x128xbf16> to vector<1x4x128xbf16>
    %36 = vector.shape_cast %35 : vector<1x4x128xbf16> to vector<4x128xbf16>
    %cst_10 = arith.constant dense<0.000000e+00> : vector<256x128xf32>
    %37 = tpu.matmul %34, %36, %cst_10 {dimension_numbers = #tpu.dot_dimension_numbers<[1], [0], [0], [1], [0, 0, 1, 1], [], []>} : vector<256x4xbf16>, vector<4x128xbf16>, vector<256x128xf32> -> vector<256x128xf32>
    %38 = arith.addf %31, %37 : vector<256x128xf32>
    %39 = vector.extract_strided_slice %1 {offsets = [1, 2, 0], sizes = [16, 16, 4], strides = [1, 1, 1]} : vector<18x18x4xf32> to vector<16x16x4xf32>
    %40 = vector.shape_cast %39 : vector<16x16x4xf32> to vector<256x4xf32>
    %41 = arith.truncf %40 : vector<256x4xf32> to vector<256x4xbf16>
    %42 = vector.extract_strided_slice %2 {offsets = [5, 0, 0], sizes = [1, 4, 128], strides = [1, 1, 1]} : vector<9x4x128xbf16> to vector<1x4x128xbf16>
    %43 = vector.shape_cast %42 : vector<1x4x128xbf16> to vector<4x128xbf16>
    %cst_11 = arith.constant dense<0.000000e+00> : vector<256x128xf32>
    %44 = tpu.matmul %41, %43, %cst_11 {dimension_numbers = #tpu.dot_dimension_numbers<[1], [0], [0], [1], [0, 0, 1, 1], [], []>} : vector<256x4xbf16>, vector<4x128xbf16>, vector<256x128xf32> -> vector<256x128xf32>
    %45 = arith.addf %38, %44 : vector<256x128xf32>
    %46 = vector.extract_strided_slice %1 {offsets = [2, 0, 0], sizes = [16, 16, 4], strides = [1, 1, 1]} : vector<18x18x4xf32> to vector<16x16x4xf32>
    %47 = vector.shape_cast %46 : vector<16x16x4xf32> to vector<256x4xf32>
    %48 = arith.truncf %47 : vector<256x4xf32> to vector<256x4xbf16>
    %49 = vector.extract_strided_slice %2 {offsets = [6, 0, 0], sizes = [1, 4, 128], strides = [1, 1, 1]} : vector<9x4x128xbf16> to vector<1x4x128xbf16>
    %50 = vector.shape_cast %49 : vector<1x4x128xbf16> to vector<4x128xbf16>
    %cst_12 = arith.constant dense<0.000000e+00> : vector<256x128xf32>
    %51 = tpu.matmul %48, %50, %cst_12 {dimension_numbers = #tpu.dot_dimension_numbers<[1], [0], [0], [1], [0, 0, 1, 1], [], []>} : vector<256x4xbf16>, vector<4x128xbf16>, vector<256x128xf32> -> vector<256x128xf32>
    %52 = arith.addf %45, %51 : vector<256x128xf32>
    %53 = vector.extract_strided_slice %1 {offsets = [2, 1, 0], sizes = [16, 16, 4], strides = [1, 1, 1]} : vector<18x18x4xf32> to vector<16x16x4xf32>
    %54 = vector.shape_cast %53 : vector<16x16x4xf32> to vector<256x4xf32>
    %55 = arith.truncf %54 : vector<256x4xf32> to vector<256x4xbf16>
    %56 = vector.extract_strided_slice %2 {offsets = [7, 0, 0], sizes = [1, 4, 128], strides = [1, 1, 1]} : vector<9x4x128xbf16> to vector<1x4x128xbf16>
    %57 = vector.shape_cast %56 : vector<1x4x128xbf16> to vector<4x128xbf16>
    %cst_13 = arith.constant dense<0.000000e+00> : vector<256x128xf32>
    %58 = tpu.matmul %55, %57, %cst_13 {dimension_numbers = #tpu.dot_dimension_numbers<[1], [0], [0], [1], [0, 0, 1, 1], [], []>} : vector<256x4xbf16>, vector<4x128xbf16>, vector<256x128xf32> -> vector<256x128xf32>
    %59 = arith.addf %52, %58 : vector<256x128xf32>
    %60 = vector.extract_strided_slice %1 {offsets = [2, 2, 0], sizes = [16, 16, 4], strides = [1, 1, 1]} : vector<18x18x4xf32> to vector<16x16x4xf32>
    %61 = vector.shape_cast %60 : vector<16x16x4xf32> to vector<256x4xf32>
    %62 = arith.truncf %61 : vector<256x4xf32> to vector<256x4xbf16>
    %63 = vector.extract_strided_slice %2 {offsets = [8, 0, 0], sizes = [1, 4, 128], strides = [1, 1, 1]} : vector<9x4x128xbf16> to vector<1x4x128xbf16>
    %64 = vector.shape_cast %63 : vector<1x4x128xbf16> to vector<4x128xbf16>
    %cst_14 = arith.constant dense<0.000000e+00> : vector<256x128xf32>
    %65 = tpu.matmul %62, %64, %cst_14 {dimension_numbers = #tpu.dot_dimension_numbers<[1], [0], [0], [1], [0, 0, 1, 1], [], []>} : vector<256x4xbf16>, vector<4x128xbf16>, vector<256x128xf32> -> vector<256x128xf32>
    %66 = arith.addf %59, %65 : vector<256x128xf32>
    %c0_15 = arith.constant 0 : index
    %c0_16 = arith.constant 0 : index
    %67 = vector.load %arg3[%c0_15, %c0_16] : memref<1x128xf32, #tpu.memory_space<vmem>>, vector<1x128xf32>
    %68 = vector.broadcast %67 : vector<1x128xf32> to vector<256x128xf32>
    %69 = arith.addf %66, %68 : vector<256x128xf32>
    %cst_17 = arith.constant dense<0.000000e+00> : vector<128xf32>
    %70 = vector.multi_reduction <add>, %69, %cst_17 [0] : vector<256x128xf32> to vector<128xf32>
    %71 = vector.shape_cast %70 : vector<128xf32> to vector<1x128xf32>
    %72 = vector.shape_cast %71 : vector<1x128xf32> to vector<1x1x128xf32>
    %c0_18 = arith.constant 0 : index
    %c0_19 = arith.constant 0 : index
    %c0_20 = arith.constant 0 : index
    %73 = vector.load %arg4[%c0_18, %c0_19, %c0_20] : memref<1x1x128xf32, #tpu.memory_space<vmem>>, vector<1x1x128xf32>
    tpu.vector_store %arg4[%c0_18, %c0_19, %c0_20], %72 {strides = array<i32>} : memref<1x1x128xf32, #tpu.memory_space<vmem>>, vector<1x1x128xf32>,
    return
  }
  func.func @transform_0(%arg0: i32) -> (i32, i32, i32, i32) {
    %c0_i32 = arith.constant 0 : i32
    %c0_i32_0 = arith.constant 0 : i32
    %c0_i32_1 = arith.constant 0 : i32
    %c0_i32_2 = arith.constant 0 : i32
    return %arg0, %c0_i32, %c0_i32_0, %c0_i32_1 : i32, i32, i32, i32
  }
  func.func @transform_1(%arg0: i32) -> (i32, i32, i32) {
    %c0_i32 = arith.constant 0 : i32
    %c0_i32_0 = arith.constant 0 : i32
    %c0_i32_1 = arith.constant 0 : i32
    %c0_i32_2 = arith.constant 0 : i32
    return %c0_i32, %c0_i32_0, %c0_i32_1 : i32, i32, i32
  }
  func.func @transform_2(%arg0: i32) -> (i32, i32) {
    %c0_i32 = arith.constant 0 : i32
    %c0_i32_0 = arith.constant 0 : i32
    %c0_i32_1 = arith.constant 0 : i32
    return %c0_i32, %c0_i32_0 : i32, i32
  }
  func.func @transform_3(%arg0: i32) -> (i32, i32, i32) {
    %c0_i32 = arith.constant 0 : i32
    %c0_i32_0 = arith.constant 0 : i32
    %c0_i32_1 = arith.constant 0 : i32
    return %arg0, %c0_i32, %c0_i32_0 : i32, i32, i32
  }
}

module attributes {stable_mosaic.version = 11 : i64} {
  func.func @gate_kernel(%arg0: memref<2x8xf32, #tpu.memory_space<vmem>>, %arg1: memref<2x8xf32, #tpu.memory_space<vmem>>, %arg2: memref<8x4xf32, #tpu.memory_space<vmem>>, %arg3: memref<1x4xf32, #tpu.memory_space<vmem>>, %arg4: memref<8x4xf32, #tpu.memory_space<vmem>>, %arg5: memref<8x4xf32, #tpu.memory_space<vmem>>, %arg6: memref<1x4xf32, #tpu.memory_space<vmem>>, %arg7: memref<2x4xf32, #tpu.memory_space<vmem>>) attributes {dimension_semantics = [], scalar_prefetch = 0 : i64, scratch_operands = 0 : i64, tpu.core_type = #tpu.core_type<tc>} {
    %c0 = arith.constant 0 : index
    %c0_0 = arith.constant 0 : index
    %0 = vector.load %arg0[%c0, %c0_0] : memref<2x8xf32, #tpu.memory_space<vmem>>, vector<2x8xf32>
    %c0_1 = arith.constant 0 : index
    %c0_2 = arith.constant 0 : index
    %1 = vector.load %arg1[%c0_1, %c0_2] : memref<2x8xf32, #tpu.memory_space<vmem>>, vector<2x8xf32>
    %2 = arith.mulf %0, %1 : vector<2x8xf32>
    %cst = arith.constant 0.000000e+00 : f32
    %3 = vector.broadcast %cst : f32 to vector<2x8xf32>
    %4 = arith.maximumf %2, %3 : vector<2x8xf32>
    %c0_3 = arith.constant 0 : index
    %c0_4 = arith.constant 0 : index
    %5 = vector.load %arg2[%c0_3, %c0_4] : memref<8x4xf32, #tpu.memory_space<vmem>>, vector<8x4xf32>
    %6 = arith.truncf %4 : vector<2x8xf32> to vector<2x8xbf16>
    %7 = arith.truncf %5 : vector<8x4xf32> to vector<8x4xbf16>
    %cst_5 = arith.constant dense<0.000000e+00> : vector<2x4xf32>
    %8 = tpu.matmul %6, %7, %cst_5 {dimension_numbers = #tpu.dot_dimension_numbers<[1], [0], [0], [1], [0, 0, 1, 1], [], []>} : vector<2x8xbf16>, vector<8x4xbf16>, vector<2x4xf32> -> vector<2x4xf32>
    %c0_6 = arith.constant 0 : index
    %c0_7 = arith.constant 0 : index
    %9 = vector.load %arg3[%c0_6, %c0_7] : memref<1x4xf32, #tpu.memory_space<vmem>>, vector<1x4xf32>
    %10 = vector.broadcast %9 : vector<1x4xf32> to vector<2x4xf32>
    %11 = arith.addf %8, %10 : vector<2x4xf32>
    %c0_8 = arith.constant 0 : index
    %c0_9 = arith.constant 0 : index
    %12 = vector.load %arg4[%c0_8, %c0_9] : memref<8x4xf32, #tpu.memory_space<vmem>>, vector<8x4xf32>
    %13 = arith.truncf %0 : vector<2x8xf32> to vector<2x8xbf16>
    %14 = arith.truncf %12 : vector<8x4xf32> to vector<8x4xbf16>
    %cst_10 = arith.constant dense<0.000000e+00> : vector<2x4xf32>
    %15 = tpu.matmul %13, %14, %cst_10 {dimension_numbers = #tpu.dot_dimension_numbers<[1], [0], [0], [1], [0, 0, 1, 1], [], []>} : vector<2x8xbf16>, vector<8x4xbf16>, vector<2x4xf32> -> vector<2x4xf32>
    %c0_11 = arith.constant 0 : index
    %c0_12 = arith.constant 0 : index
    %16 = vector.load %arg5[%c0_11, %c0_12] : memref<8x4xf32, #tpu.memory_space<vmem>>, vector<8x4xf32>
    %17 = arith.truncf %1 : vector<2x8xf32> to vector<2x8xbf16>
    %18 = arith.truncf %16 : vector<8x4xf32> to vector<8x4xbf16>
    %cst_13 = arith.constant dense<0.000000e+00> : vector<2x4xf32>
    %19 = tpu.matmul %17, %18, %cst_13 {dimension_numbers = #tpu.dot_dimension_numbers<[1], [0], [0], [1], [0, 0, 1, 1], [], []>} : vector<2x8xbf16>, vector<8x4xbf16>, vector<2x4xf32> -> vector<2x4xf32>
    %20 = arith.addf %15, %19 : vector<2x4xf32>
    %c0_14 = arith.constant 0 : index
    %c0_15 = arith.constant 0 : index
    %21 = vector.load %arg6[%c0_14, %c0_15] : memref<1x4xf32, #tpu.memory_space<vmem>>, vector<1x4xf32>
    %22 = vector.broadcast %21 : vector<1x4xf32> to vector<2x4xf32>
    %23 = arith.addf %20, %22 : vector<2x4xf32>
    %cst_16 = arith.constant 0.000000e+00 : f32
    %24 = vector.broadcast %cst_16 : f32 to vector<2x4xf32>
    %25 = arith.maximumf %23, %24 : vector<2x4xf32>
    %26 = arith.mulf %11, %25 : vector<2x4xf32>
    %27 = arith.negf %26 : vector<2x4xf32>
    %28 = math.exp %27 : vector<2x4xf32>
    %cst_17 = arith.constant 1.000000e+00 : f32
    %29 = vector.broadcast %cst_17 : f32 to vector<2x4xf32>
    %30 = arith.addf %29, %28 : vector<2x4xf32>
    %31 = arith.divf %29, %30 : vector<2x4xf32>
    %c0_18 = arith.constant 0 : index
    %c0_19 = arith.constant 0 : index
    %32 = vector.load %arg7[%c0_18, %c0_19] : memref<2x4xf32, #tpu.memory_space<vmem>>, vector<2x4xf32>
    tpu.vector_store %arg7[%c0_18, %c0_19], %31 {strides = array<i32>} : memref<2x4xf32, #tpu.memory_space<vmem>>, vector<2x4xf32>,
    return
  }
}

module attributes {stable_mosaic.version = 11 : i64} {
  func.func @conv_s1_gated_kernel(%arg0: i32, %arg1: memref<1x18x18x4xf32, #tpu.memory_space<vmem>>, %arg2: memref<1x1x4xf32, #tpu.memory_space<vmem>>, %arg3: memref<9x4x128xbf16, #tpu.memory_space<vmem>>, %arg4: memref<1x128xf32, #tpu.memory_space<vmem>>, %arg5: memref<1x16x16x128xf32, #tpu.memory_space<vmem>>) attributes {dimension_semantics = [#tpu.dimension_semantics<parallel>], iteration_bounds = array<i64: 2>, scalar_prefetch = 0 : i64, scratch_operands = 0 : i64, tpu.core_type = #tpu.core_type<tc>, window_params = [{transform_indices = @transform_0, window_bounds = array<i64: 1, 18, 18, 4>}, {transform_indices = @transform_1, window_bounds = array<i64: 1, 1, 4>}, {pipeline_mode = #tpu.pipeline_mode<synchronous>, transform_indices = @transform_2, window_bounds = array<i64: 9, 4, 128>}, {pipeline_mode = #tpu.pipeline_mode<synchronous>, transform_indices = @transform_3, window_bounds = array<i64: 1, 128>}, {transform_indices = @transform_4, window_bounds = array<i64: 1, 16, 16, 128>}]} {
    %c0 = arith.constant 0 : index
    %c0_0 = arith.constant 0 : index
    %c0_1 = arith.constant 0 : index
    %c0_2 = arith.constant 0 : index
    %0 = vector.load %arg1[%c0, %c0_0, %c0_1, %c0_2] : memref<1x18x18x4xf32, #tpu.memory_space<vmem>>, vector<1x18x18x4xf32>
    %1 = vector.shape_cast %0 : vector<1x18x18x4xf32> to vector<18x18x4xf32>
    %c0_3 = arith.constant 0 : index
    %c0_4 = arith.constant 0 : index
    %c0_5 = arith.constant 0 : index
    %2 = vector.load %arg2[%c0_3, %c0_4, %c0_5] : memref<1x1x4xf32, #tpu.memory_space<vmem>>, vector<1x1x4xf32>
    %3 = vector.shape_cast %2 : vector<1x1x4xf32> to vector<4xf32>
    %4 = vector.shape_cast %3 : vector<4xf32> to vector<1x1x4xf32>
    %5 = vector.broadcast %4 : vector<1x1x4xf32> to vector<18x18x4xf32>
    %6 = arith.mulf %1, %5 : vector<18x18x4xf32>
    %c0_6 = arith.constant 0 : index
    %c0_7 = arith.constant 0 : index
    %c0_8 = arith.constant 0 : index
    %7 = vector.load %arg3[%c0_6, %c0_7, %c0_8] : memref<9x4x128xbf16, #tpu.memory_space<vmem>>, vector<9x4x128xbf16>
    %cst = arith.constant 0.000000e+00 : f32
    %8 = vector.broadcast %cst : f32 to vector<256x128xf32>
    %9 = vector.extract_strided_slice %6 {offsets = [0, 0, 0], sizes = [16, 16, 4], strides = [1, 1, 1]} : vector<18x18x4xf32> to vector<16x16x4xf32>
    %10 = vector.shape_cast %9 : vector<16x16x4xf32> to vector<256x4xf32>
    %11 = arith.truncf %10 : vector<256x4xf32> to vector<256x4xbf16>
    %12 = vector.extract_strided_slice %7 {offsets = [0, 0, 0], sizes = [1, 4, 128], strides = [1, 1, 1]} : vector<9x4x128xbf16> to vector<1x4x128xbf16>
    %13 = vector.shape_cast %12 : vector<1x4x128xbf16> to vector<4x128xbf16>
    %cst_9 = arith.constant dense<0.000000e+00> : vector<256x128xf32>
    %14 = tpu.matmul %11, %13, %cst_9 {dimension_numbers = #tpu.dot_dimension_numbers<[1], [0], [0], [1], [0, 0, 1, 1], [], []>} : vector<256x4xbf16>, vector<4x128xbf16>, vector<256x128xf32> -> vector<256x128xf32>
    %15 = arith.addf %8, %14 : vector<256x128xf32>
    %16 = vector.extract_strided_slice %6 {offsets = [0, 1, 0], sizes = [16, 16, 4], strides = [1, 1, 1]} : vector<18x18x4xf32> to vector<16x16x4xf32>
    %17 = vector.shape_cast %16 : vector<16x16x4xf32> to vector<256x4xf32>
    %18 = arith.truncf %17 : vector<256x4xf32> to vector<256x4xbf16>
    %19 = vector.extract_strided_slice %7 {offsets = [1, 0, 0], sizes = [1, 4, 128], strides = [1, 1, 1]} : vector<9x4x128xbf16> to vector<1x4x128xbf16>
    %20 = vector.shape_cast %19 : vector<1x4x128xbf16> to vector<4x128xbf16>
    %cst_10 = arith.constant dense<0.000000e+00> : vector<256x128xf32>
    %21 = tpu.matmul %18, %20, %cst_10 {dimension_numbers = #tpu.dot_dimension_numbers<[1], [0], [0], [1], [0, 0, 1, 1], [], []>} : vector<256x4xbf16>, vector<4x128xbf16>, vector<256x128xf32> -> vector<256x128xf32>
    %22 = arith.addf %15, %21 : vector<256x128xf32>
    %23 = vector.extract_strided_slice %6 {offsets = [0, 2, 0], sizes = [16, 16, 4], strides = [1, 1, 1]} : vector<18x18x4xf32> to vector<16x16x4xf32>
    %24 = vector.shape_cast %23 : vector<16x16x4xf32> to vector<256x4xf32>
    %25 = arith.truncf %24 : vector<256x4xf32> to vector<256x4xbf16>
    %26 = vector.extract_strided_slice %7 {offsets = [2, 0, 0], sizes = [1, 4, 128], strides = [1, 1, 1]} : vector<9x4x128xbf16> to vector<1x4x128xbf16>
    %27 = vector.shape_cast %26 : vector<1x4x128xbf16> to vector<4x128xbf16>
    %cst_11 = arith.constant dense<0.000000e+00> : vector<256x128xf32>
    %28 = tpu.matmul %25, %27, %cst_11 {dimension_numbers = #tpu.dot_dimension_numbers<[1], [0], [0], [1], [0, 0, 1, 1], [], []>} : vector<256x4xbf16>, vector<4x128xbf16>, vector<256x128xf32> -> vector<256x128xf32>
    %29 = arith.addf %22, %28 : vector<256x128xf32>
    %30 = vector.extract_strided_slice %6 {offsets = [1, 0, 0], sizes = [16, 16, 4], strides = [1, 1, 1]} : vector<18x18x4xf32> to vector<16x16x4xf32>
    %31 = vector.shape_cast %30 : vector<16x16x4xf32> to vector<256x4xf32>
    %32 = arith.truncf %31 : vector<256x4xf32> to vector<256x4xbf16>
    %33 = vector.extract_strided_slice %7 {offsets = [3, 0, 0], sizes = [1, 4, 128], strides = [1, 1, 1]} : vector<9x4x128xbf16> to vector<1x4x128xbf16>
    %34 = vector.shape_cast %33 : vector<1x4x128xbf16> to vector<4x128xbf16>
    %cst_12 = arith.constant dense<0.000000e+00> : vector<256x128xf32>
    %35 = tpu.matmul %32, %34, %cst_12 {dimension_numbers = #tpu.dot_dimension_numbers<[1], [0], [0], [1], [0, 0, 1, 1], [], []>} : vector<256x4xbf16>, vector<4x128xbf16>, vector<256x128xf32> -> vector<256x128xf32>
    %36 = arith.addf %29, %35 : vector<256x128xf32>
    %37 = vector.extract_strided_slice %6 {offsets = [1, 1, 0], sizes = [16, 16, 4], strides = [1, 1, 1]} : vector<18x18x4xf32> to vector<16x16x4xf32>
    %38 = vector.shape_cast %37 : vector<16x16x4xf32> to vector<256x4xf32>
    %39 = arith.truncf %38 : vector<256x4xf32> to vector<256x4xbf16>
    %40 = vector.extract_strided_slice %7 {offsets = [4, 0, 0], sizes = [1, 4, 128], strides = [1, 1, 1]} : vector<9x4x128xbf16> to vector<1x4x128xbf16>
    %41 = vector.shape_cast %40 : vector<1x4x128xbf16> to vector<4x128xbf16>
    %cst_13 = arith.constant dense<0.000000e+00> : vector<256x128xf32>
    %42 = tpu.matmul %39, %41, %cst_13 {dimension_numbers = #tpu.dot_dimension_numbers<[1], [0], [0], [1], [0, 0, 1, 1], [], []>} : vector<256x4xbf16>, vector<4x128xbf16>, vector<256x128xf32> -> vector<256x128xf32>
    %43 = arith.addf %36, %42 : vector<256x128xf32>
    %44 = vector.extract_strided_slice %6 {offsets = [1, 2, 0], sizes = [16, 16, 4], strides = [1, 1, 1]} : vector<18x18x4xf32> to vector<16x16x4xf32>
    %45 = vector.shape_cast %44 : vector<16x16x4xf32> to vector<256x4xf32>
    %46 = arith.truncf %45 : vector<256x4xf32> to vector<256x4xbf16>
    %47 = vector.extract_strided_slice %7 {offsets = [5, 0, 0], sizes = [1, 4, 128], strides = [1, 1, 1]} : vector<9x4x128xbf16> to vector<1x4x128xbf16>
    %48 = vector.shape_cast %47 : vector<1x4x128xbf16> to vector<4x128xbf16>
    %cst_14 = arith.constant dense<0.000000e+00> : vector<256x128xf32>
    %49 = tpu.matmul %46, %48, %cst_14 {dimension_numbers = #tpu.dot_dimension_numbers<[1], [0], [0], [1], [0, 0, 1, 1], [], []>} : vector<256x4xbf16>, vector<4x128xbf16>, vector<256x128xf32> -> vector<256x128xf32>
    %50 = arith.addf %43, %49 : vector<256x128xf32>
    %51 = vector.extract_strided_slice %6 {offsets = [2, 0, 0], sizes = [16, 16, 4], strides = [1, 1, 1]} : vector<18x18x4xf32> to vector<16x16x4xf32>
    %52 = vector.shape_cast %51 : vector<16x16x4xf32> to vector<256x4xf32>
    %53 = arith.truncf %52 : vector<256x4xf32> to vector<256x4xbf16>
    %54 = vector.extract_strided_slice %7 {offsets = [6, 0, 0], sizes = [1, 4, 128], strides = [1, 1, 1]} : vector<9x4x128xbf16> to vector<1x4x128xbf16>
    %55 = vector.shape_cast %54 : vector<1x4x128xbf16> to vector<4x128xbf16>
    %cst_15 = arith.constant dense<0.000000e+00> : vector<256x128xf32>
    %56 = tpu.matmul %53, %55, %cst_15 {dimension_numbers = #tpu.dot_dimension_numbers<[1], [0], [0], [1], [0, 0, 1, 1], [], []>} : vector<256x4xbf16>, vector<4x128xbf16>, vector<256x128xf32> -> vector<256x128xf32>
    %57 = arith.addf %50, %56 : vector<256x128xf32>
    %58 = vector.extract_strided_slice %6 {offsets = [2, 1, 0], sizes = [16, 16, 4], strides = [1, 1, 1]} : vector<18x18x4xf32> to vector<16x16x4xf32>
    %59 = vector.shape_cast %58 : vector<16x16x4xf32> to vector<256x4xf32>
    %60 = arith.truncf %59 : vector<256x4xf32> to vector<256x4xbf16>
    %61 = vector.extract_strided_slice %7 {offsets = [7, 0, 0], sizes = [1, 4, 128], strides = [1, 1, 1]} : vector<9x4x128xbf16> to vector<1x4x128xbf16>
    %62 = vector.shape_cast %61 : vector<1x4x128xbf16> to vector<4x128xbf16>
    %cst_16 = arith.constant dense<0.000000e+00> : vector<256x128xf32>
    %63 = tpu.matmul %60, %62, %cst_16 {dimension_numbers = #tpu.dot_dimension_numbers<[1], [0], [0], [1], [0, 0, 1, 1], [], []>} : vector<256x4xbf16>, vector<4x128xbf16>, vector<256x128xf32> -> vector<256x128xf32>
    %64 = arith.addf %57, %63 : vector<256x128xf32>
    %65 = vector.extract_strided_slice %6 {offsets = [2, 2, 0], sizes = [16, 16, 4], strides = [1, 1, 1]} : vector<18x18x4xf32> to vector<16x16x4xf32>
    %66 = vector.shape_cast %65 : vector<16x16x4xf32> to vector<256x4xf32>
    %67 = arith.truncf %66 : vector<256x4xf32> to vector<256x4xbf16>
    %68 = vector.extract_strided_slice %7 {offsets = [8, 0, 0], sizes = [1, 4, 128], strides = [1, 1, 1]} : vector<9x4x128xbf16> to vector<1x4x128xbf16>
    %69 = vector.shape_cast %68 : vector<1x4x128xbf16> to vector<4x128xbf16>
    %cst_17 = arith.constant dense<0.000000e+00> : vector<256x128xf32>
    %70 = tpu.matmul %67, %69, %cst_17 {dimension_numbers = #tpu.dot_dimension_numbers<[1], [0], [0], [1], [0, 0, 1, 1], [], []>} : vector<256x4xbf16>, vector<4x128xbf16>, vector<256x128xf32> -> vector<256x128xf32>
    %71 = arith.addf %64, %70 : vector<256x128xf32>
    %c0_18 = arith.constant 0 : index
    %c0_19 = arith.constant 0 : index
    %72 = vector.load %arg4[%c0_18, %c0_19] : memref<1x128xf32, #tpu.memory_space<vmem>>, vector<1x128xf32>
    %73 = vector.broadcast %72 : vector<1x128xf32> to vector<256x128xf32>
    %74 = arith.addf %71, %73 : vector<256x128xf32>
    %75 = vector.shape_cast %74 : vector<256x128xf32> to vector<1x16x16x128xf32>
    %c0_20 = arith.constant 0 : index
    %c0_21 = arith.constant 0 : index
    %c0_22 = arith.constant 0 : index
    %c0_23 = arith.constant 0 : index
    %76 = vector.load %arg5[%c0_20, %c0_21, %c0_22, %c0_23] : memref<1x16x16x128xf32, #tpu.memory_space<vmem>>, vector<1x16x16x128xf32>
    tpu.vector_store %arg5[%c0_20, %c0_21, %c0_22, %c0_23], %75 {strides = array<i32>} : memref<1x16x16x128xf32, #tpu.memory_space<vmem>>, vector<1x16x16x128xf32>,
    return
  }
  func.func @transform_0(%arg0: i32) -> (i32, i32, i32, i32) {
    %c0_i32 = arith.constant 0 : i32
    %c0_i32_0 = arith.constant 0 : i32
    %c0_i32_1 = arith.constant 0 : i32
    %c0_i32_2 = arith.constant 0 : i32
    return %arg0, %c0_i32, %c0_i32_0, %c0_i32_1 : i32, i32, i32, i32
  }
  func.func @transform_1(%arg0: i32) -> (i32, i32, i32) {
    %c0_i32 = arith.constant 0 : i32
    %c0_i32_0 = arith.constant 0 : i32
    %c0_i32_1 = arith.constant 0 : i32
    return %arg0, %c0_i32, %c0_i32_0 : i32, i32, i32
  }
  func.func @transform_2(%arg0: i32) -> (i32, i32, i32) {
    %c0_i32 = arith.constant 0 : i32
    %c0_i32_0 = arith.constant 0 : i32
    %c0_i32_1 = arith.constant 0 : i32
    %c0_i32_2 = arith.constant 0 : i32
    return %c0_i32, %c0_i32_0, %c0_i32_1 : i32, i32, i32
  }
  func.func @transform_3(%arg0: i32) -> (i32, i32) {
    %c0_i32 = arith.constant 0 : i32
    %c0_i32_0 = arith.constant 0 : i32
    %c0_i32_1 = arith.constant 0 : i32
    return %c0_i32, %c0_i32_0 : i32, i32
  }
  func.func @transform_4(%arg0: i32) -> (i32, i32, i32, i32) {
    %c0_i32 = arith.constant 0 : i32
    %c0_i32_0 = arith.constant 0 : i32
    %c0_i32_1 = arith.constant 0 : i32
    %c0_i32_2 = arith.constant 0 : i32
    return %arg0, %c0_i32, %c0_i32_0, %c0_i32_1 : i32, i32, i32, i32
  }
}

</mosaic_0001>

<llo_original>
// kernel: t_layer_forward.6
$region0: #{t_layer_forward.6}
  #allocation0 [shape = 'u32[]', space=smem, size = 0x4, offset = 0x4, fixed_abs, tag = 'smem constant byte address 0x4 - core index']
  #allocation1 [shape = 'u32[144,128]{1,0:T(1,128)}', space=vmem, size = 0x12000, scoped, tag = 'internal scratch']
  %s0 = inlined_call_operand.vmem [shape: f32[2,8], index: 0, kind: input, shape index: {}]
  %s1 = inlined_call_operand.vmem [shape: f32[2,8], index: 1, kind: input, shape index: {}]
  %s2 = inlined_call_operand.vmem [shape: f32[8,4], index: 2, kind: input, shape index: {}]
  %s3 = inlined_call_operand.vmem [shape: f32[1,4], index: 3, kind: input, shape index: {}]
  %s4 = inlined_call_operand.vmem [shape: f32[8,4], index: 4, kind: input, shape index: {}]
  %s5 = inlined_call_operand.vmem [shape: f32[8,4], index: 5, kind: input, shape index: {}]
  %s6 = inlined_call_operand.vmem [shape: f32[1,4], index: 6, kind: input, shape index: {}]
  %s7 = inlined_call_operand.vmem [shape: f32[2,4], index: 7, kind: output, shape index: {}]
  %s8 = sld [smem:[#allocation0]]
  $region38: #{t_layer_forward.6} parent=0
    _
  %s10 = ssub.s32 1, %s8
  %s11 = scalar_select 0, %s10, %s8
  // Predicated region
  $region2: #{t_layer_forward.6} parent=0 // pred_check
    _
  $region3: #{t_layer_forward.6} parent=0 // pred_check_branch
    %13 = sbr.rel (0) target = $region5
  $region4: #{t_layer_forward.6} parent=0 // pred_region
    _
  $region5: #{t_layer_forward.6} parent=0 // pred_fallthru
    _
  // Predicated region
  $region6: #{t_layer_forward.6} parent=0 // pred_check
    _
  $region7: #{t_layer_forward.6} parent=0 // pred_check_branch
    %15 = sbr.rel (0) target = $region9
  $region8: #{t_layer_forward.6} parent=0 // pred_region
    _
  $region9: #{t_layer_forward.6} parent=0 // pred_fallthru
    _
  // Predicated region
  $region10: #{t_layer_forward.6} parent=0 // pred_check
    _
  $region11: #{t_layer_forward.6} parent=0 // pred_check_branch
    %17 = sbr.rel (0) target = $region13
  $region12: #{t_layer_forward.6} parent=0 // pred_region
    _
  $region13: #{t_layer_forward.6} parent=0 // pred_fallthru
    _
  // Predicated region
  $region14: #{t_layer_forward.6} parent=0 // pred_check
    _
  $region15: #{t_layer_forward.6} parent=0 // pred_check_branch
    %19 = sbr.rel (0) target = $region17
  $region16: #{t_layer_forward.6} parent=0 // pred_region
    _
  $region17: #{t_layer_forward.6} parent=0 // pred_fallthru
    _
  // Predicated region
  $region18: #{t_layer_forward.6} parent=0 // pred_check
    _
  $region19: #{t_layer_forward.6} parent=0 // pred_check_branch
    %21 = sbr.rel (0) target = $region21
  $region20: #{t_layer_forward.6} parent=0 // pred_region
    _
  $region21: #{t_layer_forward.6} parent=0 // pred_fallthru
    _
  // Predicated region
  $region22: #{t_layer_forward.6} parent=0 // pred_check
    _
  $region23: #{t_layer_forward.6} parent=0 // pred_check_branch
    %23 = sbr.rel (0) target = $region25
  $region24: #{t_layer_forward.6} parent=0 // pred_region
    _
  $region25: #{t_layer_forward.6} parent=0 // pred_fallthru
    _
  // Predicated region
  $region26: #{t_layer_forward.6} parent=0 // pred_check
    _
  $region27: #{t_layer_forward.6} parent=0 // pred_check_branch
    %25 = sbr.rel (0) target = $region29
  $region28: #{t_layer_forward.6} parent=0 // pred_region
    _
  $region29: #{t_layer_forward.6} parent=0 // pred_fallthru
    _
  %v27 = vld [vmem:[%s0] sm:$0x3]
  %v28 = vld [vmem:[%s1] sm:$0x3]
  %v29 = vmul.f32 %v27, %v28
  %v30 = vmax.f32 %v29, 0.0
  %v31 = vld [vmem:[%s2] sm:$0xff]
  %v32 = vpack.c.bf16 %v30, %v30
  %v33 = vpack.c.bf16 %v31, %v31
  %v34 = vld [vmem:[%s3] sm:$0x1]
  %v36 = vlaneseq
  %v37 = vshrl.u32 %v36, 7
  %v38 = vsub.s32 0, %v37
  %v39 = vrot.slane %v34, %v38
  %vm41 = vcmask 64512
  %v43 = vsel %vm41, %v32, 0
  %vm45 = vcmask 1043456
  %v47 = vsel %vm45, %v33, 0
  %49 = vmatprep.subr.bf16.mxu0 0
  %50 = vmatpush1.bf16.msra.mxu0 %v47
  %51 = vmatprep.subr.bf16.mxu0 0
  %52 = vmatpush1.bf16.msra.mxu0 0
  %53 = vmatprep.subr.bf16.mxu0 0
  %54 = vmatpush1.bf16.msra.mxu0 0
  %55 = vmatprep.subr.bf16.mxu0 0
  %56 = vmatpush1.bf16.msra.mxu0 0
  %57 = vmatprep.subr.bf16.mxu0 0
  %58 = vmatpush1.bf16.msra.mxu0 0
  %59 = vmatprep.subr.bf16.mxu0 0
  %60 = vmatpush1.bf16.msra.mxu0 0
  %61 = vmatprep.subr.bf16.mxu0 0
  %62 = vmatpush1.bf16.msra.mxu0 0
  %63 = vmatprep.subr.bf16.mxu0 0
  %64 = vmatpush1.bf16.msra.mxu0 0
  %65 = vmatprep.subr.bf16.mxu0 0
  %66 = vmatpush1.bf16.msra.mxu0 0
  %67 = vmatprep.subr.bf16.mxu0 0
  %68 = vmatpush1.bf16.msra.mxu0 0
  %69 = vmatprep.subr.bf16.mxu0 0
  %70 = vmatpush1.bf16.msra.mxu0 0
  %71 = vmatprep.subr.bf16.mxu0 0
  %72 = vmatpush1.bf16.msra.mxu0 0
  %73 = vmatprep.subr.bf16.mxu0 0
  %74 = vmatpush1.bf16.msra.mxu0 0
  %75 = vmatprep.subr.bf16.mxu0 0
  %76 = vmatpush1.bf16.msra.mxu0 0
  %77 = vmatprep.subr.bf16.mxu0 0
  %78 = vmatpush1.bf16.msra.mxu0 0
  %79 = vmatprep.subr.bf16.mxu0 0
  %80 = vmatpush1.bf16.msra.mxu0 0
  %81 = vmatprep.mubr.bf16.mxu0 0
  %82 = vmatmul.mubr.bf16.gmra.mrb[0].mxu0 %v43
  %v83 = vpop.f32.mrb[0].mxu0
  %v84 = vadd.f32 %v39, %v83
  %v85 = vpop.f32.mrb[0].mxu0
  %v86 = vpop.f32.mrb[0].mxu0
  %v87 = vpop.f32.mrb[0].mxu0
  %88 = vdwg.mxu0
  %v89 = vld [vmem:[%s4] sm:$0xff]
  %v90 = vpack.c.bf16 %v27, %v27
  %v91 = vpack.c.bf16 %v89, %v89
  %v92 = vld [vmem:[%s5] sm:$0xff]
  %v93 = vpack.c.bf16 %v28, %v28
  %v94 = vpack.c.bf16 %v92, %v92
  %v96 = vsel %vm41, %v93, 0
  %v99 = vsel %vm45, %v94, 0
  %101 = vmatprep.subr.bf16.mxu0 0
  %102 = vmatpush1.bf16.msra.mxu0 %v99
  %103 = vmatprep.subr.bf16.mxu0 0
  %104 = vmatpush1.bf16.msra.mxu0 0
  %105 = vmatprep.subr.bf16.mxu0 0
  %106 = vmatpush1.bf16.msra.mxu0 0
  %107 = vmatprep.subr.bf16.mxu0 0
  %108 = vmatpush1.bf16.msra.mxu0 0
  %109 = vmatprep.subr.bf16.mxu0 0
  %110 = vmatpush1.bf16.msra.mxu0 0
  %111 = vmatprep.subr.bf16.mxu0 0
  %112 = vmatpush1.bf16.msra.mxu0 0
  %113 = vmatprep.subr.bf16.mxu0 0
  %114 = vmatpush1.bf16.msra.mxu0 0
  %115 = vmatprep.subr.bf16.mxu0 0
  %116 = vmatpush1.bf16.msra.mxu0 0
  %117 = vmatprep.subr.bf16.mxu0 0
  %118 = vmatpush1.bf16.msra.mxu0 0
  %119 = vmatprep.subr.bf16.mxu0 0
  %120 = vmatpush1.bf16.msra.mxu0 0
  %121 = vmatprep.subr.bf16.mxu0 0
  %122 = vmatpush1.bf16.msra.mxu0 0
  %123 = vmatprep.subr.bf16.mxu0 0
  %124 = vmatpush1.bf16.msra.mxu0 0
  %125 = vmatprep.subr.bf16.mxu0 0
  %126 = vmatpush1.bf16.msra.mxu0 0
  %127 = vmatprep.subr.bf16.mxu0 0
  %128 = vmatpush1.bf16.msra.mxu0 0
  %129 = vmatprep.subr.bf16.mxu0 0
  %130 = vmatpush1.bf16.msra.mxu0 0
  %131 = vmatprep.subr.bf16.mxu0 0
  %132 = vmatpush1.bf16.msra.mxu0 0
  %133 = vmatprep.mubr.bf16.mxu0 0
  %134 = vmatmul.mubr.bf16.gmra.mrb[0].mxu0 %v96
  %v135 = vpop.f32.mrb[0].mxu0
  %v136 = vadd.f32 0.0, %v135
  %v137 = vpop.f32.mrb[0].mxu0
  %v138 = vpop.f32.mrb[0].mxu0
  %v139 = vpop.f32.mrb[0].mxu0
  %140 = vdwg.mxu0
  %v142 = vsel %vm41, %v90, 0
  %v145 = vsel %vm45, %v91, 0
  %147 = vmatprep.subr.bf16.mxu0 0
  %148 = vmatpush1.bf16.msra.mxu0 %v145
  %149 = vmatprep.subr.bf16.mxu0 0
  %150 = vmatpush1.bf16.msra.mxu0 0
  %151 = vmatprep.subr.bf16.mxu0 0
  %152 = vmatpush1.bf16.msra.mxu0 0
  %153 = vmatprep.subr.bf16.mxu0 0
  %154 = vmatpush1.bf16.msra.mxu0 0
  %155 = vmatprep.subr.bf16.mxu0 0
  %156 = vmatpush1.bf16.msra.mxu0 0
  %157 = vmatprep.subr.bf16.mxu0 0
  %158 = vmatpush1.bf16.msra.mxu0 0
  %159 = vmatprep.subr.bf16.mxu0 0
  %160 = vmatpush1.bf16.msra.mxu0 0
  %161 = vmatprep.subr.bf16.mxu0 0
  %162 = vmatpush1.bf16.msra.mxu0 0
  %163 = vmatprep.subr.bf16.mxu0 0
  %164 = vmatpush1.bf16.msra.mxu0 0
  %165 = vmatprep.subr.bf16.mxu0 0
  %166 = vmatpush1.bf16.msra.mxu0 0
  %167 = vmatprep.subr.bf16.mxu0 0
  %168 = vmatpush1.bf16.msra.mxu0 0
  %169 = vmatprep.subr.bf16.mxu0 0
  %170 = vmatpush1.bf16.msra.mxu0 0
  %171 = vmatprep.subr.bf16.mxu0 0
  %172 = vmatpush1.bf16.msra.mxu0 0
  %173 = vmatprep.subr.bf16.mxu0 0
  %174 = vmatpush1.bf16.msra.mxu0 0
  %175 = vmatprep.subr.bf16.mxu0 0
  %176 = vmatpush1.bf16.msra.mxu0 0
  %177 = vmatprep.subr.bf16.mxu0 0
  %178 = vmatpush1.bf16.msra.mxu0 0
  %179 = vmatprep.mubr.bf16.mxu0 0
  %180 = vmatmul.mubr.bf16.gmra.mrb[0].mxu0 %v142
  %v181 = vpop.f32.mrb[0].mxu0
  %v182 = vadd.f32 %v136, %v181
  %v183 = vpop.f32.mrb[0].mxu0
  %v184 = vpop.f32.mrb[0].mxu0
  %v185 = vpop.f32.mrb[0].mxu0
  %186 = vdwg.mxu0
  %v187 = vld [vmem:[%s6] sm:$0x1]
  %v189 = vlaneseq
  %v190 = vshrl.u32 %v189, 7
  %v191 = vsub.s32 0, %v190
  %v192 = vrot.slane %v187, %v191
  %v194 = vadd.f32 %v182, %v192
  %v195 = vmax.f32 %v194, 0.0
  %v196 = vmul.f32 %v84, %v195
  %v197 = vxor.u32 %v196, 2147483648
  %v198 = vmul.f32 %v197, 1.442695
  %v199 = vpow.pop %v198
  %v200 = vadd.f32 %v199, 1.0
  %v201 = vrcp.pop %v200
  %v202 = vmul.f32 1.0, %v201
  %vm203 = vcmask 25600
  %204 = vst.msk [vmem:[%s7] sm:$0x3] %vm203, %v202
  // Predicated region
  $region30: #{t_layer_forward.6} parent=0 // pred_check
    _
  $region31: #{t_layer_forward.6} parent=0 // pred_check_branch
    %206 = sbr.rel (0) target = $region33
  $region32: #{t_layer_forward.6} parent=0 // pred_region
    _
  $region33: #{t_layer_forward.6} parent=0 // pred_fallthru
    _
  // Predicated region
  $region34: #{t_layer_forward.6} parent=0 // pred_check
    _
  $region35: #{t_layer_forward.6} parent=0 // pred_check_branch
    %208 = sbr.rel (0) target = $region37
  $region36: #{t_layer_forward.6} parent=0 // pred_region
    _
  $region37: #{t_layer_forward.6} parent=0 // pred_fallthru
    _

// kernel: t_layer_forward.4
$region0: #{t_layer_forward.4}
  #allocation0 [shape = 'u32[]', space=smem, size = 0x4, offset = 0x4, fixed_abs, tag = 'smem constant byte address 0x4 - core index']
  #allocation1 [shape = 'u32[144,128]{1,0:T(1,128)}', space=vmem, size = 0x12000, scoped, tag = 'internal scratch']
  %s0 = inlined_call_operand.vmem [shape: f32[2,2,2,9,9,4], index: 0, kind: input, shape index: {}]
  %s1 = inlined_call_operand.vmem [shape: bf16[9,4,128], index: 1, kind: input, shape index: {}]
  %s2 = inlined_call_operand.vmem [shape: f32[1,128], index: 2, kind: input, shape index: {}]
  %s3 = inlined_call_operand.vmem [shape: f32[2,1,128], index: 3, kind: output, shape index: {}]
  %s4 = sld [smem:[#allocation0]]
  $region45: #{t_layer_forward.4} parent=0
    _
  %s6 = ssub.s32 1, %s4
  %s7 = scalar_select 0, %s6, %s4
  loop: start=0, step=1, limit=4
  $region2: #{t_layer_forward.4} parent=0 // loop_pre_header
    _
  $region3: #{t_layer_forward.4} parent=0 // loop_header
    %s9 = sphi 0, %s13
    %p10 = scmp.ge.s32.totalorder %s9, 4
    %s19 = sphi 0, %s21
    %s22 = sphi 0, %s19
    %s23 = sphi 0, %s22
    %s39 = sphi 0, %s23
    %s43 = sphi 0, %s43
    %s45 = sphi 0, %s43
    %s46 = sphi 0, %s45
    %s60 = sphi 0, %s46
    %s64 = sphi 0, %s64
    %s66 = sphi 0, %s64
    %s67 = sphi 0, %s66
    %s81 = sphi 0, %s67
    %s87 = sphi 0, %s89
    %s90 = sphi 0, %s87
    %s91 = sphi 0, %s90
    %s107 = sphi 0, %s91
  $region4: #{t_layer_forward.4} parent=0 // loop_header_branch
    %12 = sbr.rel (%p10) target = $region8
  $region5: #{t_layer_forward.4} parent=0 // loop_body
    %s14 = ssub.s32 %s9, 1
    %s15 = ssub.s32 %s9, 2
    %s16 = sadd.s32 %s9, 1
    %s17 = ssub.s32 %s9, %s16
    %p18 = scmp.eq.s32.totalorder %s17, 0
    %s20 = sadd.s32 %s19, 1
    %s21 = scalar_select %p18, %s19, %s20
    %p24 = pneg %p18
    %p25 = scmp.eq.s32.totalorder %s9, 1
    %p26 = por %p24, %p25
    %p27 = scmp.ne.s32.totalorder %s19, %s22
    %p28 = scmp.eq.s32.totalorder %s9, 0
    %p29 = por %p27, %p28
    %p30 = scmp.ne.s32.totalorder %s19, %s22
    %p31 = scmp.eq.s32.totalorder %s14, 1
    %p32 = por %p30, %p31
    %p33 = scmp.ne.s32.totalorder %s22, %s23
    %p34 = scmp.eq.s32.totalorder %s14, 0
    %p35 = por %p33, %p34
    %p36 = scmp.ne.s32.totalorder %s22, %s23
    %p37 = scmp.eq.s32.totalorder %s15, 1
    %p38 = por %p36, %p37
    %p40 = scmp.ne.s32.totalorder %s23, %s39
    %p41 = scmp.eq.s32.totalorder %s15, 0
    %p42 = por %p40, %p41
    %s44 = sadd.s32 %s43, 1
    %p47 = scmp.eq.s32.totalorder %s9, 1
    %p48 = scmp.ne.s32.totalorder %s43, %s45
    %p49 = scmp.eq.s32.totalorder %s9, 0
    %p50 = por %p48, %p49
    %p51 = scmp.ne.s32.totalorder %s43, %s45
    %p52 = scmp.eq.s32.totalorder %s14, 1
    %p53 = por %p51, %p52
    %p54 = scmp.ne.s32.totalorder %s45, %s46
    %p55 = scmp.eq.s32.totalorder %s14, 0
    %p56 = por %p54, %p55
    %p57 = scmp.ne.s32.totalorder %s45, %s46
    %p58 = scmp.eq.s32.totalorder %s15, 1
    %p59 = por %p57, %p58
    %p61 = scmp.ne.s32.totalorder %s46, %s60
    %p62 = scmp.eq.s32.totalorder %s15, 0
    %p63 = por %p61, %p62
    %s65 = sadd.s32 %s64, 1
    %p68 = scmp.eq.s32.totalorder %s9, 1
    %p69 = scmp.ne.s32.totalorder %s64, %s66
    %p70 = scmp.eq.s32.totalorder %s9, 0
    %p71 = por %p69, %p70
    %p72 = scmp.ne.s32.totalorder %s64, %s66
    %p73 = scmp.eq.s32.totalorder %s14, 1
    %p74 = por %p72, %p73
    %p75 = scmp.ne.s32.totalorder %s66, %s67
    %p76 = scmp.eq.s32.totalorder %s14, 0
    %p77 = por %p75, %p76
    %p78 = scmp.ne.s32.totalorder %s66, %s67
    %p79 = scmp.eq.s32.totalorder %s15, 1
    %p80 = por %p78, %p79
    %p82 = scmp.ne.s32.totalorder %s67, %s81
    %p83 = scmp.eq.s32.totalorder %s15, 0
    %p84 = por %p82, %p83
    %s85 = ssub.s32 %s9, %s16
    %p86 = scmp.eq.s32.totalorder %s85, 0
    %s88 = sadd.s32 %s87, 1
    %s89 = scalar_select %p86, %s87, %s88
    %p92 = pneg %p86
    %p93 = scmp.eq.s32.totalorder %s9, 1
    %p94 = por %p92, %p93
    %p95 = scmp.ne.s32.totalorder %s87, %s90
    %p96 = scmp.eq.s32.totalorder %s9, 0
    %p97 = por %p95, %p96
    %p98 = scmp.ne.s32.totalorder %s87, %s90
    %p99 = scmp.eq.s32.totalorder %s14, 1
    %p100 = por %p98, %p99
    %p101 = scmp.ne.s32.totalorder %s90, %s91
    %p102 = scmp.eq.s32.totalorder %s14, 0
    %p103 = por %p101, %p102
    %p104 = scmp.ne.s32.totalorder %s90, %s91
    %p105 = scmp.eq.s32.totalorder %s15, 1
    %p106 = por %p104, %p105
    %p108 = scmp.ne.s32.totalorder %s91, %s107
    %p109 = scmp.eq.s32.totalorder %s15, 0
    %p110 = por %p108, %p109
    %p111 = scmp.le.s32.totalorder 1, %s9
    %p112 = scmp.lt.s32.totalorder %s9, 3
    %p113 = pnand %p111, %p112
    %p114 = pneg %p113
    // Predicated region
    $region9: #{t_layer_forward.4} parent=5 // pred_check
      _
    $region10: #{t_layer_forward.4} parent=5 // pred_check_branch
      %116 = sbr.rel (%p113) target = $region12
    $region11: #{t_layer_forward.4} parent=5 // pred_region
      %s117 = ssub.s32 %s9, 1
      // Predicated region
      $region13: #{t_layer_forward.4} parent=11 // pred_check
        %p118 = pneg %p56
      $region14: #{t_layer_forward.4} parent=11 // pred_check_branch
        %120 = sbr.rel (%p118) target = $region16
      $region15: #{t_layer_forward.4} parent=11 // pred_region
        _
      $region16: #{t_layer_forward.4} parent=11 // pred_fallthru
        _
      // Predicated region
      $region17: #{t_layer_forward.4} parent=11 // pred_check
        %p121 = pneg %p77
      $region18: #{t_layer_forward.4} parent=11 // pred_check_branch
        %123 = sbr.rel (%p121) target = $region20
      $region19: #{t_layer_forward.4} parent=11 // pred_region
        _
      $region20: #{t_layer_forward.4} parent=11 // pred_fallthru
        _
    $region12: #{t_layer_forward.4} parent=5 // pred_fallthru
      _
    %p124 = scmp.lt.s32.totalorder %s9, 2
    // Predicated region
    $region21: #{t_layer_forward.4} parent=5 // pred_check
      %p125 = pneg %p124
    $region22: #{t_layer_forward.4} parent=5 // pred_check_branch
      %127 = sbr.rel (%p125) target = $region24
    $region23: #{t_layer_forward.4} parent=5 // pred_region
      // Predicated region
      $region25: #{t_layer_forward.4} parent=23 // pred_check
        %p128 = pneg %p29
      $region26: #{t_layer_forward.4} parent=23 // pred_check_branch
        %130 = sbr.rel (%p128) target = $region28
      $region27: #{t_layer_forward.4} parent=23 // pred_region
        %p131 = scmp.lt.s32.totalorder %s9, 1
        %s132 = scalar_select %p131, %s9, 1
        %s133 = smul.addr %s132, 72
        %s134 = smul.addr %s133, 8
        %s135 = scalar_lea.vmem %s0, %s134
      $region28: #{t_layer_forward.4} parent=23 // pred_fallthru
        _
    $region24: #{t_layer_forward.4} parent=5 // pred_fallthru
      _
    %p136 = scmp.le.s32.totalorder 1, %s9
    %p137 = scmp.lt.s32.totalorder %s9, 3
    %p138 = pnand %p136, %p137
    %p139 = pneg %p138
    // Predicated region
    $region29: #{t_layer_forward.4} parent=5 // pred_check
      _
    $region30: #{t_layer_forward.4} parent=5 // pred_check_branch
      %141 = sbr.rel (%p138) target = $region32
    $region31: #{t_layer_forward.4} parent=5 // pred_region
      %s142 = ssub.s32 %s9, 1
      %p143 = scmp.lt.s32.totalorder %s14, 1
      %s144 = scalar_select %p143, %s14, 1
      %s145 = smul.addr %s144, 72
      %s146 = smul.addr %s145, 8
      %s147 = scalar_lea.vmem %s0, %s146
      %p148 = pneg %p35
      %p149 = pneg %p32
      %p150 = pneg %p56
      %p151 = pneg %p53
      %p152 = pneg %p77
      %p153 = pneg %p74
      %p154 = pneg %p103
      %p155 = pneg %p100
      %p156 = scmp.lt.s32.totalorder %s14, 1
      %s157 = scalar_select %p156, %s14, 1
      %s158 = scalar_lea.vmem %s3, %s157
      %p159 = scmp.lt.s32.totalorder %s14, 1
      %s160 = scalar_select %p159, %s14, 1
      %s161 = smul.addr %s160, 72
      %s162 = smul.addr %s161, 8
      %s163 = scalar_lea.vmem %s0, %s162
      %p164 = scmp.lt.s32.totalorder %s14, 1
      %s165 = scalar_select %p164, %s14, 1
      %s166 = scalar_lea.vmem %s3, %s165
      %v168 = vld [vmem:[%s163] sm:$0xff]
      %v169 = vld [vmem:[%s163 + $0x8] sm:$0x1]
      %v170 = vld [vmem:[%s163 + $0x10] sm:$0xff]
      %v171 = vld [vmem:[%s163 + $0x18] sm:$0x1]
      %v172 = vld [vmem:[%s163 + $0x20] sm:$0xff]
      %v173 = vld [vmem:[%s163 + $0x28] sm:$0x1]
      %v174 = vld [vmem:[%s163 + $0x30] sm:$0xff]
      %v175 = vld [vmem:[%s163 + $0x38] sm:$0x1]
      %v176 = vld [vmem:[%s163 + $0x40] sm:$0xff]
      %v177 = vld [vmem:[%s163 + $0x48] sm:$0x1]
      %v178 = vld [vmem:[%s163 + $0x50] sm:$0xff]
      %v179 = vld [vmem:[%s163 + $0x58] sm:$0x1]
      %v180 = vld [vmem:[%s163 + $0x60] sm:$0xff]
      %v181 = vld [vmem:[%s163 + $0x68] sm:$0x1]
      %v182 = vld [vmem:[%s163 + $0x70] sm:$0xff]
      %v183 = vld [vmem:[%s163 + $0x78] sm:$0x1]
      %v184 = vld [vmem:[%s163 + $0x80] sm:$0xff]
      %v185 = vld [vmem:[%s163 + $0x88] sm:$0x1]
      %v186 = vld [vmem:[%s163 + $0x90] sm:$0xff]
      %v187 = vld [vmem:[%s163 + $0xa0] sm:$0xff]
      %v188 = vld [vmem:[%s163 + $0xb0] sm:$0xff]
      %v189 = vld [vmem:[%s163 + $0xc0] sm:$0xff]
      %v190 = vld [vmem:[%s163 + $0xd0] sm:$0xff]
      %v191 = vld [vmem:[%s163 + $0xe0] sm:$0xff]
      %v192 = vld [vmem:[%s163 + $0xf0] sm:$0xff]
      %v193 = vld [vmem:[%s163 + $0x100] sm:$0xff]
      %v194 = vld [vmem:[%s163 + $0x110] sm:$0xff]
      %v195 = vld [vmem:[%s163 + $0x120] sm:$0xff]
      %v196 = vld [vmem:[%s163 + $0x128] sm:$0x1]
      %v197 = vld [vmem:[%s163 + $0x130] sm:$0xff]
      %v198 = vld [vmem:[%s163 + $0x138] sm:$0x1]
      %v199 = vld [vmem:[%s163 + $0x140] sm:$0xff]
      %v200 = vld [vmem:[%s163 + $0x148] sm:$0x1]
      %v201 = vld [vmem:[%s163 + $0x150] sm:$0xff]
      %v202 = vld [vmem:[%s163 + $0x158] sm:$0x1]
      %v203 = vld [vmem:[%s163 + $0x160] sm:$0xff]
      %v204 = vld [vmem:[%s163 + $0x168] sm:$0x1]
      %v205 = vld [vmem:[%s163 + $0x170] sm:$0xff]
      %v206 = vld [vmem:[%s163 + $0x178] sm:$0x1]
      %v207 = vld [vmem:[%s163 + $0x180] sm:$0xff]
      %v208 = vld [vmem:[%s163 + $0x188] sm:$0x1]
      %v209 = vld [vmem:[%s163 + $0x190] sm:$0xff]
      %v210 = vld [vmem:[%s163 + $0x198] sm:$0x1]
      %v211 = vld [vmem:[%s163 + $0x1b0] sm:$0xff]
      %v212 = vld [vmem:[%s163 + $0x1c0] sm:$0xff]
      %v213 = vld [vmem:[%s163 + $0x1d0] sm:$0xff]
      %v214 = vld [vmem:[%s163 + $0x1e0] sm:$0xff]
      %v215 = vld [vmem:[%s163 + $0x1f0] sm:$0xff]
      %v216 = vld [vmem:[%s163 + $0x200] sm:$0xff]
      %v217 = vld [vmem:[%s163 + $0x210] sm:$0xff]
      %v218 = vld [vmem:[%s163 + $0x220] sm:$0xff]
      %v219 = vld [vmem:[%s1] sm:$0x3]
      %v220 = vld [vmem:[%s1 + $0x2] sm:$0x3]
      %v221 = vld [vmem:[%s1 + $0x4] sm:$0x3]
      %v222 = vld [vmem:[%s1 + $0x6] sm:$0x3]
      %v223 = vld [vmem:[%s1 + $0x8] sm:$0x3]
      %v224 = vld [vmem:[%s1 + $0xa] sm:$0x3]
      %v225 = vld [vmem:[%s1 + $0xc] sm:$0x3]
      %v226 = vld [vmem:[%s1 + $0xe] sm:$0x3]
      %v227 = vld [vmem:[%s1 + $0x10] sm:$0x3]
      %v228 = vpack.c.bf16 %v170, %v168
      %v229 = vpack.c.bf16 %v174, %v172
      %v230 = vpack.c.bf16 %v178, %v176
      %v231 = vpack.c.bf16 %v182, %v180
      %v232 = vpack.c.bf16 %v187, %v186
      %v233 = vpack.c.bf16 %v189, %v188
      %v234 = vpack.c.bf16 %v191, %v190
      %v235 = vpack.c.bf16 %v193, %v192
      %vm236 = vcmask 31744
      %v238 = vsel %vm236, %v232, 0
      %v241 = vsel %vm236, %v233, 0
      %v244 = vsel %vm236, %v234, 0
      %v247 = vsel %vm236, %v235, 0
      %vm249 = vcmask 1041408
      %v251 = vsel %vm249, %v220, 0
      %253 = vmatprep.subr.bf16.mxu0 0
      %254 = vmatpush1.bf16.msra.mxu0 %v251
      %255 = vmatprep.subr.bf16.mxu0 0
      %256 = vmatpush1.bf16.msra.mxu0 0
      %257 = vmatprep.subr.bf16.mxu0 0
      %258 = vmatpush1.bf16.msra.mxu0 0
      %259 = vmatprep.subr.bf16.mxu0 0
      %260 = vmatpush1.bf16.msra.mxu0 0
      %261 = vmatprep.subr.bf16.mxu0 0
      %262 = vmatpush1.bf16.msra.mxu0 0
      %263 = vmatprep.subr.bf16.mxu0 0
      %264 = vmatpush1.bf16.msra.mxu0 0
      %265 = vmatprep.subr.bf16.mxu0 0
      %266 = vmatpush1.bf16.msra.mxu0 0
      %267 = vmatprep.subr.bf16.mxu0 0
      %268 = vmatpush1.bf16.msra.mxu0 0
      %269 = vmatprep.subr.bf16.mxu0 0
      %270 = vmatpush1.bf16.msra.mxu0 0
      %271 = vmatprep.subr.bf16.mxu0 0
      %272 = vmatpush1.bf16.msra.mxu0 0
      %273 = vmatprep.subr.bf16.mxu0 0
      %274 = vmatpush1.bf16.msra.mxu0 0
      %275 = vmatprep.subr.bf16.mxu0 0
      %276 = vmatpush1.bf16.msra.mxu0 0
      %277 = vmatprep.subr.bf16.mxu0 0
      %278 = vmatpush1.bf16.msra.mxu0 0
      %279 = vmatprep.subr.bf16.mxu0 0
      %280 = vmatpush1.bf16.msra.mxu0 0
      %281 = vmatprep.subr.bf16.mxu0 0
      %282 = vmatpush1.bf16.msra.mxu0 0
      %283 = vmatprep.subr.bf16.mxu0 0
      %284 = vmatpush1.bf16.msra.mxu0 0
      %285 = vmatprep.mubr.bf16.mxu0 0
      %286 = vmatmul.mubr.bf16.gmra.mrb[0].mxu0 %v238
      %v287 = vpop.f32.mrb[0].mxu0
      %v288 = vadd.f32 0.0, %v287
      %v289 = vpop.f32.mrb[0].mxu0
      %v290 = vpop.f32.mrb[0].mxu0
      %v291 = vadd.f32 0.0, %v290
      %v292 = vpop.f32.mrb[0].mxu0
      %293 = vmatprep.mubr.bf16.mxu0 0
      %294 = vmatmul.mubr.bf16.gmra.mrb[0].mxu0 %v241
      %v295 = vpop.f32.mrb[0].mxu0
      %v296 = vadd.f32 0.0, %v295
      %v297 = vpop.f32.mrb[0].mxu0
      %v298 = vpop.f32.mrb[0].mxu0
      %v299 = vadd.f32 0.0, %v298
      %v300 = vpop.f32.mrb[0].mxu0
      %301 = vmatprep.mubr.bf16.mxu0 0
      %302 = vmatmul.mubr.bf16.gmra.mrb[0].mxu0 %v244
      %v303 = vpop.f32.mrb[0].mxu0
      %v304 = vadd.f32 0.0, %v303
      %v305 = vpop.f32.mrb[0].mxu0
      %v306 = vpop.f32.mrb[0].mxu0
      %v307 = vadd.f32 0.0, %v306
      %v308 = vpop.f32.mrb[0].mxu0
      %309 = vmatprep.mubr.bf16.mxu0 0
      %310 = vmatmul.mubr.bf16.gmra.mrb[0].mxu0 %v247
      %v311 = vpop.f32.mrb[0].mxu0
      %v312 = vadd.f32 0.0, %v311
      %v313 = vpop.f32.mrb[0].mxu0
      %v314 = vpop.f32.mrb[0].mxu0
      %v315 = vadd.f32 0.0, %v314
      %v316 = vpop.f32.mrb[0].mxu0
      %317 = vdwg.mxu0
      %v319 = vsel %vm236, %v228, 0
      %v322 = vsel %vm236, %v229, 0
      %v325 = vsel %vm236, %v230, 0
      %v328 = vsel %vm236, %v231, 0
      %v331 = vsel %vm249, %v219, 0
      %333 = vmatprep.subr.bf16.mxu0 0
      %334 = vmatpush1.bf16.msra.mxu0 %v331
      %335 = vmatprep.subr.bf16.mxu0 0
      %336 = vmatpush1.bf16.msra.mxu0 0
      %337 = vmatprep.subr.bf16.mxu0 0
      %338 = vmatpush1.bf16.msra.mxu0 0
      %339 = vmatprep.subr.bf16.mxu0 0
      %340 = vmatpush1.bf16.msra.mxu0 0
      %341 = vmatprep.subr.bf16.mxu0 0
      %342 = vmatpush1.bf16.msra.mxu0 0
      %343 = vmatprep.subr.bf16.mxu0 0
      %344 = vmatpush1.bf16.msra.mxu0 0
      %345 = vmatprep.subr.bf16.mxu0 0
      %346 = vmatpush1.bf16.msra.mxu0 0
      %347 = vmatprep.subr.bf16.mxu0 0
      %348 = vmatpush1.bf16.msra.mxu0 0
      %349 = vmatprep.subr.bf16.mxu0 0
      %350 = vmatpush1.bf16.msra.mxu0 0
      %351 = vmatprep.subr.bf16.mxu0 0
      %352 = vmatpush1.bf16.msra.mxu0 0
      %353 = vmatprep.subr.bf16.mxu0 0
      %354 = vmatpush1.bf16.msra.mxu0 0
      %355 = vmatprep.subr.bf16.mxu0 0
      %356 = vmatpush1.bf16.msra.mxu0 0
      %357 = vmatprep.subr.bf16.mxu0 0
      %358 = vmatpush1.bf16.msra.mxu0 0
      %359 = vmatprep.subr.bf16.mxu0 0
      %360 = vmatpush1.bf16.msra.mxu0 0
      %361 = vmatprep.subr.bf16.mxu0 0
      %362 = vmatpush1.bf16.msra.mxu0 0
      %363 = vmatprep.subr.bf16.mxu0 0
      %364 = vmatpush1.bf16.msra.mxu0 0
      %365 = vmatprep.mubr.bf16.mxu0 0
      %366 = vmatmul.mubr.bf16.gmra.mrb[0].mxu0 %v319
      %v367 = vpop.f32.mrb[0].mxu0
      %v368 = vadd.f32 %v288, %v367
      %v369 = vpop.f32.mrb[0].mxu0
      %v370 = vpop.f32.mrb[0].mxu0
      %v371 = vadd.f32 %v291, %v370
      %v372 = vpop.f32.mrb[0].mxu0
      %373 = vmatprep.mubr.bf16.mxu0 0
      %374 = vmatmul.mubr.bf16.gmra.mrb[0].mxu0 %v322
      %v375 = vpop.f32.mrb[0].mxu0
      %v376 = vadd.f32 %v296, %v375
      %v377 = vpop.f32.mrb[0].mxu0
      %v378 = vpop.f32.mrb[0].mxu0
      %v379 = vadd.f32 %v299, %v378
      %v380 = vpop.f32.mrb[0].mxu0
      %381 = vmatprep.mubr.bf16.mxu0 0
      %382 = vmatmul.mubr.bf16.gmra.mrb[0].mxu0 %v325
      %v383 = vpop.f32.mrb[0].mxu0
      %v384 = vadd.f32 %v304, %v383
      %v385 = vpop.f32.mrb[0].mxu0
      %v386 = vpop.f32.mrb[0].mxu0
      %v387 = vadd.f32 %v307, %v386
      %v388 = vpop.f32.mrb[0].mxu0
      %389 = vmatprep.mubr.bf16.mxu0 0
      %390 = vmatmul.mubr.bf16.gmra.mrb[0].mxu0 %v328
      %v391 = vpop.f32.mrb[0].mxu0
      %v392 = vadd.f32 %v312, %v391
      %v393 = vpop.f32.mrb[0].mxu0
      %v394 = vpop.f32.mrb[0].mxu0
      %v395 = vadd.f32 %v315, %v394
      %v396 = vpop.f32.mrb[0].mxu0
      %397 = vdwg.mxu0
      %vm414 = vcmask 1046528
      %v415 = vrot.slane %v168, 1
      %v416 = vrot.slane %v169, 1
      %v417 = vsel %vm414, %v415, %v416
      %v418 = vrot.slane %v170, 1
      %v419 = vrot.slane %v171, 1
      %v420 = vsel %vm414, %v418, %v419
      %v421 = vrot.slane %v172, 1
      %v422 = vrot.slane %v173, 1
      %v423 = vsel %vm414, %v421, %v422
      %v424 = vrot.slane %v174, 1
      %v425 = vrot.slane %v175, 1
      %v426 = vsel %vm414, %v424, %v425
      %v427 = vrot.slane %v176, 1
      %v428 = vrot.slane %v177, 1
      %v429 = vsel %vm414, %v427, %v428
      %v430 = vrot.slane %v178, 1
      %v431 = vrot.slane %v179, 1
      %v432 = vsel %vm414, %v430, %v431
      %v433 = vrot.slane %v180, 1
      %v434 = vrot.slane %v181, 1
      %v435 = vsel %vm414, %v433, %v434
      %v436 = vrot.slane %v182, 1
      %v437 = vrot.slane %v183, 1
      %v438 = vsel %vm414, %v436, %v437
      %v447 = vpack.c.bf16 %v420, %v417
      %v448 = vpack.c.bf16 %v426, %v423
      %v449 = vpack.c.bf16 %v432, %v429
      %v450 = vpack.c.bf16 %v438, %v435
      %v452 = vsel %vm236, %v447, 0
      %v455 = vsel %vm236, %v448, 0
      %v458 = vsel %vm236, %v449, 0
      %v461 = vsel %vm236, %v450, 0
      %v464 = vsel %vm249, %v221, 0
      %466 = vmatprep.subr.bf16.mxu0 0
      %467 = vmatpush1.bf16.msra.mxu0 %v464
      %468 = vmatprep.subr.bf16.mxu0 0
      %469 = vmatpush1.bf16.msra.mxu0 0
      %470 = vmatprep.subr.bf16.mxu0 0
      %471 = vmatpush1.bf16.msra.mxu0 0
      %472 = vmatprep.subr.bf16.mxu0 0
      %473 = vmatpush1.bf16.msra.mxu0 0
      %474 = vmatprep.subr.bf16.mxu0 0
      %475 = vmatpush1.bf16.msra.mxu0 0
      %476 = vmatprep.subr.bf16.mxu0 0
      %477 = vmatpush1.bf16.msra.mxu0 0
      %478 = vmatprep.subr.bf16.mxu0 0
      %479 = vmatpush1.bf16.msra.mxu0 0
      %480 = vmatprep.subr.bf16.mxu0 0
      %481 = vmatpush1.bf16.msra.mxu0 0
      %482 = vmatprep.subr.bf16.mxu0 0
      %483 = vmatpush1.bf16.msra.mxu0 0
      %484 = vmatprep.subr.bf16.mxu0 0
      %485 = vmatpush1.bf16.msra.mxu0 0
      %486 = vmatprep.subr.bf16.mxu0 0
      %487 = vmatpush1.bf16.msra.mxu0 0
      %488 = vmatprep.subr.bf16.mxu0 0
      %489 = vmatpush1.bf16.msra.mxu0 0
      %490 = vmatprep.subr.bf16.mxu0 0
      %491 = vmatpush1.bf16.msra.mxu0 0
      %492 = vmatprep.subr.bf16.mxu0 0
      %493 = vmatpush1.bf16.msra.mxu0 0
      %494 = vmatprep.subr.bf16.mxu0 0
      %495 = vmatpush1.bf16.msra.mxu0 0
      %496 = vmatprep.subr.bf16.mxu0 0
      %497 = vmatpush1.bf16.msra.mxu0 0
      %498 = vmatprep.mubr.bf16.mxu0 0
      %499 = vmatmul.mubr.bf16.gmra.mrb[0].mxu0 %v452
      %v500 = vpop.f32.mrb[0].mxu0
      %v501 = vadd.f32 0.0, %v500
      %v502 = vpop.f32.mrb[0].mxu0
      %v503 = vpop.f32.mrb[0].mxu0
      %v504 = vadd.f32 0.0, %v503
      %v505 = vpop.f32.mrb[0].mxu0
      %506 = vmatprep.mubr.bf16.mxu0 0
      %507 = vmatmul.mubr.bf16.gmra.mrb[0].mxu0 %v455
      %v508 = vpop.f32.mrb[0].mxu0
      %v509 = vadd.f32 0.0, %v508
      %v510 = vpop.f32.mrb[0].mxu0
      %v511 = vpop.f32.mrb[0].mxu0
      %v512 = vadd.f32 0.0, %v511
      %v513 = vpop.f32.mrb[0].mxu0
      %514 = vmatprep.mubr.bf16.mxu0 0
      %515 = vmatmul.mubr.bf16.gmra.mrb[0].mxu0 %v458
      %v516 = vpop.f32.mrb[0].mxu0
      %v517 = vadd.f32 0.0, %v516
      %v518 = vpop.f32.mrb[0].mxu0
      %v519 = vpop.f32.mrb[0].mxu0
      %v520 = vadd.f32 0.0, %v519
      %v521 = vpop.f32.mrb[0].mxu0
      %522 = vmatprep.mubr.bf16.mxu0 0
      %523 = vmatmul.mubr.bf16.gmra.mrb[0].mxu0 %v461
      %v524 = vpop.f32.mrb[0].mxu0
      %v525 = vadd.f32 0.0, %v524
      %v526 = vpop.f32.mrb[0].mxu0
      %v527 = vpop.f32.mrb[0].mxu0
      %v528 = vadd.f32 0.0, %v527
      %v529 = vpop.f32.mrb[0].mxu0
      %530 = vdwg.mxu0
      %v531 = vadd.f32 %v368, %v501
      %v532 = vadd.f32 %v371, %v504
      %v533 = vadd.f32 %v376, %v509
      %v534 = vadd.f32 %v379, %v512
      %v535 = vadd.f32 %v384, %v517
      %v536 = vadd.f32 %v387, %v520
      %v537 = vadd.f32 %v392, %v525
      %v538 = vadd.f32 %v395, %v528
      %v539 = vpack.c.bf16 %v197, %v195
      %v540 = vpack.c.bf16 %v201, %v199
      %v541 = vpack.c.bf16 %v205, %v203
      %v542 = vpack.c.bf16 %v209, %v207
      %v544 = vsel %vm236, %v539, 0
      %v547 = vsel %vm236, %v540, 0
      %v550 = vsel %vm236, %v541, 0
      %v553 = vsel %vm236, %v542, 0
      %v556 = vsel %vm249, %v222, 0
      %558 = vmatprep.subr.bf16.mxu0 0
      %559 = vmatpush1.bf16.msra.mxu0 %v556
      %560 = vmatprep.subr.bf16.mxu0 0
      %561 = vmatpush1.bf16.msra.mxu0 0
      %562 = vmatprep.subr.bf16.mxu0 0
      %563 = vmatpush1.bf16.msra.mxu0 0
      %564 = vmatprep.subr.bf16.mxu0 0
      %565 = vmatpush1.bf16.msra.mxu0 0
      %566 = vmatprep.subr.bf16.mxu0 0
      %567 = vmatpush1.bf16.msra.mxu0 0
      %568 = vmatprep.subr.bf16.mxu0 0
      %569 = vmatpush1.bf16.msra.mxu0 0
      %570 = vmatprep.subr.bf16.mxu0 0
      %571 = vmatpush1.bf16.msra.mxu0 0
      %572 = vmatprep.subr.bf16.mxu0 0
      %573 = vmatpush1.bf16.msra.mxu0 0
      %574 = vmatprep.subr.bf16.mxu0 0
      %575 = vmatpush1.bf16.msra.mxu0 0
      %576 = vmatprep.subr.bf16.mxu0 0
      %577 = vmatpush1.bf16.msra.mxu0 0
      %578 = vmatprep.subr.bf16.mxu0 0
      %579 = vmatpush1.bf16.msra.mxu0 0
      %580 = vmatprep.subr.bf16.mxu0 0
      %581 = vmatpush1.bf16.msra.mxu0 0
      %582 = vmatprep.subr.bf16.mxu0 0
      %583 = vmatpush1.bf16.msra.mxu0 0
      %584 = vmatprep.subr.bf16.mxu0 0
      %585 = vmatpush1.bf16.msra.mxu0 0
      %586 = vmatprep.subr.bf16.mxu0 0
      %587 = vmatpush1.bf16.msra.mxu0 0
      %588 = vmatprep.subr.bf16.mxu0 0
      %589 = vmatpush1.bf16.msra.mxu0 0
      %590 = vmatprep.mubr.bf16.mxu0 0
      %591 = vmatmul.mubr.bf16.gmra.mrb[0].mxu0 %v544
      %v592 = vpop.f32.mrb[0].mxu0
      %v593 = vadd.f32 0.0, %v592
      %v594 = vpop.f32.mrb[0].mxu0
      %v595 = vpop.f32.mrb[0].mxu0
      %v596 = vadd.f32 0.0, %v595
      %v597 = vpop.f32.mrb[0].mxu0
      %598 = vmatprep.mubr.bf16.mxu0 0
      %599 = vmatmul.mubr.bf16.gmra.mrb[0].mxu0 %v547
      %v600 = vpop.f32.mrb[0].mxu0
      %v601 = vadd.f32 0.0, %v600
      %v602 = vpop.f32.mrb[0].mxu0
      %v603 = vpop.f32.mrb[0].mxu0
      %v604 = vadd.f32 0.0, %v603
      %v605 = vpop.f32.mrb[0].mxu0
      %606 = vmatprep.mubr.bf16.mxu0 0
      %607 = vmatmul.mubr.bf16.gmra.mrb[0].mxu0 %v550
      %v608 = vpop.f32.mrb[0].mxu0
      %v609 = vadd.f32 0.0, %v608
      %v610 = vpop.f32.mrb[0].mxu0
      %v611 = vpop.f32.mrb[0].mxu0
      %v612 = vadd.f32 0.0, %v611
      %v613 = vpop.f32.mrb[0].mxu0
      %614 = vmatprep.mubr.bf16.mxu0 0
      %615 = vmatmul.mubr.bf16.gmra.mrb[0].mxu0 %v553
      %v616 = vpop.f32.mrb[0].mxu0
      %v617 = vadd.f32 0.0, %v616
      %v618 = vpop.f32.mrb[0].mxu0
      %v619 = vpop.f32.mrb[0].mxu0
      %v620 = vadd.f32 0.0, %v619
      %v621 = vpop.f32.mrb[0].mxu0
      %622 = vdwg.mxu0
      %v623 = vadd.f32 %v531, %v593
      %v624 = vadd.f32 %v532, %v596
      %v625 = vadd.f32 %v533, %v601
      %v626 = vadd.f32 %v534, %v604
      %v627 = vadd.f32 %v535, %v609
      %v628 = vadd.f32 %v536, %v612
      %v629 = vadd.f32 %v537, %v617
      %v630 = vadd.f32 %v538, %v620
      %v631 = vpack.c.bf16 %v212, %v211
      %v632 = vpack.c.bf16 %v214, %v213
      %v633 = vpack.c.bf16 %v216, %v215
      %v634 = vpack.c.bf16 %v218, %v217
      %v636 = vsel %vm236, %v631, 0
      %v639 = vsel %vm236, %v632, 0
      %v642 = vsel %vm236, %v633, 0
      %v645 = vsel %vm236, %v634, 0
      %v648 = vsel %vm249, %v223, 0
      %650 = vmatprep.subr.bf16.mxu0 0
      %651 = vmatpush1.bf16.msra.mxu0 %v648
      %652 = vmatprep.subr.bf16.mxu0 0
      %653 = vmatpush1.bf16.msra.mxu0 0
      %654 = vmatprep.subr.bf16.mxu0 0
      %655 = vmatpush1.bf16.msra.mxu0 0
      %656 = vmatprep.subr.bf16.mxu0 0
      %657 = vmatpush1.bf16.msra.mxu0 0
      %658 = vmatprep.subr.bf16.mxu0 0
      %659 = vmatpush1.bf16.msra.mxu0 0
      %660 = vmatprep.subr.bf16.mxu0 0
      %661 = vmatpush1.bf16.msra.mxu0 0
      %662 = vmatprep.subr.bf16.mxu0 0
      %663 = vmatpush1.bf16.msra.mxu0 0
      %664 = vmatprep.subr.bf16.mxu0 0
      %665 = vmatpush1.bf16.msra.mxu0 0
      %666 = vmatprep.subr.bf16.mxu0 0
      %667 = vmatpush1.bf16.msra.mxu0 0
      %668 = vmatprep.subr.bf16.mxu0 0
      %669 = vmatpush1.bf16.msra.mxu0 0
      %670 = vmatprep.subr.bf16.mxu0 0
      %671 = vmatpush1.bf16.msra.mxu0 0
      %672 = vmatprep.subr.bf16.mxu0 0
      %673 = vmatpush1.bf16.msra.mxu0 0
      %674 = vmatprep.subr.bf16.mxu0 0
      %675 = vmatpush1.bf16.msra.mxu0 0
      %676 = vmatprep.subr.bf16.mxu0 0
      %677 = vmatpush1.bf16.msra.mxu0 0
      %678 = vmatprep.subr.bf16.mxu0 0
      %679 = vmatpush1.bf16.msra.mxu0 0
      %680 = vmatprep.subr.bf16.mxu0 0
      %681 = vmatpush1.bf16.msra.mxu0 0
      %682 = vmatprep.mubr.bf16.mxu0 0
      %683 = vmatmul.mubr.bf16.gmra.mrb[0].mxu0 %v636
      %v684 = vpop.f32.mrb[0].mxu0
      %v685 = vadd.f32 0.0, %v684
      %v686 = vpop.f32.mrb[0].mxu0
      %v687 = vpop.f32.mrb[0].mxu0
      %v688 = vadd.f32 0.0, %v687
      %v689 = vpop.f32.mrb[0].mxu0
      %690 = vmatprep.mubr.bf16.mxu0 0
      %691 = vmatmul.mubr.bf16.gmra.mrb[0].mxu0 %v639
      %v692 = vpop.f32.mrb[0].mxu0
      %v693 = vadd.f32 0.0, %v692
      %v694 = vpop.f32.mrb[0].mxu0
      %v695 = vpop.f32.mrb[0].mxu0
      %v696 = vadd.f32 0.0, %v695
      %v697 = vpop.f32.mrb[0].mxu0
      %698 = vmatprep.mubr.bf16.mxu0 0
      %699 = vmatmul.mubr.bf16.gmra.mrb[0].mxu0 %v642
      %v700 = vpop.f32.mrb[0].mxu0
      %v701 = vadd.f32 0.0, %v700
      %v702 = vpop.f32.mrb[0].mxu0
      %v703 = vpop.f32.mrb[0].mxu0
      %v704 = vadd.f32 0.0, %v703
      %v705 = vpop.f32.mrb[0].mxu0
      %706 = vmatprep.mubr.bf16.mxu0 0
      %707 = vmatmul.mubr.bf16.gmra.mrb[0].mxu0 %v645
      %v708 = vpop.f32.mrb[0].mxu0
      %v709 = vadd.f32 0.0, %v708
      %v710 = vpop.f32.mrb[0].mxu0
      %v711 = vpop.f32.mrb[0].mxu0
      %v712 = vadd.f32 0.0, %v711
      %v713 = vpop.f32.mrb[0].mxu0
      %714 = vdwg.mxu0
      %v715 = vadd.f32 %v623, %v685
      %v716 = vadd.f32 %v624, %v688
      %v717 = vadd.f32 %v625, %v693
      %v718 = vadd.f32 %v626, %v696
      %v719 = vadd.f32 %v627, %v701
      %v720 = vadd.f32 %v628, %v704
      %v721 = vadd.f32 %v629, %v709
      %v722 = vadd.f32 %v630, %v712
      %v739 = vrot.slane %v195, 1
      %v740 = vrot.slane %v196, 1
      %v741 = vsel %vm414, %v739, %v740
      %v742 = vrot.slane %v197, 1
      %v743 = vrot.slane %v198, 1
      %v744 = vsel %vm414, %v742, %v743
      %v745 = vrot.slane %v199, 1
      %v746 = vrot.slane %v200, 1
      %v747 = vsel %vm414, %v745, %v746
      %v748 = vrot.slane %v201, 1
      %v749 = vrot.slane %v202, 1
      %v750 = vsel %vm414, %v748, %v749
      %v751 = vrot.slane %v203, 1
      %v752 = vrot.slane %v204, 1
      %v753 = vsel %vm414, %v751, %v752
      %v754 = vrot.slane %v205, 1
      %v755 = vrot.slane %v206, 1
      %v756 = vsel %vm414, %v754, %v755
      %v757 = vrot.slane %v207, 1
      %v758 = vrot.slane %v208, 1
      %v759 = vsel %vm414, %v757, %v758
      %v760 = vrot.slane %v209, 1
      %v761 = vrot.slane %v210, 1
      %v762 = vsel %vm414, %v760, %v761
      %v771 = vpack.c.bf16 %v744, %v741
      %v772 = vpack.c.bf16 %v750, %v747
      %v773 = vpack.c.bf16 %v756, %v753
      %v774 = vpack.c.bf16 %v762, %v759
      %v776 = vsel %vm236, %v771, 0
      %v779 = vsel %vm236, %v772, 0
      %v782 = vsel %vm236, %v773, 0
      %v785 = vsel %vm236, %v774, 0
      %v788 = vsel %vm249, %v224, 0
      %790 = vmatprep.subr.bf16.mxu0 0
      %791 = vmatpush1.bf16.msra.mxu0 %v788
      %792 = vmatprep.subr.bf16.mxu0 0
      %793 = vmatpush1.bf16.msra.mxu0 0
      %794 = vmatprep.subr.bf16.mxu0 0
      %795 = vmatpush1.bf16.msra.mxu0 0
      %796 = vmatprep.subr.bf16.mxu0 0
      %797 = vmatpush1.bf16.msra.mxu0 0
      %798 = vmatprep.subr.bf16.mxu0 0
      %799 = vmatpush1.bf16.msra.mxu0 0
      %800 = vmatprep.subr.bf16.mxu0 0
      %801 = vmatpush1.bf16.msra.mxu0 0
      %802 = vmatprep.subr.bf16.mxu0 0
      %803 = vmatpush1.bf16.msra.mxu0 0
      %804 = vmatprep.subr.bf16.mxu0 0
      %805 = vmatpush1.bf16.msra.mxu0 0
      %806 = vmatprep.subr.bf16.mxu0 0
      %807 = vmatpush1.bf16.msra.mxu0 0
      %808 = vmatprep.subr.bf16.mxu0 0
      %809 = vmatpush1.bf16.msra.mxu0 0
      %810 = vmatprep.subr.bf16.mxu0 0
      %811 = vmatpush1.bf16.msra.mxu0 0
      %812 = vmatprep.subr.bf16.mxu0 0
      %813 = vmatpush1.bf16.msra.mxu0 0
      %814 = vmatprep.subr.bf16.mxu0 0
      %815 = vmatpush1.bf16.msra.mxu0 0
      %816 = vmatprep.subr.bf16.mxu0 0
      %817 = vmatpush1.bf16.msra.mxu0 0
      %818 = vmatprep.subr.bf16.mxu0 0
      %819 = vmatpush1.bf16.msra.mxu0 0
      %820 = vmatprep.subr.bf16.mxu0 0
      %821 = vmatpush1.bf16.msra.mxu0 0
      %822 = vmatprep.mubr.bf16.mxu0 0
      %823 = vmatmul.mubr.bf16.gmra.mrb[0].mxu0 %v776
      %v824 = vpop.f32.mrb[0].mxu0
      %v825 = vadd.f32 0.0, %v824
      %v826 = vpop.f32.mrb[0].mxu0
      %v827 = vpop.f32.mrb[0].mxu0
      %v828 = vadd.f32 0.0, %v827
      %v829 = vpop.f32.mrb[0].mxu0
      %830 = vmatprep.mubr.bf16.mxu0 0
      %831 = vmatmul.mubr.bf16.gmra.mrb[0].mxu0 %v779
      %v832 = vpop.f32.mrb[0].mxu0
      %v833 = vadd.f32 0.0, %v832
      %v834 = vpop.f32.mrb[0].mxu0
      %v835 = vpop.f32.mrb[0].mxu0
      %v836 = vadd.f32 0.0, %v835
      %v837 = vpop.f32.mrb[0].mxu0
      %838 = vmatprep.mubr.bf16.mxu0 0
      %839 = vmatmul.mubr.bf16.gmra.mrb[0].mxu0 %v782
      %v840 = vpop.f32.mrb[0].mxu0
      %v841 = vadd.f32 0.0, %v840
      %v842 = vpop.f32.mrb[0].mxu0
      %v843 = vpop.f32.mrb[0].mxu0
      %v844 = vadd.f32 0.0, %v843
      %v845 = vpop.f32.mrb[0].mxu0
      %846 = vmatprep.mubr.bf16.mxu0 0
      %847 = vmatmul.mubr.bf16.gmra.mrb[0].mxu0 %v785
      %v848 = vpop.f32.mrb[0].mxu0
      %v849 = vadd.f32 0.0, %v848
      %v850 = vpop.f32.mrb[0].mxu0
      %v851 = vpop.f32.mrb[0].mxu0
      %v852 = vadd.f32 0.0, %v851
      %v853 = vpop.f32.mrb[0].mxu0
      %854 = vdwg.mxu0
      %v855 = vadd.f32 %v715, %v825
      %v856 = vadd.f32 %v716, %v828
      %v857 = vadd.f32 %v717, %v833
      %v858 = vadd.f32 %v718, %v836
      %v859 = vadd.f32 %v719, %v841
      %v860 = vadd.f32 %v720, %v844
      %v861 = vadd.f32 %v721, %v849
      %v862 = vadd.f32 %v722, %v852
      %v863 = vpack.c.bf16 %v172, %v170
      %v864 = vpack.c.bf16 %v176, %v174
      %v865 = vpack.c.bf16 %v180, %v178
      %v866 = vpack.c.bf16 %v184, %v182
      %v868 = vsel %vm236, %v863, 0
      %v871 = vsel %vm236, %v864, 0
      %v874 = vsel %vm236, %v865, 0
      %v877 = vsel %vm236, %v866, 0
      %v880 = vsel %vm249, %v225, 0
      %882 = vmatprep.subr.bf16.mxu0 0
      %883 = vmatpush1.bf16.msra.mxu0 %v880
      %884 = vmatprep.subr.bf16.mxu0 0
      %885 = vmatpush1.bf16.msra.mxu0 0
      %886 = vmatprep.subr.bf16.mxu0 0
      %887 = vmatpush1.bf16.msra.mxu0 0
      %888 = vmatprep.subr.bf16.mxu0 0
      %889 = vmatpush1.bf16.msra.mxu0 0
      %890 = vmatprep.subr.bf16.mxu0 0
      %891 = vmatpush1.bf16.msra.mxu0 0
      %892 = vmatprep.subr.bf16.mxu0 0
      %893 = vmatpush1.bf16.msra.mxu0 0
      %894 = vmatprep.subr.bf16.mxu0 0
      %895 = vmatpush1.bf16.msra.mxu0 0
      %896 = vmatprep.subr.bf16.mxu0 0
      %897 = vmatpush1.bf16.msra.mxu0 0
      %898 = vmatprep.subr.bf16.mxu0 0
      %899 = vmatpush1.bf16.msra.mxu0 0
      %900 = vmatprep.subr.bf16.mxu0 0
      %901 = vmatpush1.bf16.msra.mxu0 0
      %902 = vmatprep.subr.bf16.mxu0 0
      %903 = vmatpush1.bf16.msra.mxu0 0
      %904 = vmatprep.subr.bf16.mxu0 0
      %905 = vmatpush1.bf16.msra.mxu0 0
      %906 = vmatprep.subr.bf16.mxu0 0
      %907 = vmatpush1.bf16.msra.mxu0 0
      %908 = vmatprep.subr.bf16.mxu0 0
      %909 = vmatpush1.bf16.msra.mxu0 0
      %910 = vmatprep.subr.bf16.mxu0 0
      %911 = vmatpush1.bf16.msra.mxu0 0
      %912 = vmatprep.subr.bf16.mxu0 0
      %913 = vmatpush1.bf16.msra.mxu0 0
      %914 = vmatprep.mubr.bf16.mxu0 0
      %915 = vmatmul.mubr.bf16.gmra.mrb[0].mxu0 %v868
      %v916 = vpop.f32.mrb[0].mxu0
      %v917 = vadd.f32 0.0, %v916
      %v918 = vpop.f32.mrb[0].mxu0
      %v919 = vpop.f32.mrb[0].mxu0
      %v920 = vadd.f32 0.0, %v919
      %v921 = vpop.f32.mrb[0].mxu0
      %922 = vmatprep.mubr.bf16.mxu0 0
      %923 = vmatmul.mubr.bf16.gmra.mrb[0].mxu0 %v871
      %v924 = vpop.f32.mrb[0].mxu0
      %v925 = vadd.f32 0.0, %v924
      %v926 = vpop.f32.mrb[0].mxu0
      %v927 = vpop.f32.mrb[0].mxu0
      %v928 = vadd.f32 0.0, %v927
      %v929 = vpop.f32.mrb[0].mxu0
      %930 = vmatprep.mubr.bf16.mxu0 0
      %931 = vmatmul.mubr.bf16.gmra.mrb[0].mxu0 %v874
      %v932 = vpop.f32.mrb[0].mxu0
      %v933 = vadd.f32 0.0, %v932
      %v934 = vpop.f32.mrb[0].mxu0
      %v935 = vpop.f32.mrb[0].mxu0
      %v936 = vadd.f32 0.0, %v935
      %v937 = vpop.f32.mrb[0].mxu0
      %938 = vmatprep.mubr.bf16.mxu0 0
      %939 = vmatmul.mubr.bf16.gmra.mrb[0].mxu0 %v877
      %v940 = vpop.f32.mrb[0].mxu0
      %v941 = vadd.f32 0.0, %v940
      %v942 = vpop.f32.mrb[0].mxu0
      %v943 = vpop.f32.mrb[0].mxu0
      %v944 = vadd.f32 0.0, %v943
      %v945 = vpop.f32.mrb[0].mxu0
      %946 = vdwg.mxu0
      %v947 = vadd.f32 %v855, %v917
      %v948 = vadd.f32 %v856, %v920
      %v949 = vadd.f32 %v857, %v925
      %v950 = vadd.f32 %v858, %v928
      %v951 = vadd.f32 %v859, %v933
      %v952 = vadd.f32 %v860, %v936
      %v953 = vadd.f32 %v861, %v941
      %v954 = vadd.f32 %v862, %v944
      %v955 = vpack.c.bf16 %v188, %v187
      %v956 = vpack.c.bf16 %v190, %v189
      %v957 = vpack.c.bf16 %v192, %v191
      %v958 = vpack.c.bf16 %v194, %v193
      %v960 = vsel %vm236, %v955, 0
      %v963 = vsel %vm236, %v956, 0
      %v966 = vsel %vm236, %v957, 0
      %v969 = vsel %vm236, %v958, 0
      %v972 = vsel %vm249, %v226, 0
      %974 = vmatprep.subr.bf16.mxu0 0
      %975 = vmatpush1.bf16.msra.mxu0 %v972
      %976 = vmatprep.subr.bf16.mxu0 0
      %977 = vmatpush1.bf16.msra.mxu0 0
      %978 = vmatprep.subr.bf16.mxu0 0
      %979 = vmatpush1.bf16.msra.mxu0 0
      %980 = vmatprep.subr.bf16.mxu0 0
      %981 = vmatpush1.bf16.msra.mxu0 0
      %982 = vmatprep.subr.bf16.mxu0 0
      %983 = vmatpush1.bf16.msra.mxu0 0
      %984 = vmatprep.subr.bf16.mxu0 0
      %985 = vmatpush1.bf16.msra.mxu0 0
      %986 = vmatprep.subr.bf16.mxu0 0
      %987 = vmatpush1.bf16.msra.mxu0 0
      %988 = vmatprep.subr.bf16.mxu0 0
      %989 = vmatpush1.bf16.msra.mxu0 0
      %990 = vmatprep.subr.bf16.mxu0 0
      %991 = vmatpush1.bf16.msra.mxu0 0
      %992 = vmatprep.subr.bf16.mxu0 0
      %993 = vmatpush1.bf16.msra.mxu0 0
      %994 = vmatprep.subr.bf16.mxu0 0
      %995 = vmatpush1.bf16.msra.mxu0 0
      %996 = vmatprep.subr.bf16.mxu0 0
      %997 = vmatpush1.bf16.msra.mxu0 0
      %998 = vmatprep.subr.bf16.mxu0 0
      %999 = vmatpush1.bf16.msra.mxu0 0
      %1000 = vmatprep.subr.bf16.mxu0 0
      %1001 = vmatpush1.bf16.msra.mxu0 0
      %1002 = vmatprep.subr.bf16.mxu0 0
      %1003 = vmatpush1.bf16.msra.mxu0 0
      %1004 = vmatprep.subr.bf16.mxu0 0
      %1005 = vmatpush1.bf16.msra.mxu0 0
      %1006 = vmatprep.mubr.bf16.mxu0 0
      %1007 = vmatmul.mubr.bf16.gmra.mrb[0].mxu0 %v960
      %v1008 = vpop.f32.mrb[0].mxu0
      %v1009 = vadd.f32 0.0, %v1008
      %v1010 = vpop.f32.mrb[0].mxu0
      %v1011 = vpop.f32.mrb[0].mxu0
      %v1012 = vadd.f32 0.0, %v1011
      %v1013 = vpop.f32.mrb[0].mxu0
      %1014 = vmatprep.mubr.bf16.mxu0 0
      %1015 = vmatmul.mubr.bf16.gmra.mrb[0].mxu0 %v963
      %v1016 = vpop.f32.mrb[0].mxu0
      %v1017 = vadd.f32 0.0, %v1016
      %v1018 = vpop.f32.mrb[0].mxu0
      %v1019 = vpop.f32.mrb[0].mxu0
      %v1020 = vadd.f32 0.0, %v1019
      %v1021 = vpop.f32.mrb[0].mxu0
      %1022 = vmatprep.mubr.bf16.mxu0 0
      %1023 = vmatmul.mubr.bf16.gmra.mrb[0].mxu0 %v966
      %v1024 = vpop.f32.mrb[0].mxu0
      %v1025 = vadd.f32 0.0, %v1024
      %v1026 = vpop.f32.mrb[0].mxu0
      %v1027 = vpop.f32.mrb[0].mxu0
      %v1028 = vadd.f32 0.0, %v1027
      %v1029 = vpop.f32.mrb[0].mxu0
      %1030 = vmatprep.mubr.bf16.mxu0 0
      %1031 = vmatmul.mubr.bf16.gmra.mrb[0].mxu0 %v969
      %v1032 = vpop.f32.mrb[0].mxu0
      %v1033 = vadd.f32 0.0, %v1032
      %v1034 = vpop.f32.mrb[0].mxu0
      %v1035 = vpop.f32.mrb[0].mxu0
      %v1036 = vadd.f32 0.0, %v1035
      %v1037 = vpop.f32.mrb[0].mxu0
      %1038 = vdwg.mxu0
      %v1039 = vadd.f32 %v947, %v1009
      %v1040 = vadd.f32 %v948, %v1012
      %v1041 = vadd.f32 %v949, %v1017
      %v1042 = vadd.f32 %v950, %v1020
      %v1043 = vadd.f32 %v951, %v1025
      %v1044 = vadd.f32 %v952, %v1028
      %v1045 = vadd.f32 %v953, %v1033
      %v1046 = vadd.f32 %v954, %v1036
      %v1049 = vrot.slane %v184, 1
      %v1050 = vrot.slane %v185, 1
      %v1051 = vsel %vm414, %v1049, %v1050
      %v1053 = vpack.c.bf16 %v423, %v420
      %v1054 = vpack.c.bf16 %v429, %v426
      %v1055 = vpack.c.bf16 %v435, %v432
      %v1056 = vpack.c.bf16 %v1051, %v438
      %v1058 = vsel %vm236, %v1053, 0
      %v1061 = vsel %vm236, %v1054, 0
      %v1064 = vsel %vm236, %v1055, 0
      %v1067 = vsel %vm236, %v1056, 0
      %v1070 = vsel %vm249, %v227, 0
      %1072 = vmatprep.subr.bf16.mxu0 0
      %1073 = vmatpush1.bf16.msra.mxu0 %v1070
      %1074 = vmatprep.subr.bf16.mxu0 0
      %1075 = vmatpush1.bf16.msra.mxu0 0
      %1076 = vmatprep.subr.bf16.mxu0 0
      %1077 = vmatpush1.bf16.msra.mxu0 0
      %1078 = vmatprep.subr.bf16.mxu0 0
      %1079 = vmatpush1.bf16.msra.mxu0 0
      %1080 = vmatprep.subr.bf16.mxu0 0
      %1081 = vmatpush1.bf16.msra.mxu0 0
      %1082 = vmatprep.subr.bf16.mxu0 0
      %1083 = vmatpush1.bf16.msra.mxu0 0
      %1084 = vmatprep.subr.bf16.mxu0 0
      %1085 = vmatpush1.bf16.msra.mxu0 0
      %1086 = vmatprep.subr.bf16.mxu0 0
      %1087 = vmatpush1.bf16.msra.mxu0 0
      %1088 = vmatprep.subr.bf16.mxu0 0
      %1089 = vmatpush1.bf16.msra.mxu0 0
      %1090 = vmatprep.subr.bf16.mxu0 0
      %1091 = vmatpush1.bf16.msra.mxu0 0
      %1092 = vmatprep.subr.bf16.mxu0 0
      %1093 = vmatpush1.bf16.msra.mxu0 0
      %1094 = vmatprep.subr.bf16.mxu0 0
      %1095 = vmatpush1.bf16.msra.mxu0 0
      %1096 = vmatprep.subr.bf16.mxu0 0
      %1097 = vmatpush1.bf16.msra.mxu0 0
      %1098 = vmatprep.subr.bf16.mxu0 0
      %1099 = vmatpush1.bf16.msra.mxu0 0
      %1100 = vmatprep.subr.bf16.mxu0 0
      %1101 = vmatpush1.bf16.msra.mxu0 0
      %1102 = vmatprep.subr.bf16.mxu0 0
      %1103 = vmatpush1.bf16.msra.mxu0 0
      %1104 = vmatprep.mubr.bf16.mxu0 0
      %1105 = vmatmul.mubr.bf16.gmra.mrb[0].mxu0 %v1058
      %v1106 = vpop.f32.mrb[0].mxu0
      %v1107 = vadd.f32 0.0, %v1106
      %v1108 = vpop.f32.mrb[0].mxu0
      %v1109 = vpop.f32.mrb[0].mxu0
      %v1110 = vadd.f32 0.0, %v1109
      %v1111 = vpop.f32.mrb[0].mxu0
      %1112 = vmatprep.mubr.bf16.mxu0 0
      %1113 = vmatmul.mubr.bf16.gmra.mrb[0].mxu0 %v1061
      %v1114 = vpop.f32.mrb[0].mxu0
      %v1115 = vadd.f32 0.0, %v1114
      %v1116 = vpop.f32.mrb[0].mxu0
      %v1117 = vpop.f32.mrb[0].mxu0
      %v1118 = vadd.f32 0.0, %v1117
      %v1119 = vpop.f32.mrb[0].mxu0
      %1120 = vmatprep.mubr.bf16.mxu0 0
      %1121 = vmatmul.mubr.bf16.gmra.mrb[0].mxu0 %v1064
      %v1122 = vpop.f32.mrb[0].mxu0
      %v1123 = vadd.f32 0.0, %v1122
      %v1124 = vpop.f32.mrb[0].mxu0
      %v1125 = vpop.f32.mrb[0].mxu0
      %v1126 = vadd.f32 0.0, %v1125
      %v1127 = vpop.f32.mrb[0].mxu0
      %1128 = vmatprep.mubr.bf16.mxu0 0
      %1129 = vmatmul.mubr.bf16.gmra.mrb[0].mxu0 %v1067
      %v1130 = vpop.f32.mrb[0].mxu0
      %v1131 = vadd.f32 0.0, %v1130
      %v1132 = vpop.f32.mrb[0].mxu0
      %v1133 = vpop.f32.mrb[0].mxu0
      %v1134 = vadd.f32 0.0, %v1133
      %v1135 = vpop.f32.mrb[0].mxu0
      %1136 = vdwg.mxu0
      %v1137 = vadd.f32 %v1039, %v1107
      %v1138 = vadd.f32 %v1040, %v1110
      %v1139 = vadd.f32 %v1041, %v1115
      %v1140 = vadd.f32 %v1042, %v1118
      %v1141 = vadd.f32 %v1043, %v1123
      %v1142 = vadd.f32 %v1044, %v1126
      %v1143 = vadd.f32 %v1045, %v1131
      %v1144 = vadd.f32 %v1046, %v1134
      %v1145 = vld [vmem:[%s2] sm:$0x1]
      %v1147 = vlaneseq
      %v1148 = vshrl.u32 %v1147, 7
      %v1149 = vsub.s32 0, %v1148
      %v1150 = vrot.slane %v1145, %v1149
      %v1152 = vadd.f32 %v1137, %v1150
      %v1153 = vadd.f32 %v1138, %v1150
      %v1154 = vadd.f32 %v1139, %v1150
      %v1155 = vadd.f32 %v1140, %v1150
      %v1156 = vadd.f32 %v1141, %v1150
      %v1157 = vadd.f32 %v1142, %v1150
      %v1158 = vadd.f32 %v1143, %v1150
      %v1159 = vadd.f32 %v1144, %v1150
      %v1160 = vadd.f32 %v1152, %v1153
      %v1161 = vadd.f32 %v1160, %v1154
      %v1162 = vadd.f32 %v1161, %v1155
      %v1163 = vadd.f32 %v1162, %v1156
      %v1164 = vadd.f32 %v1163, %v1157
      %v1165 = vadd.f32 %v1164, %v1158
      %v1166 = vadd.f32 %v1165, %v1159
      %v1167 = vrot.slane %v1166, 4
      %v1168 = vadd.f32 %v1166, %v1167
      %v1169 = vrot.slane %v1168, 2
      %v1170 = vadd.f32 %v1168, %v1169
      %v1171 = vrot.slane %v1170, 1
      %v1172 = vadd.f32 %v1170, %v1171
      %1173 = vst [vmem:[%s166] sm:$0x1] %v1172
      %p1174 = scmp.lt.s32.totalorder %s14, 1
      %s1175 = scalar_select %p1174, %s14, 1
      %s1176 = scalar_lea.vmem %s3, %s1175
      // Predicated region
      $region33: #{t_layer_forward.4} parent=31 // pred_check
        %p1177 = pneg %p100
      $region34: #{t_layer_forward.4} parent=31 // pred_check_branch
        %1179 = sbr.rel (%p1177) target = $region36
      $region35: #{t_layer_forward.4} parent=31 // pred_region
        _
      $region36: #{t_layer_forward.4} parent=31 // pred_fallthru
        _
    $region32: #{t_layer_forward.4} parent=5 // pred_fallthru
      _
    %p1180 = scmp.le.s32.totalorder 2, %s9
    // Predicated region
    $region37: #{t_layer_forward.4} parent=5 // pred_check
      %p1181 = pneg %p1180
    $region38: #{t_layer_forward.4} parent=5 // pred_check_branch
      %1183 = sbr.rel (%p1181) target = $region40
    $region39: #{t_layer_forward.4} parent=5 // pred_region
      %s1184 = ssub.s32 %s9, 2
      // Predicated region
      $region41: #{t_layer_forward.4} parent=39 // pred_check
        %p1185 = pneg %p106
      $region42: #{t_layer_forward.4} parent=39 // pred_check_branch
        %1187 = sbr.rel (%p1185) target = $region44
      $region43: #{t_layer_forward.4} parent=39 // pred_region
        %p1188 = scmp.lt.s32.totalorder %s15, 1
        %s1189 = scalar_select %p1188, %s15, 1
        %s1190 = scalar_lea.vmem %s3, %s1189
      $region44: #{t_layer_forward.4} parent=39 // pred_fallthru
        _
    $region40: #{t_layer_forward.4} parent=5 // pred_fallthru
      _
  $region6: #{t_layer_forward.4} parent=0 // loop_footer
    %s13 = sadd.s32 1, %s9
  $region7: #{t_layer_forward.4} parent=0 // loop_footer_branch
    %8 = sbr.rel target = $region3
  $region8: #{t_layer_forward.4} parent=0 // loop_exit
    _

// kernel: t_layer_forward.5
$region0: #{t_layer_forward.5}
  #allocation0 [shape = 'u32[]', space=smem, size = 0x4, offset = 0x4, fixed_abs, tag = 'smem constant byte address 0x4 - core index']
  #allocation1 [shape = 'u32[144,128]{1,0:T(1,128)}', space=vmem, size = 0x12000, scoped, tag = 'internal scratch']
  %s0 = inlined_call_operand.vmem [shape: f32[2,18,18,4], index: 0, kind: input, shape index: {}]
  %s1 = inlined_call_operand.vmem [shape: bf16[9,4,128], index: 1, kind: input, shape index: {}]
  %s2 = inlined_call_operand.vmem [shape: f32[1,128], index: 2, kind: input, shape index: {}]
  %s3 = inlined_call_operand.vmem [shape: f32[2,1,128], index: 3, kind: output, shape index: {}]
  %s4 = sld [smem:[#allocation0]]
  $region45: #{t_layer_forward.5} parent=0
    _
  %s6 = ssub.s32 1, %s4
  %s7 = scalar_select 0, %s6, %s4
  loop: start=0, step=1, limit=4
  $region2: #{t_layer_forward.5} parent=0 // loop_pre_header
    _
  $region3: #{t_layer_forward.5} parent=0 // loop_header
    %s9 = sphi 0, %s13
    %p10 = scmp.ge.s32.totalorder %s9, 4
    %s19 = sphi 0, %s21
    %s22 = sphi 0, %s19
    %s23 = sphi 0, %s22
    %s39 = sphi 0, %s23
    %s43 = sphi 0, %s43
    %s45 = sphi 0, %s43
    %s46 = sphi 0, %s45
    %s60 = sphi 0, %s46
    %s64 = sphi 0, %s64
    %s66 = sphi 0, %s64
    %s67 = sphi 0, %s66
    %s81 = sphi 0, %s67
    %s87 = sphi 0, %s89
    %s90 = sphi 0, %s87
    %s91 = sphi 0, %s90
    %s107 = sphi 0, %s91
  $region4: #{t_layer_forward.5} parent=0 // loop_header_branch
    %12 = sbr.rel (%p10) target = $region8
  $region5: #{t_layer_forward.5} parent=0 // loop_body
    %s14 = ssub.s32 %s9, 1
    %s15 = ssub.s32 %s9, 2
    %s16 = sadd.s32 %s9, 1
    %s17 = ssub.s32 %s9, %s16
    %p18 = scmp.eq.s32.totalorder %s17, 0
    %s20 = sadd.s32 %s19, 1
    %s21 = scalar_select %p18, %s19, %s20
    %p24 = pneg %p18
    %p25 = scmp.eq.s32.totalorder %s9, 1
    %p26 = por %p24, %p25
    %p27 = scmp.ne.s32.totalorder %s19, %s22
    %p28 = scmp.eq.s32.totalorder %s9, 0
    %p29 = por %p27, %p28
    %p30 = scmp.ne.s32.totalorder %s19, %s22
    %p31 = scmp.eq.s32.totalorder %s14, 1
    %p32 = por %p30, %p31
    %p33 = scmp.ne.s32.totalorder %s22, %s23
    %p34 = scmp.eq.s32.totalorder %s14, 0
    %p35 = por %p33, %p34
    %p36 = scmp.ne.s32.totalorder %s22, %s23
    %p37 = scmp.eq.s32.totalorder %s15, 1
    %p38 = por %p36, %p37
    %p40 = scmp.ne.s32.totalorder %s23, %s39
    %p41 = scmp.eq.s32.totalorder %s15, 0
    %p42 = por %p40, %p41
    %s44 = sadd.s32 %s43, 1
    %p47 = scmp.eq.s32.totalorder %s9, 1
    %p48 = scmp.ne.s32.totalorder %s43, %s45
    %p49 = scmp.eq.s32.totalorder %s9, 0
    %p50 = por %p48, %p49
    %p51 = scmp.ne.s32.totalorder %s43, %s45
    %p52 = scmp.eq.s32.totalorder %s14, 1
    %p53 = por %p51, %p52
    %p54 = scmp.ne.s32.totalorder %s45, %s46
    %p55 = scmp.eq.s32.totalorder %s14, 0
    %p56 = por %p54, %p55
    %p57 = scmp.ne.s32.totalorder %s45, %s46
    %p58 = scmp.eq.s32.totalorder %s15, 1
    %p59 = por %p57, %p58
    %p61 = scmp.ne.s32.totalorder %s46, %s60
    %p62 = scmp.eq.s32.totalorder %s15, 0
    %p63 = por %p61, %p62
    %s65 = sadd.s32 %s64, 1
    %p68 = scmp.eq.s32.totalorder %s9, 1
    %p69 = scmp.ne.s32.totalorder %s64, %s66
    %p70 = scmp.eq.s32.totalorder %s9, 0
    %p71 = por %p69, %p70
    %p72 = scmp.ne.s32.totalorder %s64, %s66
    %p73 = scmp.eq.s32.totalorder %s14, 1
    %p74 = por %p72, %p73
    %p75 = scmp.ne.s32.totalorder %s66, %s67
    %p76 = scmp.eq.s32.totalorder %s14, 0
    %p77 = por %p75, %p76
    %p78 = scmp.ne.s32.totalorder %s66, %s67
    %p79 = scmp.eq.s32.totalorder %s15, 1
    %p80 = por %p78, %p79
    %p82 = scmp.ne.s32.totalorder %s67, %s81
    %p83 = scmp.eq.s32.totalorder %s15, 0
    %p84 = por %p82, %p83
    %s85 = ssub.s32 %s9, %s16
    %p86 = scmp.eq.s32.totalorder %s85, 0
    %s88 = sadd.s32 %s87, 1
    %s89 = scalar_select %p86, %s87, %s88
    %p92 = pneg %p86
    %p93 = scmp.eq.s32.totalorder %s9, 1
    %p94 = por %p92, %p93
    %p95 = scmp.ne.s32.totalorder %s87, %s90
    %p96 = scmp.eq.s32.totalorder %s9, 0
    %p97 = por %p95, %p96
    %p98 = scmp.ne.s32.totalorder %s87, %s90
    %p99 = scmp.eq.s32.totalorder %s14, 1
    %p100 = por %p98, %p99
    %p101 = scmp.ne.s32.totalorder %s90, %s91
    %p102 = scmp.eq.s32.totalorder %s14, 0
    %p103 = por %p101, %p102
    %p104 = scmp.ne.s32.totalorder %s90, %s91
    %p105 = scmp.eq.s32.totalorder %s15, 1
    %p106 = por %p104, %p105
    %p108 = scmp.ne.s32.totalorder %s91, %s107
    %p109 = scmp.eq.s32.totalorder %s15, 0
    %p110 = por %p108, %p109
    %p111 = scmp.le.s32.totalorder 1, %s9
    %p112 = scmp.lt.s32.totalorder %s9, 3
    %p113 = pnand %p111, %p112
    %p114 = pneg %p113
    // Predicated region
    $region9: #{t_layer_forward.5} parent=5 // pred_check
      _
    $region10: #{t_layer_forward.5} parent=5 // pred_check_branch
      %116 = sbr.rel (%p113) target = $region12
    $region11: #{t_layer_forward.5} parent=5 // pred_region
      %s117 = ssub.s32 %s9, 1
      // Predicated region
      $region13: #{t_layer_forward.5} parent=11 // pred_check
        %p118 = pneg %p56
      $region14: #{t_layer_forward.5} parent=11 // pred_check_branch
        %120 = sbr.rel (%p118) target = $region16
      $region15: #{t_layer_forward.5} parent=11 // pred_region
        _
      $region16: #{t_layer_forward.5} parent=11 // pred_fallthru
        _
      // Predicated region
      $region17: #{t_layer_forward.5} parent=11 // pred_check
        %p121 = pneg %p77
      $region18: #{t_layer_forward.5} parent=11 // pred_check_branch
        %123 = sbr.rel (%p121) target = $region20
      $region19: #{t_layer_forward.5} parent=11 // pred_region
        _
      $region20: #{t_layer_forward.5} parent=11 // pred_fallthru
        _
    $region12: #{t_layer_forward.5} parent=5 // pred_fallthru
      _
    %p124 = scmp.lt.s32.totalorder %s9, 2
    // Predicated region
    $region21: #{t_layer_forward.5} parent=5 // pred_check
      %p125 = pneg %p124
    $region22: #{t_layer_forward.5} parent=5 // pred_check_branch
      %127 = sbr.rel (%p125) target = $region24
    $region23: #{t_layer_forward.5} parent=5 // pred_region
      // Predicated region
      $region25: #{t_layer_forward.5} parent=23 // pred_check
        %p128 = pneg %p29
      $region26: #{t_layer_forward.5} parent=23 // pred_check_branch
        %130 = sbr.rel (%p128) target = $region28
      $region27: #{t_layer_forward.5} parent=23 // pred_region
        %p131 = scmp.lt.s32.totalorder %s9, 1
        %s132 = scalar_select %p131, %s9, 1
        %s133 = smul.addr %s132, 54
        %s134 = smul.addr %s133, 8
        %s135 = scalar_lea.vmem %s0, %s134
      $region28: #{t_layer_forward.5} parent=23 // pred_fallthru
        _
    $region24: #{t_layer_forward.5} parent=5 // pred_fallthru
      _
    %p136 = scmp.le.s32.totalorder 1, %s9
    %p137 = scmp.lt.s32.totalorder %s9, 3
    %p138 = pnand %p136, %p137
    %p139 = pneg %p138
    // Predicated region
    $region29: #{t_layer_forward.5} parent=5 // pred_check
      _
    $region30: #{t_layer_forward.5} parent=5 // pred_check_branch
      %141 = sbr.rel (%p138) target = $region32
    $region31: #{t_layer_forward.5} parent=5 // pred_region
      %s142 = ssub.s32 %s9, 1
      %p143 = scmp.lt.s32.totalorder %s14, 1
      %s144 = scalar_select %p143, %s14, 1
      %s145 = smul.addr %s144, 54
      %s146 = smul.addr %s145, 8
      %s147 = scalar_lea.vmem %s0, %s146
      %p148 = pneg %p35
      %p149 = pneg %p32
      %p150 = pneg %p56
      %p151 = pneg %p53
      %p152 = pneg %p77
      %p153 = pneg %p74
      %p154 = pneg %p103
      %p155 = pneg %p100
      %p156 = scmp.lt.s32.totalorder %s14, 1
      %s157 = scalar_select %p156, %s14, 1
      %s158 = scalar_lea.vmem %s3, %s157
      %p159 = scmp.lt.s32.totalorder %s14, 1
      %s160 = scalar_select %p159, %s14, 1
      %s161 = smul.addr %s160, 54
      %s162 = smul.addr %s161, 8
      %s163 = scalar_lea.vmem %s0, %s162
      %p164 = scmp.lt.s32.totalorder %s14, 1
      %s165 = scalar_select %p164, %s14, 1
      %s166 = scalar_lea.vmem %s3, %s165
      %v168 = vld [vmem:[%s163] sm:$0xff]
      %v169 = vld [vmem:[%s163 + $0x8] sm:$0xff]
      %v170 = vld [vmem:[%s163 + $0x10] sm:$0x3]
      %v171 = vld [vmem:[%s163 + $0x18] sm:$0xff]
      %v172 = vld [vmem:[%s163 + $0x20] sm:$0xff]
      %v173 = vld [vmem:[%s163 + $0x28] sm:$0x3]
      %v174 = vld [vmem:[%s163 + $0x30] sm:$0xff]
      %v175 = vld [vmem:[%s163 + $0x38] sm:$0xff]
      %v176 = vld [vmem:[%s163 + $0x40] sm:$0x3]
      %v177 = vld [vmem:[%s163 + $0x48] sm:$0xff]
      %v178 = vld [vmem:[%s163 + $0x50] sm:$0xff]
      %v179 = vld [vmem:[%s163 + $0x58] sm:$0x3]
      %v180 = vld [vmem:[%s163 + $0x60] sm:$0xff]
      %v181 = vld [vmem:[%s163 + $0x68] sm:$0xff]
      %v182 = vld [vmem:[%s163 + $0x70] sm:$0x3]
      %v183 = vld [vmem:[%s163 + $0x78] sm:$0xff]
      %v184 = vld [vmem:[%s163 + $0x80] sm:$0xff]
      %v185 = vld [vmem:[%s163 + $0x88] sm:$0x3]
      %v186 = vld [vmem:[%s163 + $0x90] sm:$0xff]
      %v187 = vld [vmem:[%s163 + $0x98] sm:$0xff]
      %v188 = vld [vmem:[%s163 + $0xa0] sm:$0x3]
      %v189 = vld [vmem:[%s163 + $0xa8] sm:$0xff]
      %v190 = vld [vmem:[%s163 + $0xb0] sm:$0xff]
      %v191 = vld [vmem:[%s163 + $0xb8] sm:$0x3]
      %v192 = vld [vmem:[%s163 + $0xc0] sm:$0xff]
      %v193 = vld [vmem:[%s163 + $0xc8] sm:$0xff]
      %v194 = vld [vmem:[%s163 + $0xd0] sm:$0x3]
      %v195 = vld [vmem:[%s163 + $0xd8] sm:$0xff]
      %v196 = vld [vmem:[%s163 + $0xe0] sm:$0xff]
      %v197 = vld [vmem:[%s163 + $0xe8] sm:$0x3]
      %v198 = vld [vmem:[%s163 + $0xf0] sm:$0xff]
      %v199 = vld [vmem:[%s163 + $0xf8] sm:$0xff]
      %v200 = vld [vmem:[%s163 + $0x100] sm:$0x3]
      %v201 = vld [vmem:[%s163 + $0x108] sm:$0xff]
      %v202 = vld [vmem:[%s163 + $0x110] sm:$0xff]
      %v203 = vld [vmem:[%s163 + $0x118] sm:$0x3]
      %v204 = vld [vmem:[%s163 + $0x120] sm:$0xff]
      %v205 = vld [vmem:[%s163 + $0x128] sm:$0xff]
      %v206 = vld [vmem:[%s163 + $0x130] sm:$0x3]
      %v207 = vld [vmem:[%s163 + $0x138] sm:$0xff]
      %v208 = vld [vmem:[%s163 + $0x140] sm:$0xff]
      %v209 = vld [vmem:[%s163 + $0x148] sm:$0x3]
      %v210 = vld [vmem:[%s163 + $0x150] sm:$0xff]
      %v211 = vld [vmem:[%s163 + $0x158] sm:$0xff]
      %v212 = vld [vmem:[%s163 + $0x160] sm:$0x3]
      %v213 = vld [vmem:[%s163 + $0x168] sm:$0xff]
      %v214 = vld [vmem:[%s163 + $0x170] sm:$0xff]
      %v215 = vld [vmem:[%s163 + $0x178] sm:$0x3]
      %v216 = vld [vmem:[%s163 + $0x180] sm:$0xff]
      %v217 = vld [vmem:[%s163 + $0x188] sm:$0xff]
      %v218 = vld [vmem:[%s163 + $0x190] sm:$0x3]
      %v219 = vld [vmem:[%s163 + $0x198] sm:$0xff]
      %v220 = vld [vmem:[%s163 + $0x1a0] sm:$0xff]
      %v221 = vld [vmem:[%s163 + $0x1a8] sm:$0x3]
      %v222 = vld [vmem:[%s1] sm:$0x3]
      %v223 = vld [vmem:[%s1 + $0x2] sm:$0x3]
      %v224 = vld [vmem:[%s1 + $0x4] sm:$0x3]
      %v225 = vld [vmem:[%s1 + $0x6] sm:$0x3]
      %v226 = vld [vmem:[%s1 + $0x8] sm:$0x3]
      %v227 = vld [vmem:[%s1 + $0xa] sm:$0x3]
      %v228 = vld [vmem:[%s1 + $0xc] sm:$0x3]
      %v229 = vld [vmem:[%s1 + $0xe] sm:$0x3]
      %v230 = vld [vmem:[%s1 + $0x10] sm:$0x3]
      %v231 = vpack.c.bf16 %v169, %v168
      %v232 = vpack.c.bf16 %v172, %v171
      %v233 = vpack.c.bf16 %v175, %v174
      %v234 = vpack.c.bf16 %v178, %v177
      %v235 = vpack.c.bf16 %v181, %v180
      %v236 = vpack.c.bf16 %v184, %v183
      %v237 = vpack.c.bf16 %v187, %v186
      %v238 = vpack.c.bf16 %v190, %v189
      %v239 = vpack.c.bf16 %v193, %v192
      %v240 = vpack.c.bf16 %v196, %v195
      %v241 = vpack.c.bf16 %v199, %v198
      %v242 = vpack.c.bf16 %v202, %v201
      %v243 = vpack.c.bf16 %v205, %v204
      %v244 = vpack.c.bf16 %v208, %v207
      %v245 = vpack.c.bf16 %v211, %v210
      %v246 = vpack.c.bf16 %v214, %v213
      %vm295 = vcmask 1046528
      %v296 = vrot.slane %v168, 1
      %v297 = vrot.slane %v169, 1
      %v298 = vsel %vm295, %v296, %v297
      %v299 = vrot.slane %v170, 1
      %v300 = vsel %vm295, %v297, %v299
      %v301 = vrot.slane %v171, 1
      %v302 = vrot.slane %v172, 1
      %v303 = vsel %vm295, %v301, %v302
      %v304 = vrot.slane %v173, 1
      %v305 = vsel %vm295, %v302, %v304
      %v306 = vrot.slane %v174, 1
      %v307 = vrot.slane %v175, 1
      %v308 = vsel %vm295, %v306, %v307
      %v309 = vrot.slane %v176, 1
      %v310 = vsel %vm295, %v307, %v309
      %v311 = vrot.slane %v177, 1
      %v312 = vrot.slane %v178, 1
      %v313 = vsel %vm295, %v311, %v312
      %v314 = vrot.slane %v179, 1
      %v315 = vsel %vm295, %v312, %v314
      %v316 = vrot.slane %v180, 1
      %v317 = vrot.slane %v181, 1
      %v318 = vsel %vm295, %v316, %v317
      %v319 = vrot.slane %v182, 1
      %v320 = vsel %vm295, %v317, %v319
      %v321 = vrot.slane %v183, 1
      %v322 = vrot.slane %v184, 1
      %v323 = vsel %vm295, %v321, %v322
      %v324 = vrot.slane %v185, 1
      %v325 = vsel %vm295, %v322, %v324
      %v326 = vrot.slane %v186, 1
      %v327 = vrot.slane %v187, 1
      %v328 = vsel %vm295, %v326, %v327
      %v329 = vrot.slane %v188, 1
      %v330 = vsel %vm295, %v327, %v329
      %v331 = vrot.slane %v189, 1
      %v332 = vrot.slane %v190, 1
      %v333 = vsel %vm295, %v331, %v332
      %v334 = vrot.slane %v191, 1
      %v335 = vsel %vm295, %v332, %v334
      %v336 = vrot.slane %v192, 1
      %v337 = vrot.slane %v193, 1
      %v338 = vsel %vm295, %v336, %v337
      %v339 = vrot.slane %v194, 1
      %v340 = vsel %vm295, %v337, %v339
      %v341 = vrot.slane %v195, 1
      %v342 = vrot.slane %v196, 1
      %v343 = vsel %vm295, %v341, %v342
      %v344 = vrot.slane %v197, 1
      %v345 = vsel %vm295, %v342, %v344
      %v346 = vrot.slane %v198, 1
      %v347 = vrot.slane %v199, 1
      %v348 = vsel %vm295, %v346, %v347
      %v349 = vrot.slane %v200, 1
      %v350 = vsel %vm295, %v347, %v349
      %v351 = vrot.slane %v201, 1
      %v352 = vrot.slane %v202, 1
      %v353 = vsel %vm295, %v351, %v352
      %v354 = vrot.slane %v203, 1
      %v355 = vsel %vm295, %v352, %v354
      %v356 = vrot.slane %v204, 1
      %v357 = vrot.slane %v205, 1
      %v358 = vsel %vm295, %v356, %v357
      %v359 = vrot.slane %v206, 1
      %v360 = vsel %vm295, %v357, %v359
      %v361 = vrot.slane %v207, 1
      %v362 = vrot.slane %v208, 1
      %v363 = vsel %vm295, %v361, %v362
      %v364 = vrot.slane %v209, 1
      %v365 = vsel %vm295, %v362, %v364
      %v366 = vrot.slane %v210, 1
      %v367 = vrot.slane %v211, 1
      %v368 = vsel %vm295, %v366, %v367
      %v369 = vrot.slane %v212, 1
      %v370 = vsel %vm295, %v367, %v369
      %v371 = vrot.slane %v213, 1
      %v372 = vrot.slane %v214, 1
      %v373 = vsel %vm295, %v371, %v372
      %v374 = vrot.slane %v215, 1
      %v375 = vsel %vm295, %v372, %v374
      %v408 = vpack.c.bf16 %v300, %v298
      %v409 = vpack.c.bf16 %v305, %v303
      %v410 = vpack.c.bf16 %v310, %v308
      %v411 = vpack.c.bf16 %v315, %v313
      %v412 = vpack.c.bf16 %v320, %v318
      %v413 = vpack.c.bf16 %v325, %v323
      %v414 = vpack.c.bf16 %v330, %v328
      %v415 = vpack.c.bf16 %v335, %v333
      %v416 = vpack.c.bf16 %v340, %v338
      %v417 = vpack.c.bf16 %v345, %v343
      %v418 = vpack.c.bf16 %v350, %v348
      %v419 = vpack.c.bf16 %v355, %v353
      %v420 = vpack.c.bf16 %v360, %v358
      %v421 = vpack.c.bf16 %v365, %v363
      %v422 = vpack.c.bf16 %v370, %v368
      %v423 = vpack.c.bf16 %v375, %v373
      %vm424 = vcmask 31744
      %v426 = vsel %vm424, %v408, 0
      %v429 = vsel %vm424, %v409, 0
      %v432 = vsel %vm424, %v410, 0
      %v435 = vsel %vm424, %v411, 0
      %v438 = vsel %vm424, %v412, 0
      %v441 = vsel %vm424, %v413, 0
      %v444 = vsel %vm424, %v414, 0
      %v447 = vsel %vm424, %v415, 0
      %v450 = vsel %vm424, %v416, 0
      %v453 = vsel %vm424, %v417, 0
      %v456 = vsel %vm424, %v418, 0
      %v459 = vsel %vm424, %v419, 0
      %v462 = vsel %vm424, %v420, 0
      %v465 = vsel %vm424, %v421, 0
      %v468 = vsel %vm424, %v422, 0
      %v471 = vsel %vm424, %v423, 0
      %vm473 = vcmask 1041408
      %v475 = vsel %vm473, %v223, 0
      %477 = vmatprep.subr.bf16.mxu0 0
      %478 = vmatpush1.bf16.msra.mxu0 %v475
      %479 = vmatprep.subr.bf16.mxu0 0
      %480 = vmatpush1.bf16.msra.mxu0 0
      %481 = vmatprep.subr.bf16.mxu0 0
      %482 = vmatpush1.bf16.msra.mxu0 0
      %483 = vmatprep.subr.bf16.mxu0 0
      %484 = vmatpush1.bf16.msra.mxu0 0
      %485 = vmatprep.subr.bf16.mxu0 0
      %486 = vmatpush1.bf16.msra.mxu0 0
      %487 = vmatprep.subr.bf16.mxu0 0
      %488 = vmatpush1.bf16.msra.mxu0 0
      %489 = vmatprep.subr.bf16.mxu0 0
      %490 = vmatpush1.bf16.msra.mxu0 0
      %491 = vmatprep.subr.bf16.mxu0 0
      %492 = vmatpush1.bf16.msra.mxu0 0
      %493 = vmatprep.subr.bf16.mxu0 0
      %494 = vmatpush1.bf16.msra.mxu0 0
      %495 = vmatprep.subr.bf16.mxu0 0
      %496 = vmatpush1.bf16.msra.mxu0 0
      %497 = vmatprep.subr.bf16.mxu0 0
      %498 = vmatpush1.bf16.msra.mxu0 0
      %499 = vmatprep.subr.bf16.mxu0 0
      %500 = vmatpush1.bf16.msra.mxu0 0
      %501 = vmatprep.subr.bf16.mxu0 0
      %502 = vmatpush1.bf16.msra.mxu0 0
      %503 = vmatprep.subr.bf16.mxu0 0
      %504 = vmatpush1.bf16.msra.mxu0 0
      %505 = vmatprep.subr.bf16.mxu0 0
      %506 = vmatpush1.bf16.msra.mxu0 0
      %507 = vmatprep.subr.bf16.mxu0 0
      %508 = vmatpush1.bf16.msra.mxu0 0
      %509 = vmatprep.mubr.bf16.mxu0 0
      %510 = vmatmul.mubr.bf16.gmra.mrb[0].mxu0 %v426
      %v511 = vpop.f32.mrb[0].mxu0
      %v512 = vadd.f32 0.0, %v511
      %v513 = vpop.f32.mrb[0].mxu0
      %v514 = vpop.f32.mrb[0].mxu0
      %v515 = vadd.f32 0.0, %v514
      %v516 = vpop.f32.mrb[0].mxu0
      %517 = vmatprep.mubr.bf16.mxu0 0
      %518 = vmatmul.mubr.bf16.gmra.mrb[0].mxu0 %v429
      %v519 = vpop.f32.mrb[0].mxu0
      %v520 = vadd.f32 0.0, %v519
      %v521 = vpop.f32.mrb[0].mxu0
      %v522 = vpop.f32.mrb[0].mxu0
      %v523 = vadd.f32 0.0, %v522
      %v524 = vpop.f32.mrb[0].mxu0
      %525 = vmatprep.mubr.bf16.mxu0 0
      %526 = vmatmul.mubr.bf16.gmra.mrb[0].mxu0 %v432
      %v527 = vpop.f32.mrb[0].mxu0
      %v528 = vadd.f32 0.0, %v527
      %v529 = vpop.f32.mrb[0].mxu0
      %v530 = vpop.f32.mrb[0].mxu0
      %v531 = vadd.f32 0.0, %v530
      %v532 = vpop.f32.mrb[0].mxu0
      %533 = vmatprep.mubr.bf16.mxu0 0
      %534 = vmatmul.mubr.bf16.gmra.mrb[0].mxu0 %v435
      %v535 = vpop.f32.mrb[0].mxu0
      %v536 = vadd.f32 0.0, %v535
      %v537 = vpop.f32.mrb[0].mxu0
      %v538 = vpop.f32.mrb[0].mxu0
      %v539 = vadd.f32 0.0, %v538
      %v540 = vpop.f32.mrb[0].mxu0
      %541 = vmatprep.mubr.bf16.mxu0 0
      %542 = vmatmul.mubr.bf16.gmra.mrb[0].mxu0 %v438
      %v543 = vpop.f32.mrb[0].mxu0
      %v544 = vadd.f32 0.0, %v543
      %v545 = vpop.f32.mrb[0].mxu0
      %v546 = vpop.f32.mrb[0].mxu0
      %v547 = vadd.f32 0.0, %v546
      %v548 = vpop.f32.mrb[0].mxu0
      %549 = vmatprep.mubr.bf16.mxu0 0
      %550 = vmatmul.mubr.bf16.gmra.mrb[0].mxu0 %v441
      %v551 = vpop.f32.mrb[0].mxu0
      %v552 = vadd.f32 0.0, %v551
      %v553 = vpop.f32.mrb[0].mxu0
      %v554 = vpop.f32.mrb[0].mxu0
      %v555 = vadd.f32 0.0, %v554
      %v556 = vpop.f32.mrb[0].mxu0
      %557 = vmatprep.mubr.bf16.mxu0 0
      %558 = vmatmul.mubr.bf16.gmra.mrb[0].mxu0 %v444
      %v559 = vpop.f32.mrb[0].mxu0
      %v560 = vadd.f32 0.0, %v559
      %v561 = vpop.f32.mrb[0].mxu0
      %v562 = vpop.f32.mrb[0].mxu0
      %v563 = vadd.f32 0.0, %v562
      %v564 = vpop.f32.mrb[0].mxu0
      %565 = vmatprep.mubr.bf16.mxu0 0
      %566 = vmatmul.mubr.bf16.gmra.mrb[0].mxu0 %v447
      %v567 = vpop.f32.mrb[0].mxu0
      %v568 = vadd.f32 0.0, %v567
      %v569 = vpop.f32.mrb[0].mxu0
      %v570 = vpop.f32.mrb[0].mxu0
      %v571 = vadd.f32 0.0, %v570
      %v572 = vpop.f32.mrb[0].mxu0
      %573 = vmatprep.mubr.bf16.mxu0 0
      %574 = vmatmul.mubr.bf16.gmra.mrb[0].mxu0 %v450
      %v575 = vpop.f32.mrb[0].mxu0
      %v576 = vadd.f32 0.0, %v575
      %v577 = vpop.f32.mrb[0].mxu0
      %v578 = vpop.f32.mrb[0].mxu0
      %v579 = vadd.f32 0.0, %v578
      %v580 = vpop.f32.mrb[0].mxu0
      %581 = vmatprep.mubr.bf16.mxu0 0
      %582 = vmatmul.mubr.bf16.gmra.mrb[0].mxu0 %v453
      %v583 = vpop.f32.mrb[0].mxu0
      %v584 = vadd.f32 0.0, %v583
      %v585 = vpop.f32.mrb[0].mxu0
      %v586 = vpop.f32.mrb[0].mxu0
      %v587 = vadd.f32 0.0, %v586
      %v588 = vpop.f32.mrb[0].mxu0
      %589 = vmatprep.mubr.bf16.mxu0 0
      %590 = vmatmul.mubr.bf16.gmra.mrb[0].mxu0 %v456
      %v591 = vpop.f32.mrb[0].mxu0
      %v592 = vadd.f32 0.0, %v591
      %v593 = vpop.f32.mrb[0].mxu0
      %v594 = vpop.f32.mrb[0].mxu0
      %v595 = vadd.f32 0.0, %v594
      %v596 = vpop.f32.mrb[0].mxu0
      %597 = vmatprep.mubr.bf16.mxu0 0
      %598 = vmatmul.mubr.bf16.gmra.mrb[0].mxu0 %v459
      %v599 = vpop.f32.mrb[0].mxu0
      %v600 = vadd.f32 0.0, %v599
      %v601 = vpop.f32.mrb[0].mxu0
      %v602 = vpop.f32.mrb[0].mxu0
      %v603 = vadd.f32 0.0, %v602
      %v604 = vpop.f32.mrb[0].mxu0
      %605 = vmatprep.mubr.bf16.mxu0 0
      %606 = vmatmul.mubr.bf16.gmra.mrb[0].mxu0 %v462
      %v607 = vpop.f32.mrb[0].mxu0
      %v608 = vadd.f32 0.0, %v607
      %v609 = vpop.f32.mrb[0].mxu0
      %v610 = vpop.f32.mrb[0].mxu0
      %v611 = vadd.f32 0.0, %v610
      %v612 = vpop.f32.mrb[0].mxu0
      %613 = vmatprep.mubr.bf16.mxu0 0
      %614 = vmatmul.mubr.bf16.gmra.mrb[0].mxu0 %v465
      %v615 = vpop.f32.mrb[0].mxu0
      %v616 = vadd.f32 0.0, %v615
      %v617 = vpop.f32.mrb[0].mxu0
      %v618 = vpop.f32.mrb[0].mxu0
      %v619 = vadd.f32 0.0, %v618
      %v620 = vpop.f32.mrb[0].mxu0
      %621 = vmatprep.mubr.bf16.mxu0 0
      %622 = vmatmul.mubr.bf16.gmra.mrb[0].mxu0 %v468
      %v623 = vpop.f32.mrb[0].mxu0
      %v624 = vadd.f32 0.0, %v623
      %v625 = vpop.f32.mrb[0].mxu0
      %v626 = vpop.f32.mrb[0].mxu0
      %v627 = vadd.f32 0.0, %v626
      %v628 = vpop.f32.mrb[0].mxu0
      %629 = vmatprep.mubr.bf16.mxu0 0
      %630 = vmatmul.mubr.bf16.gmra.mrb[0].mxu0 %v471
      %v631 = vpop.f32.mrb[0].mxu0
      %v632 = vadd.f32 0.0, %v631
      %v633 = vpop.f32.mrb[0].mxu0
      %v634 = vpop.f32.mrb[0].mxu0
      %v635 = vadd.f32 0.0, %v634
      %v636 = vpop.f32.mrb[0].mxu0
      %637 = vdwg.mxu0
      %v639 = vsel %vm424, %v231, 0
      %v642 = vsel %vm424, %v232, 0
      %v645 = vsel %vm424, %v233, 0
      %v648 = vsel %vm424, %v234, 0
      %v651 = vsel %vm424, %v235, 0
      %v654 = vsel %vm424, %v236, 0
      %v657 = vsel %vm424, %v237, 0
      %v660 = vsel %vm424, %v238, 0
      %v663 = vsel %vm424, %v239, 0
      %v666 = vsel %vm424, %v240, 0
      %v669 = vsel %vm424, %v241, 0
      %v672 = vsel %vm424, %v242, 0
      %v675 = vsel %vm424, %v243, 0
      %v678 = vsel %vm424, %v244, 0
      %v681 = vsel %vm424, %v245, 0
      %v684 = vsel %vm424, %v246, 0
      %v687 = vsel %vm473, %v222, 0
      %689 = vmatprep.subr.bf16.mxu0 0
      %690 = vmatpush1.bf16.msra.mxu0 %v687
      %691 = vmatprep.subr.bf16.mxu0 0
      %692 = vmatpush1.bf16.msra.mxu0 0
      %693 = vmatprep.subr.bf16.mxu0 0
      %694 = vmatpush1.bf16.msra.mxu0 0
      %695 = vmatprep.subr.bf16.mxu0 0
      %696 = vmatpush1.bf16.msra.mxu0 0
      %697 = vmatprep.subr.bf16.mxu0 0
      %698 = vmatpush1.bf16.msra.mxu0 0
      %699 = vmatprep.subr.bf16.mxu0 0
      %700 = vmatpush1.bf16.msra.mxu0 0
      %701 = vmatprep.subr.bf16.mxu0 0
      %702 = vmatpush1.bf16.msra.mxu0 0
      %703 = vmatprep.subr.bf16.mxu0 0
      %704 = vmatpush1.bf16.msra.mxu0 0
      %705 = vmatprep.subr.bf16.mxu0 0
      %706 = vmatpush1.bf16.msra.mxu0 0
      %707 = vmatprep.subr.bf16.mxu0 0
      %708 = vmatpush1.bf16.msra.mxu0 0
      %709 = vmatprep.subr.bf16.mxu0 0
      %710 = vmatpush1.bf16.msra.mxu0 0
      %711 = vmatprep.subr.bf16.mxu0 0
      %712 = vmatpush1.bf16.msra.mxu0 0
      %713 = vmatprep.subr.bf16.mxu0 0
      %714 = vmatpush1.bf16.msra.mxu0 0
      %715 = vmatprep.subr.bf16.mxu0 0
      %716 = vmatpush1.bf16.msra.mxu0 0
      %717 = vmatprep.subr.bf16.mxu0 0
      %718 = vmatpush1.bf16.msra.mxu0 0
      %719 = vmatprep.subr.bf16.mxu0 0
      %720 = vmatpush1.bf16.msra.mxu0 0
      %721 = vmatprep.mubr.bf16.mxu0 0
      %722 = vmatmul.mubr.bf16.gmra.mrb[0].mxu0 %v639
      %v723 = vpop.f32.mrb[0].mxu0
      %v724 = vadd.f32 %v512, %v723
      %v725 = vpop.f32.mrb[0].mxu0
      %v726 = vpop.f32.mrb[0].mxu0
      %v727 = vadd.f32 %v515, %v726
      %v728 = vpop.f32.mrb[0].mxu0
      %729 = vmatprep.mubr.bf16.mxu0 0
      %730 = vmatmul.mubr.bf16.gmra.mrb[0].mxu0 %v642
      %v731 = vpop.f32.mrb[0].mxu0
      %v732 = vadd.f32 %v520, %v731
      %v733 = vpop.f32.mrb[0].mxu0
      %v734 = vpop.f32.mrb[0].mxu0
      %v735 = vadd.f32 %v523, %v734
      %v736 = vpop.f32.mrb[0].mxu0
      %737 = vmatprep.mubr.bf16.mxu0 0
      %738 = vmatmul.mubr.bf16.gmra.mrb[0].mxu0 %v645
      %v739 = vpop.f32.mrb[0].mxu0
      %v740 = vadd.f32 %v528, %v739
      %v741 = vpop.f32.mrb[0].mxu0
      %v742 = vpop.f32.mrb[0].mxu0
      %v743 = vadd.f32 %v531, %v742
      %v744 = vpop.f32.mrb[0].mxu0
      %745 = vmatprep.mubr.bf16.mxu0 0
      %746 = vmatmul.mubr.bf16.gmra.mrb[0].mxu0 %v648
      %v747 = vpop.f32.mrb[0].mxu0
      %v748 = vadd.f32 %v536, %v747
      %v749 = vpop.f32.mrb[0].mxu0
      %v750 = vpop.f32.mrb[0].mxu0
      %v751 = vadd.f32 %v539, %v750
      %v752 = vpop.f32.mrb[0].mxu0
      %753 = vmatprep.mubr.bf16.mxu0 0
      %754 = vmatmul.mubr.bf16.gmra.mrb[0].mxu0 %v651
      %v755 = vpop.f32.mrb[0].mxu0
      %v756 = vadd.f32 %v544, %v755
      %v757 = vpop.f32.mrb[0].mxu0
      %v758 = vpop.f32.mrb[0].mxu0
      %v759 = vadd.f32 %v547, %v758
      %v760 = vpop.f32.mrb[0].mxu0
      %761 = vmatprep.mubr.bf16.mxu0 0
      %762 = vmatmul.mubr.bf16.gmra.mrb[0].mxu0 %v654
      %v763 = vpop.f32.mrb[0].mxu0
      %v764 = vadd.f32 %v552, %v763
      %v765 = vpop.f32.mrb[0].mxu0
      %v766 = vpop.f32.mrb[0].mxu0
      %v767 = vadd.f32 %v555, %v766
      %v768 = vpop.f32.mrb[0].mxu0
      %769 = vmatprep.mubr.bf16.mxu0 0
      %770 = vmatmul.mubr.bf16.gmra.mrb[0].mxu0 %v657
      %v771 = vpop.f32.mrb[0].mxu0
      %v772 = vadd.f32 %v560, %v771
      %v773 = vpop.f32.mrb[0].mxu0
      %v774 = vpop.f32.mrb[0].mxu0
      %v775 = vadd.f32 %v563, %v774
      %v776 = vpop.f32.mrb[0].mxu0
      %777 = vmatprep.mubr.bf16.mxu0 0
      %778 = vmatmul.mubr.bf16.gmra.mrb[0].mxu0 %v660
      %v779 = vpop.f32.mrb[0].mxu0
      %v780 = vadd.f32 %v568, %v779
      %v781 = vpop.f32.mrb[0].mxu0
      %v782 = vpop.f32.mrb[0].mxu0
      %v783 = vadd.f32 %v571, %v782
      %v784 = vpop.f32.mrb[0].mxu0
      %785 = vmatprep.mubr.bf16.mxu0 0
      %786 = vmatmul.mubr.bf16.gmra.mrb[0].mxu0 %v663
      %v787 = vpop.f32.mrb[0].mxu0
      %v788 = vadd.f32 %v576, %v787
      %v789 = vpop.f32.mrb[0].mxu0
      %v790 = vpop.f32.mrb[0].mxu0
      %v791 = vadd.f32 %v579, %v790
      %v792 = vpop.f32.mrb[0].mxu0
      %793 = vmatprep.mubr.bf16.mxu0 0
      %794 = vmatmul.mubr.bf16.gmra.mrb[0].mxu0 %v666
      %v795 = vpop.f32.mrb[0].mxu0
      %v796 = vadd.f32 %v584, %v795
      %v797 = vpop.f32.mrb[0].mxu0
      %v798 = vpop.f32.mrb[0].mxu0
      %v799 = vadd.f32 %v587, %v798
      %v800 = vpop.f32.mrb[0].mxu0
      %801 = vmatprep.mubr.bf16.mxu0 0
      %802 = vmatmul.mubr.bf16.gmra.mrb[0].mxu0 %v669
      %v803 = vpop.f32.mrb[0].mxu0
      %v804 = vadd.f32 %v592, %v803
      %v805 = vpop.f32.mrb[0].mxu0
      %v806 = vpop.f32.mrb[0].mxu0
      %v807 = vadd.f32 %v595, %v806
      %v808 = vpop.f32.mrb[0].mxu0
      %809 = vmatprep.mubr.bf16.mxu0 0
      %810 = vmatmul.mubr.bf16.gmra.mrb[0].mxu0 %v672
      %v811 = vpop.f32.mrb[0].mxu0
      %v812 = vadd.f32 %v600, %v811
      %v813 = vpop.f32.mrb[0].mxu0
      %v814 = vpop.f32.mrb[0].mxu0
      %v815 = vadd.f32 %v603, %v814
      %v816 = vpop.f32.mrb[0].mxu0
      %817 = vmatprep.mubr.bf16.mxu0 0
      %818 = vmatmul.mubr.bf16.gmra.mrb[0].mxu0 %v675
      %v819 = vpop.f32.mrb[0].mxu0
      %v820 = vadd.f32 %v608, %v819
      %v821 = vpop.f32.mrb[0].mxu0
      %v822 = vpop.f32.mrb[0].mxu0
      %v823 = vadd.f32 %v611, %v822
      %v824 = vpop.f32.mrb[0].mxu0
      %825 = vmatprep.mubr.bf16.mxu0 0
      %826 = vmatmul.mubr.bf16.gmra.mrb[0].mxu0 %v678
      %v827 = vpop.f32.mrb[0].mxu0
      %v828 = vadd.f32 %v616, %v827
      %v829 = vpop.f32.mrb[0].mxu0
      %v830 = vpop.f32.mrb[0].mxu0
      %v831 = vadd.f32 %v619, %v830
      %v832 = vpop.f32.mrb[0].mxu0
      %833 = vmatprep.mubr.bf16.mxu0 0
      %834 = vmatmul.mubr.bf16.gmra.mrb[0].mxu0 %v681
      %v835 = vpop.f32.mrb[0].mxu0
      %v836 = vadd.f32 %v624, %v835
      %v837 = vpop.f32.mrb[0].mxu0
      %v838 = vpop.f32.mrb[0].mxu0
      %v839 = vadd.f32 %v627, %v838
      %v840 = vpop.f32.mrb[0].mxu0
      %841 = vmatprep.mubr.bf16.mxu0 0
      %842 = vmatmul.mubr.bf16.gmra.mrb[0].mxu0 %v684
      %v843 = vpop.f32.mrb[0].mxu0
      %v844 = vadd.f32 %v632, %v843
      %v845 = vpop.f32.mrb[0].mxu0
      %v846 = vpop.f32.mrb[0].mxu0
      %v847 = vadd.f32 %v635, %v846
      %v848 = vpop.f32.mrb[0].mxu0
      %849 = vdwg.mxu0
      %vm850 = vcmask 1045504
      %v851 = vrot.slane %v168, 2
      %v852 = vrot.slane %v169, 2
      %v853 = vsel %vm850, %v851, %v852
      %v854 = vrot.slane %v170, 2
      %v855 = vsel %vm850, %v852, %v854
      %v856 = vrot.slane %v171, 2
      %v857 = vrot.slane %v172, 2
      %v858 = vsel %vm850, %v856, %v857
      %v859 = vrot.slane %v173, 2
      %v860 = vsel %vm850, %v857, %v859
      %v861 = vrot.slane %v174, 2
      %v862 = vrot.slane %v175, 2
      %v863 = vsel %vm850, %v861, %v862
      %v864 = vrot.slane %v176, 2
      %v865 = vsel %vm850, %v862, %v864
      %v866 = vrot.slane %v177, 2
      %v867 = vrot.slane %v178, 2
      %v868 = vsel %vm850, %v866, %v867
      %v869 = vrot.slane %v179, 2
      %v870 = vsel %vm850, %v867, %v869
      %v871 = vrot.slane %v180, 2
      %v872 = vrot.slane %v181, 2
      %v873 = vsel %vm850, %v871, %v872
      %v874 = vrot.slane %v182, 2
      %v875 = vsel %vm850, %v872, %v874
      %v876 = vrot.slane %v183, 2
      %v877 = vrot.slane %v184, 2
      %v878 = vsel %vm850, %v876, %v877
      %v879 = vrot.slane %v185, 2
      %v880 = vsel %vm850, %v877, %v879
      %v881 = vrot.slane %v186, 2
      %v882 = vrot.slane %v187, 2
      %v883 = vsel %vm850, %v881, %v882
      %v884 = vrot.slane %v188, 2
      %v885 = vsel %vm850, %v882, %v884
      %v886 = vrot.slane %v189, 2
      %v887 = vrot.slane %v190, 2
      %v888 = vsel %vm850, %v886, %v887
      %v889 = vrot.slane %v191, 2
      %v890 = vsel %vm850, %v887, %v889
      %v891 = vrot.slane %v192, 2
      %v892 = vrot.slane %v193, 2
      %v893 = vsel %vm850, %v891, %v892
      %v894 = vrot.slane %v194, 2
      %v895 = vsel %vm850, %v892, %v894
      %v896 = vrot.slane %v195, 2
      %v897 = vrot.slane %v196, 2
      %v898 = vsel %vm850, %v896, %v897
      %v899 = vrot.slane %v197, 2
      %v900 = vsel %vm850, %v897, %v899
      %v901 = vrot.slane %v198, 2
      %v902 = vrot.slane %v199, 2
      %v903 = vsel %vm850, %v901, %v902
      %v904 = vrot.slane %v200, 2
      %v905 = vsel %vm850, %v902, %v904
      %v906 = vrot.slane %v201, 2
      %v907 = vrot.slane %v202, 2
      %v908 = vsel %vm850, %v906, %v907
      %v909 = vrot.slane %v203, 2
      %v910 = vsel %vm850, %v907, %v909
      %v911 = vrot.slane %v204, 2
      %v912 = vrot.slane %v205, 2
      %v913 = vsel %vm850, %v911, %v912
      %v914 = vrot.slane %v206, 2
      %v915 = vsel %vm850, %v912, %v914
      %v916 = vrot.slane %v207, 2
      %v917 = vrot.slane %v208, 2
      %v918 = vsel %vm850, %v916, %v917
      %v919 = vrot.slane %v209, 2
      %v920 = vsel %vm850, %v917, %v919
      %v921 = vrot.slane %v210, 2
      %v922 = vrot.slane %v211, 2
      %v923 = vsel %vm850, %v921, %v922
      %v924 = vrot.slane %v212, 2
      %v925 = vsel %vm850, %v922, %v924
      %v926 = vrot.slane %v213, 2
      %v927 = vrot.slane %v214, 2
      %v928 = vsel %vm850, %v926, %v927
      %v929 = vrot.slane %v215, 2
      %v930 = vsel %vm850, %v927, %v929
      %v963 = vpack.c.bf16 %v855, %v853
      %v964 = vpack.c.bf16 %v860, %v858
      %v965 = vpack.c.bf16 %v865, %v863
      %v966 = vpack.c.bf16 %v870, %v868
      %v967 = vpack.c.bf16 %v875, %v873
      %v968 = vpack.c.bf16 %v880, %v878
      %v969 = vpack.c.bf16 %v885, %v883
      %v970 = vpack.c.bf16 %v890, %v888
      %v971 = vpack.c.bf16 %v895, %v893
      %v972 = vpack.c.bf16 %v900, %v898
      %v973 = vpack.c.bf16 %v905, %v903
      %v974 = vpack.c.bf16 %v910, %v908
      %v975 = vpack.c.bf16 %v915, %v913
      %v976 = vpack.c.bf16 %v920, %v918
      %v977 = vpack.c.bf16 %v925, %v923
      %v978 = vpack.c.bf16 %v930, %v928
      %v980 = vsel %vm424, %v963, 0
      %v983 = vsel %vm424, %v964, 0
      %v986 = vsel %vm424, %v965, 0
      %v989 = vsel %vm424, %v966, 0
      %v992 = vsel %vm424, %v967, 0
      %v995 = vsel %vm424, %v968, 0
      %v998 = vsel %vm424, %v969, 0
      %v1001 = vsel %vm424, %v970, 0
      %v1004 = vsel %vm424, %v971, 0
      %v1007 = vsel %vm424, %v972, 0
      %v1010 = vsel %vm424, %v973, 0
      %v1013 = vsel %vm424, %v974, 0
      %v1016 = vsel %vm424, %v975, 0
      %v1019 = vsel %vm424, %v976, 0
      %v1022 = vsel %vm424, %v977, 0
      %v1025 = vsel %vm424, %v978, 0
      %v1028 = vsel %vm473, %v224, 0
      %1030 = vmatprep.subr.bf16.mxu0 0
      %1031 = vmatpush1.bf16.msra.mxu0 %v1028
      %1032 = vmatprep.subr.bf16.mxu0 0
      %1033 = vmatpush1.bf16.msra.mxu0 0
      %1034 = vmatprep.subr.bf16.mxu0 0
      %1035 = vmatpush1.bf16.msra.mxu0 0
      %1036 = vmatprep.subr.bf16.mxu0 0
      %1037 = vmatpush1.bf16.msra.mxu0 0
      %1038 = vmatprep.subr.bf16.mxu0 0
      %1039 = vmatpush1.bf16.msra.mxu0 0
      %1040 = vmatprep.subr.bf16.mxu0 0
      %1041 = vmatpush1.bf16.msra.mxu0 0
      %1042 = vmatprep.subr.bf16.mxu0 0
      %1043 = vmatpush1.bf16.msra.mxu0 0
      %1044 = vmatprep.subr.bf16.mxu0 0
      %1045 = vmatpush1.bf16.msra.mxu0 0
      %1046 = vmatprep.subr.bf16.mxu0 0
      %1047 = vmatpush1.bf16.msra.mxu0 0
      %1048 = vmatprep.subr.bf16.mxu0 0
      %1049 = vmatpush1.bf16.msra.mxu0 0
      %1050 = vmatprep.subr.bf16.mxu0 0
      %1051 = vmatpush1.bf16.msra.mxu0 0
      %1052 = vmatprep.subr.bf16.mxu0 0
      %1053 = vmatpush1.bf16.msra.mxu0 0
      %1054 = vmatprep.subr.bf16.mxu0 0
      %1055 = vmatpush1.bf16.msra.mxu0 0
      %1056 = vmatprep.subr.bf16.mxu0 0
      %1057 = vmatpush1.bf16.msra.mxu0 0
      %1058 = vmatprep.subr.bf16.mxu0 0
      %1059 = vmatpush1.bf16.msra.mxu0 0
      %1060 = vmatprep.subr.bf16.mxu0 0
      %1061 = vmatpush1.bf16.msra.mxu0 0
      %1062 = vmatprep.mubr.bf16.mxu0 0
      %1063 = vmatmul.mubr.bf16.gmra.mrb[0].mxu0 %v980
      %v1064 = vpop.f32.mrb[0].mxu0
      %v1065 = vadd.f32 0.0, %v1064
      %v1066 = vpop.f32.mrb[0].mxu0
      %v1067 = vpop.f32.mrb[0].mxu0
      %v1068 = vadd.f32 0.0, %v1067
      %v1069 = vpop.f32.mrb[0].mxu0
      %1070 = vmatprep.mubr.bf16.mxu0 0
      %1071 = vmatmul.mubr.bf16.gmra.mrb[0].mxu0 %v983
      %v1072 = vpop.f32.mrb[0].mxu0
      %v1073 = vadd.f32 0.0, %v1072
      %v1074 = vpop.f32.mrb[0].mxu0
      %v1075 = vpop.f32.mrb[0].mxu0
      %v1076 = vadd.f32 0.0, %v1075
      %v1077 = vpop.f32.mrb[0].mxu0
      %1078 = vmatprep.mubr.bf16.mxu0 0
      %1079 = vmatmul.mubr.bf16.gmra.mrb[0].mxu0 %v986
      %v1080 = vpop.f32.mrb[0].mxu0
      %v1081 = vadd.f32 0.0, %v1080
      %v1082 = vpop.f32.mrb[0].mxu0
      %v1083 = vpop.f32.mrb[0].mxu0
      %v1084 = vadd.f32 0.0, %v1083
      %v1085 = vpop.f32.mrb[0].mxu0
      %1086 = vmatprep.mubr.bf16.mxu0 0
      %1087 = vmatmul.mubr.bf16.gmra.mrb[0].mxu0 %v989
      %v1088 = vpop.f32.mrb[0].mxu0
      %v1089 = vadd.f32 0.0, %v1088
      %v1090 = vpop.f32.mrb[0].mxu0
      %v1091 = vpop.f32.mrb[0].mxu0
      %v1092 = vadd.f32 0.0, %v1091
      %v1093 = vpop.f32.mrb[0].mxu0
      %1094 = vmatprep.mubr.bf16.mxu0 0
      %1095 = vmatmul.mubr.bf16.gmra.mrb[0].mxu0 %v992
      %v1096 = vpop.f32.mrb[0].mxu0
      %v1097 = vadd.f32 0.0, %v1096
      %v1098 = vpop.f32.mrb[0].mxu0
      %v1099 = vpop.f32.mrb[0].mxu0
      %v1100 = vadd.f32 0.0, %v1099
      %v1101 = vpop.f32.mrb[0].mxu0
      %1102 = vmatprep.mubr.bf16.mxu0 0
      %1103 = vmatmul.mubr.bf16.gmra.mrb[0].mxu0 %v995
      %v1104 = vpop.f32.mrb[0].mxu0
      %v1105 = vadd.f32 0.0, %v1104
      %v1106 = vpop.f32.mrb[0].mxu0
      %v1107 = vpop.f32.mrb[0].mxu0
      %v1108 = vadd.f32 0.0, %v1107
      %v1109 = vpop.f32.mrb[0].mxu0
      %1110 = vmatprep.mubr.bf16.mxu0 0
      %1111 = vmatmul.mubr.bf16.gmra.mrb[0].mxu0 %v998
      %v1112 = vpop.f32.mrb[0].mxu0
      %v1113 = vadd.f32 0.0, %v1112
      %v1114 = vpop.f32.mrb[0].mxu0
      %v1115 = vpop.f32.mrb[0].mxu0
      %v1116 = vadd.f32 0.0, %v1115
      %v1117 = vpop.f32.mrb[0].mxu0
      %1118 = vmatprep.mubr.bf16.mxu0 0
      %1119 = vmatmul.mubr.bf16.gmra.mrb[0].mxu0 %v1001
      %v1120 = vpop.f32.mrb[0].mxu0
      %v1121 = vadd.f32 0.0, %v1120
      %v1122 = vpop.f32.mrb[0].mxu0
      %v1123 = vpop.f32.mrb[0].mxu0
      %v1124 = vadd.f32 0.0, %v1123
      %v1125 = vpop.f32.mrb[0].mxu0
      %1126 = vmatprep.mubr.bf16.mxu0 0
      %1127 = vmatmul.mubr.bf16.gmra.mrb[0].mxu0 %v1004
      %v1128 = vpop.f32.mrb[0].mxu0
      %v1129 = vadd.f32 0.0, %v1128
      %v1130 = vpop.f32.mrb[0].mxu0
      %v1131 = vpop.f32.mrb[0].mxu0
      %v1132 = vadd.f32 0.0, %v1131
      %v1133 = vpop.f32.mrb[0].mxu0
      %1134 = vmatprep.mubr.bf16.mxu0 0
      %1135 = vmatmul.mubr.bf16.gmra.mrb[0].mxu0 %v1007
      %v1136 = vpop.f32.mrb[0].mxu0
      %v1137 = vadd.f32 0.0, %v1136
      %v1138 = vpop.f32.mrb[0].mxu0
      %v1139 = vpop.f32.mrb[0].mxu0
      %v1140 = vadd.f32 0.0, %v1139
      %v1141 = vpop.f32.mrb[0].mxu0
      %1142 = vmatprep.mubr.bf16.mxu0 0
      %1143 = vmatmul.mubr.bf16.gmra.mrb[0].mxu0 %v1010
      %v1144 = vpop.f32.mrb[0].mxu0
      %v1145 = vadd.f32 0.0, %v1144
      %v1146 = vpop.f32.mrb[0].mxu0
      %v1147 = vpop.f32.mrb[0].mxu0
      %v1148 = vadd.f32 0.0, %v1147
      %v1149 = vpop.f32.mrb[0].mxu0
      %1150 = vmatprep.mubr.bf16.mxu0 0
      %1151 = vmatmul.mubr.bf16.gmra.mrb[0].mxu0 %v1013
      %v1152 = vpop.f32.mrb[0].mxu0
      %v1153 = vadd.f32 0.0, %v1152
      %v1154 = vpop.f32.mrb[0].mxu0
      %v1155 = vpop.f32.mrb[0].mxu0
      %v1156 = vadd.f32 0.0, %v1155
      %v1157 = vpop.f32.mrb[0].mxu0
      %1158 = vmatprep.mubr.bf16.mxu0 0
      %1159 = vmatmul.mubr.bf16.gmra.mrb[0].mxu0 %v1016
      %v1160 = vpop.f32.mrb[0].mxu0
      %v1161 = vadd.f32 0.0, %v1160
      %v1162 = vpop.f32.mrb[0].mxu0
      %v1163 = vpop.f32.mrb[0].mxu0
      %v1164 = vadd.f32 0.0, %v1163
      %v1165 = vpop.f32.mrb[0].mxu0
      %1166 = vmatprep.mubr.bf16.mxu0 0
      %1167 = vmatmul.mubr.bf16.gmra.mrb[0].mxu0 %v1019
      %v1168 = vpop.f32.mrb[0].mxu0
      %v1169 = vadd.f32 0.0, %v1168
      %v1170 = vpop.f32.mrb[0].mxu0
      %v1171 = vpop.f32.mrb[0].mxu0
      %v1172 = vadd.f32 0.0, %v1171
      %v1173 = vpop.f32.mrb[0].mxu0
      %1174 = vmatprep.mubr.bf16.mxu0 0
      %1175 = vmatmul.mubr.bf16.gmra.mrb[0].mxu0 %v1022
      %v1176 = vpop.f32.mrb[0].mxu0
      %v1177 = vadd.f32 0.0, %v1176
      %v1178 = vpop.f32.mrb[0].mxu0
      %v1179 = vpop.f32.mrb[0].mxu0
      %v1180 = vadd.f32 0.0, %v1179
      %v1181 = vpop.f32.mrb[0].mxu0
      %1182 = vmatprep.mubr.bf16.mxu0 0
      %1183 = vmatmul.mubr.bf16.gmra.mrb[0].mxu0 %v1025
      %v1184 = vpop.f32.mrb[0].mxu0
      %v1185 = vadd.f32 0.0, %v1184
      %v1186 = vpop.f32.mrb[0].mxu0
      %v1187 = vpop.f32.mrb[0].mxu0
      %v1188 = vadd.f32 0.0, %v1187
      %v1189 = vpop.f32.mrb[0].mxu0
      %1190 = vdwg.mxu0
      %v1191 = vadd.f32 %v724, %v1065
      %v1192 = vadd.f32 %v727, %v1068
      %v1193 = vadd.f32 %v732, %v1073
      %v1194 = vadd.f32 %v735, %v1076
      %v1195 = vadd.f32 %v740, %v1081
      %v1196 = vadd.f32 %v743, %v1084
      %v1197 = vadd.f32 %v748, %v1089
      %v1198 = vadd.f32 %v751, %v1092
      %v1199 = vadd.f32 %v756, %v1097
      %v1200 = vadd.f32 %v759, %v1100
      %v1201 = vadd.f32 %v764, %v1105
      %v1202 = vadd.f32 %v767, %v1108
      %v1203 = vadd.f32 %v772, %v1113
      %v1204 = vadd.f32 %v775, %v1116
      %v1205 = vadd.f32 %v780, %v1121
      %v1206 = vadd.f32 %v783, %v1124
      %v1207 = vadd.f32 %v788, %v1129
      %v1208 = vadd.f32 %v791, %v1132
      %v1209 = vadd.f32 %v796, %v1137
      %v1210 = vadd.f32 %v799, %v1140
      %v1211 = vadd.f32 %v804, %v1145
      %v1212 = vadd.f32 %v807, %v1148
      %v1213 = vadd.f32 %v812, %v1153
      %v1214 = vadd.f32 %v815, %v1156
      %v1215 = vadd.f32 %v820, %v1161
      %v1216 = vadd.f32 %v823, %v1164
      %v1217 = vadd.f32 %v828, %v1169
      %v1218 = vadd.f32 %v831, %v1172
      %v1219 = vadd.f32 %v836, %v1177
      %v1220 = vadd.f32 %v839, %v1180
      %v1221 = vadd.f32 %v844, %v1185
      %v1222 = vadd.f32 %v847, %v1188
      %v1223 = vpack.c.bf16 %v217, %v216
      %v1225 = vsel %vm424, %v1223, 0
      %v1228 = vsel %vm473, %v225, 0
      %1230 = vmatprep.subr.bf16.mxu0 0
      %1231 = vmatpush1.bf16.msra.mxu0 %v1228
      %1232 = vmatprep.subr.bf16.mxu0 0
      %1233 = vmatpush1.bf16.msra.mxu0 0
      %1234 = vmatprep.subr.bf16.mxu0 0
      %1235 = vmatpush1.bf16.msra.mxu0 0
      %1236 = vmatprep.subr.bf16.mxu0 0
      %1237 = vmatpush1.bf16.msra.mxu0 0
      %1238 = vmatprep.subr.bf16.mxu0 0
      %1239 = vmatpush1.bf16.msra.mxu0 0
      %1240 = vmatprep.subr.bf16.mxu0 0
      %1241 = vmatpush1.bf16.msra.mxu0 0
      %1242 = vmatprep.subr.bf16.mxu0 0
      %1243 = vmatpush1.bf16.msra.mxu0 0
      %1244 = vmatprep.subr.bf16.mxu0 0
      %1245 = vmatpush1.bf16.msra.mxu0 0
      %1246 = vmatprep.subr.bf16.mxu0 0
      %1247 = vmatpush1.bf16.msra.mxu0 0
      %1248 = vmatprep.subr.bf16.mxu0 0
      %1249 = vmatpush1.bf16.msra.mxu0 0
      %1250 = vmatprep.subr.bf16.mxu0 0
      %1251 = vmatpush1.bf16.msra.mxu0 0
      %1252 = vmatprep.subr.bf16.mxu0 0
      %1253 = vmatpush1.bf16.msra.mxu0 0
      %1254 = vmatprep.subr.bf16.mxu0 0
      %1255 = vmatpush1.bf16.msra.mxu0 0
      %1256 = vmatprep.subr.bf16.mxu0 0
      %1257 = vmatpush1.bf16.msra.mxu0 0
      %1258 = vmatprep.subr.bf16.mxu0 0
      %1259 = vmatpush1.bf16.msra.mxu0 0
      %1260 = vmatprep.subr.bf16.mxu0 0
      %1261 = vmatpush1.bf16.msra.mxu0 0
      %1262 = vmatprep.mubr.bf16.mxu0 0
      %1263 = vmatmul.mubr.bf16.gmra.mrb[0].mxu0 %v642
      %v1264 = vpop.f32.mrb[0].mxu0
      %v1265 = vadd.f32 0.0, %v1264
      %v1266 = vpop.f32.mrb[0].mxu0
      %v1267 = vpop.f32.mrb[0].mxu0
      %v1268 = vadd.f32 0.0, %v1267
      %v1269 = vpop.f32.mrb[0].mxu0
      %1270 = vmatprep.mubr.bf16.mxu0 0
      %1271 = vmatmul.mubr.bf16.gmra.mrb[0].mxu0 %v645
      %v1272 = vpop.f32.mrb[0].mxu0
      %v1273 = vadd.f32 0.0, %v1272
      %v1274 = vpop.f32.mrb[0].mxu0
      %v1275 = vpop.f32.mrb[0].mxu0
      %v1276 = vadd.f32 0.0, %v1275
      %v1277 = vpop.f32.mrb[0].mxu0
      %1278 = vmatprep.mubr.bf16.mxu0 0
      %1279 = vmatmul.mubr.bf16.gmra.mrb[0].mxu0 %v648
      %v1280 = vpop.f32.mrb[0].mxu0
      %v1281 = vadd.f32 0.0, %v1280
      %v1282 = vpop.f32.mrb[0].mxu0
      %v1283 = vpop.f32.mrb[0].mxu0
      %v1284 = vadd.f32 0.0, %v1283
      %v1285 = vpop.f32.mrb[0].mxu0
      %1286 = vmatprep.mubr.bf16.mxu0 0
      %1287 = vmatmul.mubr.bf16.gmra.mrb[0].mxu0 %v651
      %v1288 = vpop.f32.mrb[0].mxu0
      %v1289 = vadd.f32 0.0, %v1288
      %v1290 = vpop.f32.mrb[0].mxu0
      %v1291 = vpop.f32.mrb[0].mxu0
      %v1292 = vadd.f32 0.0, %v1291
      %v1293 = vpop.f32.mrb[0].mxu0
      %1294 = vmatprep.mubr.bf16.mxu0 0
      %1295 = vmatmul.mubr.bf16.gmra.mrb[0].mxu0 %v654
      %v1296 = vpop.f32.mrb[0].mxu0
      %v1297 = vadd.f32 0.0, %v1296
      %v1298 = vpop.f32.mrb[0].mxu0
      %v1299 = vpop.f32.mrb[0].mxu0
      %v1300 = vadd.f32 0.0, %v1299
      %v1301 = vpop.f32.mrb[0].mxu0
      %1302 = vmatprep.mubr.bf16.mxu0 0
      %1303 = vmatmul.mubr.bf16.gmra.mrb[0].mxu0 %v657
      %v1304 = vpop.f32.mrb[0].mxu0
      %v1305 = vadd.f32 0.0, %v1304
      %v1306 = vpop.f32.mrb[0].mxu0
      %v1307 = vpop.f32.mrb[0].mxu0
      %v1308 = vadd.f32 0.0, %v1307
      %v1309 = vpop.f32.mrb[0].mxu0
      %1310 = vmatprep.mubr.bf16.mxu0 0
      %1311 = vmatmul.mubr.bf16.gmra.mrb[0].mxu0 %v660
      %v1312 = vpop.f32.mrb[0].mxu0
      %v1313 = vadd.f32 0.0, %v1312
      %v1314 = vpop.f32.mrb[0].mxu0
      %v1315 = vpop.f32.mrb[0].mxu0
      %v1316 = vadd.f32 0.0, %v1315
      %v1317 = vpop.f32.mrb[0].mxu0
      %1318 = vmatprep.mubr.bf16.mxu0 0
      %1319 = vmatmul.mubr.bf16.gmra.mrb[0].mxu0 %v663
      %v1320 = vpop.f32.mrb[0].mxu0
      %v1321 = vadd.f32 0.0, %v1320
      %v1322 = vpop.f32.mrb[0].mxu0
      %v1323 = vpop.f32.mrb[0].mxu0
      %v1324 = vadd.f32 0.0, %v1323
      %v1325 = vpop.f32.mrb[0].mxu0
      %1326 = vmatprep.mubr.bf16.mxu0 0
      %1327 = vmatmul.mubr.bf16.gmra.mrb[0].mxu0 %v666
      %v1328 = vpop.f32.mrb[0].mxu0
      %v1329 = vadd.f32 0.0, %v1328
      %v1330 = vpop.f32.mrb[0].mxu0
      %v1331 = vpop.f32.mrb[0].mxu0
      %v1332 = vadd.f32 0.0, %v1331
      %v1333 = vpop.f32.mrb[0].mxu0
      %1334 = vmatprep.mubr.bf16.mxu0 0
      %1335 = vmatmul.mubr.bf16.gmra.mrb[0].mxu0 %v669
      %v1336 = vpop.f32.mrb[0].mxu0
      %v1337 = vadd.f32 0.0, %v1336
      %v1338 = vpop.f32.mrb[0].mxu0
      %v1339 = vpop.f32.mrb[0].mxu0
      %v1340 = vadd.f32 0.0, %v1339
      %v1341 = vpop.f32.mrb[0].mxu0
      %1342 = vmatprep.mubr.bf16.mxu0 0
      %1343 = vmatmul.mubr.bf16.gmra.mrb[0].mxu0 %v672
      %v1344 = vpop.f32.mrb[0].mxu0
      %v1345 = vadd.f32 0.0, %v1344
      %v1346 = vpop.f32.mrb[0].mxu0
      %v1347 = vpop.f32.mrb[0].mxu0
      %v1348 = vadd.f32 0.0, %v1347
      %v1349 = vpop.f32.mrb[0].mxu0
      %1350 = vmatprep.mubr.bf16.mxu0 0
      %1351 = vmatmul.mubr.bf16.gmra.mrb[0].mxu0 %v675
      %v1352 = vpop.f32.mrb[0].mxu0
      %v1353 = vadd.f32 0.0, %v1352
      %v1354 = vpop.f32.mrb[0].mxu0
      %v1355 = vpop.f32.mrb[0].mxu0
      %v1356 = vadd.f32 0.0, %v1355
      %v1357 = vpop.f32.mrb[0].mxu0
      %1358 = vmatprep.mubr.bf16.mxu0 0
      %1359 = vmatmul.mubr.bf16.gmra.mrb[0].mxu0 %v678
      %v1360 = vpop.f32.mrb[0].mxu0
      %v1361 = vadd.f32 0.0, %v1360
      %v1362 = vpop.f32.mrb[0].mxu0
      %v1363 = vpop.f32.mrb[0].mxu0
      %v1364 = vadd.f32 0.0, %v1363
      %v1365 = vpop.f32.mrb[0].mxu0
      %1366 = vmatprep.mubr.bf16.mxu0 0
      %1367 = vmatmul.mubr.bf16.gmra.mrb[0].mxu0 %v681
      %v1368 = vpop.f32.mrb[0].mxu0
      %v1369 = vadd.f32 0.0, %v1368
      %v1370 = vpop.f32.mrb[0].mxu0
      %v1371 = vpop.f32.mrb[0].mxu0
      %v1372 = vadd.f32 0.0, %v1371
      %v1373 = vpop.f32.mrb[0].mxu0
      %1374 = vmatprep.mubr.bf16.mxu0 0
      %1375 = vmatmul.mubr.bf16.gmra.mrb[0].mxu0 %v684
      %v1376 = vpop.f32.mrb[0].mxu0
      %v1377 = vadd.f32 0.0, %v1376
      %v1378 = vpop.f32.mrb[0].mxu0
      %v1379 = vpop.f32.mrb[0].mxu0
      %v1380 = vadd.f32 0.0, %v1379
      %v1381 = vpop.f32.mrb[0].mxu0
      %1382 = vmatprep.mubr.bf16.mxu0 0
      %1383 = vmatmul.mubr.bf16.gmra.mrb[0].mxu0 %v1225
      %v1384 = vpop.f32.mrb[0].mxu0
      %v1385 = vadd.f32 0.0, %v1384
      %v1386 = vpop.f32.mrb[0].mxu0
      %v1387 = vpop.f32.mrb[0].mxu0
      %v1388 = vadd.f32 0.0, %v1387
      %v1389 = vpop.f32.mrb[0].mxu0
      %1390 = vdwg.mxu0
      %v1391 = vadd.f32 %v1191, %v1265
      %v1392 = vadd.f32 %v1192, %v1268
      %v1393 = vadd.f32 %v1193, %v1273
      %v1394 = vadd.f32 %v1194, %v1276
      %v1395 = vadd.f32 %v1195, %v1281
      %v1396 = vadd.f32 %v1196, %v1284
      %v1397 = vadd.f32 %v1197, %v1289
      %v1398 = vadd.f32 %v1198, %v1292
      %v1399 = vadd.f32 %v1199, %v1297
      %v1400 = vadd.f32 %v1200, %v1300
      %v1401 = vadd.f32 %v1201, %v1305
      %v1402 = vadd.f32 %v1202, %v1308
      %v1403 = vadd.f32 %v1203, %v1313
      %v1404 = vadd.f32 %v1204, %v1316
      %v1405 = vadd.f32 %v1205, %v1321
      %v1406 = vadd.f32 %v1206, %v1324
      %v1407 = vadd.f32 %v1207, %v1329
      %v1408 = vadd.f32 %v1208, %v1332
      %v1409 = vadd.f32 %v1209, %v1337
      %v1410 = vadd.f32 %v1210, %v1340
      %v1411 = vadd.f32 %v1211, %v1345
      %v1412 = vadd.f32 %v1212, %v1348
      %v1413 = vadd.f32 %v1213, %v1353
      %v1414 = vadd.f32 %v1214, %v1356
      %v1415 = vadd.f32 %v1215, %v1361
      %v1416 = vadd.f32 %v1216, %v1364
      %v1417 = vadd.f32 %v1217, %v1369
      %v1418 = vadd.f32 %v1218, %v1372
      %v1419 = vadd.f32 %v1219, %v1377
      %v1420 = vadd.f32 %v1220, %v1380
      %v1421 = vadd.f32 %v1221, %v1385
      %v1422 = vadd.f32 %v1222, %v1388
      %v1426 = vrot.slane %v216, 1
      %v1427 = vrot.slane %v217, 1
      %v1428 = vsel %vm295, %v1426, %v1427
      %v1429 = vrot.slane %v218, 1
      %v1430 = vsel %vm295, %v1427, %v1429
      %v1433 = vpack.c.bf16 %v1430, %v1428
      %v1435 = vsel %vm424, %v1433, 0
      %v1438 = vsel %vm473, %v226, 0
      %1440 = vmatprep.subr.bf16.mxu0 0
      %1441 = vmatpush1.bf16.msra.mxu0 %v1438
      %1442 = vmatprep.subr.bf16.mxu0 0
      %1443 = vmatpush1.bf16.msra.mxu0 0
      %1444 = vmatprep.subr.bf16.mxu0 0
      %1445 = vmatpush1.bf16.msra.mxu0 0
      %1446 = vmatprep.subr.bf16.mxu0 0
      %1447 = vmatpush1.bf16.msra.mxu0 0
      %1448 = vmatprep.subr.bf16.mxu0 0
      %1449 = vmatpush1.bf16.msra.mxu0 0
      %1450 = vmatprep.subr.bf16.mxu0 0
      %1451 = vmatpush1.bf16.msra.mxu0 0
      %1452 = vmatprep.subr.bf16.mxu0 0
      %1453 = vmatpush1.bf16.msra.mxu0 0
      %1454 = vmatprep.subr.bf16.mxu0 0
      %1455 = vmatpush1.bf16.msra.mxu0 0
      %1456 = vmatprep.subr.bf16.mxu0 0
      %1457 = vmatpush1.bf16.msra.mxu0 0
      %1458 = vmatprep.subr.bf16.mxu0 0
      %1459 = vmatpush1.bf16.msra.mxu0 0
      %1460 = vmatprep.subr.bf16.mxu0 0
      %1461 = vmatpush1.bf16.msra.mxu0 0
      %1462 = vmatprep.subr.bf16.mxu0 0
      %1463 = vmatpush1.bf16.msra.mxu0 0
      %1464 = vmatprep.subr.bf16.mxu0 0
      %1465 = vmatpush1.bf16.msra.mxu0 0
      %1466 = vmatprep.subr.bf16.mxu0 0
      %1467 = vmatpush1.bf16.msra.mxu0 0
      %1468 = vmatprep.subr.bf16.mxu0 0
      %1469 = vmatpush1.bf16.msra.mxu0 0
      %1470 = vmatprep.subr.bf16.mxu0 0
      %1471 = vmatpush1.bf16.msra.mxu0 0
      %1472 = vmatprep.mubr.bf16.mxu0 0
      %1473 = vmatmul.mubr.bf16.gmra.mrb[0].mxu0 %v429
      %v1474 = vpop.f32.mrb[0].mxu0
      %v1475 = vadd.f32 0.0, %v1474
      %v1476 = vpop.f32.mrb[0].mxu0
      %v1477 = vpop.f32.mrb[0].mxu0
      %v1478 = vadd.f32 0.0, %v1477
      %v1479 = vpop.f32.mrb[0].mxu0
      %1480 = vmatprep.mubr.bf16.mxu0 0
      %1481 = vmatmul.mubr.bf16.gmra.mrb[0].mxu0 %v432
      %v1482 = vpop.f32.mrb[0].mxu0
      %v1483 = vadd.f32 0.0, %v1482
      %v1484 = vpop.f32.mrb[0].mxu0
      %v1485 = vpop.f32.mrb[0].mxu0
      %v1486 = vadd.f32 0.0, %v1485
      %v1487 = vpop.f32.mrb[0].mxu0
      %1488 = vmatprep.mubr.bf16.mxu0 0
      %1489 = vmatmul.mubr.bf16.gmra.mrb[0].mxu0 %v435
      %v1490 = vpop.f32.mrb[0].mxu0
      %v1491 = vadd.f32 0.0, %v1490
      %v1492 = vpop.f32.mrb[0].mxu0
      %v1493 = vpop.f32.mrb[0].mxu0
      %v1494 = vadd.f32 0.0, %v1493
      %v1495 = vpop.f32.mrb[0].mxu0
      %1496 = vmatprep.mubr.bf16.mxu0 0
      %1497 = vmatmul.mubr.bf16.gmra.mrb[0].mxu0 %v438
      %v1498 = vpop.f32.mrb[0].mxu0
      %v1499 = vadd.f32 0.0, %v1498
      %v1500 = vpop.f32.mrb[0].mxu0
      %v1501 = vpop.f32.mrb[0].mxu0
      %v1502 = vadd.f32 0.0, %v1501
      %v1503 = vpop.f32.mrb[0].mxu0
      %1504 = vmatprep.mubr.bf16.mxu0 0
      %1505 = vmatmul.mubr.bf16.gmra.mrb[0].mxu0 %v441
      %v1506 = vpop.f32.mrb[0].mxu0
      %v1507 = vadd.f32 0.0, %v1506
      %v1508 = vpop.f32.mrb[0].mxu0
      %v1509 = vpop.f32.mrb[0].mxu0
      %v1510 = vadd.f32 0.0, %v1509
      %v1511 = vpop.f32.mrb[0].mxu0
      %1512 = vmatprep.mubr.bf16.mxu0 0
      %1513 = vmatmul.mubr.bf16.gmra.mrb[0].mxu0 %v444
      %v1514 = vpop.f32.mrb[0].mxu0
      %v1515 = vadd.f32 0.0, %v1514
      %v1516 = vpop.f32.mrb[0].mxu0
      %v1517 = vpop.f32.mrb[0].mxu0
      %v1518 = vadd.f32 0.0, %v1517
      %v1519 = vpop.f32.mrb[0].mxu0
      %1520 = vmatprep.mubr.bf16.mxu0 0
      %1521 = vmatmul.mubr.bf16.gmra.mrb[0].mxu0 %v447
      %v1522 = vpop.f32.mrb[0].mxu0
      %v1523 = vadd.f32 0.0, %v1522
      %v1524 = vpop.f32.mrb[0].mxu0
      %v1525 = vpop.f32.mrb[0].mxu0
      %v1526 = vadd.f32 0.0, %v1525
      %v1527 = vpop.f32.mrb[0].mxu0
      %1528 = vmatprep.mubr.bf16.mxu0 0
      %1529 = vmatmul.mubr.bf16.gmra.mrb[0].mxu0 %v450
      %v1530 = vpop.f32.mrb[0].mxu0
      %v1531 = vadd.f32 0.0, %v1530
      %v1532 = vpop.f32.mrb[0].mxu0
      %v1533 = vpop.f32.mrb[0].mxu0
      %v1534 = vadd.f32 0.0, %v1533
      %v1535 = vpop.f32.mrb[0].mxu0
      %1536 = vmatprep.mubr.bf16.mxu0 0
      %1537 = vmatmul.mubr.bf16.gmra.mrb[0].mxu0 %v453
      %v1538 = vpop.f32.mrb[0].mxu0
      %v1539 = vadd.f32 0.0, %v1538
      %v1540 = vpop.f32.mrb[0].mxu0
      %v1541 = vpop.f32.mrb[0].mxu0
      %v1542 = vadd.f32 0.0, %v1541
      %v1543 = vpop.f32.mrb[0].mxu0
      %1544 = vmatprep.mubr.bf16.mxu0 0
      %1545 = vmatmul.mubr.bf16.gmra.mrb[0].mxu0 %v456
      %v1546 = vpop.f32.mrb[0].mxu0
      %v1547 = vadd.f32 0.0, %v1546
      %v1548 = vpop.f32.mrb[0].mxu0
      %v1549 = vpop.f32.mrb[0].mxu0
      %v1550 = vadd.f32 0.0, %v1549
      %v1551 = vpop.f32.mrb[0].mxu0
      %1552 = vmatprep.mubr.bf16.mxu0 0
      %1553 = vmatmul.mubr.bf16.gmra.mrb[0].mxu0 %v459
      %v1554 = vpop.f32.mrb[0].mxu0
      %v1555 = vadd.f32 0.0, %v1554
      %v1556 = vpop.f32.mrb[0].mxu0
      %v1557 = vpop.f32.mrb[0].mxu0
      %v1558 = vadd.f32 0.0, %v1557
      %v1559 = vpop.f32.mrb[0].mxu0
      %1560 = vmatprep.mubr.bf16.mxu0 0
      %1561 = vmatmul.mubr.bf16.gmra.mrb[0].mxu0 %v462
      %v1562 = vpop.f32.mrb[0].mxu0
      %v1563 = vadd.f32 0.0, %v1562
      %v1564 = vpop.f32.mrb[0].mxu0
      %v1565 = vpop.f32.mrb[0].mxu0
      %v1566 = vadd.f32 0.0, %v1565
      %v1567 = vpop.f32.mrb[0].mxu0
      %1568 = vmatprep.mubr.bf16.mxu0 0
      %1569 = vmatmul.mubr.bf16.gmra.mrb[0].mxu0 %v465
      %v1570 = vpop.f32.mrb[0].mxu0
      %v1571 = vadd.f32 0.0, %v1570
      %v1572 = vpop.f32.mrb[0].mxu0
      %v1573 = vpop.f32.mrb[0].mxu0
      %v1574 = vadd.f32 0.0, %v1573
      %v1575 = vpop.f32.mrb[0].mxu0
      %1576 = vmatprep.mubr.bf16.mxu0 0
      %1577 = vmatmul.mubr.bf16.gmra.mrb[0].mxu0 %v468
      %v1578 = vpop.f32.mrb[0].mxu0
      %v1579 = vadd.f32 0.0, %v1578
      %v1580 = vpop.f32.mrb[0].mxu0
      %v1581 = vpop.f32.mrb[0].mxu0
      %v1582 = vadd.f32 0.0, %v1581
      %v1583 = vpop.f32.mrb[0].mxu0
      %1584 = vmatprep.mubr.bf16.mxu0 0
      %1585 = vmatmul.mubr.bf16.gmra.mrb[0].mxu0 %v471
      %v1586 = vpop.f32.mrb[0].mxu0
      %v1587 = vadd.f32 0.0, %v1586
      %v1588 = vpop.f32.mrb[0].mxu0
      %v1589 = vpop.f32.mrb[0].mxu0
      %v1590 = vadd.f32 0.0, %v1589
      %v1591 = vpop.f32.mrb[0].mxu0
      %1592 = vmatprep.mubr.bf16.mxu0 0
      %1593 = vmatmul.mubr.bf16.gmra.mrb[0].mxu0 %v1435
      %v1594 = vpop.f32.mrb[0].mxu0
      %v1595 = vadd.f32 0.0, %v1594
      %v1596 = vpop.f32.mrb[0].mxu0
      %v1597 = vpop.f32.mrb[0].mxu0
      %v1598 = vadd.f32 0.0, %v1597
      %v1599 = vpop.f32.mrb[0].mxu0
      %1600 = vdwg.mxu0
      %v1601 = vadd.f32 %v1391, %v1475
      %v1602 = vadd.f32 %v1392, %v1478
      %v1603 = vadd.f32 %v1393, %v1483
      %v1604 = vadd.f32 %v1394, %v1486
      %v1605 = vadd.f32 %v1395, %v1491
      %v1606 = vadd.f32 %v1396, %v1494
      %v1607 = vadd.f32 %v1397, %v1499
      %v1608 = vadd.f32 %v1398, %v1502
      %v1609 = vadd.f32 %v1399, %v1507
      %v1610 = vadd.f32 %v1400, %v1510
      %v1611 = vadd.f32 %v1401, %v1515
      %v1612 = vadd.f32 %v1402, %v1518
      %v1613 = vadd.f32 %v1403, %v1523
      %v1614 = vadd.f32 %v1404, %v1526
      %v1615 = vadd.f32 %v1405, %v1531
      %v1616 = vadd.f32 %v1406, %v1534
      %v1617 = vadd.f32 %v1407, %v1539
      %v1618 = vadd.f32 %v1408, %v1542
      %v1619 = vadd.f32 %v1409, %v1547
      %v1620 = vadd.f32 %v1410, %v1550
      %v1621 = vadd.f32 %v1411, %v1555
      %v1622 = vadd.f32 %v1412, %v1558
      %v1623 = vadd.f32 %v1413, %v1563
      %v1624 = vadd.f32 %v1414, %v1566
      %v1625 = vadd.f32 %v1415, %v1571
      %v1626 = vadd.f32 %v1416, %v1574
      %v1627 = vadd.f32 %v1417, %v1579
      %v1628 = vadd.f32 %v1418, %v1582
      %v1629 = vadd.f32 %v1419, %v1587
      %v1630 = vadd.f32 %v1420, %v1590
      %v1631 = vadd.f32 %v1421, %v1595
      %v1632 = vadd.f32 %v1422, %v1598
      %v1633 = vrot.slane %v216, 2
      %v1634 = vrot.slane %v217, 2
      %v1635 = vsel %vm850, %v1633, %v1634
      %v1636 = vrot.slane %v218, 2
      %v1637 = vsel %vm850, %v1634, %v1636
      %v1640 = vpack.c.bf16 %v1637, %v1635
      %v1642 = vsel %vm424, %v1640, 0
      %v1645 = vsel %vm473, %v227, 0
      %1647 = vmatprep.subr.bf16.mxu0 0
      %1648 = vmatpush1.bf16.msra.mxu0 %v1645
      %1649 = vmatprep.subr.bf16.mxu0 0
      %1650 = vmatpush1.bf16.msra.mxu0 0
      %1651 = vmatprep.subr.bf16.mxu0 0
      %1652 = vmatpush1.bf16.msra.mxu0 0
      %1653 = vmatprep.subr.bf16.mxu0 0
      %1654 = vmatpush1.bf16.msra.mxu0 0
      %1655 = vmatprep.subr.bf16.mxu0 0
      %1656 = vmatpush1.bf16.msra.mxu0 0
      %1657 = vmatprep.subr.bf16.mxu0 0
      %1658 = vmatpush1.bf16.msra.mxu0 0
      %1659 = vmatprep.subr.bf16.mxu0 0
      %1660 = vmatpush1.bf16.msra.mxu0 0
      %1661 = vmatprep.subr.bf16.mxu0 0
      %1662 = vmatpush1.bf16.msra.mxu0 0
      %1663 = vmatprep.subr.bf16.mxu0 0
      %1664 = vmatpush1.bf16.msra.mxu0 0
      %1665 = vmatprep.subr.bf16.mxu0 0
      %1666 = vmatpush1.bf16.msra.mxu0 0
      %1667 = vmatprep.subr.bf16.mxu0 0
      %1668 = vmatpush1.bf16.msra.mxu0 0
      %1669 = vmatprep.subr.bf16.mxu0 0
      %1670 = vmatpush1.bf16.msra.mxu0 0
      %1671 = vmatprep.subr.bf16.mxu0 0
      %1672 = vmatpush1.bf16.msra.mxu0 0
      %1673 = vmatprep.subr.bf16.mxu0 0
      %1674 = vmatpush1.bf16.msra.mxu0 0
      %1675 = vmatprep.subr.bf16.mxu0 0
      %1676 = vmatpush1.bf16.msra.mxu0 0
      %1677 = vmatprep.subr.bf16.mxu0 0
      %1678 = vmatpush1.bf16.msra.mxu0 0
      %1679 = vmatprep.mubr.bf16.mxu0 0
      %1680 = vmatmul.mubr.bf16.gmra.mrb[0].mxu0 %v983
      %v1681 = vpop.f32.mrb[0].mxu0
      %v1682 = vadd.f32 0.0, %v1681
      %v1683 = vpop.f32.mrb[0].mxu0
      %v1684 = vpop.f32.mrb[0].mxu0
      %v1685 = vadd.f32 0.0, %v1684
      %v1686 = vpop.f32.mrb[0].mxu0
      %1687 = vmatprep.mubr.bf16.mxu0 0
      %1688 = vmatmul.mubr.bf16.gmra.mrb[0].mxu0 %v986
      %v1689 = vpop.f32.mrb[0].mxu0
      %v1690 = vadd.f32 0.0, %v1689
      %v1691 = vpop.f32.mrb[0].mxu0
      %v1692 = vpop.f32.mrb[0].mxu0
      %v1693 = vadd.f32 0.0, %v1692
      %v1694 = vpop.f32.mrb[0].mxu0
      %1695 = vmatprep.mubr.bf16.mxu0 0
      %1696 = vmatmul.mubr.bf16.gmra.mrb[0].mxu0 %v989
      %v1697 = vpop.f32.mrb[0].mxu0
      %v1698 = vadd.f32 0.0, %v1697
      %v1699 = vpop.f32.mrb[0].mxu0
      %v1700 = vpop.f32.mrb[0].mxu0
      %v1701 = vadd.f32 0.0, %v1700
      %v1702 = vpop.f32.mrb[0].mxu0
      %1703 = vmatprep.mubr.bf16.mxu0 0
      %1704 = vmatmul.mubr.bf16.gmra.mrb[0].mxu0 %v992
      %v1705 = vpop.f32.mrb[0].mxu0
      %v1706 = vadd.f32 0.0, %v1705
      %v1707 = vpop.f32.mrb[0].mxu0
      %v1708 = vpop.f32.mrb[0].mxu0
      %v1709 = vadd.f32 0.0, %v1708
      %v1710 = vpop.f32.mrb[0].mxu0
      %1711 = vmatprep.mubr.bf16.mxu0 0
      %1712 = vmatmul.mubr.bf16.gmra.mrb[0].mxu0 %v995
      %v1713 = vpop.f32.mrb[0].mxu0
      %v1714 = vadd.f32 0.0, %v1713
      %v1715 = vpop.f32.mrb[0].mxu0
      %v1716 = vpop.f32.mrb[0].mxu0
      %v1717 = vadd.f32 0.0, %v1716
      %v1718 = vpop.f32.mrb[0].mxu0
      %1719 = vmatprep.mubr.bf16.mxu0 0
      %1720 = vmatmul.mubr.bf16.gmra.mrb[0].mxu0 %v998
      %v1721 = vpop.f32.mrb[0].mxu0
      %v1722 = vadd.f32 0.0, %v1721
      %v1723 = vpop.f32.mrb[0].mxu0
      %v1724 = vpop.f32.mrb[0].mxu0
      %v1725 = vadd.f32 0.0, %v1724
      %v1726 = vpop.f32.mrb[0].mxu0
      %1727 = vmatprep.mubr.bf16.mxu0 0
      %1728 = vmatmul.mubr.bf16.gmra.mrb[0].mxu0 %v1001
      %v1729 = vpop.f32.mrb[0].mxu0
      %v1730 = vadd.f32 0.0, %v1729
      %v1731 = vpop.f32.mrb[0].mxu0
      %v1732 = vpop.f32.mrb[0].mxu0
      %v1733 = vadd.f32 0.0, %v1732
      %v1734 = vpop.f32.mrb[0].mxu0
      %1735 = vmatprep.mubr.bf16.mxu0 0
      %1736 = vmatmul.mubr.bf16.gmra.mrb[0].mxu0 %v1004
      %v1737 = vpop.f32.mrb[0].mxu0
      %v1738 = vadd.f32 0.0, %v1737
      %v1739 = vpop.f32.mrb[0].mxu0
      %v1740 = vpop.f32.mrb[0].mxu0
      %v1741 = vadd.f32 0.0, %v1740
      %v1742 = vpop.f32.mrb[0].mxu0
      %1743 = vmatprep.mubr.bf16.mxu0 0
      %1744 = vmatmul.mubr.bf16.gmra.mrb[0].mxu0 %v1007
      %v1745 = vpop.f32.mrb[0].mxu0
      %v1746 = vadd.f32 0.0, %v1745
      %v1747 = vpop.f32.mrb[0].mxu0
      %v1748 = vpop.f32.mrb[0].mxu0
      %v1749 = vadd.f32 0.0, %v1748
      %v1750 = vpop.f32.mrb[0].mxu0
      %1751 = vmatprep.mubr.bf16.mxu0 0
      %1752 = vmatmul.mubr.bf16.gmra.mrb[0].mxu0 %v1010
      %v1753 = vpop.f32.mrb[0].mxu0
      %v1754 = vadd.f32 0.0, %v1753
      %v1755 = vpop.f32.mrb[0].mxu0
      %v1756 = vpop.f32.mrb[0].mxu0
      %v1757 = vadd.f32 0.0, %v1756
      %v1758 = vpop.f32.mrb[0].mxu0
      %1759 = vmatprep.mubr.bf16.mxu0 0
      %1760 = vmatmul.mubr.bf16.gmra.mrb[0].mxu0 %v1013
      %v1761 = vpop.f32.mrb[0].mxu0
      %v1762 = vadd.f32 0.0, %v1761
      %v1763 = vpop.f32.mrb[0].mxu0
      %v1764 = vpop.f32.mrb[0].mxu0
      %v1765 = vadd.f32 0.0, %v1764
      %v1766 = vpop.f32.mrb[0].mxu0
      %1767 = vmatprep.mubr.bf16.mxu0 0
      %1768 = vmatmul.mubr.bf16.gmra.mrb[0].mxu0 %v1016
      %v1769 = vpop.f32.mrb[0].mxu0
      %v1770 = vadd.f32 0.0, %v1769
      %v1771 = vpop.f32.mrb[0].mxu0
      %v1772 = vpop.f32.mrb[0].mxu0
      %v1773 = vadd.f32 0.0, %v1772
      %v1774 = vpop.f32.mrb[0].mxu0
      %1775 = vmatprep.mubr.bf16.mxu0 0
      %1776 = vmatmul.mubr.bf16.gmra.mrb[0].mxu0 %v1019
      %v1777 = vpop.f32.mrb[0].mxu0
      %v1778 = vadd.f32 0.0, %v1777
      %v1779 = vpop.f32.mrb[0].mxu0
      %v1780 = vpop.f32.mrb[0].mxu0
      %v1781 = vadd.f32 0.0, %v1780
      %v1782 = vpop.f32.mrb[0].mxu0
      %1783 = vmatprep.mubr.bf16.mxu0 0
      %1784 = vmatmul.mubr.bf16.gmra.mrb[0].mxu0 %v1022
      %v1785 = vpop.f32.mrb[0].mxu0
      %v1786 = vadd.f32 0.0, %v1785
      %v1787 = vpop.f32.mrb[0].mxu0
      %v1788 = vpop.f32.mrb[0].mxu0
      %v1789 = vadd.f32 0.0, %v1788
      %v1790 = vpop.f32.mrb[0].mxu0
      %1791 = vmatprep.mubr.bf16.mxu0 0
      %1792 = vmatmul.mubr.bf16.gmra.mrb[0].mxu0 %v1025
      %v1793 = vpop.f32.mrb[0].mxu0
      %v1794 = vadd.f32 0.0, %v1793
      %v1795 = vpop.f32.mrb[0].mxu0
      %v1796 = vpop.f32.mrb[0].mxu0
      %v1797 = vadd.f32 0.0, %v1796
      %v1798 = vpop.f32.mrb[0].mxu0
      %1799 = vmatprep.mubr.bf16.mxu0 0
      %1800 = vmatmul.mubr.bf16.gmra.mrb[0].mxu0 %v1642
      %v1801 = vpop.f32.mrb[0].mxu0
      %v1802 = vadd.f32 0.0, %v1801
      %v1803 = vpop.f32.mrb[0].mxu0
      %v1804 = vpop.f32.mrb[0].mxu0
      %v1805 = vadd.f32 0.0, %v1804
      %v1806 = vpop.f32.mrb[0].mxu0
      %1807 = vdwg.mxu0
      %v1808 = vadd.f32 %v1601, %v1682
      %v1809 = vadd.f32 %v1602, %v1685
      %v1810 = vadd.f32 %v1603, %v1690
      %v1811 = vadd.f32 %v1604, %v1693
      %v1812 = vadd.f32 %v1605, %v1698
      %v1813 = vadd.f32 %v1606, %v1701
      %v1814 = vadd.f32 %v1607, %v1706
      %v1815 = vadd.f32 %v1608, %v1709
      %v1816 = vadd.f32 %v1609, %v1714
      %v1817 = vadd.f32 %v1610, %v1717
      %v1818 = vadd.f32 %v1611, %v1722
      %v1819 = vadd.f32 %v1612, %v1725
      %v1820 = vadd.f32 %v1613, %v1730
      %v1821 = vadd.f32 %v1614, %v1733
      %v1822 = vadd.f32 %v1615, %v1738
      %v1823 = vadd.f32 %v1616, %v1741
      %v1824 = vadd.f32 %v1617, %v1746
      %v1825 = vadd.f32 %v1618, %v1749
      %v1826 = vadd.f32 %v1619, %v1754
      %v1827 = vadd.f32 %v1620, %v1757
      %v1828 = vadd.f32 %v1621, %v1762
      %v1829 = vadd.f32 %v1622, %v1765
      %v1830 = vadd.f32 %v1623, %v1770
      %v1831 = vadd.f32 %v1624, %v1773
      %v1832 = vadd.f32 %v1625, %v1778
      %v1833 = vadd.f32 %v1626, %v1781
      %v1834 = vadd.f32 %v1627, %v1786
      %v1835 = vadd.f32 %v1628, %v1789
      %v1836 = vadd.f32 %v1629, %v1794
      %v1837 = vadd.f32 %v1630, %v1797
      %v1838 = vadd.f32 %v1631, %v1802
      %v1839 = vadd.f32 %v1632, %v1805
      %v1840 = vpack.c.bf16 %v220, %v219
      %v1842 = vsel %vm424, %v1840, 0
      %v1845 = vsel %vm473, %v228, 0
      %1847 = vmatprep.subr.bf16.mxu0 0
      %1848 = vmatpush1.bf16.msra.mxu0 %v1845
      %1849 = vmatprep.subr.bf16.mxu0 0
      %1850 = vmatpush1.bf16.msra.mxu0 0
      %1851 = vmatprep.subr.bf16.mxu0 0
      %1852 = vmatpush1.bf16.msra.mxu0 0
      %1853 = vmatprep.subr.bf16.mxu0 0
      %1854 = vmatpush1.bf16.msra.mxu0 0
      %1855 = vmatprep.subr.bf16.mxu0 0
      %1856 = vmatpush1.bf16.msra.mxu0 0
      %1857 = vmatprep.subr.bf16.mxu0 0
      %1858 = vmatpush1.bf16.msra.mxu0 0
      %1859 = vmatprep.subr.bf16.mxu0 0
      %1860 = vmatpush1.bf16.msra.mxu0 0
      %1861 = vmatprep.subr.bf16.mxu0 0
      %1862 = vmatpush1.bf16.msra.mxu0 0
      %1863 = vmatprep.subr.bf16.mxu0 0
      %1864 = vmatpush1.bf16.msra.mxu0 0
      %1865 = vmatprep.subr.bf16.mxu0 0
      %1866 = vmatpush1.bf16.msra.mxu0 0
      %1867 = vmatprep.subr.bf16.mxu0 0
      %1868 = vmatpush1.bf16.msra.mxu0 0
      %1869 = vmatprep.subr.bf16.mxu0 0
      %1870 = vmatpush1.bf16.msra.mxu0 0
      %1871 = vmatprep.subr.bf16.mxu0 0
      %1872 = vmatpush1.bf16.msra.mxu0 0
      %1873 = vmatprep.subr.bf16.mxu0 0
      %1874 = vmatpush1.bf16.msra.mxu0 0
      %1875 = vmatprep.subr.bf16.mxu0 0
      %1876 = vmatpush1.bf16.msra.mxu0 0
      %1877 = vmatprep.subr.bf16.mxu0 0
      %1878 = vmatpush1.bf16.msra.mxu0 0
      %1879 = vmatprep.mubr.bf16.mxu0 0
      %1880 = vmatmul.mubr.bf16.gmra.mrb[0].mxu0 %v645
      %v1881 = vpop.f32.mrb[0].mxu0
      %v1882 = vadd.f32 0.0, %v1881
      %v1883 = vpop.f32.mrb[0].mxu0
      %v1884 = vpop.f32.mrb[0].mxu0
      %v1885 = vadd.f32 0.0, %v1884
      %v1886 = vpop.f32.mrb[0].mxu0
      %1887 = vmatprep.mubr.bf16.mxu0 0
      %1888 = vmatmul.mubr.bf16.gmra.mrb[0].mxu0 %v648
      %v1889 = vpop.f32.mrb[0].mxu0
      %v1890 = vadd.f32 0.0, %v1889
      %v1891 = vpop.f32.mrb[0].mxu0
      %v1892 = vpop.f32.mrb[0].mxu0
      %v1893 = vadd.f32 0.0, %v1892
      %v1894 = vpop.f32.mrb[0].mxu0
      %1895 = vmatprep.mubr.bf16.mxu0 0
      %1896 = vmatmul.mubr.bf16.gmra.mrb[0].mxu0 %v651
      %v1897 = vpop.f32.mrb[0].mxu0
      %v1898 = vadd.f32 0.0, %v1897
      %v1899 = vpop.f32.mrb[0].mxu0
      %v1900 = vpop.f32.mrb[0].mxu0
      %v1901 = vadd.f32 0.0, %v1900
      %v1902 = vpop.f32.mrb[0].mxu0
      %1903 = vmatprep.mubr.bf16.mxu0 0
      %1904 = vmatmul.mubr.bf16.gmra.mrb[0].mxu0 %v654
      %v1905 = vpop.f32.mrb[0].mxu0
      %v1906 = vadd.f32 0.0, %v1905
      %v1907 = vpop.f32.mrb[0].mxu0
      %v1908 = vpop.f32.mrb[0].mxu0
      %v1909 = vadd.f32 0.0, %v1908
      %v1910 = vpop.f32.mrb[0].mxu0
      %1911 = vmatprep.mubr.bf16.mxu0 0
      %1912 = vmatmul.mubr.bf16.gmra.mrb[0].mxu0 %v657
      %v1913 = vpop.f32.mrb[0].mxu0
      %v1914 = vadd.f32 0.0, %v1913
      %v1915 = vpop.f32.mrb[0].mxu0
      %v1916 = vpop.f32.mrb[0].mxu0
      %v1917 = vadd.f32 0.0, %v1916
      %v1918 = vpop.f32.mrb[0].mxu0
      %1919 = vmatprep.mubr.bf16.mxu0 0
      %1920 = vmatmul.mubr.bf16.gmra.mrb[0].mxu0 %v660
      %v1921 = vpop.f32.mrb[0].mxu0
      %v1922 = vadd.f32 0.0, %v1921
      %v1923 = vpop.f32.mrb[0].mxu0
      %v1924 = vpop.f32.mrb[0].mxu0
      %v1925 = vadd.f32 0.0, %v1924
      %v1926 = vpop.f32.mrb[0].mxu0
      %1927 = vmatprep.mubr.bf16.mxu0 0
      %1928 = vmatmul.mubr.bf16.gmra.mrb[0].mxu0 %v663
      %v1929 = vpop.f32.mrb[0].mxu0
      %v1930 = vadd.f32 0.0, %v1929
      %v1931 = vpop.f32.mrb[0].mxu0
      %v1932 = vpop.f32.mrb[0].mxu0
      %v1933 = vadd.f32 0.0, %v1932
      %v1934 = vpop.f32.mrb[0].mxu0
      %1935 = vmatprep.mubr.bf16.mxu0 0
      %1936 = vmatmul.mubr.bf16.gmra.mrb[0].mxu0 %v666
      %v1937 = vpop.f32.mrb[0].mxu0
      %v1938 = vadd.f32 0.0, %v1937
      %v1939 = vpop.f32.mrb[0].mxu0
      %v1940 = vpop.f32.mrb[0].mxu0
      %v1941 = vadd.f32 0.0, %v1940
      %v1942 = vpop.f32.mrb[0].mxu0
      %1943 = vmatprep.mubr.bf16.mxu0 0
      %1944 = vmatmul.mubr.bf16.gmra.mrb[0].mxu0 %v669
      %v1945 = vpop.f32.mrb[0].mxu0
      %v1946 = vadd.f32 0.0, %v1945
      %v1947 = vpop.f32.mrb[0].mxu0
      %v1948 = vpop.f32.mrb[0].mxu0
      %v1949 = vadd.f32 0.0, %v1948
      %v1950 = vpop.f32.mrb[0].mxu0
      %1951 = vmatprep.mubr.bf16.mxu0 0
      %1952 = vmatmul.mubr.bf16.gmra.mrb[0].mxu0 %v672
      %v1953 = vpop.f32.mrb[0].mxu0
      %v1954 = vadd.f32 0.0, %v1953
      %v1955 = vpop.f32.mrb[0].mxu0
      %v1956 = vpop.f32.mrb[0].mxu0
      %v1957 = vadd.f32 0.0, %v1956
      %v1958 = vpop.f32.mrb[0].mxu0
      %1959 = vmatprep.mubr.bf16.mxu0 0
      %1960 = vmatmul.mubr.bf16.gmra.mrb[0].mxu0 %v675
      %v1961 = vpop.f32.mrb[0].mxu0
      %v1962 = vadd.f32 0.0, %v1961
      %v1963 = vpop.f32.mrb[0].mxu0
      %v1964 = vpop.f32.mrb[0].mxu0
      %v1965 = vadd.f32 0.0, %v1964
      %v1966 = vpop.f32.mrb[0].mxu0
      %1967 = vmatprep.mubr.bf16.mxu0 0
      %1968 = vmatmul.mubr.bf16.gmra.mrb[0].mxu0 %v678
      %v1969 = vpop.f32.mrb[0].mxu0
      %v1970 = vadd.f32 0.0, %v1969
      %v1971 = vpop.f32.mrb[0].mxu0
      %v1972 = vpop.f32.mrb[0].mxu0
      %v1973 = vadd.f32 0.0, %v1972
      %v1974 = vpop.f32.mrb[0].mxu0
      %1975 = vmatprep.mubr.bf16.mxu0 0
      %1976 = vmatmul.mubr.bf16.gmra.mrb[0].mxu0 %v681
      %v1977 = vpop.f32.mrb[0].mxu0
      %v1978 = vadd.f32 0.0, %v1977
      %v1979 = vpop.f32.mrb[0].mxu0
      %v1980 = vpop.f32.mrb[0].mxu0
      %v1981 = vadd.f32 0.0, %v1980
      %v1982 = vpop.f32.mrb[0].mxu0
      %1983 = vmatprep.mubr.bf16.mxu0 0
      %1984 = vmatmul.mubr.bf16.gmra.mrb[0].mxu0 %v684
      %v1985 = vpop.f32.mrb[0].mxu0
      %v1986 = vadd.f32 0.0, %v1985
      %v1987 = vpop.f32.mrb[0].mxu0
      %v1988 = vpop.f32.mrb[0].mxu0
      %v1989 = vadd.f32 0.0, %v1988
      %v1990 = vpop.f32.mrb[0].mxu0
      %1991 = vmatprep.mubr.bf16.mxu0 0
      %1992 = vmatmul.mubr.bf16.gmra.mrb[0].mxu0 %v1225
      %v1993 = vpop.f32.mrb[0].mxu0
      %v1994 = vadd.f32 0.0, %v1993
      %v1995 = vpop.f32.mrb[0].mxu0
      %v1996 = vpop.f32.mrb[0].mxu0
      %v1997 = vadd.f32 0.0, %v1996
      %v1998 = vpop.f32.mrb[0].mxu0
      %1999 = vmatprep.mubr.bf16.mxu0 0
      %2000 = vmatmul.mubr.bf16.gmra.mrb[0].mxu0 %v1842
      %v2001 = vpop.f32.mrb[0].mxu0
      %v2002 = vadd.f32 0.0, %v2001
      %v2003 = vpop.f32.mrb[0].mxu0
      %v2004 = vpop.f32.mrb[0].mxu0
      %v2005 = vadd.f32 0.0, %v2004
      %v2006 = vpop.f32.mrb[0].mxu0
      %2007 = vdwg.mxu0
      %v2008 = vadd.f32 %v1808, %v1882
      %v2009 = vadd.f32 %v1809, %v1885
      %v2010 = vadd.f32 %v1810, %v1890
      %v2011 = vadd.f32 %v1811, %v1893
      %v2012 = vadd.f32 %v1812, %v1898
      %v2013 = vadd.f32 %v1813, %v1901
      %v2014 = vadd.f32 %v1814, %v1906
      %v2015 = vadd.f32 %v1815, %v1909
      %v2016 = vadd.f32 %v1816, %v1914
      %v2017 = vadd.f32 %v1817, %v1917
      %v2018 = vadd.f32 %v1818, %v1922
      %v2019 = vadd.f32 %v1819, %v1925
      %v2020 = vadd.f32 %v1820, %v1930
      %v2021 = vadd.f32 %v1821, %v1933
      %v2022 = vadd.f32 %v1822, %v1938
      %v2023 = vadd.f32 %v1823, %v1941
      %v2024 = vadd.f32 %v1824, %v1946
      %v2025 = vadd.f32 %v1825, %v1949
      %v2026 = vadd.f32 %v1826, %v1954
      %v2027 = vadd.f32 %v1827, %v1957
      %v2028 = vadd.f32 %v1828, %v1962
      %v2029 = vadd.f32 %v1829, %v1965
      %v2030 = vadd.f32 %v1830, %v1970
      %v2031 = vadd.f32 %v1831, %v1973
      %v2032 = vadd.f32 %v1832, %v1978
      %v2033 = vadd.f32 %v1833, %v1981
      %v2034 = vadd.f32 %v1834, %v1986
      %v2035 = vadd.f32 %v1835, %v1989
      %v2036 = vadd.f32 %v1836, %v1994
      %v2037 = vadd.f32 %v1837, %v1997
      %v2038 = vadd.f32 %v1838, %v2002
      %v2039 = vadd.f32 %v1839, %v2005
      %v2043 = vrot.slane %v219, 1
      %v2044 = vrot.slane %v220, 1
      %v2045 = vsel %vm295, %v2043, %v2044
      %v2046 = vrot.slane %v221, 1
      %v2047 = vsel %vm295, %v2044, %v2046
      %v2050 = vpack.c.bf16 %v2047, %v2045
      %v2052 = vsel %vm424, %v2050, 0
      %v2055 = vsel %vm473, %v229, 0
      %2057 = vmatprep.subr.bf16.mxu0 0
      %2058 = vmatpush1.bf16.msra.mxu0 %v2055
      %2059 = vmatprep.subr.bf16.mxu0 0
      %2060 = vmatpush1.bf16.msra.mxu0 0
      %2061 = vmatprep.subr.bf16.mxu0 0
      %2062 = vmatpush1.bf16.msra.mxu0 0
      %2063 = vmatprep.subr.bf16.mxu0 0
      %2064 = vmatpush1.bf16.msra.mxu0 0
      %2065 = vmatprep.subr.bf16.mxu0 0
      %2066 = vmatpush1.bf16.msra.mxu0 0
      %2067 = vmatprep.subr.bf16.mxu0 0
      %2068 = vmatpush1.bf16.msra.mxu0 0
      %2069 = vmatprep.subr.bf16.mxu0 0
      %2070 = vmatpush1.bf16.msra.mxu0 0
      %2071 = vmatprep.subr.bf16.mxu0 0
      %2072 = vmatpush1.bf16.msra.mxu0 0
      %2073 = vmatprep.subr.bf16.mxu0 0
      %2074 = vmatpush1.bf16.msra.mxu0 0
      %2075 = vmatprep.subr.bf16.mxu0 0
      %2076 = vmatpush1.bf16.msra.mxu0 0
      %2077 = vmatprep.subr.bf16.mxu0 0
      %2078 = vmatpush1.bf16.msra.mxu0 0
      %2079 = vmatprep.subr.bf16.mxu0 0
      %2080 = vmatpush1.bf16.msra.mxu0 0
      %2081 = vmatprep.subr.bf16.mxu0 0
      %2082 = vmatpush1.bf16.msra.mxu0 0
      %2083 = vmatprep.subr.bf16.mxu0 0
      %2084 = vmatpush1.bf16.msra.mxu0 0
      %2085 = vmatprep.subr.bf16.mxu0 0
      %2086 = vmatpush1.bf16.msra.mxu0 0
      %2087 = vmatprep.subr.bf16.mxu0 0
      %2088 = vmatpush1.bf16.msra.mxu0 0
      %2089 = vmatprep.mubr.bf16.mxu0 0
      %2090 = vmatmul.mubr.bf16.gmra.mrb[0].mxu0 %v432
      %v2091 = vpop.f32.mrb[0].mxu0
      %v2092 = vadd.f32 0.0, %v2091
      %v2093 = vpop.f32.mrb[0].mxu0
      %v2094 = vpop.f32.mrb[0].mxu0
      %v2095 = vadd.f32 0.0, %v2094
      %v2096 = vpop.f32.mrb[0].mxu0
      %2097 = vmatprep.mubr.bf16.mxu0 0
      %2098 = vmatmul.mubr.bf16.gmra.mrb[0].mxu0 %v435
      %v2099 = vpop.f32.mrb[0].mxu0
      %v2100 = vadd.f32 0.0, %v2099
      %v2101 = vpop.f32.mrb[0].mxu0
      %v2102 = vpop.f32.mrb[0].mxu0
      %v2103 = vadd.f32 0.0, %v2102
      %v2104 = vpop.f32.mrb[0].mxu0
      %2105 = vmatprep.mubr.bf16.mxu0 0
      %2106 = vmatmul.mubr.bf16.gmra.mrb[0].mxu0 %v438
      %v2107 = vpop.f32.mrb[0].mxu0
      %v2108 = vadd.f32 0.0, %v2107
      %v2109 = vpop.f32.mrb[0].mxu0
      %v2110 = vpop.f32.mrb[0].mxu0
      %v2111 = vadd.f32 0.0, %v2110
      %v2112 = vpop.f32.mrb[0].mxu0
      %2113 = vmatprep.mubr.bf16.mxu0 0
      %2114 = vmatmul.mubr.bf16.gmra.mrb[0].mxu0 %v441
      %v2115 = vpop.f32.mrb[0].mxu0
      %v2116 = vadd.f32 0.0, %v2115
      %v2117 = vpop.f32.mrb[0].mxu0
      %v2118 = vpop.f32.mrb[0].mxu0
      %v2119 = vadd.f32 0.0, %v2118
      %v2120 = vpop.f32.mrb[0].mxu0
      %2121 = vmatprep.mubr.bf16.mxu0 0
      %2122 = vmatmul.mubr.bf16.gmra.mrb[0].mxu0 %v444
      %v2123 = vpop.f32.mrb[0].mxu0
      %v2124 = vadd.f32 0.0, %v2123
      %v2125 = vpop.f32.mrb[0].mxu0
      %v2126 = vpop.f32.mrb[0].mxu0
      %v2127 = vadd.f32 0.0, %v2126
      %v2128 = vpop.f32.mrb[0].mxu0
      %2129 = vmatprep.mubr.bf16.mxu0 0
      %2130 = vmatmul.mubr.bf16.gmra.mrb[0].mxu0 %v447
      %v2131 = vpop.f32.mrb[0].mxu0
      %v2132 = vadd.f32 0.0, %v2131
      %v2133 = vpop.f32.mrb[0].mxu0
      %v2134 = vpop.f32.mrb[0].mxu0
      %v2135 = vadd.f32 0.0, %v2134
      %v2136 = vpop.f32.mrb[0].mxu0
      %2137 = vmatprep.mubr.bf16.mxu0 0
      %2138 = vmatmul.mubr.bf16.gmra.mrb[0].mxu0 %v450
      %v2139 = vpop.f32.mrb[0].mxu0
      %v2140 = vadd.f32 0.0, %v2139
      %v2141 = vpop.f32.mrb[0].mxu0
      %v2142 = vpop.f32.mrb[0].mxu0
      %v2143 = vadd.f32 0.0, %v2142
      %v2144 = vpop.f32.mrb[0].mxu0
      %2145 = vmatprep.mubr.bf16.mxu0 0
      %2146 = vmatmul.mubr.bf16.gmra.mrb[0].mxu0 %v453
      %v2147 = vpop.f32.mrb[0].mxu0
      %v2148 = vadd.f32 0.0, %v2147
      %v2149 = vpop.f32.mrb[0].mxu0
      %v2150 = vpop.f32.mrb[0].mxu0
      %v2151 = vadd.f32 0.0, %v2150
      %v2152 = vpop.f32.mrb[0].mxu0
      %2153 = vmatprep.mubr.bf16.mxu0 0
      %2154 = vmatmul.mubr.bf16.gmra.mrb[0].mxu0 %v456
      %v2155 = vpop.f32.mrb[0].mxu0
      %v2156 = vadd.f32 0.0, %v2155
      %v2157 = vpop.f32.mrb[0].mxu0
      %v2158 = vpop.f32.mrb[0].mxu0
      %v2159 = vadd.f32 0.0, %v2158
      %v2160 = vpop.f32.mrb[0].mxu0
      %2161 = vmatprep.mubr.bf16.mxu0 0
      %2162 = vmatmul.mubr.bf16.gmra.mrb[0].mxu0 %v459
      %v2163 = vpop.f32.mrb[0].mxu0
      %v2164 = vadd.f32 0.0, %v2163
      %v2165 = vpop.f32.mrb[0].mxu0
      %v2166 = vpop.f32.mrb[0].mxu0
      %v2167 = vadd.f32 0.0, %v2166
      %v2168 = vpop.f32.mrb[0].mxu0
      %2169 = vmatprep.mubr.bf16.mxu0 0
      %2170 = vmatmul.mubr.bf16.gmra.mrb[0].mxu0 %v462
      %v2171 = vpop.f32.mrb[0].mxu0
      %v2172 = vadd.f32 0.0, %v2171
      %v2173 = vpop.f32.mrb[0].mxu0
      %v2174 = vpop.f32.mrb[0].mxu0
      %v2175 = vadd.f32 0.0, %v2174
      %v2176 = vpop.f32.mrb[0].mxu0
      %2177 = vmatprep.mubr.bf16.mxu0 0
      %2178 = vmatmul.mubr.bf16.gmra.mrb[0].mxu0 %v465
      %v2179 = vpop.f32.mrb[0].mxu0
      %v2180 = vadd.f32 0.0, %v2179
      %v2181 = vpop.f32.mrb[0].mxu0
      %v2182 = vpop.f32.mrb[0].mxu0
      %v2183 = vadd.f32 0.0, %v2182
      %v2184 = vpop.f32.mrb[0].mxu0
      %2185 = vmatprep.mubr.bf16.mxu0 0
      %2186 = vmatmul.mubr.bf16.gmra.mrb[0].mxu0 %v468
      %v2187 = vpop.f32.mrb[0].mxu0
      %v2188 = vadd.f32 0.0, %v2187
      %v2189 = vpop.f32.mrb[0].mxu0
      %v2190 = vpop.f32.mrb[0].mxu0
      %v2191 = vadd.f32 0.0, %v2190
      %v2192 = vpop.f32.mrb[0].mxu0
      %2193 = vmatprep.mubr.bf16.mxu0 0
      %2194 = vmatmul.mubr.bf16.gmra.mrb[0].mxu0 %v471
      %v2195 = vpop.f32.mrb[0].mxu0
      %v2196 = vadd.f32 0.0, %v2195
      %v2197 = vpop.f32.mrb[0].mxu0
      %v2198 = vpop.f32.mrb[0].mxu0
      %v2199 = vadd.f32 0.0, %v2198
      %v2200 = vpop.f32.mrb[0].mxu0
      %2201 = vmatprep.mubr.bf16.mxu0 0
      %2202 = vmatmul.mubr.bf16.gmra.mrb[0].mxu0 %v1435
      %v2203 = vpop.f32.mrb[0].mxu0
      %v2204 = vadd.f32 0.0, %v2203
      %v2205 = vpop.f32.mrb[0].mxu0
      %v2206 = vpop.f32.mrb[0].mxu0
      %v2207 = vadd.f32 0.0, %v2206
      %v2208 = vpop.f32.mrb[0].mxu0
      %2209 = vmatprep.mubr.bf16.mxu0 0
      %2210 = vmatmul.mubr.bf16.gmra.mrb[0].mxu0 %v2052
      %v2211 = vpop.f32.mrb[0].mxu0
      %v2212 = vadd.f32 0.0, %v2211
      %v2213 = vpop.f32.mrb[0].mxu0
      %v2214 = vpop.f32.mrb[0].mxu0
      %v2215 = vadd.f32 0.0, %v2214
      %v2216 = vpop.f32.mrb[0].mxu0
      %2217 = vdwg.mxu0
      %v2218 = vadd.f32 %v2008, %v2092
      %v2219 = vadd.f32 %v2009, %v2095
      %v2220 = vadd.f32 %v2010, %v2100
      %v2221 = vadd.f32 %v2011, %v2103
      %v2222 = vadd.f32 %v2012, %v2108
      %v2223 = vadd.f32 %v2013, %v2111
      %v2224 = vadd.f32 %v2014, %v2116
      %v2225 = vadd.f32 %v2015, %v2119
      %v2226 = vadd.f32 %v2016, %v2124
      %v2227 = vadd.f32 %v2017, %v2127
      %v2228 = vadd.f32 %v2018, %v2132
      %v2229 = vadd.f32 %v2019, %v2135
      %v2230 = vadd.f32 %v2020, %v2140
      %v2231 = vadd.f32 %v2021, %v2143
      %v2232 = vadd.f32 %v2022, %v2148
      %v2233 = vadd.f32 %v2023, %v2151
      %v2234 = vadd.f32 %v2024, %v2156
      %v2235 = vadd.f32 %v2025, %v2159
      %v2236 = vadd.f32 %v2026, %v2164
      %v2237 = vadd.f32 %v2027, %v2167
      %v2238 = vadd.f32 %v2028, %v2172
      %v2239 = vadd.f32 %v2029, %v2175
      %v2240 = vadd.f32 %v2030, %v2180
      %v2241 = vadd.f32 %v2031, %v2183
      %v2242 = vadd.f32 %v2032, %v2188
      %v2243 = vadd.f32 %v2033, %v2191
      %v2244 = vadd.f32 %v2034, %v2196
      %v2245 = vadd.f32 %v2035, %v2199
      %v2246 = vadd.f32 %v2036, %v2204
      %v2247 = vadd.f32 %v2037, %v2207
      %v2248 = vadd.f32 %v2038, %v2212
      %v2249 = vadd.f32 %v2039, %v2215
      %v2250 = vrot.slane %v219, 2
      %v2251 = vrot.slane %v220, 2
      %v2252 = vsel %vm850, %v2250, %v2251
      %v2253 = vrot.slane %v221, 2
      %v2254 = vsel %vm850, %v2251, %v2253
      %v2257 = vpack.c.bf16 %v2254, %v2252
      %v2259 = vsel %vm424, %v2257, 0
      %v2262 = vsel %vm473, %v230, 0
      %2264 = vmatprep.subr.bf16.mxu0 0
      %2265 = vmatpush1.bf16.msra.mxu0 %v2262
      %2266 = vmatprep.subr.bf16.mxu0 0
      %2267 = vmatpush1.bf16.msra.mxu0 0
      %2268 = vmatprep.subr.bf16.mxu0 0
      %2269 = vmatpush1.bf16.msra.mxu0 0
      %2270 = vmatprep.subr.bf16.mxu0 0
      %2271 = vmatpush1.bf16.msra.mxu0 0
      %2272 = vmatprep.subr.bf16.mxu0 0
      %2273 = vmatpush1.bf16.msra.mxu0 0
      %2274 = vmatprep.subr.bf16.mxu0 0
      %2275 = vmatpush1.bf16.msra.mxu0 0
      %2276 = vmatprep.subr.bf16.mxu0 0
      %2277 = vmatpush1.bf16.msra.mxu0 0
      %2278 = vmatprep.subr.bf16.mxu0 0
      %2279 = vmatpush1.bf16.msra.mxu0 0
      %2280 = vmatprep.subr.bf16.mxu0 0
      %2281 = vmatpush1.bf16.msra.mxu0 0
      %2282 = vmatprep.subr.bf16.mxu0 0
      %2283 = vmatpush1.bf16.msra.mxu0 0
      %2284 = vmatprep.subr.bf16.mxu0 0
      %2285 = vmatpush1.bf16.msra.mxu0 0
      %2286 = vmatprep.subr.bf16.mxu0 0
      %2287 = vmatpush1.bf16.msra.mxu0 0
      %2288 = vmatprep.subr.bf16.mxu0 0
      %2289 = vmatpush1.bf16.msra.mxu0 0
      %2290 = vmatprep.subr.bf16.mxu0 0
      %2291 = vmatpush1.bf16.msra.mxu0 0
      %2292 = vmatprep.subr.bf16.mxu0 0
      %2293 = vmatpush1.bf16.msra.mxu0 0
      %2294 = vmatprep.subr.bf16.mxu0 0
      %2295 = vmatpush1.bf16.msra.mxu0 0
      %2296 = vmatprep.mubr.bf16.mxu0 0
      %2297 = vmatmul.mubr.bf16.gmra.mrb[0].mxu0 %v986
      %v2298 = vpop.f32.mrb[0].mxu0
      %v2299 = vadd.f32 0.0, %v2298
      %v2300 = vpop.f32.mrb[0].mxu0
      %v2301 = vpop.f32.mrb[0].mxu0
      %v2302 = vadd.f32 0.0, %v2301
      %v2303 = vpop.f32.mrb[0].mxu0
      %2304 = vmatprep.mubr.bf16.mxu0 0
      %2305 = vmatmul.mubr.bf16.gmra.mrb[0].mxu0 %v989
      %v2306 = vpop.f32.mrb[0].mxu0
      %v2307 = vadd.f32 0.0, %v2306
      %v2308 = vpop.f32.mrb[0].mxu0
      %v2309 = vpop.f32.mrb[0].mxu0
      %v2310 = vadd.f32 0.0, %v2309
      %v2311 = vpop.f32.mrb[0].mxu0
      %2312 = vmatprep.mubr.bf16.mxu0 0
      %2313 = vmatmul.mubr.bf16.gmra.mrb[0].mxu0 %v992
      %v2314 = vpop.f32.mrb[0].mxu0
      %v2315 = vadd.f32 0.0, %v2314
      %v2316 = vpop.f32.mrb[0].mxu0
      %v2317 = vpop.f32.mrb[0].mxu0
      %v2318 = vadd.f32 0.0, %v2317
      %v2319 = vpop.f32.mrb[0].mxu0
      %2320 = vmatprep.mubr.bf16.mxu0 0
      %2321 = vmatmul.mubr.bf16.gmra.mrb[0].mxu0 %v995
      %v2322 = vpop.f32.mrb[0].mxu0
      %v2323 = vadd.f32 0.0, %v2322
      %v2324 = vpop.f32.mrb[0].mxu0
      %v2325 = vpop.f32.mrb[0].mxu0
      %v2326 = vadd.f32 0.0, %v2325
      %v2327 = vpop.f32.mrb[0].mxu0
      %2328 = vmatprep.mubr.bf16.mxu0 0
      %2329 = vmatmul.mubr.bf16.gmra.mrb[0].mxu0 %v998
      %v2330 = vpop.f32.mrb[0].mxu0
      %v2331 = vadd.f32 0.0, %v2330
      %v2332 = vpop.f32.mrb[0].mxu0
      %v2333 = vpop.f32.mrb[0].mxu0
      %v2334 = vadd.f32 0.0, %v2333
      %v2335 = vpop.f32.mrb[0].mxu0
      %2336 = vmatprep.mubr.bf16.mxu0 0
      %2337 = vmatmul.mubr.bf16.gmra.mrb[0].mxu0 %v1001
      %v2338 = vpop.f32.mrb[0].mxu0
      %v2339 = vadd.f32 0.0, %v2338
      %v2340 = vpop.f32.mrb[0].mxu0
      %v2341 = vpop.f32.mrb[0].mxu0
      %v2342 = vadd.f32 0.0, %v2341
      %v2343 = vpop.f32.mrb[0].mxu0
      %2344 = vmatprep.mubr.bf16.mxu0 0
      %2345 = vmatmul.mubr.bf16.gmra.mrb[0].mxu0 %v1004
      %v2346 = vpop.f32.mrb[0].mxu0
      %v2347 = vadd.f32 0.0, %v2346
      %v2348 = vpop.f32.mrb[0].mxu0
      %v2349 = vpop.f32.mrb[0].mxu0
      %v2350 = vadd.f32 0.0, %v2349
      %v2351 = vpop.f32.mrb[0].mxu0
      %2352 = vmatprep.mubr.bf16.mxu0 0
      %2353 = vmatmul.mubr.bf16.gmra.mrb[0].mxu0 %v1007
      %v2354 = vpop.f32.mrb[0].mxu0
      %v2355 = vadd.f32 0.0, %v2354
      %v2356 = vpop.f32.mrb[0].mxu0
      %v2357 = vpop.f32.mrb[0].mxu0
      %v2358 = vadd.f32 0.0, %v2357
      %v2359 = vpop.f32.mrb[0].mxu0
      %2360 = vmatprep.mubr.bf16.mxu0 0
      %2361 = vmatmul.mubr.bf16.gmra.mrb[0].mxu0 %v1010
      %v2362 = vpop.f32.mrb[0].mxu0
      %v2363 = vadd.f32 0.0, %v2362
      %v2364 = vpop.f32.mrb[0].mxu0
      %v2365 = vpop.f32.mrb[0].mxu0
      %v2366 = vadd.f32 0.0, %v2365
      %v2367 = vpop.f32.mrb[0].mxu0
      %2368 = vmatprep.mubr.bf16.mxu0 0
      %2369 = vmatmul.mubr.bf16.gmra.mrb[0].mxu0 %v1013
      %v2370 = vpop.f32.mrb[0].mxu0
      %v2371 = vadd.f32 0.0, %v2370
      %v2372 = vpop.f32.mrb[0].mxu0
      %v2373 = vpop.f32.mrb[0].mxu0
      %v2374 = vadd.f32 0.0, %v2373
      %v2375 = vpop.f32.mrb[0].mxu0
      %2376 = vmatprep.mubr.bf16.mxu0 0
      %2377 = vmatmul.mubr.bf16.gmra.mrb[0].mxu0 %v1016
      %v2378 = vpop.f32.mrb[0].mxu0
      %v2379 = vadd.f32 0.0, %v2378
      %v2380 = vpop.f32.mrb[0].mxu0
      %v2381 = vpop.f32.mrb[0].mxu0
      %v2382 = vadd.f32 0.0, %v2381
      %v2383 = vpop.f32.mrb[0].mxu0
      %2384 = vmatprep.mubr.bf16.mxu0 0
      %2385 = vmatmul.mubr.bf16.gmra.mrb[0].mxu0 %v1019
      %v2386 = vpop.f32.mrb[0].mxu0
      %v2387 = vadd.f32 0.0, %v2386
      %v2388 = vpop.f32.mrb[0].mxu0
      %v2389 = vpop.f32.mrb[0].mxu0
      %v2390 = vadd.f32 0.0, %v2389
      %v2391 = vpop.f32.mrb[0].mxu0
      %2392 = vmatprep.mubr.bf16.mxu0 0
      %2393 = vmatmul.mubr.bf16.gmra.mrb[0].mxu0 %v1022
      %v2394 = vpop.f32.mrb[0].mxu0
      %v2395 = vadd.f32 0.0, %v2394
      %v2396 = vpop.f32.mrb[0].mxu0
      %v2397 = vpop.f32.mrb[0].mxu0
      %v2398 = vadd.f32 0.0, %v2397
      %v2399 = vpop.f32.mrb[0].mxu0
      %2400 = vmatprep.mubr.bf16.mxu0 0
      %2401 = vmatmul.mubr.bf16.gmra.mrb[0].mxu0 %v1025
      %v2402 = vpop.f32.mrb[0].mxu0
      %v2403 = vadd.f32 0.0, %v2402
      %v2404 = vpop.f32.mrb[0].mxu0
      %v2405 = vpop.f32.mrb[0].mxu0
      %v2406 = vadd.f32 0.0, %v2405
      %v2407 = vpop.f32.mrb[0].mxu0
      %2408 = vmatprep.mubr.bf16.mxu0 0
      %2409 = vmatmul.mubr.bf16.gmra.mrb[0].mxu0 %v1642
      %v2410 = vpop.f32.mrb[0].mxu0
      %v2411 = vadd.f32 0.0, %v2410
      %v2412 = vpop.f32.mrb[0].mxu0
      %v2413 = vpop.f32.mrb[0].mxu0
      %v2414 = vadd.f32 0.0, %v2413
      %v2415 = vpop.f32.mrb[0].mxu0
      %2416 = vmatprep.mubr.bf16.mxu0 0
      %2417 = vmatmul.mubr.bf16.gmra.mrb[0].mxu0 %v2259
      %v2418 = vpop.f32.mrb[0].mxu0
      %v2419 = vadd.f32 0.0, %v2418
      %v2420 = vpop.f32.mrb[0].mxu0
      %v2421 = vpop.f32.mrb[0].mxu0
      %v2422 = vadd.f32 0.0, %v2421
      %v2423 = vpop.f32.mrb[0].mxu0
      %2424 = vdwg.mxu0
      %v2425 = vadd.f32 %v2218, %v2299
      %v2426 = vadd.f32 %v2219, %v2302
      %v2427 = vadd.f32 %v2220, %v2307
      %v2428 = vadd.f32 %v2221, %v2310
      %v2429 = vadd.f32 %v2222, %v2315
      %v2430 = vadd.f32 %v2223, %v2318
      %v2431 = vadd.f32 %v2224, %v2323
      %v2432 = vadd.f32 %v2225, %v2326
      %v2433 = vadd.f32 %v2226, %v2331
      %v2434 = vadd.f32 %v2227, %v2334
      %v2435 = vadd.f32 %v2228, %v2339
      %v2436 = vadd.f32 %v2229, %v2342
      %v2437 = vadd.f32 %v2230, %v2347
      %v2438 = vadd.f32 %v2231, %v2350
      %v2439 = vadd.f32 %v2232, %v2355
      %v2440 = vadd.f32 %v2233, %v2358
      %v2441 = vadd.f32 %v2234, %v2363
      %v2442 = vadd.f32 %v2235, %v2366
      %v2443 = vadd.f32 %v2236, %v2371
      %v2444 = vadd.f32 %v2237, %v2374
      %v2445 = vadd.f32 %v2238, %v2379
      %v2446 = vadd.f32 %v2239, %v2382
      %v2447 = vadd.f32 %v2240, %v2387
      %v2448 = vadd.f32 %v2241, %v2390
      %v2449 = vadd.f32 %v2242, %v2395
      %v2450 = vadd.f32 %v2243, %v2398
      %v2451 = vadd.f32 %v2244, %v2403
      %v2452 = vadd.f32 %v2245, %v2406
      %v2453 = vadd.f32 %v2246, %v2411
      %v2454 = vadd.f32 %v2247, %v2414
      %v2455 = vadd.f32 %v2248, %v2419
      %v2456 = vadd.f32 %v2249, %v2422
      %v2457 = vld [vmem:[%s2] sm:$0x1]
      %v2459 = vlaneseq
      %v2460 = vshrl.u32 %v2459, 7
      %v2461 = vsub.s32 0, %v2460
      %v2462 = vrot.slane %v2457, %v2461
      %v2464 = vadd.f32 %v2425, %v2462
      %v2465 = vadd.f32 %v2426, %v2462
      %v2466 = vadd.f32 %v2427, %v2462
      %v2467 = vadd.f32 %v2428, %v2462
      %v2468 = vadd.f32 %v2429, %v2462
      %v2469 = vadd.f32 %v2430, %v2462
      %v2470 = vadd.f32 %v2431, %v2462
      %v2471 = vadd.f32 %v2432, %v2462
      %v2472 = vadd.f32 %v2433, %v2462
      %v2473 = vadd.f32 %v2434, %v2462
      %v2474 = vadd.f32 %v2435, %v2462
      %v2475 = vadd.f32 %v2436, %v2462
      %v2476 = vadd.f32 %v2437, %v2462
      %v2477 = vadd.f32 %v2438, %v2462
      %v2478 = vadd.f32 %v2439, %v2462
      %v2479 = vadd.f32 %v2440, %v2462
      %v2480 = vadd.f32 %v2441, %v2462
      %v2481 = vadd.f32 %v2442, %v2462
      %v2482 = vadd.f32 %v2443, %v2462
      %v2483 = vadd.f32 %v2444, %v2462
      %v2484 = vadd.f32 %v2445, %v2462
      %v2485 = vadd.f32 %v2446, %v2462
      %v2486 = vadd.f32 %v2447, %v2462
      %v2487 = vadd.f32 %v2448, %v2462
      %v2488 = vadd.f32 %v2449, %v2462
      %v2489 = vadd.f32 %v2450, %v2462
      %v2490 = vadd.f32 %v2451, %v2462
      %v2491 = vadd.f32 %v2452, %v2462
      %v2492 = vadd.f32 %v2453, %v2462
      %v2493 = vadd.f32 %v2454, %v2462
      %v2494 = vadd.f32 %v2455, %v2462
      %v2495 = vadd.f32 %v2456, %v2462
      %v2496 = vadd.f32 %v2464, %v2465
      %v2497 = vadd.f32 %v2496, %v2466
      %v2498 = vadd.f32 %v2497, %v2467
      %v2499 = vadd.f32 %v2498, %v2468
      %v2500 = vadd.f32 %v2499, %v2469
      %v2501 = vadd.f32 %v2500, %v2470
      %v2502 = vadd.f32 %v2501, %v2471
      %v2503 = vadd.f32 %v2502, %v2472
      %v2504 = vadd.f32 %v2503, %v2473
      %v2505 = vadd.f32 %v2504, %v2474
      %v2506 = vadd.f32 %v2505, %v2475
      %v2507 = vadd.f32 %v2506, %v2476
      %v2508 = vadd.f32 %v2507, %v2477
      %v2509 = vadd.f32 %v2508, %v2478
      %v2510 = vadd.f32 %v2509, %v2479
      %v2511 = vadd.f32 %v2510, %v2480
      %v2512 = vadd.f32 %v2511, %v2481
      %v2513 = vadd.f32 %v2512, %v2482
      %v2514 = vadd.f32 %v2513, %v2483
      %v2515 = vadd.f32 %v2514, %v2484
      %v2516 = vadd.f32 %v2515, %v2485
      %v2517 = vadd.f32 %v2516, %v2486
      %v2518 = vadd.f32 %v2517, %v2487
      %v2519 = vadd.f32 %v2518, %v2488
      %v2520 = vadd.f32 %v2519, %v2489
      %v2521 = vadd.f32 %v2520, %v2490
      %v2522 = vadd.f32 %v2521, %v2491
      %v2523 = vadd.f32 %v2522, %v2492
      %v2524 = vadd.f32 %v2523, %v2493
      %v2525 = vadd.f32 %v2524, %v2494
      %v2526 = vadd.f32 %v2525, %v2495
      %v2527 = vrot.slane %v2526, 4
      %v2528 = vadd.f32 %v2526, %v2527
      %v2529 = vrot.slane %v2528, 2
      %v2530 = vadd.f32 %v2528, %v2529
      %v2531 = vrot.slane %v2530, 1
      %v2532 = vadd.f32 %v2530, %v2531
      %2533 = vst [vmem:[%s166] sm:$0x1] %v2532
      %p2534 = scmp.lt.s32.totalorder %s14, 1
      %s2535 = scalar_select %p2534, %s14, 1
      %s2536 = scalar_lea.vmem %s3, %s2535
      // Predicated region
      $region33: #{t_layer_forward.5} parent=31 // pred_check
        %p2537 = pneg %p100
      $region34: #{t_layer_forward.5} parent=31 // pred_check_branch
        %2539 = sbr.rel (%p2537) target = $region36
      $region35: #{t_layer_forward.5} parent=31 // pred_region
        _
      $region36: #{t_layer_forward.5} parent=31 // pred_fallthru
        _
    $region32: #{t_layer_forward.5} parent=5 // pred_fallthru
      _
    %p2540 = scmp.le.s32.totalorder 2, %s9
    // Predicated region
    $region37: #{t_layer_forward.5} parent=5 // pred_check
      %p2541 = pneg %p2540
    $region38: #{t_layer_forward.5} parent=5 // pred_check_branch
      %2543 = sbr.rel (%p2541) target = $region40
    $region39: #{t_layer_forward.5} parent=5 // pred_region
      %s2544 = ssub.s32 %s9, 2
      // Predicated region
      $region41: #{t_layer_forward.5} parent=39 // pred_check
        %p2545 = pneg %p106
      $region42: #{t_layer_forward.5} parent=39 // pred_check_branch
        %2547 = sbr.rel (%p2545) target = $region44
      $region43: #{t_layer_forward.5} parent=39 // pred_region
        %p2548 = scmp.lt.s32.totalorder %s15, 1
        %s2549 = scalar_select %p2548, %s15, 1
        %s2550 = scalar_lea.vmem %s3, %s2549
      $region44: #{t_layer_forward.5} parent=39 // pred_fallthru
        _
    $region40: #{t_layer_forward.5} parent=5 // pred_fallthru
      _
  $region6: #{t_layer_forward.5} parent=0 // loop_footer
    %s13 = sadd.s32 1, %s9
  $region7: #{t_layer_forward.5} parent=0 // loop_footer_branch
    %8 = sbr.rel target = $region3
  $region8: #{t_layer_forward.5} parent=0 // loop_exit
    _

// kernel: t_layer_forward.7
$region0: #{t_layer_forward.7}
  #allocation0 [shape = 'u32[]', space=smem, size = 0x4, offset = 0x4, fixed_abs, tag = 'smem constant byte address 0x4 - core index']
  #allocation1 [shape = 'u32[144,128]{1,0:T(1,128)}', space=vmem, size = 0x12000, scoped, tag = 'internal scratch']
  %s0 = inlined_call_operand.vmem [shape: f32[2,18,18,4], index: 0, kind: input, shape index: {}]
  %s1 = inlined_call_operand.vmem [shape: f32[2,1,4], index: 1, kind: input, shape index: {}]
  %s2 = inlined_call_operand.vmem [shape: bf16[9,4,128], index: 2, kind: input, shape index: {}]
  %s3 = inlined_call_operand.vmem [shape: f32[1,128], index: 3, kind: input, shape index: {}]
  %s4 = inlined_call_operand.vmem [shape: f32[2,16,16,128], index: 4, kind: output, shape index: {}]
  %s5 = sld [smem:[#allocation0]]
  $region49: #{t_layer_forward.7} parent=0
    _
  %s7 = ssub.s32 1, %s5
  %s8 = scalar_select 0, %s7, %s5
  loop: start=0, step=1, limit=4
  $region2: #{t_layer_forward.7} parent=0 // loop_pre_header
    _
  $region3: #{t_layer_forward.7} parent=0 // loop_header
    %s10 = sphi 0, %s14
    %p11 = scmp.ge.s32.totalorder %s10, 4
    %s20 = sphi 0, %s22
    %s23 = sphi 0, %s20
    %s24 = sphi 0, %s23
    %s40 = sphi 0, %s24
    %s46 = sphi 0, %s48
    %s49 = sphi 0, %s46
    %s50 = sphi 0, %s49
    %s66 = sphi 0, %s50
    %s70 = sphi 0, %s70
    %s72 = sphi 0, %s70
    %s73 = sphi 0, %s72
    %s87 = sphi 0, %s73
    %s91 = sphi 0, %s91
    %s93 = sphi 0, %s91
    %s94 = sphi 0, %s93
    %s108 = sphi 0, %s94
    %s114 = sphi 0, %s116
    %s117 = sphi 0, %s114
    %s118 = sphi 0, %s117
    %s134 = sphi 0, %s118
  $region4: #{t_layer_forward.7} parent=0 // loop_header_branch
    %13 = sbr.rel (%p11) target = $region8
  $region5: #{t_layer_forward.7} parent=0 // loop_body
    %s15 = ssub.s32 %s10, 1
    %s16 = ssub.s32 %s10, 2
    %s17 = sadd.s32 %s10, 1
    %s18 = ssub.s32 %s10, %s17
    %p19 = scmp.eq.s32.totalorder %s18, 0
    %s21 = sadd.s32 %s20, 1
    %s22 = scalar_select %p19, %s20, %s21
    %p25 = pneg %p19
    %p26 = scmp.eq.s32.totalorder %s10, 1
    %p27 = por %p25, %p26
    %p28 = scmp.ne.s32.totalorder %s20, %s23
    %p29 = scmp.eq.s32.totalorder %s10, 0
    %p30 = por %p28, %p29
    %p31 = scmp.ne.s32.totalorder %s20, %s23
    %p32 = scmp.eq.s32.totalorder %s15, 1
    %p33 = por %p31, %p32
    %p34 = scmp.ne.s32.totalorder %s23, %s24
    %p35 = scmp.eq.s32.totalorder %s15, 0
    %p36 = por %p34, %p35
    %p37 = scmp.ne.s32.totalorder %s23, %s24
    %p38 = scmp.eq.s32.totalorder %s16, 1
    %p39 = por %p37, %p38
    %p41 = scmp.ne.s32.totalorder %s24, %s40
    %p42 = scmp.eq.s32.totalorder %s16, 0
    %p43 = por %p41, %p42
    %s44 = ssub.s32 %s10, %s17
    %p45 = scmp.eq.s32.totalorder %s44, 0
    %s47 = sadd.s32 %s46, 1
    %s48 = scalar_select %p45, %s46, %s47
    %p51 = pneg %p45
    %p52 = scmp.eq.s32.totalorder %s10, 1
    %p53 = por %p51, %p52
    %p54 = scmp.ne.s32.totalorder %s46, %s49
    %p55 = scmp.eq.s32.totalorder %s10, 0
    %p56 = por %p54, %p55
    %p57 = scmp.ne.s32.totalorder %s46, %s49
    %p58 = scmp.eq.s32.totalorder %s15, 1
    %p59 = por %p57, %p58
    %p60 = scmp.ne.s32.totalorder %s49, %s50
    %p61 = scmp.eq.s32.totalorder %s15, 0
    %p62 = por %p60, %p61
    %p63 = scmp.ne.s32.totalorder %s49, %s50
    %p64 = scmp.eq.s32.totalorder %s16, 1
    %p65 = por %p63, %p64
    %p67 = scmp.ne.s32.totalorder %s50, %s66
    %p68 = scmp.eq.s32.totalorder %s16, 0
    %p69 = por %p67, %p68
    %s71 = sadd.s32 %s70, 1
    %p74 = scmp.eq.s32.totalorder %s10, 1
    %p75 = scmp.ne.s32.totalorder %s70, %s72
    %p76 = scmp.eq.s32.totalorder %s10, 0
    %p77 = por %p75, %p76
    %p78 = scmp.ne.s32.totalorder %s70, %s72
    %p79 = scmp.eq.s32.totalorder %s15, 1
    %p80 = por %p78, %p79
    %p81 = scmp.ne.s32.totalorder %s72, %s73
    %p82 = scmp.eq.s32.totalorder %s15, 0
    %p83 = por %p81, %p82
    %p84 = scmp.ne.s32.totalorder %s72, %s73
    %p85 = scmp.eq.s32.totalorder %s16, 1
    %p86 = por %p84, %p85
    %p88 = scmp.ne.s32.totalorder %s73, %s87
    %p89 = scmp.eq.s32.totalorder %s16, 0
    %p90 = por %p88, %p89
    %s92 = sadd.s32 %s91, 1
    %p95 = scmp.eq.s32.totalorder %s10, 1
    %p96 = scmp.ne.s32.totalorder %s91, %s93
    %p97 = scmp.eq.s32.totalorder %s10, 0
    %p98 = por %p96, %p97
    %p99 = scmp.ne.s32.totalorder %s91, %s93
    %p100 = scmp.eq.s32.totalorder %s15, 1
    %p101 = por %p99, %p100
    %p102 = scmp.ne.s32.totalorder %s93, %s94
    %p103 = scmp.eq.s32.totalorder %s15, 0
    %p104 = por %p102, %p103
    %p105 = scmp.ne.s32.totalorder %s93, %s94
    %p106 = scmp.eq.s32.totalorder %s16, 1
    %p107 = por %p105, %p106
    %p109 = scmp.ne.s32.totalorder %s94, %s108
    %p110 = scmp.eq.s32.totalorder %s16, 0
    %p111 = por %p109, %p110
    %s112 = ssub.s32 %s10, %s17
    %p113 = scmp.eq.s32.totalorder %s112, 0
    %s115 = sadd.s32 %s114, 1
    %s116 = scalar_select %p113, %s114, %s115
    %p119 = pneg %p113
    %p120 = scmp.eq.s32.totalorder %s10, 1
    %p121 = por %p119, %p120
    %p122 = scmp.ne.s32.totalorder %s114, %s117
    %p123 = scmp.eq.s32.totalorder %s10, 0
    %p124 = por %p122, %p123
    %p125 = scmp.ne.s32.totalorder %s114, %s117
    %p126 = scmp.eq.s32.totalorder %s15, 1
    %p127 = por %p125, %p126
    %p128 = scmp.ne.s32.totalorder %s117, %s118
    %p129 = scmp.eq.s32.totalorder %s15, 0
    %p130 = por %p128, %p129
    %p131 = scmp.ne.s32.totalorder %s117, %s118
    %p132 = scmp.eq.s32.totalorder %s16, 1
    %p133 = por %p131, %p132
    %p135 = scmp.ne.s32.totalorder %s118, %s134
    %p136 = scmp.eq.s32.totalorder %s16, 0
    %p137 = por %p135, %p136
    %p138 = scmp.le.s32.totalorder 1, %s10
    %p139 = scmp.lt.s32.totalorder %s10, 3
    %p140 = pnand %p138, %p139
    %p141 = pneg %p140
    // Predicated region
    $region9: #{t_layer_forward.7} parent=5 // pred_check
      _
    $region10: #{t_layer_forward.7} parent=5 // pred_check_branch
      %143 = sbr.rel (%p140) target = $region12
    $region11: #{t_layer_forward.7} parent=5 // pred_region
      %s144 = ssub.s32 %s10, 1
      // Predicated region
      $region13: #{t_layer_forward.7} parent=11 // pred_check
        %p145 = pneg %p83
      $region14: #{t_layer_forward.7} parent=11 // pred_check_branch
        %147 = sbr.rel (%p145) target = $region16
      $region15: #{t_layer_forward.7} parent=11 // pred_region
        _
      $region16: #{t_layer_forward.7} parent=11 // pred_fallthru
        _
      // Predicated region
      $region17: #{t_layer_forward.7} parent=11 // pred_check
        %p148 = pneg %p104
      $region18: #{t_layer_forward.7} parent=11 // pred_check_branch
        %150 = sbr.rel (%p148) target = $region20
      $region19: #{t_layer_forward.7} parent=11 // pred_region
        _
      $region20: #{t_layer_forward.7} parent=11 // pred_fallthru
        _
    $region12: #{t_layer_forward.7} parent=5 // pred_fallthru
      _
    %p151 = scmp.lt.s32.totalorder %s10, 2
    // Predicated region
    $region21: #{t_layer_forward.7} parent=5 // pred_check
      %p152 = pneg %p151
    $region22: #{t_layer_forward.7} parent=5 // pred_check_branch
      %154 = sbr.rel (%p152) target = $region24
    $region23: #{t_layer_forward.7} parent=5 // pred_region
      // Predicated region
      $region25: #{t_layer_forward.7} parent=23 // pred_check
        %p155 = pneg %p30
      $region26: #{t_layer_forward.7} parent=23 // pred_check_branch
        %157 = sbr.rel (%p155) target = $region28
      $region27: #{t_layer_forward.7} parent=23 // pred_region
        %p158 = scmp.lt.s32.totalorder %s10, 1
        %s159 = scalar_select %p158, %s10, 1
        %s160 = smul.addr %s159, 54
        %s161 = smul.addr %s160, 8
        %s162 = scalar_lea.vmem %s0, %s161
      $region28: #{t_layer_forward.7} parent=23 // pred_fallthru
        _
      // Predicated region
      $region29: #{t_layer_forward.7} parent=23 // pred_check
        %p163 = pneg %p56
      $region30: #{t_layer_forward.7} parent=23 // pred_check_branch
        %165 = sbr.rel (%p163) target = $region32
      $region31: #{t_layer_forward.7} parent=23 // pred_region
        %p166 = scmp.lt.s32.totalorder %s10, 1
        %s167 = scalar_select %p166, %s10, 1
        %s168 = scalar_lea.vmem %s1, %s167
      $region32: #{t_layer_forward.7} parent=23 // pred_fallthru
        _
    $region24: #{t_layer_forward.7} parent=5 // pred_fallthru
      _
    %p169 = scmp.le.s32.totalorder 1, %s10
    %p170 = scmp.lt.s32.totalorder %s10, 3
    %p171 = pnand %p169, %p170
    %p172 = pneg %p171
    // Predicated region
    $region33: #{t_layer_forward.7} parent=5 // pred_check
      _
    $region34: #{t_layer_forward.7} parent=5 // pred_check_branch
      %174 = sbr.rel (%p171) target = $region36
    $region35: #{t_layer_forward.7} parent=5 // pred_region
      %s175 = ssub.s32 %s10, 1
      %p176 = scmp.lt.s32.totalorder %s15, 1
      %s177 = scalar_select %p176, %s15, 1
      %s178 = smul.addr %s177, 54
      %s179 = smul.addr %s178, 8
      %s180 = scalar_lea.vmem %s0, %s179
      %p181 = pneg %p36
      %p182 = pneg %p33
      %p183 = scmp.lt.s32.totalorder %s15, 1
      %s184 = scalar_select %p183, %s15, 1
      %s185 = scalar_lea.vmem %s1, %s184
      %p186 = pneg %p62
      %p187 = pneg %p59
      %p188 = pneg %p83
      %p189 = pneg %p80
      %p190 = pneg %p104
      %p191 = pneg %p101
      %p192 = pneg %p130
      %p193 = pneg %p127
      %p194 = scmp.lt.s32.totalorder %s15, 1
      %s195 = scalar_select %p194, %s15, 1
      %s196 = smul.addr %s195, 32
      %s197 = smul.addr %s196, 8
      %s198 = scalar_lea.vmem %s4, %s197
      %p199 = scmp.lt.s32.totalorder %s15, 1
      %s200 = scalar_select %p199, %s15, 1
      %s201 = smul.addr %s200, 54
      %s202 = smul.addr %s201, 8
      %s203 = scalar_lea.vmem %s0, %s202
      %p204 = scmp.lt.s32.totalorder %s15, 1
      %s205 = scalar_select %p204, %s15, 1
      %s206 = scalar_lea.vmem %s1, %s205
      %p207 = scmp.lt.s32.totalorder %s15, 1
      %s208 = scalar_select %p207, %s15, 1
      %s209 = smul.addr %s208, 32
      %s210 = smul.addr %s209, 8
      %s211 = scalar_lea.vmem %s4, %s210
      %v213 = vld [vmem:[%s203] sm:$0xff]
      %v214 = vld [vmem:[%s203 + $0x8] sm:$0xff]
      %v215 = vld [vmem:[%s203 + $0x10] sm:$0x3]
      %v216 = vld [vmem:[%s203 + $0x18] sm:$0xff]
      %v217 = vld [vmem:[%s203 + $0x20] sm:$0xff]
      %v218 = vld [vmem:[%s203 + $0x28] sm:$0x3]
      %v219 = vld [vmem:[%s203 + $0x30] sm:$0xff]
      %v220 = vld [vmem:[%s203 + $0x38] sm:$0xff]
      %v221 = vld [vmem:[%s203 + $0x40] sm:$0x3]
      %v222 = vld [vmem:[%s203 + $0x48] sm:$0xff]
      %v223 = vld [vmem:[%s203 + $0x50] sm:$0xff]
      %v224 = vld [vmem:[%s203 + $0x58] sm:$0x3]
      %v225 = vld [vmem:[%s203 + $0x60] sm:$0xff]
      %v226 = vld [vmem:[%s203 + $0x68] sm:$0xff]
      %v227 = vld [vmem:[%s203 + $0x70] sm:$0x3]
      %v228 = vld [vmem:[%s203 + $0x78] sm:$0xff]
      %v229 = vld [vmem:[%s203 + $0x80] sm:$0xff]
      %v230 = vld [vmem:[%s203 + $0x88] sm:$0x3]
      %v231 = vld [vmem:[%s203 + $0x90] sm:$0xff]
      %v232 = vld [vmem:[%s203 + $0x98] sm:$0xff]
      %v233 = vld [vmem:[%s203 + $0xa0] sm:$0x3]
      %v234 = vld [vmem:[%s203 + $0xa8] sm:$0xff]
      %v235 = vld [vmem:[%s203 + $0xb0] sm:$0xff]
      %v236 = vld [vmem:[%s203 + $0xb8] sm:$0x3]
      %v237 = vld [vmem:[%s203 + $0xc0] sm:$0xff]
      %v238 = vld [vmem:[%s203 + $0xc8] sm:$0xff]
      %v239 = vld [vmem:[%s203 + $0xd0] sm:$0x3]
      %v240 = vld [vmem:[%s203 + $0xd8] sm:$0xff]
      %v241 = vld [vmem:[%s203 + $0xe0] sm:$0xff]
      %v242 = vld [vmem:[%s203 + $0xe8] sm:$0x3]
      %v243 = vld [vmem:[%s203 + $0xf0] sm:$0xff]
      %v244 = vld [vmem:[%s203 + $0xf8] sm:$0xff]
      %v245 = vld [vmem:[%s203 + $0x100] sm:$0x3]
      %v246 = vld [vmem:[%s203 + $0x108] sm:$0xff]
      %v247 = vld [vmem:[%s203 + $0x110] sm:$0xff]
      %v248 = vld [vmem:[%s203 + $0x118] sm:$0x3]
      %v249 = vld [vmem:[%s203 + $0x120] sm:$0xff]
      %v250 = vld [vmem:[%s203 + $0x128] sm:$0xff]
      %v251 = vld [vmem:[%s203 + $0x130] sm:$0x3]
      %v252 = vld [vmem:[%s203 + $0x138] sm:$0xff]
      %v253 = vld [vmem:[%s203 + $0x140] sm:$0xff]
      %v254 = vld [vmem:[%s203 + $0x148] sm:$0x3]
      %v255 = vld [vmem:[%s203 + $0x150] sm:$0xff]
      %v256 = vld [vmem:[%s203 + $0x158] sm:$0xff]
      %v257 = vld [vmem:[%s203 + $0x160] sm:$0x3]
      %v258 = vld [vmem:[%s203 + $0x168] sm:$0xff]
      %v259 = vld [vmem:[%s203 + $0x170] sm:$0xff]
      %v260 = vld [vmem:[%s203 + $0x178] sm:$0x3]
      %v261 = vld [vmem:[%s203 + $0x180] sm:$0xff]
      %v262 = vld [vmem:[%s203 + $0x188] sm:$0xff]
      %v263 = vld [vmem:[%s203 + $0x190] sm:$0x3]
      %v264 = vld [vmem:[%s203 + $0x198] sm:$0xff]
      %v265 = vld [vmem:[%s203 + $0x1a0] sm:$0xff]
      %v266 = vld [vmem:[%s203 + $0x1a8] sm:$0x3]
      %v267 = vld [vmem:[%s206] sm:$0x1]
      %v269 = vlaneseq
      %v270 = vshrl.u32 %v269, 7
      %v271 = vsub.s32 0, %v270
      %v272 = vrot.slane %v267, %v271
      %v274 = vmul.f32 %v213, %v272
      %v275 = vmul.f32 %v214, %v272
      %v276 = vmul.f32 %v215, %v272
      %v277 = vmul.f32 %v216, %v272
      %v278 = vmul.f32 %v217, %v272
      %v279 = vmul.f32 %v218, %v272
      %v280 = vmul.f32 %v219, %v272
      %v281 = vmul.f32 %v220, %v272
      %v282 = vmul.f32 %v221, %v272
      %v283 = vmul.f32 %v222, %v272
      %v284 = vmul.f32 %v223, %v272
      %v285 = vmul.f32 %v224, %v272
      %v286 = vmul.f32 %v225, %v272
      %v287 = vmul.f32 %v226, %v272
      %v288 = vmul.f32 %v227, %v272
      %v289 = vmul.f32 %v228, %v272
      %v290 = vmul.f32 %v229, %v272
      %v291 = vmul.f32 %v230, %v272
      %v292 = vmul.f32 %v231, %v272
      %v293 = vmul.f32 %v232, %v272
      %v294 = vmul.f32 %v233, %v272
      %v295 = vmul.f32 %v234, %v272
      %v296 = vmul.f32 %v235, %v272
      %v297 = vmul.f32 %v236, %v272
      %v298 = vmul.f32 %v237, %v272
      %v299 = vmul.f32 %v238, %v272
      %v300 = vmul.f32 %v239, %v272
      %v301 = vmul.f32 %v240, %v272
      %v302 = vmul.f32 %v241, %v272
      %v303 = vmul.f32 %v242, %v272
      %v304 = vmul.f32 %v243, %v272
      %v305 = vmul.f32 %v244, %v272
      %v306 = vmul.f32 %v245, %v272
      %v307 = vmul.f32 %v246, %v272
      %v308 = vmul.f32 %v247, %v272
      %v309 = vmul.f32 %v248, %v272
      %v310 = vmul.f32 %v249, %v272
      %v311 = vmul.f32 %v250, %v272
      %v312 = vmul.f32 %v251, %v272
      %v313 = vmul.f32 %v252, %v272
      %v314 = vmul.f32 %v253, %v272
      %v315 = vmul.f32 %v254, %v272
      %v316 = vmul.f32 %v255, %v272
      %v317 = vmul.f32 %v256, %v272
      %v318 = vmul.f32 %v257, %v272
      %v319 = vmul.f32 %v258, %v272
      %v320 = vmul.f32 %v259, %v272
      %v321 = vmul.f32 %v260, %v272
      %v322 = vmul.f32 %v261, %v272
      %v323 = vmul.f32 %v262, %v272
      %v324 = vmul.f32 %v263, %v272
      %v325 = vmul.f32 %v264, %v272
      %v326 = vmul.f32 %v265, %v272
      %v327 = vmul.f32 %v266, %v272
      %v328 = vld [vmem:[%s2] sm:$0x3]
      %v329 = vld [vmem:[%s2 + $0x2] sm:$0x3]
      %v330 = vld [vmem:[%s2 + $0x4] sm:$0x3]
      %v331 = vld [vmem:[%s2 + $0x6] sm:$0x3]
      %v332 = vld [vmem:[%s2 + $0x8] sm:$0x3]
      %v333 = vld [vmem:[%s2 + $0xa] sm:$0x3]
      %v334 = vld [vmem:[%s2 + $0xc] sm:$0x3]
      %v335 = vld [vmem:[%s2 + $0xe] sm:$0x3]
      %v336 = vld [vmem:[%s2 + $0x10] sm:$0x3]
      %v337 = vpack.c.bf16 %v275, %v274
      %v338 = vpack.c.bf16 %v278, %v277
      %v339 = vpack.c.bf16 %v281, %v280
      %v340 = vpack.c.bf16 %v284, %v283
      %v341 = vpack.c.bf16 %v287, %v286
      %v342 = vpack.c.bf16 %v290, %v289
      %v343 = vpack.c.bf16 %v293, %v292
      %v344 = vpack.c.bf16 %v296, %v295
      %v345 = vpack.c.bf16 %v299, %v298
      %v346 = vpack.c.bf16 %v302, %v301
      %v347 = vpack.c.bf16 %v305, %v304
      %v348 = vpack.c.bf16 %v308, %v307
      %v349 = vpack.c.bf16 %v311, %v310
      %v350 = vpack.c.bf16 %v314, %v313
      %v351 = vpack.c.bf16 %v317, %v316
      %v352 = vpack.c.bf16 %v320, %v319
      %vm401 = vcmask 1046528
      %v402 = vrot.slane %v274, 1
      %v403 = vrot.slane %v275, 1
      %v404 = vsel %vm401, %v402, %v403
      %v405 = vrot.slane %v276, 1
      %v406 = vsel %vm401, %v403, %v405
      %v407 = vrot.slane %v277, 1
      %v408 = vrot.slane %v278, 1
      %v409 = vsel %vm401, %v407, %v408
      %v410 = vrot.slane %v279, 1
      %v411 = vsel %vm401, %v408, %v410
      %v412 = vrot.slane %v280, 1
      %v413 = vrot.slane %v281, 1
      %v414 = vsel %vm401, %v412, %v413
      %v415 = vrot.slane %v282, 1
      %v416 = vsel %vm401, %v413, %v415
      %v417 = vrot.slane %v283, 1
      %v418 = vrot.slane %v284, 1
      %v419 = vsel %vm401, %v417, %v418
      %v420 = vrot.slane %v285, 1
      %v421 = vsel %vm401, %v418, %v420
      %v422 = vrot.slane %v286, 1
      %v423 = vrot.slane %v287, 1
      %v424 = vsel %vm401, %v422, %v423
      %v425 = vrot.slane %v288, 1
      %v426 = vsel %vm401, %v423, %v425
      %v427 = vrot.slane %v289, 1
      %v428 = vrot.slane %v290, 1
      %v429 = vsel %vm401, %v427, %v428
      %v430 = vrot.slane %v291, 1
      %v431 = vsel %vm401, %v428, %v430
      %v432 = vrot.slane %v292, 1
      %v433 = vrot.slane %v293, 1
      %v434 = vsel %vm401, %v432, %v433
      %v435 = vrot.slane %v294, 1
      %v436 = vsel %vm401, %v433, %v435
      %v437 = vrot.slane %v295, 1
      %v438 = vrot.slane %v296, 1
      %v439 = vsel %vm401, %v437, %v438
      %v440 = vrot.slane %v297, 1
      %v441 = vsel %vm401, %v438, %v440
      %v442 = vrot.slane %v298, 1
      %v443 = vrot.slane %v299, 1
      %v444 = vsel %vm401, %v442, %v443
      %v445 = vrot.slane %v300, 1
      %v446 = vsel %vm401, %v443, %v445
      %v447 = vrot.slane %v301, 1
      %v448 = vrot.slane %v302, 1
      %v449 = vsel %vm401, %v447, %v448
      %v450 = vrot.slane %v303, 1
      %v451 = vsel %vm401, %v448, %v450
      %v452 = vrot.slane %v304, 1
      %v453 = vrot.slane %v305, 1
      %v454 = vsel %vm401, %v452, %v453
      %v455 = vrot.slane %v306, 1
      %v456 = vsel %vm401, %v453, %v455
      %v457 = vrot.slane %v307, 1
      %v458 = vrot.slane %v308, 1
      %v459 = vsel %vm401, %v457, %v458
      %v460 = vrot.slane %v309, 1
      %v461 = vsel %vm401, %v458, %v460
      %v462 = vrot.slane %v310, 1
      %v463 = vrot.slane %v311, 1
      %v464 = vsel %vm401, %v462, %v463
      %v465 = vrot.slane %v312, 1
      %v466 = vsel %vm401, %v463, %v465
      %v467 = vrot.slane %v313, 1
      %v468 = vrot.slane %v314, 1
      %v469 = vsel %vm401, %v467, %v468
      %v470 = vrot.slane %v315, 1
      %v471 = vsel %vm401, %v468, %v470
      %v472 = vrot.slane %v316, 1
      %v473 = vrot.slane %v317, 1
      %v474 = vsel %vm401, %v472, %v473
      %v475 = vrot.slane %v318, 1
      %v476 = vsel %vm401, %v473, %v475
      %v477 = vrot.slane %v319, 1
      %v478 = vrot.slane %v320, 1
      %v479 = vsel %vm401, %v477, %v478
      %v480 = vrot.slane %v321, 1
      %v481 = vsel %vm401, %v478, %v480
      %v514 = vpack.c.bf16 %v406, %v404
      %v515 = vpack.c.bf16 %v411, %v409
      %v516 = vpack.c.bf16 %v416, %v414
      %v517 = vpack.c.bf16 %v421, %v419
      %v518 = vpack.c.bf16 %v426, %v424
      %v519 = vpack.c.bf16 %v431, %v429
      %v520 = vpack.c.bf16 %v436, %v434
      %v521 = vpack.c.bf16 %v441, %v439
      %v522 = vpack.c.bf16 %v446, %v444
      %v523 = vpack.c.bf16 %v451, %v449
      %v524 = vpack.c.bf16 %v456, %v454
      %v525 = vpack.c.bf16 %v461, %v459
      %v526 = vpack.c.bf16 %v466, %v464
      %v527 = vpack.c.bf16 %v471, %v469
      %v528 = vpack.c.bf16 %v476, %v474
      %v529 = vpack.c.bf16 %v481, %v479
      %vm530 = vcmask 31744
      %v532 = vsel %vm530, %v514, 0
      %v535 = vsel %vm530, %v515, 0
      %v538 = vsel %vm530, %v516, 0
      %v541 = vsel %vm530, %v517, 0
      %v544 = vsel %vm530, %v518, 0
      %v547 = vsel %vm530, %v519, 0
      %v550 = vsel %vm530, %v520, 0
      %v553 = vsel %vm530, %v521, 0
      %v556 = vsel %vm530, %v522, 0
      %v559 = vsel %vm530, %v523, 0
      %v562 = vsel %vm530, %v524, 0
      %v565 = vsel %vm530, %v525, 0
      %v568 = vsel %vm530, %v526, 0
      %v571 = vsel %vm530, %v527, 0
      %v574 = vsel %vm530, %v528, 0
      %v577 = vsel %vm530, %v529, 0
      %vm579 = vcmask 1041408
      %v581 = vsel %vm579, %v329, 0
      %583 = vmatprep.subr.bf16.mxu0 0
      %584 = vmatpush1.bf16.msra.mxu0 %v581
      %585 = vmatprep.subr.bf16.mxu0 0
      %586 = vmatpush1.bf16.msra.mxu0 0
      %587 = vmatprep.subr.bf16.mxu0 0
      %588 = vmatpush1.bf16.msra.mxu0 0
      %589 = vmatprep.subr.bf16.mxu0 0
      %590 = vmatpush1.bf16.msra.mxu0 0
      %591 = vmatprep.subr.bf16.mxu0 0
      %592 = vmatpush1.bf16.msra.mxu0 0
      %593 = vmatprep.subr.bf16.mxu0 0
      %594 = vmatpush1.bf16.msra.mxu0 0
      %595 = vmatprep.subr.bf16.mxu0 0
      %596 = vmatpush1.bf16.msra.mxu0 0
      %597 = vmatprep.subr.bf16.mxu0 0
      %598 = vmatpush1.bf16.msra.mxu0 0
      %599 = vmatprep.subr.bf16.mxu0 0
      %600 = vmatpush1.bf16.msra.mxu0 0
      %601 = vmatprep.subr.bf16.mxu0 0
      %602 = vmatpush1.bf16.msra.mxu0 0
      %603 = vmatprep.subr.bf16.mxu0 0
      %604 = vmatpush1.bf16.msra.mxu0 0
      %605 = vmatprep.subr.bf16.mxu0 0
      %606 = vmatpush1.bf16.msra.mxu0 0
      %607 = vmatprep.subr.bf16.mxu0 0
      %608 = vmatpush1.bf16.msra.mxu0 0
      %609 = vmatprep.subr.bf16.mxu0 0
      %610 = vmatpush1.bf16.msra.mxu0 0
      %611 = vmatprep.subr.bf16.mxu0 0
      %612 = vmatpush1.bf16.msra.mxu0 0
      %613 = vmatprep.subr.bf16.mxu0 0
      %614 = vmatpush1.bf16.msra.mxu0 0
      %615 = vmatprep.mubr.bf16.mxu0 0
      %616 = vmatmul.mubr.bf16.gmra.mrb[0].mxu0 %v532
      %v617 = vpop.f32.mrb[0].mxu0
      %v618 = vadd.f32 0.0, %v617
      %v619 = vpop.f32.mrb[0].mxu0
      %v620 = vpop.f32.mrb[0].mxu0
      %v621 = vadd.f32 0.0, %v620
      %v622 = vpop.f32.mrb[0].mxu0
      %623 = vmatprep.mubr.bf16.mxu0 0
      %624 = vmatmul.mubr.bf16.gmra.mrb[0].mxu0 %v535
      %v625 = vpop.f32.mrb[0].mxu0
      %v626 = vadd.f32 0.0, %v625
      %v627 = vpop.f32.mrb[0].mxu0
      %v628 = vpop.f32.mrb[0].mxu0
      %v629 = vadd.f32 0.0, %v628
      %v630 = vpop.f32.mrb[0].mxu0
      %631 = vmatprep.mubr.bf16.mxu0 0
      %632 = vmatmul.mubr.bf16.gmra.mrb[0].mxu0 %v538
      %v633 = vpop.f32.mrb[0].mxu0
      %v634 = vadd.f32 0.0, %v633
      %v635 = vpop.f32.mrb[0].mxu0
      %v636 = vpop.f32.mrb[0].mxu0
      %v637 = vadd.f32 0.0, %v636
      %v638 = vpop.f32.mrb[0].mxu0
      %639 = vmatprep.mubr.bf16.mxu0 0
      %640 = vmatmul.mubr.bf16.gmra.mrb[0].mxu0 %v541
      %v641 = vpop.f32.mrb[0].mxu0
      %v642 = vadd.f32 0.0, %v641
      %v643 = vpop.f32.mrb[0].mxu0
      %v644 = vpop.f32.mrb[0].mxu0
      %v645 = vadd.f32 0.0, %v644
      %v646 = vpop.f32.mrb[0].mxu0
      %647 = vmatprep.mubr.bf16.mxu0 0
      %648 = vmatmul.mubr.bf16.gmra.mrb[0].mxu0 %v544
      %v649 = vpop.f32.mrb[0].mxu0
      %v650 = vadd.f32 0.0, %v649
      %v651 = vpop.f32.mrb[0].mxu0
      %v652 = vpop.f32.mrb[0].mxu0
      %v653 = vadd.f32 0.0, %v652
      %v654 = vpop.f32.mrb[0].mxu0
      %655 = vmatprep.mubr.bf16.mxu0 0
      %656 = vmatmul.mubr.bf16.gmra.mrb[0].mxu0 %v547
      %v657 = vpop.f32.mrb[0].mxu0
      %v658 = vadd.f32 0.0, %v657
      %v659 = vpop.f32.mrb[0].mxu0
      %v660 = vpop.f32.mrb[0].mxu0
      %v661 = vadd.f32 0.0, %v660
      %v662 = vpop.f32.mrb[0].mxu0
      %663 = vmatprep.mubr.bf16.mxu0 0
      %664 = vmatmul.mubr.bf16.gmra.mrb[0].mxu0 %v550
      %v665 = vpop.f32.mrb[0].mxu0
      %v666 = vadd.f32 0.0, %v665
      %v667 = vpop.f32.mrb[0].mxu0
      %v668 = vpop.f32.mrb[0].mxu0
      %v669 = vadd.f32 0.0, %v668
      %v670 = vpop.f32.mrb[0].mxu0
      %671 = vmatprep.mubr.bf16.mxu0 0
      %672 = vmatmul.mubr.bf16.gmra.mrb[0].mxu0 %v553
      %v673 = vpop.f32.mrb[0].mxu0
      %v674 = vadd.f32 0.0, %v673
      %v675 = vpop.f32.mrb[0].mxu0
      %v676 = vpop.f32.mrb[0].mxu0
      %v677 = vadd.f32 0.0, %v676
      %v678 = vpop.f32.mrb[0].mxu0
      %679 = vmatprep.mubr.bf16.mxu0 0
      %680 = vmatmul.mubr.bf16.gmra.mrb[0].mxu0 %v556
      %v681 = vpop.f32.mrb[0].mxu0
      %v682 = vadd.f32 0.0, %v681
      %v683 = vpop.f32.mrb[0].mxu0
      %v684 = vpop.f32.mrb[0].mxu0
      %v685 = vadd.f32 0.0, %v684
      %v686 = vpop.f32.mrb[0].mxu0
      %687 = vmatprep.mubr.bf16.mxu0 0
      %688 = vmatmul.mubr.bf16.gmra.mrb[0].mxu0 %v559
      %v689 = vpop.f32.mrb[0].mxu0
      %v690 = vadd.f32 0.0, %v689
      %v691 = vpop.f32.mrb[0].mxu0
      %v692 = vpop.f32.mrb[0].mxu0
      %v693 = vadd.f32 0.0, %v692
      %v694 = vpop.f32.mrb[0].mxu0
      %695 = vmatprep.mubr.bf16.mxu0 0
      %696 = vmatmul.mubr.bf16.gmra.mrb[0].mxu0 %v562
      %v697 = vpop.f32.mrb[0].mxu0
      %v698 = vadd.f32 0.0, %v697
      %v699 = vpop.f32.mrb[0].mxu0
      %v700 = vpop.f32.mrb[0].mxu0
      %v701 = vadd.f32 0.0, %v700
      %v702 = vpop.f32.mrb[0].mxu0
      %703 = vmatprep.mubr.bf16.mxu0 0
      %704 = vmatmul.mubr.bf16.gmra.mrb[0].mxu0 %v565
      %v705 = vpop.f32.mrb[0].mxu0
      %v706 = vadd.f32 0.0, %v705
      %v707 = vpop.f32.mrb[0].mxu0
      %v708 = vpop.f32.mrb[0].mxu0
      %v709 = vadd.f32 0.0, %v708
      %v710 = vpop.f32.mrb[0].mxu0
      %711 = vmatprep.mubr.bf16.mxu0 0
      %712 = vmatmul.mubr.bf16.gmra.mrb[0].mxu0 %v568
      %v713 = vpop.f32.mrb[0].mxu0
      %v714 = vadd.f32 0.0, %v713
      %v715 = vpop.f32.mrb[0].mxu0
      %v716 = vpop.f32.mrb[0].mxu0
      %v717 = vadd.f32 0.0, %v716
      %v718 = vpop.f32.mrb[0].mxu0
      %719 = vmatprep.mubr.bf16.mxu0 0
      %720 = vmatmul.mubr.bf16.gmra.mrb[0].mxu0 %v571
      %v721 = vpop.f32.mrb[0].mxu0
      %v722 = vadd.f32 0.0, %v721
      %v723 = vpop.f32.mrb[0].mxu0
      %v724 = vpop.f32.mrb[0].mxu0
      %v725 = vadd.f32 0.0, %v724
      %v726 = vpop.f32.mrb[0].mxu0
      %727 = vmatprep.mubr.bf16.mxu0 0
      %728 = vmatmul.mubr.bf16.gmra.mrb[0].mxu0 %v574
      %v729 = vpop.f32.mrb[0].mxu0
      %v730 = vadd.f32 0.0, %v729
      %v731 = vpop.f32.mrb[0].mxu0
      %v732 = vpop.f32.mrb[0].mxu0
      %v733 = vadd.f32 0.0, %v732
      %v734 = vpop.f32.mrb[0].mxu0
      %735 = vmatprep.mubr.bf16.mxu0 0
      %736 = vmatmul.mubr.bf16.gmra.mrb[0].mxu0 %v577
      %v737 = vpop.f32.mrb[0].mxu0
      %v738 = vadd.f32 0.0, %v737
      %v739 = vpop.f32.mrb[0].mxu0
      %v740 = vpop.f32.mrb[0].mxu0
      %v741 = vadd.f32 0.0, %v740
      %v742 = vpop.f32.mrb[0].mxu0
      %743 = vdwg.mxu0
      %v745 = vsel %vm530, %v337, 0
      %v748 = vsel %vm530, %v338, 0
      %v751 = vsel %vm530, %v339, 0
      %v754 = vsel %vm530, %v340, 0
      %v757 = vsel %vm530, %v341, 0
      %v760 = vsel %vm530, %v342, 0
      %v763 = vsel %vm530, %v343, 0
      %v766 = vsel %vm530, %v344, 0
      %v769 = vsel %vm530, %v345, 0
      %v772 = vsel %vm530, %v346, 0
      %v775 = vsel %vm530, %v347, 0
      %v778 = vsel %vm530, %v348, 0
      %v781 = vsel %vm530, %v349, 0
      %v784 = vsel %vm530, %v350, 0
      %v787 = vsel %vm530, %v351, 0
      %v790 = vsel %vm530, %v352, 0
      %v793 = vsel %vm579, %v328, 0
      %795 = vmatprep.subr.bf16.mxu0 0
      %796 = vmatpush1.bf16.msra.mxu0 %v793
      %797 = vmatprep.subr.bf16.mxu0 0
      %798 = vmatpush1.bf16.msra.mxu0 0
      %799 = vmatprep.subr.bf16.mxu0 0
      %800 = vmatpush1.bf16.msra.mxu0 0
      %801 = vmatprep.subr.bf16.mxu0 0
      %802 = vmatpush1.bf16.msra.mxu0 0
      %803 = vmatprep.subr.bf16.mxu0 0
      %804 = vmatpush1.bf16.msra.mxu0 0
      %805 = vmatprep.subr.bf16.mxu0 0
      %806 = vmatpush1.bf16.msra.mxu0 0
      %807 = vmatprep.subr.bf16.mxu0 0
      %808 = vmatpush1.bf16.msra.mxu0 0
      %809 = vmatprep.subr.bf16.mxu0 0
      %810 = vmatpush1.bf16.msra.mxu0 0
      %811 = vmatprep.subr.bf16.mxu0 0
      %812 = vmatpush1.bf16.msra.mxu0 0
      %813 = vmatprep.subr.bf16.mxu0 0
      %814 = vmatpush1.bf16.msra.mxu0 0
      %815 = vmatprep.subr.bf16.mxu0 0
      %816 = vmatpush1.bf16.msra.mxu0 0
      %817 = vmatprep.subr.bf16.mxu0 0
      %818 = vmatpush1.bf16.msra.mxu0 0
      %819 = vmatprep.subr.bf16.mxu0 0
      %820 = vmatpush1.bf16.msra.mxu0 0
      %821 = vmatprep.subr.bf16.mxu0 0
      %822 = vmatpush1.bf16.msra.mxu0 0
      %823 = vmatprep.subr.bf16.mxu0 0
      %824 = vmatpush1.bf16.msra.mxu0 0
      %825 = vmatprep.subr.bf16.mxu0 0
      %826 = vmatpush1.bf16.msra.mxu0 0
      %827 = vmatprep.mubr.bf16.mxu0 0
      %828 = vmatmul.mubr.bf16.gmra.mrb[0].mxu0 %v745
      %v829 = vpop.f32.mrb[0].mxu0
      %v830 = vadd.f32 %v618, %v829
      %v831 = vpop.f32.mrb[0].mxu0
      %v832 = vpop.f32.mrb[0].mxu0
      %v833 = vadd.f32 %v621, %v832
      %v834 = vpop.f32.mrb[0].mxu0
      %835 = vmatprep.mubr.bf16.mxu0 0
      %836 = vmatmul.mubr.bf16.gmra.mrb[0].mxu0 %v748
      %v837 = vpop.f32.mrb[0].mxu0
      %v838 = vadd.f32 %v626, %v837
      %v839 = vpop.f32.mrb[0].mxu0
      %v840 = vpop.f32.mrb[0].mxu0
      %v841 = vadd.f32 %v629, %v840
      %v842 = vpop.f32.mrb[0].mxu0
      %843 = vmatprep.mubr.bf16.mxu0 0
      %844 = vmatmul.mubr.bf16.gmra.mrb[0].mxu0 %v751
      %v845 = vpop.f32.mrb[0].mxu0
      %v846 = vadd.f32 %v634, %v845
      %v847 = vpop.f32.mrb[0].mxu0
      %v848 = vpop.f32.mrb[0].mxu0
      %v849 = vadd.f32 %v637, %v848
      %v850 = vpop.f32.mrb[0].mxu0
      %851 = vmatprep.mubr.bf16.mxu0 0
      %852 = vmatmul.mubr.bf16.gmra.mrb[0].mxu0 %v754
      %v853 = vpop.f32.mrb[0].mxu0
      %v854 = vadd.f32 %v642, %v853
      %v855 = vpop.f32.mrb[0].mxu0
      %v856 = vpop.f32.mrb[0].mxu0
      %v857 = vadd.f32 %v645, %v856
      %v858 = vpop.f32.mrb[0].mxu0
      %859 = vmatprep.mubr.bf16.mxu0 0
      %860 = vmatmul.mubr.bf16.gmra.mrb[0].mxu0 %v757
      %v861 = vpop.f32.mrb[0].mxu0
      %v862 = vadd.f32 %v650, %v861
      %v863 = vpop.f32.mrb[0].mxu0
      %v864 = vpop.f32.mrb[0].mxu0
      %v865 = vadd.f32 %v653, %v864
      %v866 = vpop.f32.mrb[0].mxu0
      %867 = vmatprep.mubr.bf16.mxu0 0
      %868 = vmatmul.mubr.bf16.gmra.mrb[0].mxu0 %v760
      %v869 = vpop.f32.mrb[0].mxu0
      %v870 = vadd.f32 %v658, %v869
      %v871 = vpop.f32.mrb[0].mxu0
      %v872 = vpop.f32.mrb[0].mxu0
      %v873 = vadd.f32 %v661, %v872
      %v874 = vpop.f32.mrb[0].mxu0
      %875 = vmatprep.mubr.bf16.mxu0 0
      %876 = vmatmul.mubr.bf16.gmra.mrb[0].mxu0 %v763
      %v877 = vpop.f32.mrb[0].mxu0
      %v878 = vadd.f32 %v666, %v877
      %v879 = vpop.f32.mrb[0].mxu0
      %v880 = vpop.f32.mrb[0].mxu0
      %v881 = vadd.f32 %v669, %v880
      %v882 = vpop.f32.mrb[0].mxu0
      %883 = vmatprep.mubr.bf16.mxu0 0
      %884 = vmatmul.mubr.bf16.gmra.mrb[0].mxu0 %v766
      %v885 = vpop.f32.mrb[0].mxu0
      %v886 = vadd.f32 %v674, %v885
      %v887 = vpop.f32.mrb[0].mxu0
      %v888 = vpop.f32.mrb[0].mxu0
      %v889 = vadd.f32 %v677, %v888
      %v890 = vpop.f32.mrb[0].mxu0
      %891 = vmatprep.mubr.bf16.mxu0 0
      %892 = vmatmul.mubr.bf16.gmra.mrb[0].mxu0 %v769
      %v893 = vpop.f32.mrb[0].mxu0
      %v894 = vadd.f32 %v682, %v893
      %v895 = vpop.f32.mrb[0].mxu0
      %v896 = vpop.f32.mrb[0].mxu0
      %v897 = vadd.f32 %v685, %v896
      %v898 = vpop.f32.mrb[0].mxu0
      %899 = vmatprep.mubr.bf16.mxu0 0
      %900 = vmatmul.mubr.bf16.gmra.mrb[0].mxu0 %v772
      %v901 = vpop.f32.mrb[0].mxu0
      %v902 = vadd.f32 %v690, %v901
      %v903 = vpop.f32.mrb[0].mxu0
      %v904 = vpop.f32.mrb[0].mxu0
      %v905 = vadd.f32 %v693, %v904
      %v906 = vpop.f32.mrb[0].mxu0
      %907 = vmatprep.mubr.bf16.mxu0 0
      %908 = vmatmul.mubr.bf16.gmra.mrb[0].mxu0 %v775
      %v909 = vpop.f32.mrb[0].mxu0
      %v910 = vadd.f32 %v698, %v909
      %v911 = vpop.f32.mrb[0].mxu0
      %v912 = vpop.f32.mrb[0].mxu0
      %v913 = vadd.f32 %v701, %v912
      %v914 = vpop.f32.mrb[0].mxu0
      %915 = vmatprep.mubr.bf16.mxu0 0
      %916 = vmatmul.mubr.bf16.gmra.mrb[0].mxu0 %v778
      %v917 = vpop.f32.mrb[0].mxu0
      %v918 = vadd.f32 %v706, %v917
      %v919 = vpop.f32.mrb[0].mxu0
      %v920 = vpop.f32.mrb[0].mxu0
      %v921 = vadd.f32 %v709, %v920
      %v922 = vpop.f32.mrb[0].mxu0
      %923 = vmatprep.mubr.bf16.mxu0 0
      %924 = vmatmul.mubr.bf16.gmra.mrb[0].mxu0 %v781
      %v925 = vpop.f32.mrb[0].mxu0
      %v926 = vadd.f32 %v714, %v925
      %v927 = vpop.f32.mrb[0].mxu0
      %v928 = vpop.f32.mrb[0].mxu0
      %v929 = vadd.f32 %v717, %v928
      %v930 = vpop.f32.mrb[0].mxu0
      %931 = vmatprep.mubr.bf16.mxu0 0
      %932 = vmatmul.mubr.bf16.gmra.mrb[0].mxu0 %v784
      %v933 = vpop.f32.mrb[0].mxu0
      %v934 = vadd.f32 %v722, %v933
      %v935 = vpop.f32.mrb[0].mxu0
      %v936 = vpop.f32.mrb[0].mxu0
      %v937 = vadd.f32 %v725, %v936
      %v938 = vpop.f32.mrb[0].mxu0
      %939 = vmatprep.mubr.bf16.mxu0 0
      %940 = vmatmul.mubr.bf16.gmra.mrb[0].mxu0 %v787
      %v941 = vpop.f32.mrb[0].mxu0
      %v942 = vadd.f32 %v730, %v941
      %v943 = vpop.f32.mrb[0].mxu0
      %v944 = vpop.f32.mrb[0].mxu0
      %v945 = vadd.f32 %v733, %v944
      %v946 = vpop.f32.mrb[0].mxu0
      %947 = vmatprep.mubr.bf16.mxu0 0
      %948 = vmatmul.mubr.bf16.gmra.mrb[0].mxu0 %v790
      %v949 = vpop.f32.mrb[0].mxu0
      %v950 = vadd.f32 %v738, %v949
      %v951 = vpop.f32.mrb[0].mxu0
      %v952 = vpop.f32.mrb[0].mxu0
      %v953 = vadd.f32 %v741, %v952
      %v954 = vpop.f32.mrb[0].mxu0
      %955 = vdwg.mxu0
      %vm956 = vcmask 1045504
      %v957 = vrot.slane %v274, 2
      %v958 = vrot.slane %v275, 2
      %v959 = vsel %vm956, %v957, %v958
      %v960 = vrot.slane %v276, 2
      %v961 = vsel %vm956, %v958, %v960
      %v962 = vrot.slane %v277, 2
      %v963 = vrot.slane %v278, 2
      %v964 = vsel %vm956, %v962, %v963
      %v965 = vrot.slane %v279, 2
      %v966 = vsel %vm956, %v963, %v965
      %v967 = vrot.slane %v280, 2
      %v968 = vrot.slane %v281, 2
      %v969 = vsel %vm956, %v967, %v968
      %v970 = vrot.slane %v282, 2
      %v971 = vsel %vm956, %v968, %v970
      %v972 = vrot.slane %v283, 2
      %v973 = vrot.slane %v284, 2
      %v974 = vsel %vm956, %v972, %v973
      %v975 = vrot.slane %v285, 2
      %v976 = vsel %vm956, %v973, %v975
      %v977 = vrot.slane %v286, 2
      %v978 = vrot.slane %v287, 2
      %v979 = vsel %vm956, %v977, %v978
      %v980 = vrot.slane %v288, 2
      %v981 = vsel %vm956, %v978, %v980
      %v982 = vrot.slane %v289, 2
      %v983 = vrot.slane %v290, 2
      %v984 = vsel %vm956, %v982, %v983
      %v985 = vrot.slane %v291, 2
      %v986 = vsel %vm956, %v983, %v985
      %v987 = vrot.slane %v292, 2
      %v988 = vrot.slane %v293, 2
      %v989 = vsel %vm956, %v987, %v988
      %v990 = vrot.slane %v294, 2
      %v991 = vsel %vm956, %v988, %v990
      %v992 = vrot.slane %v295, 2
      %v993 = vrot.slane %v296, 2
      %v994 = vsel %vm956, %v992, %v993
      %v995 = vrot.slane %v297, 2
      %v996 = vsel %vm956, %v993, %v995
      %v997 = vrot.slane %v298, 2
      %v998 = vrot.slane %v299, 2
      %v999 = vsel %vm956, %v997, %v998
      %v1000 = vrot.slane %v300, 2
      %v1001 = vsel %vm956, %v998, %v1000
      %v1002 = vrot.slane %v301, 2
      %v1003 = vrot.slane %v302, 2
      %v1004 = vsel %vm956, %v1002, %v1003
      %v1005 = vrot.slane %v303, 2
      %v1006 = vsel %vm956, %v1003, %v1005
      %v1007 = vrot.slane %v304, 2
      %v1008 = vrot.slane %v305, 2
      %v1009 = vsel %vm956, %v1007, %v1008
      %v1010 = vrot.slane %v306, 2
      %v1011 = vsel %vm956, %v1008, %v1010
      %v1012 = vrot.slane %v307, 2
      %v1013 = vrot.slane %v308, 2
      %v1014 = vsel %vm956, %v1012, %v1013
      %v1015 = vrot.slane %v309, 2
      %v1016 = vsel %vm956, %v1013, %v1015
      %v1017 = vrot.slane %v310, 2
      %v1018 = vrot.slane %v311, 2
      %v1019 = vsel %vm956, %v1017, %v1018
      %v1020 = vrot.slane %v312, 2
      %v1021 = vsel %vm956, %v1018, %v1020
      %v1022 = vrot.slane %v313, 2
      %v1023 = vrot.slane %v314, 2
      %v1024 = vsel %vm956, %v1022, %v1023
      %v1025 = vrot.slane %v315, 2
      %v1026 = vsel %vm956, %v1023, %v1025
      %v1027 = vrot.slane %v316, 2
      %v1028 = vrot.slane %v317, 2
      %v1029 = vsel %vm956, %v1027, %v1028
      %v1030 = vrot.slane %v318, 2
      %v1031 = vsel %vm956, %v1028, %v1030
      %v1032 = vrot.slane %v319, 2
      %v1033 = vrot.slane %v320, 2
      %v1034 = vsel %vm956, %v1032, %v1033
      %v1035 = vrot.slane %v321, 2
      %v1036 = vsel %vm956, %v1033, %v1035
      %v1069 = vpack.c.bf16 %v961, %v959
      %v1070 = vpack.c.bf16 %v966, %v964
      %v1071 = vpack.c.bf16 %v971, %v969
      %v1072 = vpack.c.bf16 %v976, %v974
      %v1073 = vpack.c.bf16 %v981, %v979
      %v1074 = vpack.c.bf16 %v986, %v984
      %v1075 = vpack.c.bf16 %v991, %v989
      %v1076 = vpack.c.bf16 %v996, %v994
      %v1077 = vpack.c.bf16 %v1001, %v999
      %v1078 = vpack.c.bf16 %v1006, %v1004
      %v1079 = vpack.c.bf16 %v1011, %v1009
      %v1080 = vpack.c.bf16 %v1016, %v1014
      %v1081 = vpack.c.bf16 %v1021, %v1019
      %v1082 = vpack.c.bf16 %v1026, %v1024
      %v1083 = vpack.c.bf16 %v1031, %v1029
      %v1084 = vpack.c.bf16 %v1036, %v1034
      %v1086 = vsel %vm530, %v1069, 0
      %v1089 = vsel %vm530, %v1070, 0
      %v1092 = vsel %vm530, %v1071, 0
      %v1095 = vsel %vm530, %v1072, 0
      %v1098 = vsel %vm530, %v1073, 0
      %v1101 = vsel %vm530, %v1074, 0
      %v1104 = vsel %vm530, %v1075, 0
      %v1107 = vsel %vm530, %v1076, 0
      %v1110 = vsel %vm530, %v1077, 0
      %v1113 = vsel %vm530, %v1078, 0
      %v1116 = vsel %vm530, %v1079, 0
      %v1119 = vsel %vm530, %v1080, 0
      %v1122 = vsel %vm530, %v1081, 0
      %v1125 = vsel %vm530, %v1082, 0
      %v1128 = vsel %vm530, %v1083, 0
      %v1131 = vsel %vm530, %v1084, 0
      %v1134 = vsel %vm579, %v330, 0
      %1136 = vmatprep.subr.bf16.mxu0 0
      %1137 = vmatpush1.bf16.msra.mxu0 %v1134
      %1138 = vmatprep.subr.bf16.mxu0 0
      %1139 = vmatpush1.bf16.msra.mxu0 0
      %1140 = vmatprep.subr.bf16.mxu0 0
      %1141 = vmatpush1.bf16.msra.mxu0 0
      %1142 = vmatprep.subr.bf16.mxu0 0
      %1143 = vmatpush1.bf16.msra.mxu0 0
      %1144 = vmatprep.subr.bf16.mxu0 0
      %1145 = vmatpush1.bf16.msra.mxu0 0
      %1146 = vmatprep.subr.bf16.mxu0 0
      %1147 = vmatpush1.bf16.msra.mxu0 0
      %1148 = vmatprep.subr.bf16.mxu0 0
      %1149 = vmatpush1.bf16.msra.mxu0 0
      %1150 = vmatprep.subr.bf16.mxu0 0
      %1151 = vmatpush1.bf16.msra.mxu0 0
      %1152 = vmatprep.subr.bf16.mxu0 0
      %1153 = vmatpush1.bf16.msra.mxu0 0
      %1154 = vmatprep.subr.bf16.mxu0 0
      %1155 = vmatpush1.bf16.msra.mxu0 0
      %1156 = vmatprep.subr.bf16.mxu0 0
      %1157 = vmatpush1.bf16.msra.mxu0 0
      %1158 = vmatprep.subr.bf16.mxu0 0
      %1159 = vmatpush1.bf16.msra.mxu0 0
      %1160 = vmatprep.subr.bf16.mxu0 0
      %1161 = vmatpush1.bf16.msra.mxu0 0
      %1162 = vmatprep.subr.bf16.mxu0 0
      %1163 = vmatpush1.bf16.msra.mxu0 0
      %1164 = vmatprep.subr.bf16.mxu0 0
      %1165 = vmatpush1.bf16.msra.mxu0 0
      %1166 = vmatprep.subr.bf16.mxu0 0
      %1167 = vmatpush1.bf16.msra.mxu0 0
      %1168 = vmatprep.mubr.bf16.mxu0 0
      %1169 = vmatmul.mubr.bf16.gmra.mrb[0].mxu0 %v1086
      %v1170 = vpop.f32.mrb[0].mxu0
      %v1171 = vadd.f32 0.0, %v1170
      %v1172 = vpop.f32.mrb[0].mxu0
      %v1173 = vpop.f32.mrb[0].mxu0
      %v1174 = vadd.f32 0.0, %v1173
      %v1175 = vpop.f32.mrb[0].mxu0
      %1176 = vmatprep.mubr.bf16.mxu0 0
      %1177 = vmatmul.mubr.bf16.gmra.mrb[0].mxu0 %v1089
      %v1178 = vpop.f32.mrb[0].mxu0
      %v1179 = vadd.f32 0.0, %v1178
      %v1180 = vpop.f32.mrb[0].mxu0
      %v1181 = vpop.f32.mrb[0].mxu0
      %v1182 = vadd.f32 0.0, %v1181
      %v1183 = vpop.f32.mrb[0].mxu0
      %1184 = vmatprep.mubr.bf16.mxu0 0
      %1185 = vmatmul.mubr.bf16.gmra.mrb[0].mxu0 %v1092
      %v1186 = vpop.f32.mrb[0].mxu0
      %v1187 = vadd.f32 0.0, %v1186
      %v1188 = vpop.f32.mrb[0].mxu0
      %v1189 = vpop.f32.mrb[0].mxu0
      %v1190 = vadd.f32 0.0, %v1189
      %v1191 = vpop.f32.mrb[0].mxu0
      %1192 = vmatprep.mubr.bf16.mxu0 0
      %1193 = vmatmul.mubr.bf16.gmra.mrb[0].mxu0 %v1095
      %v1194 = vpop.f32.mrb[0].mxu0
      %v1195 = vadd.f32 0.0, %v1194
      %v1196 = vpop.f32.mrb[0].mxu0
      %v1197 = vpop.f32.mrb[0].mxu0
      %v1198 = vadd.f32 0.0, %v1197
      %v1199 = vpop.f32.mrb[0].mxu0
      %1200 = vmatprep.mubr.bf16.mxu0 0
      %1201 = vmatmul.mubr.bf16.gmra.mrb[0].mxu0 %v1098
      %v1202 = vpop.f32.mrb[0].mxu0
      %v1203 = vadd.f32 0.0, %v1202
      %v1204 = vpop.f32.mrb[0].mxu0
      %v1205 = vpop.f32.mrb[0].mxu0
      %v1206 = vadd.f32 0.0, %v1205
      %v1207 = vpop.f32.mrb[0].mxu0
      %1208 = vmatprep.mubr.bf16.mxu0 0
      %1209 = vmatmul.mubr.bf16.gmra.mrb[0].mxu0 %v1101
      %v1210 = vpop.f32.mrb[0].mxu0
      %v1211 = vadd.f32 0.0, %v1210
      %v1212 = vpop.f32.mrb[0].mxu0
      %v1213 = vpop.f32.mrb[0].mxu0
      %v1214 = vadd.f32 0.0, %v1213
      %v1215 = vpop.f32.mrb[0].mxu0
      %1216 = vmatprep.mubr.bf16.mxu0 0
      %1217 = vmatmul.mubr.bf16.gmra.mrb[0].mxu0 %v1104
      %v1218 = vpop.f32.mrb[0].mxu0
      %v1219 = vadd.f32 0.0, %v1218
      %v1220 = vpop.f32.mrb[0].mxu0
      %v1221 = vpop.f32.mrb[0].mxu0
      %v1222 = vadd.f32 0.0, %v1221
      %v1223 = vpop.f32.mrb[0].mxu0
      %1224 = vmatprep.mubr.bf16.mxu0 0
      %1225 = vmatmul.mubr.bf16.gmra.mrb[0].mxu0 %v1107
      %v1226 = vpop.f32.mrb[0].mxu0
      %v1227 = vadd.f32 0.0, %v1226
      %v1228 = vpop.f32.mrb[0].mxu0
      %v1229 = vpop.f32.mrb[0].mxu0
      %v1230 = vadd.f32 0.0, %v1229
      %v1231 = vpop.f32.mrb[0].mxu0
      %1232 = vmatprep.mubr.bf16.mxu0 0
      %1233 = vmatmul.mubr.bf16.gmra.mrb[0].mxu0 %v1110
      %v1234 = vpop.f32.mrb[0].mxu0
      %v1235 = vadd.f32 0.0, %v1234
      %v1236 = vpop.f32.mrb[0].mxu0
      %v1237 = vpop.f32.mrb[0].mxu0
      %v1238 = vadd.f32 0.0, %v1237
      %v1239 = vpop.f32.mrb[0].mxu0
      %1240 = vmatprep.mubr.bf16.mxu0 0
      %1241 = vmatmul.mubr.bf16.gmra.mrb[0].mxu0 %v1113
      %v1242 = vpop.f32.mrb[0].mxu0
      %v1243 = vadd.f32 0.0, %v1242
      %v1244 = vpop.f32.mrb[0].mxu0
      %v1245 = vpop.f32.mrb[0].mxu0
      %v1246 = vadd.f32 0.0, %v1245
      %v1247 = vpop.f32.mrb[0].mxu0
      %1248 = vmatprep.mubr.bf16.mxu0 0
      %1249 = vmatmul.mubr.bf16.gmra.mrb[0].mxu0 %v1116
      %v1250 = vpop.f32.mrb[0].mxu0
      %v1251 = vadd.f32 0.0, %v1250
      %v1252 = vpop.f32.mrb[0].mxu0
      %v1253 = vpop.f32.mrb[0].mxu0
      %v1254 = vadd.f32 0.0, %v1253
      %v1255 = vpop.f32.mrb[0].mxu0
      %1256 = vmatprep.mubr.bf16.mxu0 0
      %1257 = vmatmul.mubr.bf16.gmra.mrb[0].mxu0 %v1119
      %v1258 = vpop.f32.mrb[0].mxu0
      %v1259 = vadd.f32 0.0, %v1258
      %v1260 = vpop.f32.mrb[0].mxu0
      %v1261 = vpop.f32.mrb[0].mxu0
      %v1262 = vadd.f32 0.0, %v1261
      %v1263 = vpop.f32.mrb[0].mxu0
      %1264 = vmatprep.mubr.bf16.mxu0 0
      %1265 = vmatmul.mubr.bf16.gmra.mrb[0].mxu0 %v1122
      %v1266 = vpop.f32.mrb[0].mxu0
      %v1267 = vadd.f32 0.0, %v1266
      %v1268 = vpop.f32.mrb[0].mxu0
      %v1269 = vpop.f32.mrb[0].mxu0
      %v1270 = vadd.f32 0.0, %v1269
      %v1271 = vpop.f32.mrb[0].mxu0
      %1272 = vmatprep.mubr.bf16.mxu0 0
      %1273 = vmatmul.mubr.bf16.gmra.mrb[0].mxu0 %v1125
      %v1274 = vpop.f32.mrb[0].mxu0
      %v1275 = vadd.f32 0.0, %v1274
      %v1276 = vpop.f32.mrb[0].mxu0
      %v1277 = vpop.f32.mrb[0].mxu0
      %v1278 = vadd.f32 0.0, %v1277
      %v1279 = vpop.f32.mrb[0].mxu0
      %1280 = vmatprep.mubr.bf16.mxu0 0
      %1281 = vmatmul.mubr.bf16.gmra.mrb[0].mxu0 %v1128
      %v1282 = vpop.f32.mrb[0].mxu0
      %v1283 = vadd.f32 0.0, %v1282
      %v1284 = vpop.f32.mrb[0].mxu0
      %v1285 = vpop.f32.mrb[0].mxu0
      %v1286 = vadd.f32 0.0, %v1285
      %v1287 = vpop.f32.mrb[0].mxu0
      %1288 = vmatprep.mubr.bf16.mxu0 0
      %1289 = vmatmul.mubr.bf16.gmra.mrb[0].mxu0 %v1131
      %v1290 = vpop.f32.mrb[0].mxu0
      %v1291 = vadd.f32 0.0, %v1290
      %v1292 = vpop.f32.mrb[0].mxu0
      %v1293 = vpop.f32.mrb[0].mxu0
      %v1294 = vadd.f32 0.0, %v1293
      %v1295 = vpop.f32.mrb[0].mxu0
      %1296 = vdwg.mxu0
      %v1297 = vadd.f32 %v830, %v1171
      %v1298 = vadd.f32 %v833, %v1174
      %v1299 = vadd.f32 %v838, %v1179
      %v1300 = vadd.f32 %v841, %v1182
      %v1301 = vadd.f32 %v846, %v1187
      %v1302 = vadd.f32 %v849, %v1190
      %v1303 = vadd.f32 %v854, %v1195
      %v1304 = vadd.f32 %v857, %v1198
      %v1305 = vadd.f32 %v862, %v1203
      %v1306 = vadd.f32 %v865, %v1206
      %v1307 = vadd.f32 %v870, %v1211
      %v1308 = vadd.f32 %v873, %v1214
      %v1309 = vadd.f32 %v878, %v1219
      %v1310 = vadd.f32 %v881, %v1222
      %v1311 = vadd.f32 %v886, %v1227
      %v1312 = vadd.f32 %v889, %v1230
      %v1313 = vadd.f32 %v894, %v1235
      %v1314 = vadd.f32 %v897, %v1238
      %v1315 = vadd.f32 %v902, %v1243
      %v1316 = vadd.f32 %v905, %v1246
      %v1317 = vadd.f32 %v910, %v1251
      %v1318 = vadd.f32 %v913, %v1254
      %v1319 = vadd.f32 %v918, %v1259
      %v1320 = vadd.f32 %v921, %v1262
      %v1321 = vadd.f32 %v926, %v1267
      %v1322 = vadd.f32 %v929, %v1270
      %v1323 = vadd.f32 %v934, %v1275
      %v1324 = vadd.f32 %v937, %v1278
      %v1325 = vadd.f32 %v942, %v1283
      %v1326 = vadd.f32 %v945, %v1286
      %v1327 = vadd.f32 %v950, %v1291
      %v1328 = vadd.f32 %v953, %v1294
      %v1329 = vpack.c.bf16 %v323, %v322
      %v1331 = vsel %vm530, %v1329, 0
      %v1334 = vsel %vm579, %v331, 0
      %1336 = vmatprep.subr.bf16.mxu0 0
      %1337 = vmatpush1.bf16.msra.mxu0 %v1334
      %1338 = vmatprep.subr.bf16.mxu0 0
      %1339 = vmatpush1.bf16.msra.mxu0 0
      %1340 = vmatprep.subr.bf16.mxu0 0
      %1341 = vmatpush1.bf16.msra.mxu0 0
      %1342 = vmatprep.subr.bf16.mxu0 0
      %1343 = vmatpush1.bf16.msra.mxu0 0
      %1344 = vmatprep.subr.bf16.mxu0 0
      %1345 = vmatpush1.bf16.msra.mxu0 0
      %1346 = vmatprep.subr.bf16.mxu0 0
      %1347 = vmatpush1.bf16.msra.mxu0 0
      %1348 = vmatprep.subr.bf16.mxu0 0
      %1349 = vmatpush1.bf16.msra.mxu0 0
      %1350 = vmatprep.subr.bf16.mxu0 0
      %1351 = vmatpush1.bf16.msra.mxu0 0
      %1352 = vmatprep.subr.bf16.mxu0 0
      %1353 = vmatpush1.bf16.msra.mxu0 0
      %1354 = vmatprep.subr.bf16.mxu0 0
      %1355 = vmatpush1.bf16.msra.mxu0 0
      %1356 = vmatprep.subr.bf16.mxu0 0
      %1357 = vmatpush1.bf16.msra.mxu0 0
      %1358 = vmatprep.subr.bf16.mxu0 0
      %1359 = vmatpush1.bf16.msra.mxu0 0
      %1360 = vmatprep.subr.bf16.mxu0 0
      %1361 = vmatpush1.bf16.msra.mxu0 0
      %1362 = vmatprep.subr.bf16.mxu0 0
      %1363 = vmatpush1.bf16.msra.mxu0 0
      %1364 = vmatprep.subr.bf16.mxu0 0
      %1365 = vmatpush1.bf16.msra.mxu0 0
      %1366 = vmatprep.subr.bf16.mxu0 0
      %1367 = vmatpush1.bf16.msra.mxu0 0
      %1368 = vmatprep.mubr.bf16.mxu0 0
      %1369 = vmatmul.mubr.bf16.gmra.mrb[0].mxu0 %v748
      %v1370 = vpop.f32.mrb[0].mxu0
      %v1371 = vadd.f32 0.0, %v1370
      %v1372 = vpop.f32.mrb[0].mxu0
      %v1373 = vpop.f32.mrb[0].mxu0
      %v1374 = vadd.f32 0.0, %v1373
      %v1375 = vpop.f32.mrb[0].mxu0
      %1376 = vmatprep.mubr.bf16.mxu0 0
      %1377 = vmatmul.mubr.bf16.gmra.mrb[0].mxu0 %v751
      %v1378 = vpop.f32.mrb[0].mxu0
      %v1379 = vadd.f32 0.0, %v1378
      %v1380 = vpop.f32.mrb[0].mxu0
      %v1381 = vpop.f32.mrb[0].mxu0
      %v1382 = vadd.f32 0.0, %v1381
      %v1383 = vpop.f32.mrb[0].mxu0
      %1384 = vmatprep.mubr.bf16.mxu0 0
      %1385 = vmatmul.mubr.bf16.gmra.mrb[0].mxu0 %v754
      %v1386 = vpop.f32.mrb[0].mxu0
      %v1387 = vadd.f32 0.0, %v1386
      %v1388 = vpop.f32.mrb[0].mxu0
      %v1389 = vpop.f32.mrb[0].mxu0
      %v1390 = vadd.f32 0.0, %v1389
      %v1391 = vpop.f32.mrb[0].mxu0
      %1392 = vmatprep.mubr.bf16.mxu0 0
      %1393 = vmatmul.mubr.bf16.gmra.mrb[0].mxu0 %v757
      %v1394 = vpop.f32.mrb[0].mxu0
      %v1395 = vadd.f32 0.0, %v1394
      %v1396 = vpop.f32.mrb[0].mxu0
      %v1397 = vpop.f32.mrb[0].mxu0
      %v1398 = vadd.f32 0.0, %v1397
      %v1399 = vpop.f32.mrb[0].mxu0
      %1400 = vmatprep.mubr.bf16.mxu0 0
      %1401 = vmatmul.mubr.bf16.gmra.mrb[0].mxu0 %v760
      %v1402 = vpop.f32.mrb[0].mxu0
      %v1403 = vadd.f32 0.0, %v1402
      %v1404 = vpop.f32.mrb[0].mxu0
      %v1405 = vpop.f32.mrb[0].mxu0
      %v1406 = vadd.f32 0.0, %v1405
      %v1407 = vpop.f32.mrb[0].mxu0
      %1408 = vmatprep.mubr.bf16.mxu0 0
      %1409 = vmatmul.mubr.bf16.gmra.mrb[0].mxu0 %v763
      %v1410 = vpop.f32.mrb[0].mxu0
      %v1411 = vadd.f32 0.0, %v1410
      %v1412 = vpop.f32.mrb[0].mxu0
      %v1413 = vpop.f32.mrb[0].mxu0
      %v1414 = vadd.f32 0.0, %v1413
      %v1415 = vpop.f32.mrb[0].mxu0
      %1416 = vmatprep.mubr.bf16.mxu0 0
      %1417 = vmatmul.mubr.bf16.gmra.mrb[0].mxu0 %v766
      %v1418 = vpop.f32.mrb[0].mxu0
      %v1419 = vadd.f32 0.0, %v1418
      %v1420 = vpop.f32.mrb[0].mxu0
      %v1421 = vpop.f32.mrb[0].mxu0
      %v1422 = vadd.f32 0.0, %v1421
      %v1423 = vpop.f32.mrb[0].mxu0
      %1424 = vmatprep.mubr.bf16.mxu0 0
      %1425 = vmatmul.mubr.bf16.gmra.mrb[0].mxu0 %v769
      %v1426 = vpop.f32.mrb[0].mxu0
      %v1427 = vadd.f32 0.0, %v1426
      %v1428 = vpop.f32.mrb[0].mxu0
      %v1429 = vpop.f32.mrb[0].mxu0
      %v1430 = vadd.f32 0.0, %v1429
      %v1431 = vpop.f32.mrb[0].mxu0
      %1432 = vmatprep.mubr.bf16.mxu0 0
      %1433 = vmatmul.mubr.bf16.gmra.mrb[0].mxu0 %v772
      %v1434 = vpop.f32.mrb[0].mxu0
      %v1435 = vadd.f32 0.0, %v1434
      %v1436 = vpop.f32.mrb[0].mxu0
      %v1437 = vpop.f32.mrb[0].mxu0
      %v1438 = vadd.f32 0.0, %v1437
      %v1439 = vpop.f32.mrb[0].mxu0
      %1440 = vmatprep.mubr.bf16.mxu0 0
      %1441 = vmatmul.mubr.bf16.gmra.mrb[0].mxu0 %v775
      %v1442 = vpop.f32.mrb[0].mxu0
      %v1443 = vadd.f32 0.0, %v1442
      %v1444 = vpop.f32.mrb[0].mxu0
      %v1445 = vpop.f32.mrb[0].mxu0
      %v1446 = vadd.f32 0.0, %v1445
      %v1447 = vpop.f32.mrb[0].mxu0
      %1448 = vmatprep.mubr.bf16.mxu0 0
      %1449 = vmatmul.mubr.bf16.gmra.mrb[0].mxu0 %v778
      %v1450 = vpop.f32.mrb[0].mxu0
      %v1451 = vadd.f32 0.0, %v1450
      %v1452 = vpop.f32.mrb[0].mxu0
      %v1453 = vpop.f32.mrb[0].mxu0
      %v1454 = vadd.f32 0.0, %v1453
      %v1455 = vpop.f32.mrb[0].mxu0
      %1456 = vmatprep.mubr.bf16.mxu0 0
      %1457 = vmatmul.mubr.bf16.gmra.mrb[0].mxu0 %v781
      %v1458 = vpop.f32.mrb[0].mxu0
      %v1459 = vadd.f32 0.0, %v1458
      %v1460 = vpop.f32.mrb[0].mxu0
      %v1461 = vpop.f32.mrb[0].mxu0
      %v1462 = vadd.f32 0.0, %v1461
      %v1463 = vpop.f32.mrb[0].mxu0
      %1464 = vmatprep.mubr.bf16.mxu0 0
      %1465 = vmatmul.mubr.bf16.gmra.mrb[0].mxu0 %v784
      %v1466 = vpop.f32.mrb[0].mxu0
      %v1467 = vadd.f32 0.0, %v1466
      %v1468 = vpop.f32.mrb[0].mxu0
      %v1469 = vpop.f32.mrb[0].mxu0
      %v1470 = vadd.f32 0.0, %v1469
      %v1471 = vpop.f32.mrb[0].mxu0
      %1472 = vmatprep.mubr.bf16.mxu0 0
      %1473 = vmatmul.mubr.bf16.gmra.mrb[0].mxu0 %v787
      %v1474 = vpop.f32.mrb[0].mxu0
      %v1475 = vadd.f32 0.0, %v1474
      %v1476 = vpop.f32.mrb[0].mxu0
      %v1477 = vpop.f32.mrb[0].mxu0
      %v1478 = vadd.f32 0.0, %v1477
      %v1479 = vpop.f32.mrb[0].mxu0
      %1480 = vmatprep.mubr.bf16.mxu0 0
      %1481 = vmatmul.mubr.bf16.gmra.mrb[0].mxu0 %v790
      %v1482 = vpop.f32.mrb[0].mxu0
      %v1483 = vadd.f32 0.0, %v1482
      %v1484 = vpop.f32.mrb[0].mxu0
      %v1485 = vpop.f32.mrb[0].mxu0
      %v1486 = vadd.f32 0.0, %v1485
      %v1487 = vpop.f32.mrb[0].mxu0
      %1488 = vmatprep.mubr.bf16.mxu0 0
      %1489 = vmatmul.mubr.bf16.gmra.mrb[0].mxu0 %v1331
      %v1490 = vpop.f32.mrb[0].mxu0
      %v1491 = vadd.f32 0.0, %v1490
      %v1492 = vpop.f32.mrb[0].mxu0
      %v1493 = vpop.f32.mrb[0].mxu0
      %v1494 = vadd.f32 0.0, %v1493
      %v1495 = vpop.f32.mrb[0].mxu0
      %1496 = vdwg.mxu0
      %v1497 = vadd.f32 %v1297, %v1371
      %v1498 = vadd.f32 %v1298, %v1374
      %v1499 = vadd.f32 %v1299, %v1379
      %v1500 = vadd.f32 %v1300, %v1382
      %v1501 = vadd.f32 %v1301, %v1387
      %v1502 = vadd.f32 %v1302, %v1390
      %v1503 = vadd.f32 %v1303, %v1395
      %v1504 = vadd.f32 %v1304, %v1398
      %v1505 = vadd.f32 %v1305, %v1403
      %v1506 = vadd.f32 %v1306, %v1406
      %v1507 = vadd.f32 %v1307, %v1411
      %v1508 = vadd.f32 %v1308, %v1414
      %v1509 = vadd.f32 %v1309, %v1419
      %v1510 = vadd.f32 %v1310, %v1422
      %v1511 = vadd.f32 %v1311, %v1427
      %v1512 = vadd.f32 %v1312, %v1430
      %v1513 = vadd.f32 %v1313, %v1435
      %v1514 = vadd.f32 %v1314, %v1438
      %v1515 = vadd.f32 %v1315, %v1443
      %v1516 = vadd.f32 %v1316, %v1446
      %v1517 = vadd.f32 %v1317, %v1451
      %v1518 = vadd.f32 %v1318, %v1454
      %v1519 = vadd.f32 %v1319, %v1459
      %v1520 = vadd.f32 %v1320, %v1462
      %v1521 = vadd.f32 %v1321, %v1467
      %v1522 = vadd.f32 %v1322, %v1470
      %v1523 = vadd.f32 %v1323, %v1475
      %v1524 = vadd.f32 %v1324, %v1478
      %v1525 = vadd.f32 %v1325, %v1483
      %v1526 = vadd.f32 %v1326, %v1486
      %v1527 = vadd.f32 %v1327, %v1491
      %v1528 = vadd.f32 %v1328, %v1494
      %v1532 = vrot.slane %v322, 1
      %v1533 = vrot.slane %v323, 1
      %v1534 = vsel %vm401, %v1532, %v1533
      %v1535 = vrot.slane %v324, 1
      %v1536 = vsel %vm401, %v1533, %v1535
      %v1539 = vpack.c.bf16 %v1536, %v1534
      %v1541 = vsel %vm530, %v1539, 0
      %v1544 = vsel %vm579, %v332, 0
      %1546 = vmatprep.subr.bf16.mxu0 0
      %1547 = vmatpush1.bf16.msra.mxu0 %v1544
      %1548 = vmatprep.subr.bf16.mxu0 0
      %1549 = vmatpush1.bf16.msra.mxu0 0
      %1550 = vmatprep.subr.bf16.mxu0 0
      %1551 = vmatpush1.bf16.msra.mxu0 0
      %1552 = vmatprep.subr.bf16.mxu0 0
      %1553 = vmatpush1.bf16.msra.mxu0 0
      %1554 = vmatprep.subr.bf16.mxu0 0
      %1555 = vmatpush1.bf16.msra.mxu0 0
      %1556 = vmatprep.subr.bf16.mxu0 0
      %1557 = vmatpush1.bf16.msra.mxu0 0
      %1558 = vmatprep.subr.bf16.mxu0 0
      %1559 = vmatpush1.bf16.msra.mxu0 0
      %1560 = vmatprep.subr.bf16.mxu0 0
      %1561 = vmatpush1.bf16.msra.mxu0 0
      %1562 = vmatprep.subr.bf16.mxu0 0
      %1563 = vmatpush1.bf16.msra.mxu0 0
      %1564 = vmatprep.subr.bf16.mxu0 0
      %1565 = vmatpush1.bf16.msra.mxu0 0
      %1566 = vmatprep.subr.bf16.mxu0 0
      %1567 = vmatpush1.bf16.msra.mxu0 0
      %1568 = vmatprep.subr.bf16.mxu0 0
      %1569 = vmatpush1.bf16.msra.mxu0 0
      %1570 = vmatprep.subr.bf16.mxu0 0
      %1571 = vmatpush1.bf16.msra.mxu0 0
      %1572 = vmatprep.subr.bf16.mxu0 0
      %1573 = vmatpush1.bf16.msra.mxu0 0
      %1574 = vmatprep.subr.bf16.mxu0 0
      %1575 = vmatpush1.bf16.msra.mxu0 0
      %1576 = vmatprep.subr.bf16.mxu0 0
      %1577 = vmatpush1.bf16.msra.mxu0 0
      %1578 = vmatprep.mubr.bf16.mxu0 0
      %1579 = vmatmul.mubr.bf16.gmra.mrb[0].mxu0 %v535
      %v1580 = vpop.f32.mrb[0].mxu0
      %v1581 = vadd.f32 0.0, %v1580
      %v1582 = vpop.f32.mrb[0].mxu0
      %v1583 = vpop.f32.mrb[0].mxu0
      %v1584 = vadd.f32 0.0, %v1583
      %v1585 = vpop.f32.mrb[0].mxu0
      %1586 = vmatprep.mubr.bf16.mxu0 0
      %1587 = vmatmul.mubr.bf16.gmra.mrb[0].mxu0 %v538
      %v1588 = vpop.f32.mrb[0].mxu0
      %v1589 = vadd.f32 0.0, %v1588
      %v1590 = vpop.f32.mrb[0].mxu0
      %v1591 = vpop.f32.mrb[0].mxu0
      %v1592 = vadd.f32 0.0, %v1591
      %v1593 = vpop.f32.mrb[0].mxu0
      %1594 = vmatprep.mubr.bf16.mxu0 0
      %1595 = vmatmul.mubr.bf16.gmra.mrb[0].mxu0 %v541
      %v1596 = vpop.f32.mrb[0].mxu0
      %v1597 = vadd.f32 0.0, %v1596
      %v1598 = vpop.f32.mrb[0].mxu0
      %v1599 = vpop.f32.mrb[0].mxu0
      %v1600 = vadd.f32 0.0, %v1599
      %v1601 = vpop.f32.mrb[0].mxu0
      %1602 = vmatprep.mubr.bf16.mxu0 0
      %1603 = vmatmul.mubr.bf16.gmra.mrb[0].mxu0 %v544
      %v1604 = vpop.f32.mrb[0].mxu0
      %v1605 = vadd.f32 0.0, %v1604
      %v1606 = vpop.f32.mrb[0].mxu0
      %v1607 = vpop.f32.mrb[0].mxu0
      %v1608 = vadd.f32 0.0, %v1607
      %v1609 = vpop.f32.mrb[0].mxu0
      %1610 = vmatprep.mubr.bf16.mxu0 0
      %1611 = vmatmul.mubr.bf16.gmra.mrb[0].mxu0 %v547
      %v1612 = vpop.f32.mrb[0].mxu0
      %v1613 = vadd.f32 0.0, %v1612
      %v1614 = vpop.f32.mrb[0].mxu0
      %v1615 = vpop.f32.mrb[0].mxu0
      %v1616 = vadd.f32 0.0, %v1615
      %v1617 = vpop.f32.mrb[0].mxu0
      %1618 = vmatprep.mubr.bf16.mxu0 0
      %1619 = vmatmul.mubr.bf16.gmra.mrb[0].mxu0 %v550
      %v1620 = vpop.f32.mrb[0].mxu0
      %v1621 = vadd.f32 0.0, %v1620
      %v1622 = vpop.f32.mrb[0].mxu0
      %v1623 = vpop.f32.mrb[0].mxu0
      %v1624 = vadd.f32 0.0, %v1623
      %v1625 = vpop.f32.mrb[0].mxu0
      %1626 = vmatprep.mubr.bf16.mxu0 0
      %1627 = vmatmul.mubr.bf16.gmra.mrb[0].mxu0 %v553
      %v1628 = vpop.f32.mrb[0].mxu0
      %v1629 = vadd.f32 0.0, %v1628
      %v1630 = vpop.f32.mrb[0].mxu0
      %v1631 = vpop.f32.mrb[0].mxu0
      %v1632 = vadd.f32 0.0, %v1631
      %v1633 = vpop.f32.mrb[0].mxu0
      %1634 = vmatprep.mubr.bf16.mxu0 0
      %1635 = vmatmul.mubr.bf16.gmra.mrb[0].mxu0 %v556
      %v1636 = vpop.f32.mrb[0].mxu0
      %v1637 = vadd.f32 0.0, %v1636
      %v1638 = vpop.f32.mrb[0].mxu0
      %v1639 = vpop.f32.mrb[0].mxu0
      %v1640 = vadd.f32 0.0, %v1639
      %v1641 = vpop.f32.mrb[0].mxu0
      %1642 = vmatprep.mubr.bf16.mxu0 0
      %1643 = vmatmul.mubr.bf16.gmra.mrb[0].mxu0 %v559
      %v1644 = vpop.f32.mrb[0].mxu0
      %v1645 = vadd.f32 0.0, %v1644
      %v1646 = vpop.f32.mrb[0].mxu0
      %v1647 = vpop.f32.mrb[0].mxu0
      %v1648 = vadd.f32 0.0, %v1647
      %v1649 = vpop.f32.mrb[0].mxu0
      %1650 = vmatprep.mubr.bf16.mxu0 0
      %1651 = vmatmul.mubr.bf16.gmra.mrb[0].mxu0 %v562
      %v1652 = vpop.f32.mrb[0].mxu0
      %v1653 = vadd.f32 0.0, %v1652
      %v1654 = vpop.f32.mrb[0].mxu0
      %v1655 = vpop.f32.mrb[0].mxu0
      %v1656 = vadd.f32 0.0, %v1655
      %v1657 = vpop.f32.mrb[0].mxu0
      %1658 = vmatprep.mubr.bf16.mxu0 0
      %1659 = vmatmul.mubr.bf16.gmra.mrb[0].mxu0 %v565
      %v1660 = vpop.f32.mrb[0].mxu0
      %v1661 = vadd.f32 0.0, %v1660
      %v1662 = vpop.f32.mrb[0].mxu0
      %v1663 = vpop.f32.mrb[0].mxu0
      %v1664 = vadd.f32 0.0, %v1663
      %v1665 = vpop.f32.mrb[0].mxu0
      %1666 = vmatprep.mubr.bf16.mxu0 0
      %1667 = vmatmul.mubr.bf16.gmra.mrb[0].mxu0 %v568
      %v1668 = vpop.f32.mrb[0].mxu0
      %v1669 = vadd.f32 0.0, %v1668
      %v1670 = vpop.f32.mrb[0].mxu0
      %v1671 = vpop.f32.mrb[0].mxu0
      %v1672 = vadd.f32 0.0, %v1671
      %v1673 = vpop.f32.mrb[0].mxu0
      %1674 = vmatprep.mubr.bf16.mxu0 0
      %1675 = vmatmul.mubr.bf16.gmra.mrb[0].mxu0 %v571
      %v1676 = vpop.f32.mrb[0].mxu0
      %v1677 = vadd.f32 0.0, %v1676
      %v1678 = vpop.f32.mrb[0].mxu0
      %v1679 = vpop.f32.mrb[0].mxu0
      %v1680 = vadd.f32 0.0, %v1679
      %v1681 = vpop.f32.mrb[0].mxu0
      %1682 = vmatprep.mubr.bf16.mxu0 0
      %1683 = vmatmul.mubr.bf16.gmra.mrb[0].mxu0 %v574
      %v1684 = vpop.f32.mrb[0].mxu0
      %v1685 = vadd.f32 0.0, %v1684
      %v1686 = vpop.f32.mrb[0].mxu0
      %v1687 = vpop.f32.mrb[0].mxu0
      %v1688 = vadd.f32 0.0, %v1687
      %v1689 = vpop.f32.mrb[0].mxu0
      %1690 = vmatprep.mubr.bf16.mxu0 0
      %1691 = vmatmul.mubr.bf16.gmra.mrb[0].mxu0 %v577
      %v1692 = vpop.f32.mrb[0].mxu0
      %v1693 = vadd.f32 0.0, %v1692
      %v1694 = vpop.f32.mrb[0].mxu0
      %v1695 = vpop.f32.mrb[0].mxu0
      %v1696 = vadd.f32 0.0, %v1695
      %v1697 = vpop.f32.mrb[0].mxu0
      %1698 = vmatprep.mubr.bf16.mxu0 0
      %1699 = vmatmul.mubr.bf16.gmra.mrb[0].mxu0 %v1541
      %v1700 = vpop.f32.mrb[0].mxu0
      %v1701 = vadd.f32 0.0, %v1700
      %v1702 = vpop.f32.mrb[0].mxu0
      %v1703 = vpop.f32.mrb[0].mxu0
      %v1704 = vadd.f32 0.0, %v1703
      %v1705 = vpop.f32.mrb[0].mxu0
      %1706 = vdwg.mxu0
      %v1707 = vadd.f32 %v1497, %v1581
      %v1708 = vadd.f32 %v1498, %v1584
      %v1709 = vadd.f32 %v1499, %v1589
      %v1710 = vadd.f32 %v1500, %v1592
      %v1711 = vadd.f32 %v1501, %v1597
      %v1712 = vadd.f32 %v1502, %v1600
      %v1713 = vadd.f32 %v1503, %v1605
      %v1714 = vadd.f32 %v1504, %v1608
      %v1715 = vadd.f32 %v1505, %v1613
      %v1716 = vadd.f32 %v1506, %v1616
      %v1717 = vadd.f32 %v1507, %v1621
      %v1718 = vadd.f32 %v1508, %v1624
      %v1719 = vadd.f32 %v1509, %v1629
      %v1720 = vadd.f32 %v1510, %v1632
      %v1721 = vadd.f32 %v1511, %v1637
      %v1722 = vadd.f32 %v1512, %v1640
      %v1723 = vadd.f32 %v1513, %v1645
      %v1724 = vadd.f32 %v1514, %v1648
      %v1725 = vadd.f32 %v1515, %v1653
      %v1726 = vadd.f32 %v1516, %v1656
      %v1727 = vadd.f32 %v1517, %v1661
      %v1728 = vadd.f32 %v1518, %v1664
      %v1729 = vadd.f32 %v1519, %v1669
      %v1730 = vadd.f32 %v1520, %v1672
      %v1731 = vadd.f32 %v1521, %v1677
      %v1732 = vadd.f32 %v1522, %v1680
      %v1733 = vadd.f32 %v1523, %v1685
      %v1734 = vadd.f32 %v1524, %v1688
      %v1735 = vadd.f32 %v1525, %v1693
      %v1736 = vadd.f32 %v1526, %v1696
      %v1737 = vadd.f32 %v1527, %v1701
      %v1738 = vadd.f32 %v1528, %v1704
      %v1739 = vrot.slane %v322, 2
      %v1740 = vrot.slane %v323, 2
      %v1741 = vsel %vm956, %v1739, %v1740
      %v1742 = vrot.slane %v324, 2
      %v1743 = vsel %vm956, %v1740, %v1742
      %v1746 = vpack.c.bf16 %v1743, %v1741
      %v1748 = vsel %vm530, %v1746, 0
      %v1751 = vsel %vm579, %v333, 0
      %1753 = vmatprep.subr.bf16.mxu0 0
      %1754 = vmatpush1.bf16.msra.mxu0 %v1751
      %1755 = vmatprep.subr.bf16.mxu0 0
      %1756 = vmatpush1.bf16.msra.mxu0 0
      %1757 = vmatprep.subr.bf16.mxu0 0
      %1758 = vmatpush1.bf16.msra.mxu0 0
      %1759 = vmatprep.subr.bf16.mxu0 0
      %1760 = vmatpush1.bf16.msra.mxu0 0
      %1761 = vmatprep.subr.bf16.mxu0 0
      %1762 = vmatpush1.bf16.msra.mxu0 0
      %1763 = vmatprep.subr.bf16.mxu0 0
      %1764 = vmatpush1.bf16.msra.mxu0 0
      %1765 = vmatprep.subr.bf16.mxu0 0
      %1766 = vmatpush1.bf16.msra.mxu0 0
      %1767 = vmatprep.subr.bf16.mxu0 0
      %1768 = vmatpush1.bf16.msra.mxu0 0
      %1769 = vmatprep.subr.bf16.mxu0 0
      %1770 = vmatpush1.bf16.msra.mxu0 0
      %1771 = vmatprep.subr.bf16.mxu0 0
      %1772 = vmatpush1.bf16.msra.mxu0 0
      %1773 = vmatprep.subr.bf16.mxu0 0
      %1774 = vmatpush1.bf16.msra.mxu0 0
      %1775 = vmatprep.subr.bf16.mxu0 0
      %1776 = vmatpush1.bf16.msra.mxu0 0
      %1777 = vmatprep.subr.bf16.mxu0 0
      %1778 = vmatpush1.bf16.msra.mxu0 0
      %1779 = vmatprep.subr.bf16.mxu0 0
      %1780 = vmatpush1.bf16.msra.mxu0 0
      %1781 = vmatprep.subr.bf16.mxu0 0
      %1782 = vmatpush1.bf16.msra.mxu0 0
      %1783 = vmatprep.subr.bf16.mxu0 0
      %1784 = vmatpush1.bf16.msra.mxu0 0
      %1785 = vmatprep.mubr.bf16.mxu0 0
      %1786 = vmatmul.mubr.bf16.gmra.mrb[0].mxu0 %v1089
      %v1787 = vpop.f32.mrb[0].mxu0
      %v1788 = vadd.f32 0.0, %v1787
      %v1789 = vpop.f32.mrb[0].mxu0
      %v1790 = vpop.f32.mrb[0].mxu0
      %v1791 = vadd.f32 0.0, %v1790
      %v1792 = vpop.f32.mrb[0].mxu0
      %1793 = vmatprep.mubr.bf16.mxu0 0
      %1794 = vmatmul.mubr.bf16.gmra.mrb[0].mxu0 %v1092
      %v1795 = vpop.f32.mrb[0].mxu0
      %v1796 = vadd.f32 0.0, %v1795
      %v1797 = vpop.f32.mrb[0].mxu0
      %v1798 = vpop.f32.mrb[0].mxu0
      %v1799 = vadd.f32 0.0, %v1798
      %v1800 = vpop.f32.mrb[0].mxu0
      %1801 = vmatprep.mubr.bf16.mxu0 0
      %1802 = vmatmul.mubr.bf16.gmra.mrb[0].mxu0 %v1095
      %v1803 = vpop.f32.mrb[0].mxu0
      %v1804 = vadd.f32 0.0, %v1803
      %v1805 = vpop.f32.mrb[0].mxu0
      %v1806 = vpop.f32.mrb[0].mxu0
      %v1807 = vadd.f32 0.0, %v1806
      %v1808 = vpop.f32.mrb[0].mxu0
      %1809 = vmatprep.mubr.bf16.mxu0 0
      %1810 = vmatmul.mubr.bf16.gmra.mrb[0].mxu0 %v1098
      %v1811 = vpop.f32.mrb[0].mxu0
      %v1812 = vadd.f32 0.0, %v1811
      %v1813 = vpop.f32.mrb[0].mxu0
      %v1814 = vpop.f32.mrb[0].mxu0
      %v1815 = vadd.f32 0.0, %v1814
      %v1816 = vpop.f32.mrb[0].mxu0
      %1817 = vmatprep.mubr.bf16.mxu0 0
      %1818 = vmatmul.mubr.bf16.gmra.mrb[0].mxu0 %v1101
      %v1819 = vpop.f32.mrb[0].mxu0
      %v1820 = vadd.f32 0.0, %v1819
      %v1821 = vpop.f32.mrb[0].mxu0
      %v1822 = vpop.f32.mrb[0].mxu0
      %v1823 = vadd.f32 0.0, %v1822
      %v1824 = vpop.f32.mrb[0].mxu0
      %1825 = vmatprep.mubr.bf16.mxu0 0
      %1826 = vmatmul.mubr.bf16.gmra.mrb[0].mxu0 %v1104
      %v1827 = vpop.f32.mrb[0].mxu0
      %v1828 = vadd.f32 0.0, %v1827
      %v1829 = vpop.f32.mrb[0].mxu0
      %v1830 = vpop.f32.mrb[0].mxu0
      %v1831 = vadd.f32 0.0, %v1830
      %v1832 = vpop.f32.mrb[0].mxu0
      %1833 = vmatprep.mubr.bf16.mxu0 0
      %1834 = vmatmul.mubr.bf16.gmra.mrb[0].mxu0 %v1107
      %v1835 = vpop.f32.mrb[0].mxu0
      %v1836 = vadd.f32 0.0, %v1835
      %v1837 = vpop.f32.mrb[0].mxu0
      %v1838 = vpop.f32.mrb[0].mxu0
      %v1839 = vadd.f32 0.0, %v1838
      %v1840 = vpop.f32.mrb[0].mxu0
      %1841 = vmatprep.mubr.bf16.mxu0 0
      %1842 = vmatmul.mubr.bf16.gmra.mrb[0].mxu0 %v1110
      %v1843 = vpop.f32.mrb[0].mxu0
      %v1844 = vadd.f32 0.0, %v1843
      %v1845 = vpop.f32.mrb[0].mxu0
      %v1846 = vpop.f32.mrb[0].mxu0
      %v1847 = vadd.f32 0.0, %v1846
      %v1848 = vpop.f32.mrb[0].mxu0
      %1849 = vmatprep.mubr.bf16.mxu0 0
      %1850 = vmatmul.mubr.bf16.gmra.mrb[0].mxu0 %v1113
      %v1851 = vpop.f32.mrb[0].mxu0
      %v1852 = vadd.f32 0.0, %v1851
      %v1853 = vpop.f32.mrb[0].mxu0
      %v1854 = vpop.f32.mrb[0].mxu0
      %v1855 = vadd.f32 0.0, %v1854
      %v1856 = vpop.f32.mrb[0].mxu0
      %1857 = vmatprep.mubr.bf16.mxu0 0
      %1858 = vmatmul.mubr.bf16.gmra.mrb[0].mxu0 %v1116
      %v1859 = vpop.f32.mrb[0].mxu0
      %v1860 = vadd.f32 0.0, %v1859
      %v1861 = vpop.f32.mrb[0].mxu0
      %v1862 = vpop.f32.mrb[0].mxu0
      %v1863 = vadd.f32 0.0, %v1862
      %v1864 = vpop.f32.mrb[0].mxu0
      %1865 = vmatprep.mubr.bf16.mxu0 0
      %1866 = vmatmul.mubr.bf16.gmra.mrb[0].mxu0 %v1119
      %v1867 = vpop.f32.mrb[0].mxu0
      %v1868 = vadd.f32 0.0, %v1867
      %v1869 = vpop.f32.mrb[0].mxu0
      %v1870 = vpop.f32.mrb[0].mxu0
      %v1871 = vadd.f32 0.0, %v1870
      %v1872 = vpop.f32.mrb[0].mxu0
      %1873 = vmatprep.mubr.bf16.mxu0 0
      %1874 = vmatmul.mubr.bf16.gmra.mrb[0].mxu0 %v1122
      %v1875 = vpop.f32.mrb[0].mxu0
      %v1876 = vadd.f32 0.0, %v1875
      %v1877 = vpop.f32.mrb[0].mxu0
      %v1878 = vpop.f32.mrb[0].mxu0
      %v1879 = vadd.f32 0.0, %v1878
      %v1880 = vpop.f32.mrb[0].mxu0
      %1881 = vmatprep.mubr.bf16.mxu0 0
      %1882 = vmatmul.mubr.bf16.gmra.mrb[0].mxu0 %v1125
      %v1883 = vpop.f32.mrb[0].mxu0
      %v1884 = vadd.f32 0.0, %v1883
      %v1885 = vpop.f32.mrb[0].mxu0
      %v1886 = vpop.f32.mrb[0].mxu0
      %v1887 = vadd.f32 0.0, %v1886
      %v1888 = vpop.f32.mrb[0].mxu0
      %1889 = vmatprep.mubr.bf16.mxu0 0
      %1890 = vmatmul.mubr.bf16.gmra.mrb[0].mxu0 %v1128
      %v1891 = vpop.f32.mrb[0].mxu0
      %v1892 = vadd.f32 0.0, %v1891
      %v1893 = vpop.f32.mrb[0].mxu0
      %v1894 = vpop.f32.mrb[0].mxu0
      %v1895 = vadd.f32 0.0, %v1894
      %v1896 = vpop.f32.mrb[0].mxu0
      %1897 = vmatprep.mubr.bf16.mxu0 0
      %1898 = vmatmul.mubr.bf16.gmra.mrb[0].mxu0 %v1131
      %v1899 = vpop.f32.mrb[0].mxu0
      %v1900 = vadd.f32 0.0, %v1899
      %v1901 = vpop.f32.mrb[0].mxu0
      %v1902 = vpop.f32.mrb[0].mxu0
      %v1903 = vadd.f32 0.0, %v1902
      %v1904 = vpop.f32.mrb[0].mxu0
      %1905 = vmatprep.mubr.bf16.mxu0 0
      %1906 = vmatmul.mubr.bf16.gmra.mrb[0].mxu0 %v1748
      %v1907 = vpop.f32.mrb[0].mxu0
      %v1908 = vadd.f32 0.0, %v1907
      %v1909 = vpop.f32.mrb[0].mxu0
      %v1910 = vpop.f32.mrb[0].mxu0
      %v1911 = vadd.f32 0.0, %v1910
      %v1912 = vpop.f32.mrb[0].mxu0
      %1913 = vdwg.mxu0
      %v1914 = vadd.f32 %v1707, %v1788
      %v1915 = vadd.f32 %v1708, %v1791
      %v1916 = vadd.f32 %v1709, %v1796
      %v1917 = vadd.f32 %v1710, %v1799
      %v1918 = vadd.f32 %v1711, %v1804
      %v1919 = vadd.f32 %v1712, %v1807
      %v1920 = vadd.f32 %v1713, %v1812
      %v1921 = vadd.f32 %v1714, %v1815
      %v1922 = vadd.f32 %v1715, %v1820
      %v1923 = vadd.f32 %v1716, %v1823
      %v1924 = vadd.f32 %v1717, %v1828
      %v1925 = vadd.f32 %v1718, %v1831
      %v1926 = vadd.f32 %v1719, %v1836
      %v1927 = vadd.f32 %v1720, %v1839
      %v1928 = vadd.f32 %v1721, %v1844
      %v1929 = vadd.f32 %v1722, %v1847
      %v1930 = vadd.f32 %v1723, %v1852
      %v1931 = vadd.f32 %v1724, %v1855
      %v1932 = vadd.f32 %v1725, %v1860
      %v1933 = vadd.f32 %v1726, %v1863
      %v1934 = vadd.f32 %v1727, %v1868
      %v1935 = vadd.f32 %v1728, %v1871
      %v1936 = vadd.f32 %v1729, %v1876
      %v1937 = vadd.f32 %v1730, %v1879
      %v1938 = vadd.f32 %v1731, %v1884
      %v1939 = vadd.f32 %v1732, %v1887
      %v1940 = vadd.f32 %v1733, %v1892
      %v1941 = vadd.f32 %v1734, %v1895
      %v1942 = vadd.f32 %v1735, %v1900
      %v1943 = vadd.f32 %v1736, %v1903
      %v1944 = vadd.f32 %v1737, %v1908
      %v1945 = vadd.f32 %v1738, %v1911
      %v1946 = vpack.c.bf16 %v326, %v325
      %v1948 = vsel %vm530, %v1946, 0
      %v1951 = vsel %vm579, %v334, 0
      %1953 = vmatprep.subr.bf16.mxu0 0
      %1954 = vmatpush1.bf16.msra.mxu0 %v1951
      %1955 = vmatprep.subr.bf16.mxu0 0
      %1956 = vmatpush1.bf16.msra.mxu0 0
      %1957 = vmatprep.subr.bf16.mxu0 0
      %1958 = vmatpush1.bf16.msra.mxu0 0
      %1959 = vmatprep.subr.bf16.mxu0 0
      %1960 = vmatpush1.bf16.msra.mxu0 0
      %1961 = vmatprep.subr.bf16.mxu0 0
      %1962 = vmatpush1.bf16.msra.mxu0 0
      %1963 = vmatprep.subr.bf16.mxu0 0
      %1964 = vmatpush1.bf16.msra.mxu0 0
      %1965 = vmatprep.subr.bf16.mxu0 0
      %1966 = vmatpush1.bf16.msra.mxu0 0
      %1967 = vmatprep.subr.bf16.mxu0 0
      %1968 = vmatpush1.bf16.msra.mxu0 0
      %1969 = vmatprep.subr.bf16.mxu0 0
      %1970 = vmatpush1.bf16.msra.mxu0 0
      %1971 = vmatprep.subr.bf16.mxu0 0
      %1972 = vmatpush1.bf16.msra.mxu0 0
      %1973 = vmatprep.subr.bf16.mxu0 0
      %1974 = vmatpush1.bf16.msra.mxu0 0
      %1975 = vmatprep.subr.bf16.mxu0 0
      %1976 = vmatpush1.bf16.msra.mxu0 0
      %1977 = vmatprep.subr.bf16.mxu0 0
      %1978 = vmatpush1.bf16.msra.mxu0 0
      %1979 = vmatprep.subr.bf16.mxu0 0
      %1980 = vmatpush1.bf16.msra.mxu0 0
      %1981 = vmatprep.subr.bf16.mxu0 0
      %1982 = vmatpush1.bf16.msra.mxu0 0
      %1983 = vmatprep.subr.bf16.mxu0 0
      %1984 = vmatpush1.bf16.msra.mxu0 0
      %1985 = vmatprep.mubr.bf16.mxu0 0
      %1986 = vmatmul.mubr.bf16.gmra.mrb[0].mxu0 %v751
      %v1987 = vpop.f32.mrb[0].mxu0
      %v1988 = vadd.f32 0.0, %v1987
      %v1989 = vpop.f32.mrb[0].mxu0
      %v1990 = vpop.f32.mrb[0].mxu0
      %v1991 = vadd.f32 0.0, %v1990
      %v1992 = vpop.f32.mrb[0].mxu0
      %1993 = vmatprep.mubr.bf16.mxu0 0
      %1994 = vmatmul.mubr.bf16.gmra.mrb[0].mxu0 %v754
      %v1995 = vpop.f32.mrb[0].mxu0
      %v1996 = vadd.f32 0.0, %v1995
      %v1997 = vpop.f32.mrb[0].mxu0
      %v1998 = vpop.f32.mrb[0].mxu0
      %v1999 = vadd.f32 0.0, %v1998
      %v2000 = vpop.f32.mrb[0].mxu0
      %2001 = vmatprep.mubr.bf16.mxu0 0
      %2002 = vmatmul.mubr.bf16.gmra.mrb[0].mxu0 %v757
      %v2003 = vpop.f32.mrb[0].mxu0
      %v2004 = vadd.f32 0.0, %v2003
      %v2005 = vpop.f32.mrb[0].mxu0
      %v2006 = vpop.f32.mrb[0].mxu0
      %v2007 = vadd.f32 0.0, %v2006
      %v2008 = vpop.f32.mrb[0].mxu0
      %2009 = vmatprep.mubr.bf16.mxu0 0
      %2010 = vmatmul.mubr.bf16.gmra.mrb[0].mxu0 %v760
      %v2011 = vpop.f32.mrb[0].mxu0
      %v2012 = vadd.f32 0.0, %v2011
      %v2013 = vpop.f32.mrb[0].mxu0
      %v2014 = vpop.f32.mrb[0].mxu0
      %v2015 = vadd.f32 0.0, %v2014
      %v2016 = vpop.f32.mrb[0].mxu0
      %2017 = vmatprep.mubr.bf16.mxu0 0
      %2018 = vmatmul.mubr.bf16.gmra.mrb[0].mxu0 %v763
      %v2019 = vpop.f32.mrb[0].mxu0
      %v2020 = vadd.f32 0.0, %v2019
      %v2021 = vpop.f32.mrb[0].mxu0
      %v2022 = vpop.f32.mrb[0].mxu0
      %v2023 = vadd.f32 0.0, %v2022
      %v2024 = vpop.f32.mrb[0].mxu0
      %2025 = vmatprep.mubr.bf16.mxu0 0
      %2026 = vmatmul.mubr.bf16.gmra.mrb[0].mxu0 %v766
      %v2027 = vpop.f32.mrb[0].mxu0
      %v2028 = vadd.f32 0.0, %v2027
      %v2029 = vpop.f32.mrb[0].mxu0
      %v2030 = vpop.f32.mrb[0].mxu0
      %v2031 = vadd.f32 0.0, %v2030
      %v2032 = vpop.f32.mrb[0].mxu0
      %2033 = vmatprep.mubr.bf16.mxu0 0
      %2034 = vmatmul.mubr.bf16.gmra.mrb[0].mxu0 %v769
      %v2035 = vpop.f32.mrb[0].mxu0
      %v2036 = vadd.f32 0.0, %v2035
      %v2037 = vpop.f32.mrb[0].mxu0
      %v2038 = vpop.f32.mrb[0].mxu0
      %v2039 = vadd.f32 0.0, %v2038
      %v2040 = vpop.f32.mrb[0].mxu0
      %2041 = vmatprep.mubr.bf16.mxu0 0
      %2042 = vmatmul.mubr.bf16.gmra.mrb[0].mxu0 %v772
      %v2043 = vpop.f32.mrb[0].mxu0
      %v2044 = vadd.f32 0.0, %v2043
      %v2045 = vpop.f32.mrb[0].mxu0
      %v2046 = vpop.f32.mrb[0].mxu0
      %v2047 = vadd.f32 0.0, %v2046
      %v2048 = vpop.f32.mrb[0].mxu0
      %2049 = vmatprep.mubr.bf16.mxu0 0
      %2050 = vmatmul.mubr.bf16.gmra.mrb[0].mxu0 %v775
      %v2051 = vpop.f32.mrb[0].mxu0
      %v2052 = vadd.f32 0.0, %v2051
      %v2053 = vpop.f32.mrb[0].mxu0
      %v2054 = vpop.f32.mrb[0].mxu0
      %v2055 = vadd.f32 0.0, %v2054
      %v2056 = vpop.f32.mrb[0].mxu0
      %2057 = vmatprep.mubr.bf16.mxu0 0
      %2058 = vmatmul.mubr.bf16.gmra.mrb[0].mxu0 %v778
      %v2059 = vpop.f32.mrb[0].mxu0
      %v2060 = vadd.f32 0.0, %v2059
      %v2061 = vpop.f32.mrb[0].mxu0
      %v2062 = vpop.f32.mrb[0].mxu0
      %v2063 = vadd.f32 0.0, %v2062
      %v2064 = vpop.f32.mrb[0].mxu0
      %2065 = vmatprep.mubr.bf16.mxu0 0
      %2066 = vmatmul.mubr.bf16.gmra.mrb[0].mxu0 %v781
      %v2067 = vpop.f32.mrb[0].mxu0
      %v2068 = vadd.f32 0.0, %v2067
      %v2069 = vpop.f32.mrb[0].mxu0
      %v2070 = vpop.f32.mrb[0].mxu0
      %v2071 = vadd.f32 0.0, %v2070
      %v2072 = vpop.f32.mrb[0].mxu0
      %2073 = vmatprep.mubr.bf16.mxu0 0
      %2074 = vmatmul.mubr.bf16.gmra.mrb[0].mxu0 %v784
      %v2075 = vpop.f32.mrb[0].mxu0
      %v2076 = vadd.f32 0.0, %v2075
      %v2077 = vpop.f32.mrb[0].mxu0
      %v2078 = vpop.f32.mrb[0].mxu0
      %v2079 = vadd.f32 0.0, %v2078
      %v2080 = vpop.f32.mrb[0].mxu0
      %2081 = vmatprep.mubr.bf16.mxu0 0
      %2082 = vmatmul.mubr.bf16.gmra.mrb[0].mxu0 %v787
      %v2083 = vpop.f32.mrb[0].mxu0
      %v2084 = vadd.f32 0.0, %v2083
      %v2085 = vpop.f32.mrb[0].mxu0
      %v2086 = vpop.f32.mrb[0].mxu0
      %v2087 = vadd.f32 0.0, %v2086
      %v2088 = vpop.f32.mrb[0].mxu0
      %2089 = vmatprep.mubr.bf16.mxu0 0
      %2090 = vmatmul.mubr.bf16.gmra.mrb[0].mxu0 %v790
      %v2091 = vpop.f32.mrb[0].mxu0
      %v2092 = vadd.f32 0.0, %v2091
      %v2093 = vpop.f32.mrb[0].mxu0
      %v2094 = vpop.f32.mrb[0].mxu0
      %v2095 = vadd.f32 0.0, %v2094
      %v2096 = vpop.f32.mrb[0].mxu0
      %2097 = vmatprep.mubr.bf16.mxu0 0
      %2098 = vmatmul.mubr.bf16.gmra.mrb[0].mxu0 %v1331
      %v2099 = vpop.f32.mrb[0].mxu0
      %v2100 = vadd.f32 0.0, %v2099
      %v2101 = vpop.f32.mrb[0].mxu0
      %v2102 = vpop.f32.mrb[0].mxu0
      %v2103 = vadd.f32 0.0, %v2102
      %v2104 = vpop.f32.mrb[0].mxu0
      %2105 = vmatprep.mubr.bf16.mxu0 0
      %2106 = vmatmul.mubr.bf16.gmra.mrb[0].mxu0 %v1948
      %v2107 = vpop.f32.mrb[0].mxu0
      %v2108 = vadd.f32 0.0, %v2107
      %v2109 = vpop.f32.mrb[0].mxu0
      %v2110 = vpop.f32.mrb[0].mxu0
      %v2111 = vadd.f32 0.0, %v2110
      %v2112 = vpop.f32.mrb[0].mxu0
      %2113 = vdwg.mxu0
      %v2114 = vadd.f32 %v1914, %v1988
      %v2115 = vadd.f32 %v1915, %v1991
      %v2116 = vadd.f32 %v1916, %v1996
      %v2117 = vadd.f32 %v1917, %v1999
      %v2118 = vadd.f32 %v1918, %v2004
      %v2119 = vadd.f32 %v1919, %v2007
      %v2120 = vadd.f32 %v1920, %v2012
      %v2121 = vadd.f32 %v1921, %v2015
      %v2122 = vadd.f32 %v1922, %v2020
      %v2123 = vadd.f32 %v1923, %v2023
      %v2124 = vadd.f32 %v1924, %v2028
      %v2125 = vadd.f32 %v1925, %v2031
      %v2126 = vadd.f32 %v1926, %v2036
      %v2127 = vadd.f32 %v1927, %v2039
      %v2128 = vadd.f32 %v1928, %v2044
      %v2129 = vadd.f32 %v1929, %v2047
      %v2130 = vadd.f32 %v1930, %v2052
      %v2131 = vadd.f32 %v1931, %v2055
      %v2132 = vadd.f32 %v1932, %v2060
      %v2133 = vadd.f32 %v1933, %v2063
      %v2134 = vadd.f32 %v1934, %v2068
      %v2135 = vadd.f32 %v1935, %v2071
      %v2136 = vadd.f32 %v1936, %v2076
      %v2137 = vadd.f32 %v1937, %v2079
      %v2138 = vadd.f32 %v1938, %v2084
      %v2139 = vadd.f32 %v1939, %v2087
      %v2140 = vadd.f32 %v1940, %v2092
      %v2141 = vadd.f32 %v1941, %v2095
      %v2142 = vadd.f32 %v1942, %v2100
      %v2143 = vadd.f32 %v1943, %v2103
      %v2144 = vadd.f32 %v1944, %v2108
      %v2145 = vadd.f32 %v1945, %v2111
      %v2149 = vrot.slane %v325, 1
      %v2150 = vrot.slane %v326, 1
      %v2151 = vsel %vm401, %v2149, %v2150
      %v2152 = vrot.slane %v327, 1
      %v2153 = vsel %vm401, %v2150, %v2152
      %v2156 = vpack.c.bf16 %v2153, %v2151
      %v2158 = vsel %vm530, %v2156, 0
      %v2161 = vsel %vm579, %v335, 0
      %2163 = vmatprep.subr.bf16.mxu0 0
      %2164 = vmatpush1.bf16.msra.mxu0 %v2161
      %2165 = vmatprep.subr.bf16.mxu0 0
      %2166 = vmatpush1.bf16.msra.mxu0 0
      %2167 = vmatprep.subr.bf16.mxu0 0
      %2168 = vmatpush1.bf16.msra.mxu0 0
      %2169 = vmatprep.subr.bf16.mxu0 0
      %2170 = vmatpush1.bf16.msra.mxu0 0
      %2171 = vmatprep.subr.bf16.mxu0 0
      %2172 = vmatpush1.bf16.msra.mxu0 0
      %2173 = vmatprep.subr.bf16.mxu0 0
      %2174 = vmatpush1.bf16.msra.mxu0 0
      %2175 = vmatprep.subr.bf16.mxu0 0
      %2176 = vmatpush1.bf16.msra.mxu0 0
      %2177 = vmatprep.subr.bf16.mxu0 0
      %2178 = vmatpush1.bf16.msra.mxu0 0
      %2179 = vmatprep.subr.bf16.mxu0 0
      %2180 = vmatpush1.bf16.msra.mxu0 0
      %2181 = vmatprep.subr.bf16.mxu0 0
      %2182 = vmatpush1.bf16.msra.mxu0 0
      %2183 = vmatprep.subr.bf16.mxu0 0
      %2184 = vmatpush1.bf16.msra.mxu0 0
      %2185 = vmatprep.subr.bf16.mxu0 0
      %2186 = vmatpush1.bf16.msra.mxu0 0
      %2187 = vmatprep.subr.bf16.mxu0 0
      %2188 = vmatpush1.bf16.msra.mxu0 0
      %2189 = vmatprep.subr.bf16.mxu0 0
      %2190 = vmatpush1.bf16.msra.mxu0 0
      %2191 = vmatprep.subr.bf16.mxu0 0
      %2192 = vmatpush1.bf16.msra.mxu0 0
      %2193 = vmatprep.subr.bf16.mxu0 0
      %2194 = vmatpush1.bf16.msra.mxu0 0
      %2195 = vmatprep.mubr.bf16.mxu0 0
      %2196 = vmatmul.mubr.bf16.gmra.mrb[0].mxu0 %v538
      %v2197 = vpop.f32.mrb[0].mxu0
      %v2198 = vadd.f32 0.0, %v2197
      %v2199 = vpop.f32.mrb[0].mxu0
      %v2200 = vpop.f32.mrb[0].mxu0
      %v2201 = vadd.f32 0.0, %v2200
      %v2202 = vpop.f32.mrb[0].mxu0
      %2203 = vmatprep.mubr.bf16.mxu0 0
      %2204 = vmatmul.mubr.bf16.gmra.mrb[0].mxu0 %v541
      %v2205 = vpop.f32.mrb[0].mxu0
      %v2206 = vadd.f32 0.0, %v2205
      %v2207 = vpop.f32.mrb[0].mxu0
      %v2208 = vpop.f32.mrb[0].mxu0
      %v2209 = vadd.f32 0.0, %v2208
      %v2210 = vpop.f32.mrb[0].mxu0
      %2211 = vmatprep.mubr.bf16.mxu0 0
      %2212 = vmatmul.mubr.bf16.gmra.mrb[0].mxu0 %v544
      %v2213 = vpop.f32.mrb[0].mxu0
      %v2214 = vadd.f32 0.0, %v2213
      %v2215 = vpop.f32.mrb[0].mxu0
      %v2216 = vpop.f32.mrb[0].mxu0
      %v2217 = vadd.f32 0.0, %v2216
      %v2218 = vpop.f32.mrb[0].mxu0
      %2219 = vmatprep.mubr.bf16.mxu0 0
      %2220 = vmatmul.mubr.bf16.gmra.mrb[0].mxu0 %v547
      %v2221 = vpop.f32.mrb[0].mxu0
      %v2222 = vadd.f32 0.0, %v2221
      %v2223 = vpop.f32.mrb[0].mxu0
      %v2224 = vpop.f32.mrb[0].mxu0
      %v2225 = vadd.f32 0.0, %v2224
      %v2226 = vpop.f32.mrb[0].mxu0
      %2227 = vmatprep.mubr.bf16.mxu0 0
      %2228 = vmatmul.mubr.bf16.gmra.mrb[0].mxu0 %v550
      %v2229 = vpop.f32.mrb[0].mxu0
      %v2230 = vadd.f32 0.0, %v2229
      %v2231 = vpop.f32.mrb[0].mxu0
      %v2232 = vpop.f32.mrb[0].mxu0
      %v2233 = vadd.f32 0.0, %v2232
      %v2234 = vpop.f32.mrb[0].mxu0
      %2235 = vmatprep.mubr.bf16.mxu0 0
      %2236 = vmatmul.mubr.bf16.gmra.mrb[0].mxu0 %v553
      %v2237 = vpop.f32.mrb[0].mxu0
      %v2238 = vadd.f32 0.0, %v2237
      %v2239 = vpop.f32.mrb[0].mxu0
      %v2240 = vpop.f32.mrb[0].mxu0
      %v2241 = vadd.f32 0.0, %v2240
      %v2242 = vpop.f32.mrb[0].mxu0
      %2243 = vmatprep.mubr.bf16.mxu0 0
      %2244 = vmatmul.mubr.bf16.gmra.mrb[0].mxu0 %v556
      %v2245 = vpop.f32.mrb[0].mxu0
      %v2246 = vadd.f32 0.0, %v2245
      %v2247 = vpop.f32.mrb[0].mxu0
      %v2248 = vpop.f32.mrb[0].mxu0
      %v2249 = vadd.f32 0.0, %v2248
      %v2250 = vpop.f32.mrb[0].mxu0
      %2251 = vmatprep.mubr.bf16.mxu0 0
      %2252 = vmatmul.mubr.bf16.gmra.mrb[0].mxu0 %v559
      %v2253 = vpop.f32.mrb[0].mxu0
      %v2254 = vadd.f32 0.0, %v2253
      %v2255 = vpop.f32.mrb[0].mxu0
      %v2256 = vpop.f32.mrb[0].mxu0
      %v2257 = vadd.f32 0.0, %v2256
      %v2258 = vpop.f32.mrb[0].mxu0
      %2259 = vmatprep.mubr.bf16.mxu0 0
      %2260 = vmatmul.mubr.bf16.gmra.mrb[0].mxu0 %v562
      %v2261 = vpop.f32.mrb[0].mxu0
      %v2262 = vadd.f32 0.0, %v2261
      %v2263 = vpop.f32.mrb[0].mxu0
      %v2264 = vpop.f32.mrb[0].mxu0
      %v2265 = vadd.f32 0.0, %v2264
      %v2266 = vpop.f32.mrb[0].mxu0
      %2267 = vmatprep.mubr.bf16.mxu0 0
      %2268 = vmatmul.mubr.bf16.gmra.mrb[0].mxu0 %v565
      %v2269 = vpop.f32.mrb[0].mxu0
      %v2270 = vadd.f32 0.0, %v2269
      %v2271 = vpop.f32.mrb[0].mxu0
      %v2272 = vpop.f32.mrb[0].mxu0
      %v2273 = vadd.f32 0.0, %v2272
      %v2274 = vpop.f32.mrb[0].mxu0
      %2275 = vmatprep.mubr.bf16.mxu0 0
      %2276 = vmatmul.mubr.bf16.gmra.mrb[0].mxu0 %v568
      %v2277 = vpop.f32.mrb[0].mxu0
      %v2278 = vadd.f32 0.0, %v2277
      %v2279 = vpop.f32.mrb[0].mxu0
      %v2280 = vpop.f32.mrb[0].mxu0
      %v2281 = vadd.f32 0.0, %v2280
      %v2282 = vpop.f32.mrb[0].mxu0
      %2283 = vmatprep.mubr.bf16.mxu0 0
      %2284 = vmatmul.mubr.bf16.gmra.mrb[0].mxu0 %v571
      %v2285 = vpop.f32.mrb[0].mxu0
      %v2286 = vadd.f32 0.0, %v2285
      %v2287 = vpop.f32.mrb[0].mxu0
      %v2288 = vpop.f32.mrb[0].mxu0
      %v2289 = vadd.f32 0.0, %v2288
      %v2290 = vpop.f32.mrb[0].mxu0
      %2291 = vmatprep.mubr.bf16.mxu0 0
      %2292 = vmatmul.mubr.bf16.gmra.mrb[0].mxu0 %v574
      %v2293 = vpop.f32.mrb[0].mxu0
      %v2294 = vadd.f32 0.0, %v2293
      %v2295 = vpop.f32.mrb[0].mxu0
      %v2296 = vpop.f32.mrb[0].mxu0
      %v2297 = vadd.f32 0.0, %v2296
      %v2298 = vpop.f32.mrb[0].mxu0
      %2299 = vmatprep.mubr.bf16.mxu0 0
      %2300 = vmatmul.mubr.bf16.gmra.mrb[0].mxu0 %v577
      %v2301 = vpop.f32.mrb[0].mxu0
      %v2302 = vadd.f32 0.0, %v2301
      %v2303 = vpop.f32.mrb[0].mxu0
      %v2304 = vpop.f32.mrb[0].mxu0
      %v2305 = vadd.f32 0.0, %v2304
      %v2306 = vpop.f32.mrb[0].mxu0
      %2307 = vmatprep.mubr.bf16.mxu0 0
      %2308 = vmatmul.mubr.bf16.gmra.mrb[0].mxu0 %v1541
      %v2309 = vpop.f32.mrb[0].mxu0
      %v2310 = vadd.f32 0.0, %v2309
      %v2311 = vpop.f32.mrb[0].mxu0
      %v2312 = vpop.f32.mrb[0].mxu0
      %v2313 = vadd.f32 0.0, %v2312
      %v2314 = vpop.f32.mrb[0].mxu0
      %2315 = vmatprep.mubr.bf16.mxu0 0
      %2316 = vmatmul.mubr.bf16.gmra.mrb[0].mxu0 %v2158
      %v2317 = vpop.f32.mrb[0].mxu0
      %v2318 = vadd.f32 0.0, %v2317
      %v2319 = vpop.f32.mrb[0].mxu0
      %v2320 = vpop.f32.mrb[0].mxu0
      %v2321 = vadd.f32 0.0, %v2320
      %v2322 = vpop.f32.mrb[0].mxu0
      %2323 = vdwg.mxu0
      %v2324 = vadd.f32 %v2114, %v2198
      %v2325 = vadd.f32 %v2115, %v2201
      %v2326 = vadd.f32 %v2116, %v2206
      %v2327 = vadd.f32 %v2117, %v2209
      %v2328 = vadd.f32 %v2118, %v2214
      %v2329 = vadd.f32 %v2119, %v2217
      %v2330 = vadd.f32 %v2120, %v2222
      %v2331 = vadd.f32 %v2121, %v2225
      %v2332 = vadd.f32 %v2122, %v2230
      %v2333 = vadd.f32 %v2123, %v2233
      %v2334 = vadd.f32 %v2124, %v2238
      %v2335 = vadd.f32 %v2125, %v2241
      %v2336 = vadd.f32 %v2126, %v2246
      %v2337 = vadd.f32 %v2127, %v2249
      %v2338 = vadd.f32 %v2128, %v2254
      %v2339 = vadd.f32 %v2129, %v2257
      %v2340 = vadd.f32 %v2130, %v2262
      %v2341 = vadd.f32 %v2131, %v2265
      %v2342 = vadd.f32 %v2132, %v2270
      %v2343 = vadd.f32 %v2133, %v2273
      %v2344 = vadd.f32 %v2134, %v2278
      %v2345 = vadd.f32 %v2135, %v2281
      %v2346 = vadd.f32 %v2136, %v2286
      %v2347 = vadd.f32 %v2137, %v2289
      %v2348 = vadd.f32 %v2138, %v2294
      %v2349 = vadd.f32 %v2139, %v2297
      %v2350 = vadd.f32 %v2140, %v2302
      %v2351 = vadd.f32 %v2141, %v2305
      %v2352 = vadd.f32 %v2142, %v2310
      %v2353 = vadd.f32 %v2143, %v2313
      %v2354 = vadd.f32 %v2144, %v2318
      %v2355 = vadd.f32 %v2145, %v2321
      %v2356 = vrot.slane %v325, 2
      %v2357 = vrot.slane %v326, 2
      %v2358 = vsel %vm956, %v2356, %v2357
      %v2359 = vrot.slane %v327, 2
      %v2360 = vsel %vm956, %v2357, %v2359
      %v2363 = vpack.c.bf16 %v2360, %v2358
      %v2365 = vsel %vm530, %v2363, 0
      %v2368 = vsel %vm579, %v336, 0
      %2370 = vmatprep.subr.bf16.mxu0 0
      %2371 = vmatpush1.bf16.msra.mxu0 %v2368
      %2372 = vmatprep.subr.bf16.mxu0 0
      %2373 = vmatpush1.bf16.msra.mxu0 0
      %2374 = vmatprep.subr.bf16.mxu0 0
      %2375 = vmatpush1.bf16.msra.mxu0 0
      %2376 = vmatprep.subr.bf16.mxu0 0
      %2377 = vmatpush1.bf16.msra.mxu0 0
      %2378 = vmatprep.subr.bf16.mxu0 0
      %2379 = vmatpush1.bf16.msra.mxu0 0
      %2380 = vmatprep.subr.bf16.mxu0 0
      %2381 = vmatpush1.bf16.msra.mxu0 0
      %2382 = vmatprep.subr.bf16.mxu0 0
      %2383 = vmatpush1.bf16.msra.mxu0 0
      %2384 = vmatprep.subr.bf16.mxu0 0
      %2385 = vmatpush1.bf16.msra.mxu0 0
      %2386 = vmatprep.subr.bf16.mxu0 0
      %2387 = vmatpush1.bf16.msra.mxu0 0
      %2388 = vmatprep.subr.bf16.mxu0 0
      %2389 = vmatpush1.bf16.msra.mxu0 0
      %2390 = vmatprep.subr.bf16.mxu0 0
      %2391 = vmatpush1.bf16.msra.mxu0 0
      %2392 = vmatprep.subr.bf16.mxu0 0
      %2393 = vmatpush1.bf16.msra.mxu0 0
      %2394 = vmatprep.subr.bf16.mxu0 0
      %2395 = vmatpush1.bf16.msra.mxu0 0
      %2396 = vmatprep.subr.bf16.mxu0 0
      %2397 = vmatpush1.bf16.msra.mxu0 0
      %2398 = vmatprep.subr.bf16.mxu0 0
      %2399 = vmatpush1.bf16.msra.mxu0 0
      %2400 = vmatprep.subr.bf16.mxu0 0
      %2401 = vmatpush1.bf16.msra.mxu0 0
      %2402 = vmatprep.mubr.bf16.mxu0 0
      %2403 = vmatmul.mubr.bf16.gmra.mrb[0].mxu0 %v1092
      %v2404 = vpop.f32.mrb[0].mxu0
      %v2405 = vadd.f32 0.0, %v2404
      %v2406 = vpop.f32.mrb[0].mxu0
      %v2407 = vpop.f32.mrb[0].mxu0
      %v2408 = vadd.f32 0.0, %v2407
      %v2409 = vpop.f32.mrb[0].mxu0
      %2410 = vmatprep.mubr.bf16.mxu0 0
      %2411 = vmatmul.mubr.bf16.gmra.mrb[0].mxu0 %v1095
      %v2412 = vpop.f32.mrb[0].mxu0
      %v2413 = vadd.f32 0.0, %v2412
      %v2414 = vpop.f32.mrb[0].mxu0
      %v2415 = vpop.f32.mrb[0].mxu0
      %v2416 = vadd.f32 0.0, %v2415
      %v2417 = vpop.f32.mrb[0].mxu0
      %2418 = vmatprep.mubr.bf16.mxu0 0
      %2419 = vmatmul.mubr.bf16.gmra.mrb[0].mxu0 %v1098
      %v2420 = vpop.f32.mrb[0].mxu0
      %v2421 = vadd.f32 0.0, %v2420
      %v2422 = vpop.f32.mrb[0].mxu0
      %v2423 = vpop.f32.mrb[0].mxu0
      %v2424 = vadd.f32 0.0, %v2423
      %v2425 = vpop.f32.mrb[0].mxu0
      %2426 = vmatprep.mubr.bf16.mxu0 0
      %2427 = vmatmul.mubr.bf16.gmra.mrb[0].mxu0 %v1101
      %v2428 = vpop.f32.mrb[0].mxu0
      %v2429 = vadd.f32 0.0, %v2428
      %v2430 = vpop.f32.mrb[0].mxu0
      %v2431 = vpop.f32.mrb[0].mxu0
      %v2432 = vadd.f32 0.0, %v2431
      %v2433 = vpop.f32.mrb[0].mxu0
      %2434 = vmatprep.mubr.bf16.mxu0 0
      %2435 = vmatmul.mubr.bf16.gmra.mrb[0].mxu0 %v1104
      %v2436 = vpop.f32.mrb[0].mxu0
      %v2437 = vadd.f32 0.0, %v2436
      %v2438 = vpop.f32.mrb[0].mxu0
      %v2439 = vpop.f32.mrb[0].mxu0
      %v2440 = vadd.f32 0.0, %v2439
      %v2441 = vpop.f32.mrb[0].mxu0
      %2442 = vmatprep.mubr.bf16.mxu0 0
      %2443 = vmatmul.mubr.bf16.gmra.mrb[0].mxu0 %v1107
      %v2444 = vpop.f32.mrb[0].mxu0
      %v2445 = vadd.f32 0.0, %v2444
      %v2446 = vpop.f32.mrb[0].mxu0
      %v2447 = vpop.f32.mrb[0].mxu0
      %v2448 = vadd.f32 0.0, %v2447
      %v2449 = vpop.f32.mrb[0].mxu0
      %2450 = vmatprep.mubr.bf16.mxu0 0
      %2451 = vmatmul.mubr.bf16.gmra.mrb[0].mxu0 %v1110
      %v2452 = vpop.f32.mrb[0].mxu0
      %v2453 = vadd.f32 0.0, %v2452
      %v2454 = vpop.f32.mrb[0].mxu0
      %v2455 = vpop.f32.mrb[0].mxu0
      %v2456 = vadd.f32 0.0, %v2455
      %v2457 = vpop.f32.mrb[0].mxu0
      %2458 = vmatprep.mubr.bf16.mxu0 0
      %2459 = vmatmul.mubr.bf16.gmra.mrb[0].mxu0 %v1113
      %v2460 = vpop.f32.mrb[0].mxu0
      %v2461 = vadd.f32 0.0, %v2460
      %v2462 = vpop.f32.mrb[0].mxu0
      %v2463 = vpop.f32.mrb[0].mxu0
      %v2464 = vadd.f32 0.0, %v2463
      %v2465 = vpop.f32.mrb[0].mxu0
      %2466 = vmatprep.mubr.bf16.mxu0 0
      %2467 = vmatmul.mubr.bf16.gmra.mrb[0].mxu0 %v1116
      %v2468 = vpop.f32.mrb[0].mxu0
      %v2469 = vadd.f32 0.0, %v2468
      %v2470 = vpop.f32.mrb[0].mxu0
      %v2471 = vpop.f32.mrb[0].mxu0
      %v2472 = vadd.f32 0.0, %v2471
      %v2473 = vpop.f32.mrb[0].mxu0
      %2474 = vmatprep.mubr.bf16.mxu0 0
      %2475 = vmatmul.mubr.bf16.gmra.mrb[0].mxu0 %v1119
      %v2476 = vpop.f32.mrb[0].mxu0
      %v2477 = vadd.f32 0.0, %v2476
      %v2478 = vpop.f32.mrb[0].mxu0
      %v2479 = vpop.f32.mrb[0].mxu0
      %v2480 = vadd.f32 0.0, %v2479
      %v2481 = vpop.f32.mrb[0].mxu0
      %2482 = vmatprep.mubr.bf16.mxu0 0
      %2483 = vmatmul.mubr.bf16.gmra.mrb[0].mxu0 %v1122
      %v2484 = vpop.f32.mrb[0].mxu0
      %v2485 = vadd.f32 0.0, %v2484
      %v2486 = vpop.f32.mrb[0].mxu0
      %v2487 = vpop.f32.mrb[0].mxu0
      %v2488 = vadd.f32 0.0, %v2487
      %v2489 = vpop.f32.mrb[0].mxu0
      %2490 = vmatprep.mubr.bf16.mxu0 0
      %2491 = vmatmul.mubr.bf16.gmra.mrb[0].mxu0 %v1125
      %v2492 = vpop.f32.mrb[0].mxu0
      %v2493 = vadd.f32 0.0, %v2492
      %v2494 = vpop.f32.mrb[0].mxu0
      %v2495 = vpop.f32.mrb[0].mxu0
      %v2496 = vadd.f32 0.0, %v2495
      %v2497 = vpop.f32.mrb[0].mxu0
      %2498 = vmatprep.mubr.bf16.mxu0 0
      %2499 = vmatmul.mubr.bf16.gmra.mrb[0].mxu0 %v1128
      %v2500 = vpop.f32.mrb[0].mxu0
      %v2501 = vadd.f32 0.0, %v2500
      %v2502 = vpop.f32.mrb[0].mxu0
      %v2503 = vpop.f32.mrb[0].mxu0
      %v2504 = vadd.f32 0.0, %v2503
      %v2505 = vpop.f32.mrb[0].mxu0
      %2506 = vmatprep.mubr.bf16.mxu0 0
      %2507 = vmatmul.mubr.bf16.gmra.mrb[0].mxu0 %v1131
      %v2508 = vpop.f32.mrb[0].mxu0
      %v2509 = vadd.f32 0.0, %v2508
      %v2510 = vpop.f32.mrb[0].mxu0
      %v2511 = vpop.f32.mrb[0].mxu0
      %v2512 = vadd.f32 0.0, %v2511
      %v2513 = vpop.f32.mrb[0].mxu0
      %2514 = vmatprep.mubr.bf16.mxu0 0
      %2515 = vmatmul.mubr.bf16.gmra.mrb[0].mxu0 %v1748
      %v2516 = vpop.f32.mrb[0].mxu0
      %v2517 = vadd.f32 0.0, %v2516
      %v2518 = vpop.f32.mrb[0].mxu0
      %v2519 = vpop.f32.mrb[0].mxu0
      %v2520 = vadd.f32 0.0, %v2519
      %v2521 = vpop.f32.mrb[0].mxu0
      %2522 = vmatprep.mubr.bf16.mxu0 0
      %2523 = vmatmul.mubr.bf16.gmra.mrb[0].mxu0 %v2365
      %v2524 = vpop.f32.mrb[0].mxu0
      %v2525 = vadd.f32 0.0, %v2524
      %v2526 = vpop.f32.mrb[0].mxu0
      %v2527 = vpop.f32.mrb[0].mxu0
      %v2528 = vadd.f32 0.0, %v2527
      %v2529 = vpop.f32.mrb[0].mxu0
      %2530 = vdwg.mxu0
      %v2531 = vadd.f32 %v2324, %v2405
      %v2532 = vadd.f32 %v2325, %v2408
      %v2533 = vadd.f32 %v2326, %v2413
      %v2534 = vadd.f32 %v2327, %v2416
      %v2535 = vadd.f32 %v2328, %v2421
      %v2536 = vadd.f32 %v2329, %v2424
      %v2537 = vadd.f32 %v2330, %v2429
      %v2538 = vadd.f32 %v2331, %v2432
      %v2539 = vadd.f32 %v2332, %v2437
      %v2540 = vadd.f32 %v2333, %v2440
      %v2541 = vadd.f32 %v2334, %v2445
      %v2542 = vadd.f32 %v2335, %v2448
      %v2543 = vadd.f32 %v2336, %v2453
      %v2544 = vadd.f32 %v2337, %v2456
      %v2545 = vadd.f32 %v2338, %v2461
      %v2546 = vadd.f32 %v2339, %v2464
      %v2547 = vadd.f32 %v2340, %v2469
      %v2548 = vadd.f32 %v2341, %v2472
      %v2549 = vadd.f32 %v2342, %v2477
      %v2550 = vadd.f32 %v2343, %v2480
      %v2551 = vadd.f32 %v2344, %v2485
      %v2552 = vadd.f32 %v2345, %v2488
      %v2553 = vadd.f32 %v2346, %v2493
      %v2554 = vadd.f32 %v2347, %v2496
      %v2555 = vadd.f32 %v2348, %v2501
      %v2556 = vadd.f32 %v2349, %v2504
      %v2557 = vadd.f32 %v2350, %v2509
      %v2558 = vadd.f32 %v2351, %v2512
      %v2559 = vadd.f32 %v2352, %v2517
      %v2560 = vadd.f32 %v2353, %v2520
      %v2561 = vadd.f32 %v2354, %v2525
      %v2562 = vadd.f32 %v2355, %v2528
      %v2563 = vld [vmem:[%s3] sm:$0x1]
      %v2565 = vlaneseq
      %v2566 = vshrl.u32 %v2565, 7
      %v2567 = vsub.s32 0, %v2566
      %v2568 = vrot.slane %v2563, %v2567
      %v2570 = vadd.f32 %v2531, %v2568
      %v2571 = vadd.f32 %v2532, %v2568
      %v2572 = vadd.f32 %v2533, %v2568
      %v2573 = vadd.f32 %v2534, %v2568
      %v2574 = vadd.f32 %v2535, %v2568
      %v2575 = vadd.f32 %v2536, %v2568
      %v2576 = vadd.f32 %v2537, %v2568
      %v2577 = vadd.f32 %v2538, %v2568
      %v2578 = vadd.f32 %v2539, %v2568
      %v2579 = vadd.f32 %v2540, %v2568
      %v2580 = vadd.f32 %v2541, %v2568
      %v2581 = vadd.f32 %v2542, %v2568
      %v2582 = vadd.f32 %v2543, %v2568
      %v2583 = vadd.f32 %v2544, %v2568
      %v2584 = vadd.f32 %v2545, %v2568
      %v2585 = vadd.f32 %v2546, %v2568
      %v2586 = vadd.f32 %v2547, %v2568
      %v2587 = vadd.f32 %v2548, %v2568
      %v2588 = vadd.f32 %v2549, %v2568
      %v2589 = vadd.f32 %v2550, %v2568
      %v2590 = vadd.f32 %v2551, %v2568
      %v2591 = vadd.f32 %v2552, %v2568
      %v2592 = vadd.f32 %v2553, %v2568
      %v2593 = vadd.f32 %v2554, %v2568
      %v2594 = vadd.f32 %v2555, %v2568
      %v2595 = vadd.f32 %v2556, %v2568
      %v2596 = vadd.f32 %v2557, %v2568
      %v2597 = vadd.f32 %v2558, %v2568
      %v2598 = vadd.f32 %v2559, %v2568
      %v2599 = vadd.f32 %v2560, %v2568
      %v2600 = vadd.f32 %v2561, %v2568
      %v2601 = vadd.f32 %v2562, %v2568
      %2602 = vst [vmem:[%s211] sm:$0xff] %v2570
      %2603 = vst [vmem:[%s211 + $0x8] sm:$0xff] %v2571
      %2604 = vst [vmem:[%s211 + $0x10] sm:$0xff] %v2572
      %2605 = vst [vmem:[%s211 + $0x18] sm:$0xff] %v2573
      %2606 = vst [vmem:[%s211 + $0x20] sm:$0xff] %v2574
      %2607 = vst [vmem:[%s211 + $0x28] sm:$0xff] %v2575
      %2608 = vst [vmem:[%s211 + $0x30] sm:$0xff] %v2576
      %2609 = vst [vmem:[%s211 + $0x38] sm:$0xff] %v2577
      %2610 = vst [vmem:[%s211 + $0x40] sm:$0xff] %v2578
      %2611 = vst [vmem:[%s211 + $0x48] sm:$0xff] %v2579
      %2612 = vst [vmem:[%s211 + $0x50] sm:$0xff] %v2580
      %2613 = vst [vmem:[%s211 + $0x58] sm:$0xff] %v2581
      %2614 = vst [vmem:[%s211 + $0x60] sm:$0xff] %v2582
      %2615 = vst [vmem:[%s211 + $0x68] sm:$0xff] %v2583
      %2616 = vst [vmem:[%s211 + $0x70] sm:$0xff] %v2584
      %2617 = vst [vmem:[%s211 + $0x78] sm:$0xff] %v2585
      %2618 = vst [vmem:[%s211 + $0x80] sm:$0xff] %v2586
      %2619 = vst [vmem:[%s211 + $0x88] sm:$0xff] %v2587
      %2620 = vst [vmem:[%s211 + $0x90] sm:$0xff] %v2588
      %2621 = vst [vmem:[%s211 + $0x98] sm:$0xff] %v2589
      %2622 = vst [vmem:[%s211 + $0xa0] sm:$0xff] %v2590
      %2623 = vst [vmem:[%s211 + $0xa8] sm:$0xff] %v2591
      %2624 = vst [vmem:[%s211 + $0xb0] sm:$0xff] %v2592
      %2625 = vst [vmem:[%s211 + $0xb8] sm:$0xff] %v2593
      %2626 = vst [vmem:[%s211 + $0xc0] sm:$0xff] %v2594
      %2627 = vst [vmem:[%s211 + $0xc8] sm:$0xff] %v2595
      %2628 = vst [vmem:[%s211 + $0xd0] sm:$0xff] %v2596
      %2629 = vst [vmem:[%s211 + $0xd8] sm:$0xff] %v2597
      %2630 = vst [vmem:[%s211 + $0xe0] sm:$0xff] %v2598
      %2631 = vst [vmem:[%s211 + $0xe8] sm:$0xff] %v2599
      %2632 = vst [vmem:[%s211 + $0xf0] sm:$0xff] %v2600
      %2633 = vst [vmem:[%s211 + $0xf8] sm:$0xff] %v2601
      %p2634 = scmp.lt.s32.totalorder %s15, 1
      %s2635 = scalar_select %p2634, %s15, 1
      %s2636 = smul.addr %s2635, 32
      %s2637 = smul.addr %s2636, 8
      %s2638 = scalar_lea.vmem %s4, %s2637
      // Predicated region
      $region37: #{t_layer_forward.7} parent=35 // pred_check
        %p2639 = pneg %p127
      $region38: #{t_layer_forward.7} parent=35 // pred_check_branch
        %2641 = sbr.rel (%p2639) target = $region40
      $region39: #{t_layer_forward.7} parent=35 // pred_region
        _
      $region40: #{t_layer_forward.7} parent=35 // pred_fallthru
        _
    $region36: #{t_layer_forward.7} parent=5 // pred_fallthru
      _
    %p2642 = scmp.le.s32.totalorder 2, %s10
    // Predicated region
    $region41: #{t_layer_forward.7} parent=5 // pred_check
      %p2643 = pneg %p2642
    $region42: #{t_layer_forward.7} parent=5 // pred_check_branch
      %2645 = sbr.rel (%p2643) target = $region44
    $region43: #{t_layer_forward.7} parent=5 // pred_region
      %s2646 = ssub.s32 %s10, 2
      // Predicated region
      $region45: #{t_layer_forward.7} parent=43 // pred_check
        %p2647 = pneg %p133
      $region46: #{t_layer_forward.7} parent=43 // pred_check_branch
        %2649 = sbr.rel (%p2647) target = $region48
      $region47: #{t_layer_forward.7} parent=43 // pred_region
        %p2650 = scmp.lt.s32.totalorder %s16, 1
        %s2651 = scalar_select %p2650, %s16, 1
        %s2652 = smul.addr %s2651, 32
        %s2653 = smul.addr %s2652, 8
        %s2654 = scalar_lea.vmem %s4, %s2653
      $region48: #{t_layer_forward.7} parent=43 // pred_fallthru
        _
    $region44: #{t_layer_forward.7} parent=5 // pred_fallthru
      _
  $region6: #{t_layer_forward.7} parent=0 // loop_footer
    %s14 = sadd.s32 1, %s10
  $region7: #{t_layer_forward.7} parent=0 // loop_footer_branch
    %9 = sbr.rel target = $region3
  $region8: #{t_layer_forward.7} parent=0 // loop_exit
    _

</llo_original>
